<compile_context>
chip_gen: v7x
topology: tpu7x:2x2x1
jax: 0.10.0
libtpu: 0.0.40
codegen_flags: <defaults>
</compile_context>

<pallas_src>
import functools

import jax
import jax.numpy as jnp
from jax.experimental import pallas as pl
from jax.experimental.pallas import tpu as pltpu

# ----- hyperparameters (opt) -----
NUM_STEPS = 8
BATCH = 4
NUM_INPUTS = 16
NUM_HIDDEN1 = 32
NUM_OUTPUTS = 10

ALPHA = 0.9        # RSynaptic alpha (learnable, init 0.9)
BETA1 = 0.9        # RSynaptic beta
THR1 = 1.0         # RSynaptic threshold (learnable, init 1.0)
BETA2 = 0.9        # Leaky beta
THR2 = 1.0         # Leaky threshold

LANE = 128         # vreg lane width
SUBLANE = 8        # vreg sublane width


def _round_up(n, m):
    return (n + m - 1) // m * m


def _scaled(v, s):
    # Drop the multiply entirely when the compile-time scale is exactly 1.0.
    return v if s == 1.0 else v * s


def spiking_net_kernel(x_ref, w_ref, out_ref, *,
                       T, B, Nin, Hp, Np,
                       alpha, beta1, thr1, beta2, thr2):
    """Whole forward pass, fully VMEM-resident, single invocation.

    x_ref   : (T*B, Nin)        inputs (batch pre-padded to sublane width)
    w_ref   : (Nin + 2*Hp, Wc)  packed [W1^T ; Wr^T ; W2^T], zero/lane-padded
    out_ref : (2, T, B, Np)     [0] = spk2, [1] = mem2
    """
    prec = jax.lax.Precision.HIGHEST

    # Static, sublane/lane-aligned slices of the packed weight buffer.
    w1t = w_ref[0:Nin, 0:Hp]                   # (Nin, Hp)
    wrt = w_ref[Nin:Nin + Hp, 0:Hp]            # (Hp,  Hp)
    w2t = w_ref[Nin + Hp:Nin + 2 * Hp, 0:Np]   # (Hp,  Np)

    # fc1 hoisted out of the time loop: one MXU matmul feeds every step.
    cur1_all = jnp.dot(x_ref[...], w1t,
                       preferred_element_type=jnp.float32,
                       precision=prec)                          # (T*B, Hp)

    # ---- Layer 1 (RSynaptic) recurrence: only the recurrent dot stays serial.
    spk1 = jnp.zeros((B, Hp), jnp.float32)
    syn1 = jnp.zeros((B, Hp), jnp.float32)
    mem1 = jnp.zeros((B, Hp), jnp.float32)
    spk1_steps = []
    for t in range(T):                           # static unroll, T is tiny
        cur1 = cur1_all[t * B:(t + 1) * B, :]    # sublane-aligned static slice
        rec = jnp.dot(spk1, wrt,
                      preferred_element_type=jnp.float32, precision=prec)
        reset1 = jnp.where(mem1 > thr1, thr1, 0.0)     # == (mem1>thr1)*thr1
        syn1 = alpha * syn1 + cur1 + rec
        mem1_pre = beta1 * mem1 + syn1
        spk1 = ((mem1_pre - reset1) > thr1).astype(jnp.float32)
        # reset_delay=False, subtract: mem1_mid - (spk1 - reset1)*thr1
        #   = mem1_pre - reset1 - spk1*thr1 + reset1 = mem1_pre - spk1*thr1
        mem1 = mem1_pre - _scaled(spk1, thr1)
        spk1_steps.append(spk1)

    # ---- fc2 hoisted out of the loop: one big matmul for all steps' cur2.
    spk1_all = jnp.concatenate(spk1_steps, axis=0)               # (T*B, Hp)
    cur2_all = jnp.dot(spk1_all, w2t,
                       preferred_element_type=jnp.float32,
                       precision=prec)                           # (T*B, Np)

    # ---- Layer 2 (Leaky, reset_delay=True) recurrence: pure VPU, no matmuls.
    mem2 = jnp.zeros((B, Np), jnp.float32)
    spk2_steps, mem2_steps = [], []
    for t in range(T):
        cur2 = cur2_all[t * B:(t + 1) * B, :]
        reset2 = jnp.where(mem2 > thr2, thr2, 0.0)
        mem2 = beta2 * mem2 + cur2 - reset2
        spk2 = (mem2 > thr2).astype(jnp.float32)
        spk2_steps.append(spk2)
        mem2_steps.append(mem2)

    # Two dense block stores; HBM writeback is a single lane-dense DMA.
    out_ref[0] = jnp.stack(spk2_steps, axis=0)                   # (T, B, Np)
    out_ref[1] = jnp.stack(mem2_steps, axis=0)                   # (T, B, Np)


@jax.jit
def spiking_net_forward(x, w1, wr, w2):
    """x: (T, B, Nin) f32. w1: (H, Nin), wr: (H, H), w2: (Nout, H).
    Returns (spk2, mem2), each (T, B, Nout). Fully jitted so padding/packing/
    slicing fuse into one XLA program around the single pallas_call."""
    T, B, Nin = x.shape
    H = w1.shape[0]
    Nout = w2.shape[0]

    Bp = _round_up(B, SUBLANE)
    Hp = _round_up(H, LANE)
    Np = _round_up(Nout, LANE)
    Wc = max(Hp, Np)

    # Pad batch to sublane width; padded rows stay exactly zero through the
    # whole recurrence (zero input, thr > 0) and are sliced off below.
    x_p = jnp.zeros((T, Bp, Nin), jnp.float32).at[:, :B, :].set(x)
    x2d = x_p.reshape(T * Bp, Nin)

    # Pack all three pre-transposed, zero-padded weights into ONE buffer so the
    # kernel needs a single weight DMA. Zero padding keeps padded lanes inert.
    wbuf = jnp.zeros((Nin + 2 * Hp, Wc), jnp.float32)
    wbuf = wbuf.at[0:Nin, 0:H].set(w1.T)                          # W1^T
    wbuf = wbuf.at[Nin:Nin + H, 0:H].set(wr.T)                    # Wr^T
    wbuf = wbuf.at[Nin + Hp:Nin + Hp + H, 0:Nout].set(w2.T)       # W2^T

    kernel = functools.partial(
        spiking_net_kernel,
        T=T, B=Bp, Nin=Nin, Hp=Hp, Np=Np,
        alpha=ALPHA, beta1=BETA1, thr1=THR1, beta2=BETA2, thr2=THR2)

    vmem = pl.BlockSpec(memory_space=pltpu.MemorySpace.VMEM)

    out = pl.pallas_call(
        kernel,
        out_shape=jax.ShapeDtypeStruct((2, T, Bp, Np), jnp.float32),
        in_specs=[vmem, vmem],
        out_specs=vmem,
    )(x2d, wbuf)

    return out[0, :, :B, :Nout], out[1, :, :B, :Nout]


def spiking_net_reference(x, w1, wr, w2):
    """Pure-JAX reference of the same semantics (for correctness check)."""
    T, B, _ = x.shape
    H = w1.shape[0]
    Nout = w2.shape[0]
    prec = jax.lax.Precision.HIGHEST

    def step(carry, x_t):
        spk1, syn1, mem1, mem2 = carry
        cur1 = jnp.dot(x_t, w1.T, precision=prec)
        rec = jnp.dot(spk1, wr.T, precision=prec)
        reset1 = (mem1 > THR1).astype(jnp.float32)
        syn1_n = ALPHA * syn1 + cur1 + rec
        mem1_mid = BETA1 * mem1 + syn1_n - reset1 * THR1
        spk1_n = (mem1_mid > THR1).astype(jnp.float32)
        mem1_n = mem1_mid - (spk1_n - reset1) * THR1
        cur2 = jnp.dot(spk1_n, w2.T, precision=prec)
        reset2 = (mem2 > THR2).astype(jnp.float32)
        mem2_n = BETA2 * mem2 + cur2 - reset2 * THR2
        spk2 = (mem2_n > THR2).astype(jnp.float32)
        return (spk1_n, syn1_n, mem1_n, mem2_n), (spk2, mem2_n)

    init = (jnp.zeros((B, H), jnp.float32), jnp.zeros((B, H), jnp.float32),
            jnp.zeros((B, H), jnp.float32), jnp.zeros((B, Nout), jnp.float32))
    _, (spk2_rec, mem2_rec) = jax.lax.scan(step, init, x)
    return spk2_rec, mem2_rec


if __name__ == "__main__":
    key = jax.random.PRNGKey(0)
    kx, k1, kr, k2 = jax.random.split(key, 4)

    # Deterministic parameter init (PyTorch-Linear-like uniform, no biases).
    x = jax.random.normal(kx, (NUM_STEPS, BATCH, NUM_INPUTS), jnp.float32)
    lim1 = 1.0 / (NUM_INPUTS ** 0.5)
    w1 = jax.random.uniform(k1, (NUM_HIDDEN1, NUM_INPUTS), jnp.float32, -lim1, lim1)
    limr = 1.0 / (NUM_HIDDEN1 ** 0.5)
    wr = jax.random.uniform(kr, (NUM_HIDDEN1, NUM_HIDDEN1), jnp.float32, -limr, limr)
    lim2 = 1.0 / (NUM_HIDDEN1 ** 0.5)
    w2 = jax.random.uniform(k2, (NUM_OUTPUTS, NUM_HIDDEN1), jnp.float32, -lim2, lim2)

    spk2, mem2 = spiking_net_forward(x, w1, wr, w2)
    jax.block_until_ready((spk2, mem2))

    spk2_ref, mem2_ref = spiking_net_reference(x, w1, wr, w2)
    assert spk2.shape == (NUM_STEPS, BATCH, NUM_OUTPUTS)
    assert mem2.shape == (NUM_STEPS, BATCH, NUM_OUTPUTS)
    assert jnp.allclose(spk2, spk2_ref, atol=1e-5), "spk2 mismatch vs reference"
    assert jnp.allclose(mem2, mem2_ref, atol=1e-5), "mem2 mismatch vs reference"

    print("KERNEL_OK")
</pallas_src>

<mosaic_0001>
module attributes {stable_mosaic.version = 11 : i64} {
  func.func @spiking_net_kernel(%arg0: memref<64x16xf32, #tpu.memory_space<vmem>>, %arg1: memref<272x128xf32, #tpu.memory_space<vmem>>, %arg2: memref<2x8x8x128xf32, #tpu.memory_space<vmem>>) attributes {dimension_semantics = [], scalar_prefetch = 0 : i64, scratch_operands = 0 : i64, tpu.core_type = #tpu.core_type<tc>} {
    %c0 = arith.constant 0 : index
    %c0_0 = arith.constant 0 : index
    %0 = vector.load %arg1[%c0, %c0_0] : memref<272x128xf32, #tpu.memory_space<vmem>>, vector<16x128xf32>
    %c16 = arith.constant 16 : index
    %c0_1 = arith.constant 0 : index
    %1 = vector.load %arg1[%c16, %c0_1] : memref<272x128xf32, #tpu.memory_space<vmem>>, vector<128x128xf32>
    %c144 = arith.constant 144 : index
    %c0_2 = arith.constant 0 : index
    %2 = vector.load %arg1[%c144, %c0_2] : memref<272x128xf32, #tpu.memory_space<vmem>>, vector<128x128xf32>
    %c0_3 = arith.constant 0 : index
    %c0_4 = arith.constant 0 : index
    %3 = vector.load %arg0[%c0_3, %c0_4] : memref<64x16xf32, #tpu.memory_space<vmem>>, vector<64x16xf32>
    %cst = arith.constant dense<0.000000e+00> : vector<64x128xf32>
    %4 = tpu.matmul %3, %0, %cst {dimension_numbers = #tpu.dot_dimension_numbers<[1], [0], [0], [1], [0, 0, 1, 1], [], []>, precision = #tpu.contract_precision<fp32>} : vector<64x16xf32>, vector<16x128xf32>, vector<64x128xf32> -> vector<64x128xf32>
    %cst_5 = arith.constant 0.000000e+00 : f32
    %5 = vector.broadcast %cst_5 : f32 to vector<8x128xf32>
    %cst_6 = arith.constant 0.000000e+00 : f32
    %6 = vector.broadcast %cst_6 : f32 to vector<8x128xf32>
    %cst_7 = arith.constant 0.000000e+00 : f32
    %7 = vector.broadcast %cst_7 : f32 to vector<8x128xf32>
    %8 = vector.extract_strided_slice %4 {offsets = [0, 0], sizes = [8, 128], strides = [1, 1]} : vector<64x128xf32> to vector<8x128xf32>
    %cst_8 = arith.constant dense<0.000000e+00> : vector<8x128xf32>
    %9 = tpu.matmul %5, %1, %cst_8 {dimension_numbers = #tpu.dot_dimension_numbers<[1], [0], [0], [1], [0, 0, 1, 1], [], []>, precision = #tpu.contract_precision<fp32>} : vector<8x128xf32>, vector<128x128xf32>, vector<8x128xf32> -> vector<8x128xf32>
    %cst_9 = arith.constant 1.000000e+00 : f32
    %10 = vector.broadcast %cst_9 : f32 to vector<8x128xf32>
    %11 = arith.cmpf ogt, %7, %10 : vector<8x128xf32>
    %cst_10 = arith.constant 1.000000e+00 : f32
    %cst_11 = arith.constant 0.000000e+00 : f32
    %12 = vector.broadcast %cst_10 : f32 to vector<8x128xf32>
    %13 = vector.broadcast %cst_11 : f32 to vector<8x128xf32>
    %14 = arith.select %11, %12, %13 : vector<8x128xi1>, vector<8x128xf32>
    %cst_12 = arith.constant 0.899999976 : f32
    %15 = vector.broadcast %cst_12 : f32 to vector<8x128xf32>
    %16 = arith.mulf %15, %6 : vector<8x128xf32>
    %17 = arith.addf %16, %8 : vector<8x128xf32>
    %18 = arith.addf %17, %9 : vector<8x128xf32>
    %cst_13 = arith.constant 0.899999976 : f32
    %19 = vector.broadcast %cst_13 : f32 to vector<8x128xf32>
    %20 = arith.mulf %19, %7 : vector<8x128xf32>
    %21 = arith.addf %20, %18 : vector<8x128xf32>
    %22 = arith.subf %21, %14 : vector<8x128xf32>
    %cst_14 = arith.constant 1.000000e+00 : f32
    %23 = vector.broadcast %cst_14 : f32 to vector<8x128xf32>
    %24 = arith.cmpf ogt, %22, %23 : vector<8x128xf32>
    %25 = arith.extui %24 : vector<8x128xi1> to vector<8x128xi32>
    %26 = arith.sitofp %25 : vector<8x128xi32> to vector<8x128xf32>
    %27 = arith.subf %21, %26 : vector<8x128xf32>
    %28 = vector.extract_strided_slice %4 {offsets = [8, 0], sizes = [8, 128], strides = [1, 1]} : vector<64x128xf32> to vector<8x128xf32>
    %cst_15 = arith.constant dense<0.000000e+00> : vector<8x128xf32>
    %29 = tpu.matmul %26, %1, %cst_15 {dimension_numbers = #tpu.dot_dimension_numbers<[1], [0], [0], [1], [0, 0, 1, 1], [], []>, precision = #tpu.contract_precision<fp32>} : vector<8x128xf32>, vector<128x128xf32>, vector<8x128xf32> -> vector<8x128xf32>
    %cst_16 = arith.constant 1.000000e+00 : f32
    %30 = vector.broadcast %cst_16 : f32 to vector<8x128xf32>
    %31 = arith.cmpf ogt, %27, %30 : vector<8x128xf32>
    %cst_17 = arith.constant 1.000000e+00 : f32
    %cst_18 = arith.constant 0.000000e+00 : f32
    %32 = vector.broadcast %cst_17 : f32 to vector<8x128xf32>
    %33 = vector.broadcast %cst_18 : f32 to vector<8x128xf32>
    %34 = arith.select %31, %32, %33 : vector<8x128xi1>, vector<8x128xf32>
    %cst_19 = arith.constant 0.899999976 : f32
    %35 = vector.broadcast %cst_19 : f32 to vector<8x128xf32>
    %36 = arith.mulf %35, %18 : vector<8x128xf32>
    %37 = arith.addf %36, %28 : vector<8x128xf32>
    %38 = arith.addf %37, %29 : vector<8x128xf32>
    %cst_20 = arith.constant 0.899999976 : f32
    %39 = vector.broadcast %cst_20 : f32 to vector<8x128xf32>
    %40 = arith.mulf %39, %27 : vector<8x128xf32>
    %41 = arith.addf %40, %38 : vector<8x128xf32>
    %42 = arith.subf %41, %34 : vector<8x128xf32>
    %cst_21 = arith.constant 1.000000e+00 : f32
    %43 = vector.broadcast %cst_21 : f32 to vector<8x128xf32>
    %44 = arith.cmpf ogt, %42, %43 : vector<8x128xf32>
    %45 = arith.extui %44 : vector<8x128xi1> to vector<8x128xi32>
    %46 = arith.sitofp %45 : vector<8x128xi32> to vector<8x128xf32>
    %47 = arith.subf %41, %46 : vector<8x128xf32>
    %48 = vector.extract_strided_slice %4 {offsets = [16, 0], sizes = [8, 128], strides = [1, 1]} : vector<64x128xf32> to vector<8x128xf32>
    %cst_22 = arith.constant dense<0.000000e+00> : vector<8x128xf32>
    %49 = tpu.matmul %46, %1, %cst_22 {dimension_numbers = #tpu.dot_dimension_numbers<[1], [0], [0], [1], [0, 0, 1, 1], [], []>, precision = #tpu.contract_precision<fp32>} : vector<8x128xf32>, vector<128x128xf32>, vector<8x128xf32> -> vector<8x128xf32>
    %cst_23 = arith.constant 1.000000e+00 : f32
    %50 = vector.broadcast %cst_23 : f32 to vector<8x128xf32>
    %51 = arith.cmpf ogt, %47, %50 : vector<8x128xf32>
    %cst_24 = arith.constant 1.000000e+00 : f32
    %cst_25 = arith.constant 0.000000e+00 : f32
    %52 = vector.broadcast %cst_24 : f32 to vector<8x128xf32>
    %53 = vector.broadcast %cst_25 : f32 to vector<8x128xf32>
    %54 = arith.select %51, %52, %53 : vector<8x128xi1>, vector<8x128xf32>
    %cst_26 = arith.constant 0.899999976 : f32
    %55 = vector.broadcast %cst_26 : f32 to vector<8x128xf32>
    %56 = arith.mulf %55, %38 : vector<8x128xf32>
    %57 = arith.addf %56, %48 : vector<8x128xf32>
    %58 = arith.addf %57, %49 : vector<8x128xf32>
    %cst_27 = arith.constant 0.899999976 : f32
    %59 = vector.broadcast %cst_27 : f32 to vector<8x128xf32>
    %60 = arith.mulf %59, %47 : vector<8x128xf32>
    %61 = arith.addf %60, %58 : vector<8x128xf32>
    %62 = arith.subf %61, %54 : vector<8x128xf32>
    %cst_28 = arith.constant 1.000000e+00 : f32
    %63 = vector.broadcast %cst_28 : f32 to vector<8x128xf32>
    %64 = arith.cmpf ogt, %62, %63 : vector<8x128xf32>
    %65 = arith.extui %64 : vector<8x128xi1> to vector<8x128xi32>
    %66 = arith.sitofp %65 : vector<8x128xi32> to vector<8x128xf32>
    %67 = arith.subf %61, %66 : vector<8x128xf32>
    %68 = vector.extract_strided_slice %4 {offsets = [24, 0], sizes = [8, 128], strides = [1, 1]} : vector<64x128xf32> to vector<8x128xf32>
    %cst_29 = arith.constant dense<0.000000e+00> : vector<8x128xf32>
    %69 = tpu.matmul %66, %1, %cst_29 {dimension_numbers = #tpu.dot_dimension_numbers<[1], [0], [0], [1], [0, 0, 1, 1], [], []>, precision = #tpu.contract_precision<fp32>} : vector<8x128xf32>, vector<128x128xf32>, vector<8x128xf32> -> vector<8x128xf32>
    %cst_30 = arith.constant 1.000000e+00 : f32
    %70 = vector.broadcast %cst_30 : f32 to vector<8x128xf32>
    %71 = arith.cmpf ogt, %67, %70 : vector<8x128xf32>
    %cst_31 = arith.constant 1.000000e+00 : f32
    %cst_32 = arith.constant 0.000000e+00 : f32
    %72 = vector.broadcast %cst_31 : f32 to vector<8x128xf32>
    %73 = vector.broadcast %cst_32 : f32 to vector<8x128xf32>
    %74 = arith.select %71, %72, %73 : vector<8x128xi1>, vector<8x128xf32>
    %cst_33 = arith.constant 0.899999976 : f32
    %75 = vector.broadcast %cst_33 : f32 to vector<8x128xf32>
    %76 = arith.mulf %75, %58 : vector<8x128xf32>
    %77 = arith.addf %76, %68 : vector<8x128xf32>
    %78 = arith.addf %77, %69 : vector<8x128xf32>
    %cst_34 = arith.constant 0.899999976 : f32
    %79 = vector.broadcast %cst_34 : f32 to vector<8x128xf32>
    %80 = arith.mulf %79, %67 : vector<8x128xf32>
    %81 = arith.addf %80, %78 : vector<8x128xf32>
    %82 = arith.subf %81, %74 : vector<8x128xf32>
    %cst_35 = arith.constant 1.000000e+00 : f32
    %83 = vector.broadcast %cst_35 : f32 to vector<8x128xf32>
    %84 = arith.cmpf ogt, %82, %83 : vector<8x128xf32>
    %85 = arith.extui %84 : vector<8x128xi1> to vector<8x128xi32>
    %86 = arith.sitofp %85 : vector<8x128xi32> to vector<8x128xf32>
    %87 = arith.subf %81, %86 : vector<8x128xf32>
    %88 = vector.extract_strided_slice %4 {offsets = [32, 0], sizes = [8, 128], strides = [1, 1]} : vector<64x128xf32> to vector<8x128xf32>
    %cst_36 = arith.constant dense<0.000000e+00> : vector<8x128xf32>
    %89 = tpu.matmul %86, %1, %cst_36 {dimension_numbers = #tpu.dot_dimension_numbers<[1], [0], [0], [1], [0, 0, 1, 1], [], []>, precision = #tpu.contract_precision<fp32>} : vector<8x128xf32>, vector<128x128xf32>, vector<8x128xf32> -> vector<8x128xf32>
    %cst_37 = arith.constant 1.000000e+00 : f32
    %90 = vector.broadcast %cst_37 : f32 to vector<8x128xf32>
    %91 = arith.cmpf ogt, %87, %90 : vector<8x128xf32>
    %cst_38 = arith.constant 1.000000e+00 : f32
    %cst_39 = arith.constant 0.000000e+00 : f32
    %92 = vector.broadcast %cst_38 : f32 to vector<8x128xf32>
    %93 = vector.broadcast %cst_39 : f32 to vector<8x128xf32>
    %94 = arith.select %91, %92, %93 : vector<8x128xi1>, vector<8x128xf32>
    %cst_40 = arith.constant 0.899999976 : f32
    %95 = vector.broadcast %cst_40 : f32 to vector<8x128xf32>
    %96 = arith.mulf %95, %78 : vector<8x128xf32>
    %97 = arith.addf %96, %88 : vector<8x128xf32>
    %98 = arith.addf %97, %89 : vector<8x128xf32>
    %cst_41 = arith.constant 0.899999976 : f32
    %99 = vector.broadcast %cst_41 : f32 to vector<8x128xf32>
    %100 = arith.mulf %99, %87 : vector<8x128xf32>
    %101 = arith.addf %100, %98 : vector<8x128xf32>
    %102 = arith.subf %101, %94 : vector<8x128xf32>
    %cst_42 = arith.constant 1.000000e+00 : f32
    %103 = vector.broadcast %cst_42 : f32 to vector<8x128xf32>
    %104 = arith.cmpf ogt, %102, %103 : vector<8x128xf32>
    %105 = arith.extui %104 : vector<8x128xi1> to vector<8x128xi32>
    %106 = arith.sitofp %105 : vector<8x128xi32> to vector<8x128xf32>
    %107 = arith.subf %101, %106 : vector<8x128xf32>
    %108 = vector.extract_strided_slice %4 {offsets = [40, 0], sizes = [8, 128], strides = [1, 1]} : vector<64x128xf32> to vector<8x128xf32>
    %cst_43 = arith.constant dense<0.000000e+00> : vector<8x128xf32>
    %109 = tpu.matmul %106, %1, %cst_43 {dimension_numbers = #tpu.dot_dimension_numbers<[1], [0], [0], [1], [0, 0, 1, 1], [], []>, precision = #tpu.contract_precision<fp32>} : vector<8x128xf32>, vector<128x128xf32>, vector<8x128xf32> -> vector<8x128xf32>
    %cst_44 = arith.constant 1.000000e+00 : f32
    %110 = vector.broadcast %cst_44 : f32 to vector<8x128xf32>
    %111 = arith.cmpf ogt, %107, %110 : vector<8x128xf32>
    %cst_45 = arith.constant 1.000000e+00 : f32
    %cst_46 = arith.constant 0.000000e+00 : f32
    %112 = vector.broadcast %cst_45 : f32 to vector<8x128xf32>
    %113 = vector.broadcast %cst_46 : f32 to vector<8x128xf32>
    %114 = arith.select %111, %112, %113 : vector<8x128xi1>, vector<8x128xf32>
    %cst_47 = arith.constant 0.899999976 : f32
    %115 = vector.broadcast %cst_47 : f32 to vector<8x128xf32>
    %116 = arith.mulf %115, %98 : vector<8x128xf32>
    %117 = arith.addf %116, %108 : vector<8x128xf32>
    %118 = arith.addf %117, %109 : vector<8x128xf32>
    %cst_48 = arith.constant 0.899999976 : f32
    %119 = vector.broadcast %cst_48 : f32 to vector<8x128xf32>
    %120 = arith.mulf %119, %107 : vector<8x128xf32>
    %121 = arith.addf %120, %118 : vector<8x128xf32>
    %122 = arith.subf %121, %114 : vector<8x128xf32>
    %cst_49 = arith.constant 1.000000e+00 : f32
    %123 = vector.broadcast %cst_49 : f32 to vector<8x128xf32>
    %124 = arith.cmpf ogt, %122, %123 : vector<8x128xf32>
    %125 = arith.extui %124 : vector<8x128xi1> to vector<8x128xi32>
    %126 = arith.sitofp %125 : vector<8x128xi32> to vector<8x128xf32>
    %127 = arith.subf %121, %126 : vector<8x128xf32>
    %128 = vector.extract_strided_slice %4 {offsets = [48, 0], sizes = [8, 128], strides = [1, 1]} : vector<64x128xf32> to vector<8x128xf32>
    %cst_50 = arith.constant dense<0.000000e+00> : vector<8x128xf32>
    %129 = tpu.matmul %126, %1, %cst_50 {dimension_numbers = #tpu.dot_dimension_numbers<[1], [0], [0], [1], [0, 0, 1, 1], [], []>, precision = #tpu.contract_precision<fp32>} : vector<8x128xf32>, vector<128x128xf32>, vector<8x128xf32> -> vector<8x128xf32>
    %cst_51 = arith.constant 1.000000e+00 : f32
    %130 = vector.broadcast %cst_51 : f32 to vector<8x128xf32>
    %131 = arith.cmpf ogt, %127, %130 : vector<8x128xf32>
    %cst_52 = arith.constant 1.000000e+00 : f32
    %cst_53 = arith.constant 0.000000e+00 : f32
    %132 = vector.broadcast %cst_52 : f32 to vector<8x128xf32>
    %133 = vector.broadcast %cst_53 : f32 to vector<8x128xf32>
    %134 = arith.select %131, %132, %133 : vector<8x128xi1>, vector<8x128xf32>
    %cst_54 = arith.constant 0.899999976 : f32
    %135 = vector.broadcast %cst_54 : f32 to vector<8x128xf32>
    %136 = arith.mulf %135, %118 : vector<8x128xf32>
    %137 = arith.addf %136, %128 : vector<8x128xf32>
    %138 = arith.addf %137, %129 : vector<8x128xf32>
    %cst_55 = arith.constant 0.899999976 : f32
    %139 = vector.broadcast %cst_55 : f32 to vector<8x128xf32>
    %140 = arith.mulf %139, %127 : vector<8x128xf32>
    %141 = arith.addf %140, %138 : vector<8x128xf32>
    %142 = arith.subf %141, %134 : vector<8x128xf32>
    %cst_56 = arith.constant 1.000000e+00 : f32
    %143 = vector.broadcast %cst_56 : f32 to vector<8x128xf32>
    %144 = arith.cmpf ogt, %142, %143 : vector<8x128xf32>
    %145 = arith.extui %144 : vector<8x128xi1> to vector<8x128xi32>
    %146 = arith.sitofp %145 : vector<8x128xi32> to vector<8x128xf32>
    %147 = arith.subf %141, %146 : vector<8x128xf32>
    %148 = vector.extract_strided_slice %4 {offsets = [56, 0], sizes = [8, 128], strides = [1, 1]} : vector<64x128xf32> to vector<8x128xf32>
    %cst_57 = arith.constant dense<0.000000e+00> : vector<8x128xf32>
    %149 = tpu.matmul %146, %1, %cst_57 {dimension_numbers = #tpu.dot_dimension_numbers<[1], [0], [0], [1], [0, 0, 1, 1], [], []>, precision = #tpu.contract_precision<fp32>} : vector<8x128xf32>, vector<128x128xf32>, vector<8x128xf32> -> vector<8x128xf32>
    %cst_58 = arith.constant 1.000000e+00 : f32
    %150 = vector.broadcast %cst_58 : f32 to vector<8x128xf32>
    %151 = arith.cmpf ogt, %147, %150 : vector<8x128xf32>
    %cst_59 = arith.constant 1.000000e+00 : f32
    %cst_60 = arith.constant 0.000000e+00 : f32
    %152 = vector.broadcast %cst_59 : f32 to vector<8x128xf32>
    %153 = vector.broadcast %cst_60 : f32 to vector<8x128xf32>
    %154 = arith.select %151, %152, %153 : vector<8x128xi1>, vector<8x128xf32>
    %cst_61 = arith.constant 0.899999976 : f32
    %155 = vector.broadcast %cst_61 : f32 to vector<8x128xf32>
    %156 = arith.mulf %155, %138 : vector<8x128xf32>
    %157 = arith.addf %156, %148 : vector<8x128xf32>
    %158 = arith.addf %157, %149 : vector<8x128xf32>
    %cst_62 = arith.constant 0.899999976 : f32
    %159 = vector.broadcast %cst_62 : f32 to vector<8x128xf32>
    %160 = arith.mulf %159, %147 : vector<8x128xf32>
    %161 = arith.addf %160, %158 : vector<8x128xf32>
    %162 = arith.subf %161, %154 : vector<8x128xf32>
    %cst_63 = arith.constant 1.000000e+00 : f32
    %163 = vector.broadcast %cst_63 : f32 to vector<8x128xf32>
    %164 = arith.cmpf ogt, %162, %163 : vector<8x128xf32>
    %165 = arith.extui %164 : vector<8x128xi1> to vector<8x128xi32>
    %166 = arith.sitofp %165 : vector<8x128xi32> to vector<8x128xf32>
    %167 = tpu.concatenate %26, %46, %66, %86, %106, %126, %146, %166 in 0 : vector<8x128xf32>, vector<8x128xf32>, vector<8x128xf32>, vector<8x128xf32>, vector<8x128xf32>, vector<8x128xf32>, vector<8x128xf32>, vector<8x128xf32> -> vector<64x128xf32>
    %cst_64 = arith.constant dense<0.000000e+00> : vector<64x128xf32>
    %168 = tpu.matmul %167, %2, %cst_64 {dimension_numbers = #tpu.dot_dimension_numbers<[1], [0], [0], [1], [0, 0, 1, 1], [], []>, precision = #tpu.contract_precision<fp32>} : vector<64x128xf32>, vector<128x128xf32>, vector<64x128xf32> -> vector<64x128xf32>
    %cst_65 = arith.constant 0.000000e+00 : f32
    %169 = vector.broadcast %cst_65 : f32 to vector<8x128xf32>
    %170 = vector.extract_strided_slice %168 {offsets = [0, 0], sizes = [8, 128], strides = [1, 1]} : vector<64x128xf32> to vector<8x128xf32>
    %cst_66 = arith.constant 1.000000e+00 : f32
    %171 = vector.broadcast %cst_66 : f32 to vector<8x128xf32>
    %172 = arith.cmpf ogt, %169, %171 : vector<8x128xf32>
    %cst_67 = arith.constant 1.000000e+00 : f32
    %cst_68 = arith.constant 0.000000e+00 : f32
    %173 = vector.broadcast %cst_67 : f32 to vector<8x128xf32>
    %174 = vector.broadcast %cst_68 : f32 to vector<8x128xf32>
    %175 = arith.select %172, %173, %174 : vector<8x128xi1>, vector<8x128xf32>
    %cst_69 = arith.constant 0.899999976 : f32
    %176 = vector.broadcast %cst_69 : f32 to vector<8x128xf32>
    %177 = arith.mulf %176, %169 : vector<8x128xf32>
    %178 = arith.addf %177, %170 : vector<8x128xf32>
    %179 = arith.subf %178, %175 : vector<8x128xf32>
    %cst_70 = arith.constant 1.000000e+00 : f32
    %180 = vector.broadcast %cst_70 : f32 to vector<8x128xf32>
    %181 = arith.cmpf ogt, %179, %180 : vector<8x128xf32>
    %182 = arith.extui %181 : vector<8x128xi1> to vector<8x128xi32>
    %183 = arith.sitofp %182 : vector<8x128xi32> to vector<8x128xf32>
    %184 = vector.extract_strided_slice %168 {offsets = [8, 0], sizes = [8, 128], strides = [1, 1]} : vector<64x128xf32> to vector<8x128xf32>
    %cst_71 = arith.constant 1.000000e+00 : f32
    %185 = vector.broadcast %cst_71 : f32 to vector<8x128xf32>
    %186 = arith.cmpf ogt, %179, %185 : vector<8x128xf32>
    %cst_72 = arith.constant 1.000000e+00 : f32
    %cst_73 = arith.constant 0.000000e+00 : f32
    %187 = vector.broadcast %cst_72 : f32 to vector<8x128xf32>
    %188 = vector.broadcast %cst_73 : f32 to vector<8x128xf32>
    %189 = arith.select %186, %187, %188 : vector<8x128xi1>, vector<8x128xf32>
    %cst_74 = arith.constant 0.899999976 : f32
    %190 = vector.broadcast %cst_74 : f32 to vector<8x128xf32>
    %191 = arith.mulf %190, %179 : vector<8x128xf32>
    %192 = arith.addf %191, %184 : vector<8x128xf32>
    %193 = arith.subf %192, %189 : vector<8x128xf32>
    %cst_75 = arith.constant 1.000000e+00 : f32
    %194 = vector.broadcast %cst_75 : f32 to vector<8x128xf32>
    %195 = arith.cmpf ogt, %193, %194 : vector<8x128xf32>
    %196 = arith.extui %195 : vector<8x128xi1> to vector<8x128xi32>
    %197 = arith.sitofp %196 : vector<8x128xi32> to vector<8x128xf32>
    %198 = vector.extract_strided_slice %168 {offsets = [16, 0], sizes = [8, 128], strides = [1, 1]} : vector<64x128xf32> to vector<8x128xf32>
    %cst_76 = arith.constant 1.000000e+00 : f32
    %199 = vector.broadcast %cst_76 : f32 to vector<8x128xf32>
    %200 = arith.cmpf ogt, %193, %199 : vector<8x128xf32>
    %cst_77 = arith.constant 1.000000e+00 : f32
    %cst_78 = arith.constant 0.000000e+00 : f32
    %201 = vector.broadcast %cst_77 : f32 to vector<8x128xf32>
    %202 = vector.broadcast %cst_78 : f32 to vector<8x128xf32>
    %203 = arith.select %200, %201, %202 : vector<8x128xi1>, vector<8x128xf32>
    %cst_79 = arith.constant 0.899999976 : f32
    %204 = vector.broadcast %cst_79 : f32 to vector<8x128xf32>
    %205 = arith.mulf %204, %193 : vector<8x128xf32>
    %206 = arith.addf %205, %198 : vector<8x128xf32>
    %207 = arith.subf %206, %203 : vector<8x128xf32>
    %cst_80 = arith.constant 1.000000e+00 : f32
    %208 = vector.broadcast %cst_80 : f32 to vector<8x128xf32>
    %209 = arith.cmpf ogt, %207, %208 : vector<8x128xf32>
    %210 = arith.extui %209 : vector<8x128xi1> to vector<8x128xi32>
    %211 = arith.sitofp %210 : vector<8x128xi32> to vector<8x128xf32>
    %212 = vector.extract_strided_slice %168 {offsets = [24, 0], sizes = [8, 128], strides = [1, 1]} : vector<64x128xf32> to vector<8x128xf32>
    %cst_81 = arith.constant 1.000000e+00 : f32
    %213 = vector.broadcast %cst_81 : f32 to vector<8x128xf32>
    %214 = arith.cmpf ogt, %207, %213 : vector<8x128xf32>
    %cst_82 = arith.constant 1.000000e+00 : f32
    %cst_83 = arith.constant 0.000000e+00 : f32
    %215 = vector.broadcast %cst_82 : f32 to vector<8x128xf32>
    %216 = vector.broadcast %cst_83 : f32 to vector<8x128xf32>
    %217 = arith.select %214, %215, %216 : vector<8x128xi1>, vector<8x128xf32>
    %cst_84 = arith.constant 0.899999976 : f32
    %218 = vector.broadcast %cst_84 : f32 to vector<8x128xf32>
    %219 = arith.mulf %218, %207 : vector<8x128xf32>
    %220 = arith.addf %219, %212 : vector<8x128xf32>
    %221 = arith.subf %220, %217 : vector<8x128xf32>
    %cst_85 = arith.constant 1.000000e+00 : f32
    %222 = vector.broadcast %cst_85 : f32 to vector<8x128xf32>
    %223 = arith.cmpf ogt, %221, %222 : vector<8x128xf32>
    %224 = arith.extui %223 : vector<8x128xi1> to vector<8x128xi32>
    %225 = arith.sitofp %224 : vector<8x128xi32> to vector<8x128xf32>
    %226 = vector.extract_strided_slice %168 {offsets = [32, 0], sizes = [8, 128], strides = [1, 1]} : vector<64x128xf32> to vector<8x128xf32>
    %cst_86 = arith.constant 1.000000e+00 : f32
    %227 = vector.broadcast %cst_86 : f32 to vector<8x128xf32>
    %228 = arith.cmpf ogt, %221, %227 : vector<8x128xf32>
    %cst_87 = arith.constant 1.000000e+00 : f32
    %cst_88 = arith.constant 0.000000e+00 : f32
    %229 = vector.broadcast %cst_87 : f32 to vector<8x128xf32>
    %230 = vector.broadcast %cst_88 : f32 to vector<8x128xf32>
    %231 = arith.select %228, %229, %230 : vector<8x128xi1>, vector<8x128xf32>
    %cst_89 = arith.constant 0.899999976 : f32
    %232 = vector.broadcast %cst_89 : f32 to vector<8x128xf32>
    %233 = arith.mulf %232, %221 : vector<8x128xf32>
    %234 = arith.addf %233, %226 : vector<8x128xf32>
    %235 = arith.subf %234, %231 : vector<8x128xf32>
    %cst_90 = arith.constant 1.000000e+00 : f32
    %236 = vector.broadcast %cst_90 : f32 to vector<8x128xf32>
    %237 = arith.cmpf ogt, %235, %236 : vector<8x128xf32>
    %238 = arith.extui %237 : vector<8x128xi1> to vector<8x128xi32>
    %239 = arith.sitofp %238 : vector<8x128xi32> to vector<8x128xf32>
    %240 = vector.extract_strided_slice %168 {offsets = [40, 0], sizes = [8, 128], strides = [1, 1]} : vector<64x128xf32> to vector<8x128xf32>
    %cst_91 = arith.constant 1.000000e+00 : f32
    %241 = vector.broadcast %cst_91 : f32 to vector<8x128xf32>
    %242 = arith.cmpf ogt, %235, %241 : vector<8x128xf32>
    %cst_92 = arith.constant 1.000000e+00 : f32
    %cst_93 = arith.constant 0.000000e+00 : f32
    %243 = vector.broadcast %cst_92 : f32 to vector<8x128xf32>
    %244 = vector.broadcast %cst_93 : f32 to vector<8x128xf32>
    %245 = arith.select %242, %243, %244 : vector<8x128xi1>, vector<8x128xf32>
    %cst_94 = arith.constant 0.899999976 : f32
    %246 = vector.broadcast %cst_94 : f32 to vector<8x128xf32>
    %247 = arith.mulf %246, %235 : vector<8x128xf32>
    %248 = arith.addf %247, %240 : vector<8x128xf32>
    %249 = arith.subf %248, %245 : vector<8x128xf32>
    %cst_95 = arith.constant 1.000000e+00 : f32
    %250 = vector.broadcast %cst_95 : f32 to vector<8x128xf32>
    %251 = arith.cmpf ogt, %249, %250 : vector<8x128xf32>
    %252 = arith.extui %251 : vector<8x128xi1> to vector<8x128xi32>
    %253 = arith.sitofp %252 : vector<8x128xi32> to vector<8x128xf32>
    %254 = vector.extract_strided_slice %168 {offsets = [48, 0], sizes = [8, 128], strides = [1, 1]} : vector<64x128xf32> to vector<8x128xf32>
    %cst_96 = arith.constant 1.000000e+00 : f32
    %255 = vector.broadcast %cst_96 : f32 to vector<8x128xf32>
    %256 = arith.cmpf ogt, %249, %255 : vector<8x128xf32>
    %cst_97 = arith.constant 1.000000e+00 : f32
    %cst_98 = arith.constant 0.000000e+00 : f32
    %257 = vector.broadcast %cst_97 : f32 to vector<8x128xf32>
    %258 = vector.broadcast %cst_98 : f32 to vector<8x128xf32>
    %259 = arith.select %256, %257, %258 : vector<8x128xi1>, vector<8x128xf32>
    %cst_99 = arith.constant 0.899999976 : f32
    %260 = vector.broadcast %cst_99 : f32 to vector<8x128xf32>
    %261 = arith.mulf %260, %249 : vector<8x128xf32>
    %262 = arith.addf %261, %254 : vector<8x128xf32>
    %263 = arith.subf %262, %259 : vector<8x128xf32>
    %cst_100 = arith.constant 1.000000e+00 : f32
    %264 = vector.broadcast %cst_100 : f32 to vector<8x128xf32>
    %265 = arith.cmpf ogt, %263, %264 : vector<8x128xf32>
    %266 = arith.extui %265 : vector<8x128xi1> to vector<8x128xi32>
    %267 = arith.sitofp %266 : vector<8x128xi32> to vector<8x128xf32>
    %268 = vector.extract_strided_slice %168 {offsets = [56, 0], sizes = [8, 128], strides = [1, 1]} : vector<64x128xf32> to vector<8x128xf32>
    %cst_101 = arith.constant 1.000000e+00 : f32
    %269 = vector.broadcast %cst_101 : f32 to vector<8x128xf32>
    %270 = arith.cmpf ogt, %263, %269 : vector<8x128xf32>
    %cst_102 = arith.constant 1.000000e+00 : f32
    %cst_103 = arith.constant 0.000000e+00 : f32
    %271 = vector.broadcast %cst_102 : f32 to vector<8x128xf32>
    %272 = vector.broadcast %cst_103 : f32 to vector<8x128xf32>
    %273 = arith.select %270, %271, %272 : vector<8x128xi1>, vector<8x128xf32>
    %cst_104 = arith.constant 0.899999976 : f32
    %274 = vector.broadcast %cst_104 : f32 to vector<8x128xf32>
    %275 = arith.mulf %274, %263 : vector<8x128xf32>
    %276 = arith.addf %275, %268 : vector<8x128xf32>
    %277 = arith.subf %276, %273 : vector<8x128xf32>
    %cst_105 = arith.constant 1.000000e+00 : f32
    %278 = vector.broadcast %cst_105 : f32 to vector<8x128xf32>
    %279 = arith.cmpf ogt, %277, %278 : vector<8x128xf32>
    %280 = arith.extui %279 : vector<8x128xi1> to vector<8x128xi32>
    %281 = arith.sitofp %280 : vector<8x128xi32> to vector<8x128xf32>
    %282 = vector.shape_cast %183 : vector<8x128xf32> to vector<1x8x128xf32>
    %283 = vector.shape_cast %197 : vector<8x128xf32> to vector<1x8x128xf32>
    %284 = vector.shape_cast %211 : vector<8x128xf32> to vector<1x8x128xf32>
    %285 = vector.shape_cast %225 : vector<8x128xf32> to vector<1x8x128xf32>
    %286 = vector.shape_cast %239 : vector<8x128xf32> to vector<1x8x128xf32>
    %287 = vector.shape_cast %253 : vector<8x128xf32> to vector<1x8x128xf32>
    %288 = vector.shape_cast %267 : vector<8x128xf32> to vector<1x8x128xf32>
    %289 = vector.shape_cast %281 : vector<8x128xf32> to vector<1x8x128xf32>
    %290 = tpu.concatenate %282, %283, %284, %285, %286, %287, %288, %289 in 0 : vector<1x8x128xf32>, vector<1x8x128xf32>, vector<1x8x128xf32>, vector<1x8x128xf32>, vector<1x8x128xf32>, vector<1x8x128xf32>, vector<1x8x128xf32>, vector<1x8x128xf32> -> vector<8x8x128xf32>
    %c0_106 = arith.constant 0 : index
    %c0_107 = arith.constant 0 : index
    %c0_108 = arith.constant 0 : index
    %c0_109 = arith.constant 0 : index
    %291 = vector.load %arg2[%c0_106, %c0_107, %c0_108, %c0_109] : memref<2x8x8x128xf32, #tpu.memory_space<vmem>>, vector<1x8x8x128xf32>
    %292 = vector.shape_cast %291 : vector<1x8x8x128xf32> to vector<8x8x128xf32>
    %293 = vector.shape_cast %290 : vector<8x8x128xf32> to vector<1x8x8x128xf32>
    tpu.vector_store %arg2[%c0_106, %c0_107, %c0_108, %c0_109], %293 {strides = array<i32>} : memref<2x8x8x128xf32, #tpu.memory_space<vmem>>, vector<1x8x8x128xf32>,
    %294 = vector.shape_cast %179 : vector<8x128xf32> to vector<1x8x128xf32>
    %295 = vector.shape_cast %193 : vector<8x128xf32> to vector<1x8x128xf32>
    %296 = vector.shape_cast %207 : vector<8x128xf32> to vector<1x8x128xf32>
    %297 = vector.shape_cast %221 : vector<8x128xf32> to vector<1x8x128xf32>
    %298 = vector.shape_cast %235 : vector<8x128xf32> to vector<1x8x128xf32>
    %299 = vector.shape_cast %249 : vector<8x128xf32> to vector<1x8x128xf32>
    %300 = vector.shape_cast %263 : vector<8x128xf32> to vector<1x8x128xf32>
    %301 = vector.shape_cast %277 : vector<8x128xf32> to vector<1x8x128xf32>
    %302 = tpu.concatenate %294, %295, %296, %297, %298, %299, %300, %301 in 0 : vector<1x8x128xf32>, vector<1x8x128xf32>, vector<1x8x128xf32>, vector<1x8x128xf32>, vector<1x8x128xf32>, vector<1x8x128xf32>, vector<1x8x128xf32>, vector<1x8x128xf32> -> vector<8x8x128xf32>
    %c1 = arith.constant 1 : index
    %c0_110 = arith.constant 0 : index
    %c0_111 = arith.constant 0 : index
    %c0_112 = arith.constant 0 : index
    %303 = vector.load %arg2[%c1, %c0_110, %c0_111, %c0_112] : memref<2x8x8x128xf32, #tpu.memory_space<vmem>>, vector<1x8x8x128xf32>
    %304 = vector.shape_cast %303 : vector<1x8x8x128xf32> to vector<8x8x128xf32>
    %305 = vector.shape_cast %302 : vector<8x8x128xf32> to vector<1x8x8x128xf32>
    tpu.vector_store %arg2[%c1, %c0_110, %c0_111, %c0_112], %305 {strides = array<i32>} : memref<2x8x8x128xf32, #tpu.memory_space<vmem>>, vector<1x8x8x128xf32>,
    return
  }
}

</mosaic_0001>

<llo_original>
// kernel: spiking_net_forward.1
$region0: #{spiking_net_forward.1}
  #allocation0 [shape = 'u32[]', space=smem, size = 0x4, offset = 0x4, fixed_abs, tag = 'smem constant byte address 0x4 - core index']
  #allocation1 [shape = 'u32[144,128]{1,0:T(1,128)}', space=vmem, size = 0x12000, scoped, tag = 'internal scratch']
  %s0 = inlined_call_operand.vmem [shape: f32[64,16], index: 0, kind: input, shape index: {}]
  %s1 = inlined_call_operand.vmem [shape: f32[272,128], index: 1, kind: input, shape index: {}]
  %s2 = inlined_call_operand.vmem [shape: f32[2,8,8,128], index: 2, kind: output, shape index: {}]
  %s3 = sld [smem:[#allocation0]]
  $region18: #{spiking_net_forward.1} parent=0
    _
  %s5 = ssub.s32 1, %s3
  %s6 = scalar_select 0, %s5, %s3
  // Predicated region
  $region2: #{spiking_net_forward.1} parent=0 // pred_check
    _
  $region3: #{spiking_net_forward.1} parent=0 // pred_check_branch
    %8 = sbr.rel (0) target = $region5
  $region4: #{spiking_net_forward.1} parent=0 // pred_region
    _
  $region5: #{spiking_net_forward.1} parent=0 // pred_fallthru
    _
  // Predicated region
  $region6: #{spiking_net_forward.1} parent=0 // pred_check
    _
  $region7: #{spiking_net_forward.1} parent=0 // pred_check_branch
    %10 = sbr.rel (0) target = $region9
  $region8: #{spiking_net_forward.1} parent=0 // pred_region
    _
  $region9: #{spiking_net_forward.1} parent=0 // pred_fallthru
    _
  %v11 = vld [vmem:[%s1] sm:$0xff]
  %v12 = vld [vmem:[%s1 + $0x8] sm:$0xff]
  %v13 = vld [vmem:[%s1 + $0x10] sm:$0xff]
  %v14 = vld [vmem:[%s1 + $0x18] sm:$0xff]
  %v15 = vld [vmem:[%s1 + $0x20] sm:$0xff]
  %v16 = vld [vmem:[%s1 + $0x28] sm:$0xff]
  %v17 = vld [vmem:[%s1 + $0x30] sm:$0xff]
  %v18 = vld [vmem:[%s1 + $0x38] sm:$0xff]
  %v19 = vld [vmem:[%s1 + $0x40] sm:$0xff]
  %v20 = vld [vmem:[%s1 + $0x48] sm:$0xff]
  %v21 = vld [vmem:[%s1 + $0x50] sm:$0xff]
  %v22 = vld [vmem:[%s1 + $0x58] sm:$0xff]
  %v23 = vld [vmem:[%s1 + $0x60] sm:$0xff]
  %v24 = vld [vmem:[%s1 + $0x68] sm:$0xff]
  %v25 = vld [vmem:[%s1 + $0x70] sm:$0xff]
  %v26 = vld [vmem:[%s1 + $0x78] sm:$0xff]
  %v27 = vld [vmem:[%s1 + $0x80] sm:$0xff]
  %v28 = vld [vmem:[%s1 + $0x88] sm:$0xff]
  %v29 = vld [vmem:[%s1 + $0x90] sm:$0xff]
  %v30 = vld [vmem:[%s1 + $0x98] sm:$0xff]
  %v31 = vld [vmem:[%s1 + $0xa0] sm:$0xff]
  %v32 = vld [vmem:[%s1 + $0xa8] sm:$0xff]
  %v33 = vld [vmem:[%s1 + $0xb0] sm:$0xff]
  %v34 = vld [vmem:[%s1 + $0xb8] sm:$0xff]
  %v35 = vld [vmem:[%s1 + $0xc0] sm:$0xff]
  %v36 = vld [vmem:[%s1 + $0xc8] sm:$0xff]
  %v37 = vld [vmem:[%s1 + $0xd0] sm:$0xff]
  %v38 = vld [vmem:[%s1 + $0xd8] sm:$0xff]
  %v39 = vld [vmem:[%s1 + $0xe0] sm:$0xff]
  %v40 = vld [vmem:[%s1 + $0xe8] sm:$0xff]
  %v41 = vld [vmem:[%s1 + $0xf0] sm:$0xff]
  %v42 = vld [vmem:[%s1 + $0xf8] sm:$0xff]
  %v43 = vld [vmem:[%s1 + $0x100] sm:$0xff]
  %v44 = vld [vmem:[%s1 + $0x108] sm:$0xff]
  %v45 = vld [vmem:[%s0] sm:$0xff]
  %v46 = vld [vmem:[%s0 + $0x8] sm:$0xff]
  %v47 = vld [vmem:[%s0 + $0x10] sm:$0xff]
  %v48 = vld [vmem:[%s0 + $0x18] sm:$0xff]
  %v49 = vld [vmem:[%s0 + $0x20] sm:$0xff]
  %v50 = vld [vmem:[%s0 + $0x28] sm:$0xff]
  %v51 = vld [vmem:[%s0 + $0x30] sm:$0xff]
  %v52 = vld [vmem:[%s0 + $0x38] sm:$0xff]
  %vm53 = vcmask 130048
  %v55 = vsel %vm53, %v45, 0
  %v58 = vsel %vm53, %v46, 0
  %v61 = vsel %vm53, %v47, 0
  %v64 = vsel %vm53, %v48, 0
  %v67 = vsel %vm53, %v49, 0
  %v70 = vsel %vm53, %v50, 0
  %v73 = vsel %vm53, %v51, 0
  %v76 = vsel %vm53, %v52, 0
  %78 = vmatprep.subr.mxu0 0.0
  %v79 = vand.u32 %v11, 4294901760
  %80 = vmatpush1.msra.mxu0 %v79
  %81 = vmatprep.subr.mxu0 0.0
  %v82 = vand.u32 %v12, 4294901760
  %83 = vmatpush1.msra.mxu0 %v82
  %84 = vmatprep.subr.mxu0 0.0
  %85 = vmatpush1.msra.mxu0 0.0
  %86 = vmatprep.subr.mxu0 0.0
  %87 = vmatpush1.msra.mxu0 0.0
  %88 = vmatprep.subr.mxu0 0.0
  %89 = vmatpush1.msra.mxu0 0.0
  %90 = vmatprep.subr.mxu0 0.0
  %91 = vmatpush1.msra.mxu0 0.0
  %92 = vmatprep.subr.mxu0 0.0
  %93 = vmatpush1.msra.mxu0 0.0
  %94 = vmatprep.subr.mxu0 0.0
  %95 = vmatpush1.msra.mxu0 0.0
  %96 = vmatprep.subr.mxu0 0.0
  %97 = vmatpush1.msra.mxu0 0.0
  %98 = vmatprep.subr.mxu0 0.0
  %99 = vmatpush1.msra.mxu0 0.0
  %100 = vmatprep.subr.mxu0 0.0
  %101 = vmatpush1.msra.mxu0 0.0
  %102 = vmatprep.subr.mxu0 0.0
  %103 = vmatpush1.msra.mxu0 0.0
  %104 = vmatprep.subr.mxu0 0.0
  %105 = vmatpush1.msra.mxu0 0.0
  %106 = vmatprep.subr.mxu0 0.0
  %107 = vmatpush1.msra.mxu0 0.0
  %108 = vmatprep.subr.mxu0 0.0
  %109 = vmatpush1.msra.mxu0 0.0
  %110 = vmatprep.subr.mxu0 0.0
  %111 = vmatpush1.msra.mxu0 0.0
  %112 = vmatprep.subr.mxu0 0.0
  %113 = vmatpush1.msra.mxu0 0.0
  %114 = vmatprep.subr.mxu0 0.0
  %115 = vmatpush1.msra.mxu0 0.0
  %116 = vmatprep.subr.mxu0 0.0
  %117 = vmatpush1.msra.mxu0 0.0
  %118 = vmatprep.subr.mxu0 0.0
  %119 = vmatpush1.msra.mxu0 0.0
  %120 = vmatprep.subr.mxu0 0.0
  %121 = vmatpush1.msra.mxu0 0.0
  %122 = vmatprep.subr.mxu0 0.0
  %123 = vmatpush1.msra.mxu0 0.0
  %124 = vmatprep.subr.mxu0 0.0
  %125 = vmatpush1.msra.mxu0 0.0
  %126 = vmatprep.subr.mxu0 0.0
  %127 = vmatpush1.msra.mxu0 0.0
  %128 = vmatprep.subr.mxu0 0.0
  %129 = vmatpush1.msra.mxu0 0.0
  %130 = vmatprep.subr.mxu0 0.0
  %131 = vmatpush1.msra.mxu0 0.0
  %132 = vmatprep.subr.mxu0 0.0
  %133 = vmatpush1.msra.mxu0 0.0
  %134 = vmatprep.subr.mxu0 0.0
  %135 = vmatpush1.msra.mxu0 0.0
  %136 = vmatprep.subr.mxu0 0.0
  %137 = vmatpush1.msra.mxu0 0.0
  %138 = vmatprep.subr.mxu0 0.0
  %139 = vmatpush1.msra.mxu0 0.0
  %140 = vmatprep.subr.mxu0 0.0
  %141 = vmatpush1.msra.mxu0 0.0
  %142 = vmatprep.subr.mxu0 0.0
  %143 = vmatpush1.msra.mxu0 0.0
  %144 = vmatprep.mubr.f32.mxu0 0.0
  %v145 = vand.u32 %v55, 4294901760
  %v146 = vsub.f32 %v55, %v145
  %v147 = vand.u32 %v146, 4294901760
  %v148 = vsub.f32 %v146, %v147
  %v149 = vand.u32 %v148, 4294901760
  %150 = vmatmul.mubr.f32.gmra.mrb[0].mxu0 %v149
  %v151 = vpop.f32.mrb[0].mxu0
  %v152 = vadd.f32 0.0, %v151
  %v153 = vpop.f32.mrb[0].mxu0
  %154 = vmatprep.mubr.f32.mxu0 0.0
  %v155 = vand.u32 %v58, 4294901760
  %v156 = vsub.f32 %v58, %v155
  %v157 = vand.u32 %v156, 4294901760
  %v158 = vsub.f32 %v156, %v157
  %v159 = vand.u32 %v158, 4294901760
  %160 = vmatmul.mubr.f32.gmra.mrb[0].mxu0 %v159
  %v161 = vpop.f32.mrb[0].mxu0
  %v162 = vadd.f32 0.0, %v161
  %v163 = vpop.f32.mrb[0].mxu0
  %164 = vmatprep.mubr.f32.mxu0 0.0
  %v165 = vand.u32 %v61, 4294901760
  %v166 = vsub.f32 %v61, %v165
  %v167 = vand.u32 %v166, 4294901760
  %v168 = vsub.f32 %v166, %v167
  %v169 = vand.u32 %v168, 4294901760
  %170 = vmatmul.mubr.f32.gmra.mrb[0].mxu0 %v169
  %v171 = vpop.f32.mrb[0].mxu0
  %v172 = vadd.f32 0.0, %v171
  %v173 = vpop.f32.mrb[0].mxu0
  %174 = vmatprep.mubr.f32.mxu0 0.0
  %v175 = vand.u32 %v64, 4294901760
  %v176 = vsub.f32 %v64, %v175
  %v177 = vand.u32 %v176, 4294901760
  %v178 = vsub.f32 %v176, %v177
  %v179 = vand.u32 %v178, 4294901760
  %180 = vmatmul.mubr.f32.gmra.mrb[0].mxu0 %v179
  %v181 = vpop.f32.mrb[0].mxu0
  %v182 = vadd.f32 0.0, %v181
  %v183 = vpop.f32.mrb[0].mxu0
  %184 = vmatprep.mubr.f32.mxu0 0.0
  %v185 = vand.u32 %v67, 4294901760
  %v186 = vsub.f32 %v67, %v185
  %v187 = vand.u32 %v186, 4294901760
  %v188 = vsub.f32 %v186, %v187
  %v189 = vand.u32 %v188, 4294901760
  %190 = vmatmul.mubr.f32.gmra.mrb[0].mxu0 %v189
  %v191 = vpop.f32.mrb[0].mxu0
  %v192 = vadd.f32 0.0, %v191
  %v193 = vpop.f32.mrb[0].mxu0
  %194 = vmatprep.mubr.f32.mxu0 0.0
  %v195 = vand.u32 %v70, 4294901760
  %v196 = vsub.f32 %v70, %v195
  %v197 = vand.u32 %v196, 4294901760
  %v198 = vsub.f32 %v196, %v197
  %v199 = vand.u32 %v198, 4294901760
  %200 = vmatmul.mubr.f32.gmra.mrb[0].mxu0 %v199
  %v201 = vpop.f32.mrb[0].mxu0
  %v202 = vadd.f32 0.0, %v201
  %v203 = vpop.f32.mrb[0].mxu0
  %204 = vmatprep.mubr.f32.mxu0 0.0
  %v205 = vand.u32 %v73, 4294901760
  %v206 = vsub.f32 %v73, %v205
  %v207 = vand.u32 %v206, 4294901760
  %v208 = vsub.f32 %v206, %v207
  %v209 = vand.u32 %v208, 4294901760
  %210 = vmatmul.mubr.f32.gmra.mrb[0].mxu0 %v209
  %v211 = vpop.f32.mrb[0].mxu0
  %v212 = vadd.f32 0.0, %v211
  %v213 = vpop.f32.mrb[0].mxu0
  %214 = vmatprep.mubr.f32.mxu0 0.0
  %v215 = vand.u32 %v76, 4294901760
  %v216 = vsub.f32 %v76, %v215
  %v217 = vand.u32 %v216, 4294901760
  %v218 = vsub.f32 %v216, %v217
  %v219 = vand.u32 %v218, 4294901760
  %220 = vmatmul.mubr.f32.gmra.mrb[0].mxu0 %v219
  %v221 = vpop.f32.mrb[0].mxu0
  %v222 = vadd.f32 0.0, %v221
  %v223 = vpop.f32.mrb[0].mxu0
  %224 = vdwg.mxu0
  %225 = vmatprep.subr.mxu0 0.0
  %v226 = vand.u32 %v11, 4294901760
  %v227 = vsub.f32 %v11, %v226
  %v228 = vand.u32 %v227, 4294901760
  %v229 = vsub.f32 %v227, %v228
  %v230 = vand.u32 %v229, 4294901760
  %231 = vmatpush1.msra.mxu0 %v230
  %232 = vmatprep.subr.mxu0 0.0
  %v233 = vand.u32 %v12, 4294901760
  %v234 = vsub.f32 %v12, %v233
  %v235 = vand.u32 %v234, 4294901760
  %v236 = vsub.f32 %v234, %v235
  %v237 = vand.u32 %v236, 4294901760
  %238 = vmatpush1.msra.mxu0 %v237
  %239 = vmatprep.subr.mxu0 0.0
  %240 = vmatpush1.msra.mxu0 0.0
  %241 = vmatprep.subr.mxu0 0.0
  %242 = vmatpush1.msra.mxu0 0.0
  %243 = vmatprep.subr.mxu0 0.0
  %244 = vmatpush1.msra.mxu0 0.0
  %245 = vmatprep.subr.mxu0 0.0
  %246 = vmatpush1.msra.mxu0 0.0
  %247 = vmatprep.subr.mxu0 0.0
  %248 = vmatpush1.msra.mxu0 0.0
  %249 = vmatprep.subr.mxu0 0.0
  %250 = vmatpush1.msra.mxu0 0.0
  %251 = vmatprep.subr.mxu0 0.0
  %252 = vmatpush1.msra.mxu0 0.0
  %253 = vmatprep.subr.mxu0 0.0
  %254 = vmatpush1.msra.mxu0 0.0
  %255 = vmatprep.subr.mxu0 0.0
  %256 = vmatpush1.msra.mxu0 0.0
  %257 = vmatprep.subr.mxu0 0.0
  %258 = vmatpush1.msra.mxu0 0.0
  %259 = vmatprep.subr.mxu0 0.0
  %260 = vmatpush1.msra.mxu0 0.0
  %261 = vmatprep.subr.mxu0 0.0
  %262 = vmatpush1.msra.mxu0 0.0
  %263 = vmatprep.subr.mxu0 0.0
  %264 = vmatpush1.msra.mxu0 0.0
  %265 = vmatprep.subr.mxu0 0.0
  %266 = vmatpush1.msra.mxu0 0.0
  %267 = vmatprep.subr.mxu0 0.0
  %268 = vmatpush1.msra.mxu0 0.0
  %269 = vmatprep.subr.mxu0 0.0
  %270 = vmatpush1.msra.mxu0 0.0
  %271 = vmatprep.subr.mxu0 0.0
  %272 = vmatpush1.msra.mxu0 0.0
  %273 = vmatprep.subr.mxu0 0.0
  %274 = vmatpush1.msra.mxu0 0.0
  %275 = vmatprep.subr.mxu0 0.0
  %276 = vmatpush1.msra.mxu0 0.0
  %277 = vmatprep.subr.mxu0 0.0
  %278 = vmatpush1.msra.mxu0 0.0
  %279 = vmatprep.subr.mxu0 0.0
  %280 = vmatpush1.msra.mxu0 0.0
  %281 = vmatprep.subr.mxu0 0.0
  %282 = vmatpush1.msra.mxu0 0.0
  %283 = vmatprep.subr.mxu0 0.0
  %284 = vmatpush1.msra.mxu0 0.0
  %285 = vmatprep.subr.mxu0 0.0
  %286 = vmatpush1.msra.mxu0 0.0
  %287 = vmatprep.subr.mxu0 0.0
  %288 = vmatpush1.msra.mxu0 0.0
  %289 = vmatprep.subr.mxu0 0.0
  %290 = vmatpush1.msra.mxu0 0.0
  %291 = vmatprep.subr.mxu0 0.0
  %292 = vmatpush1.msra.mxu0 0.0
  %293 = vmatprep.subr.mxu0 0.0
  %294 = vmatpush1.msra.mxu0 0.0
  %295 = vmatprep.subr.mxu0 0.0
  %296 = vmatpush1.msra.mxu0 0.0
  %297 = vmatprep.subr.mxu0 0.0
  %298 = vmatpush1.msra.mxu0 0.0
  %299 = vmatprep.mubr.f32.mxu0 0.0
  %v300 = vand.u32 %v55, 4294901760
  %301 = vmatmul.mubr.f32.gmra.mrb[0].mxu0 %v300
  %v302 = vpop.f32.mrb[0].mxu0
  %v303 = vadd.f32 %v152, %v302
  %v304 = vpop.f32.mrb[0].mxu0
  %305 = vmatprep.mubr.f32.mxu0 0.0
  %v306 = vand.u32 %v58, 4294901760
  %307 = vmatmul.mubr.f32.gmra.mrb[0].mxu0 %v306
  %v308 = vpop.f32.mrb[0].mxu0
  %v309 = vadd.f32 %v162, %v308
  %v310 = vpop.f32.mrb[0].mxu0
  %311 = vmatprep.mubr.f32.mxu0 0.0
  %v312 = vand.u32 %v61, 4294901760
  %313 = vmatmul.mubr.f32.gmra.mrb[0].mxu0 %v312
  %v314 = vpop.f32.mrb[0].mxu0
  %v315 = vadd.f32 %v172, %v314
  %v316 = vpop.f32.mrb[0].mxu0
  %317 = vmatprep.mubr.f32.mxu0 0.0
  %v318 = vand.u32 %v64, 4294901760
  %319 = vmatmul.mubr.f32.gmra.mrb[0].mxu0 %v318
  %v320 = vpop.f32.mrb[0].mxu0
  %v321 = vadd.f32 %v182, %v320
  %v322 = vpop.f32.mrb[0].mxu0
  %323 = vmatprep.mubr.f32.mxu0 0.0
  %v324 = vand.u32 %v67, 4294901760
  %325 = vmatmul.mubr.f32.gmra.mrb[0].mxu0 %v324
  %v326 = vpop.f32.mrb[0].mxu0
  %v327 = vadd.f32 %v192, %v326
  %v328 = vpop.f32.mrb[0].mxu0
  %329 = vmatprep.mubr.f32.mxu0 0.0
  %v330 = vand.u32 %v70, 4294901760
  %331 = vmatmul.mubr.f32.gmra.mrb[0].mxu0 %v330
  %v332 = vpop.f32.mrb[0].mxu0
  %v333 = vadd.f32 %v202, %v332
  %v334 = vpop.f32.mrb[0].mxu0
  %335 = vmatprep.mubr.f32.mxu0 0.0
  %v336 = vand.u32 %v73, 4294901760
  %337 = vmatmul.mubr.f32.gmra.mrb[0].mxu0 %v336
  %v338 = vpop.f32.mrb[0].mxu0
  %v339 = vadd.f32 %v212, %v338
  %v340 = vpop.f32.mrb[0].mxu0
  %341 = vmatprep.mubr.f32.mxu0 0.0
  %v342 = vand.u32 %v76, 4294901760
  %343 = vmatmul.mubr.f32.gmra.mrb[0].mxu0 %v342
  %v344 = vpop.f32.mrb[0].mxu0
  %v345 = vadd.f32 %v222, %v344
  %v346 = vpop.f32.mrb[0].mxu0
  %347 = vdwg.mxu0
  %348 = vmatprep.subr.mxu0 0.0
  %v349 = vand.u32 %v11, 4294901760
  %v350 = vsub.f32 %v11, %v349
  %351 = vmatpush1.msra.mxu0 %v350
  %352 = vmatprep.subr.mxu0 0.0
  %v353 = vand.u32 %v12, 4294901760
  %v354 = vsub.f32 %v12, %v353
  %355 = vmatpush1.msra.mxu0 %v354
  %356 = vmatprep.subr.mxu0 0.0
  %357 = vmatpush1.msra.mxu0 0.0
  %358 = vmatprep.subr.mxu0 0.0
  %359 = vmatpush1.msra.mxu0 0.0
  %360 = vmatprep.subr.mxu0 0.0
  %361 = vmatpush1.msra.mxu0 0.0
  %362 = vmatprep.subr.mxu0 0.0
  %363 = vmatpush1.msra.mxu0 0.0
  %364 = vmatprep.subr.mxu0 0.0
  %365 = vmatpush1.msra.mxu0 0.0
  %366 = vmatprep.subr.mxu0 0.0
  %367 = vmatpush1.msra.mxu0 0.0
  %368 = vmatprep.subr.mxu0 0.0
  %369 = vmatpush1.msra.mxu0 0.0
  %370 = vmatprep.subr.mxu0 0.0
  %371 = vmatpush1.msra.mxu0 0.0
  %372 = vmatprep.subr.mxu0 0.0
  %373 = vmatpush1.msra.mxu0 0.0
  %374 = vmatprep.subr.mxu0 0.0
  %375 = vmatpush1.msra.mxu0 0.0
  %376 = vmatprep.subr.mxu0 0.0
  %377 = vmatpush1.msra.mxu0 0.0
  %378 = vmatprep.subr.mxu0 0.0
  %379 = vmatpush1.msra.mxu0 0.0
  %380 = vmatprep.subr.mxu0 0.0
  %381 = vmatpush1.msra.mxu0 0.0
  %382 = vmatprep.subr.mxu0 0.0
  %383 = vmatpush1.msra.mxu0 0.0
  %384 = vmatprep.subr.mxu0 0.0
  %385 = vmatpush1.msra.mxu0 0.0
  %386 = vmatprep.subr.mxu0 0.0
  %387 = vmatpush1.msra.mxu0 0.0
  %388 = vmatprep.subr.mxu0 0.0
  %389 = vmatpush1.msra.mxu0 0.0
  %390 = vmatprep.subr.mxu0 0.0
  %391 = vmatpush1.msra.mxu0 0.0
  %392 = vmatprep.subr.mxu0 0.0
  %393 = vmatpush1.msra.mxu0 0.0
  %394 = vmatprep.subr.mxu0 0.0
  %395 = vmatpush1.msra.mxu0 0.0
  %396 = vmatprep.subr.mxu0 0.0
  %397 = vmatpush1.msra.mxu0 0.0
  %398 = vmatprep.subr.mxu0 0.0
  %399 = vmatpush1.msra.mxu0 0.0
  %400 = vmatprep.subr.mxu0 0.0
  %401 = vmatpush1.msra.mxu0 0.0
  %402 = vmatprep.subr.mxu0 0.0
  %403 = vmatpush1.msra.mxu0 0.0
  %404 = vmatprep.subr.mxu0 0.0
  %405 = vmatpush1.msra.mxu0 0.0
  %406 = vmatprep.subr.mxu0 0.0
  %407 = vmatpush1.msra.mxu0 0.0
  %408 = vmatprep.subr.mxu0 0.0
  %409 = vmatpush1.msra.mxu0 0.0
  %410 = vmatprep.subr.mxu0 0.0
  %411 = vmatpush1.msra.mxu0 0.0
  %412 = vmatprep.subr.mxu0 0.0
  %413 = vmatpush1.msra.mxu0 0.0
  %414 = vmatprep.subr.mxu0 0.0
  %415 = vmatpush1.msra.mxu0 0.0
  %416 = vmatprep.mubr.f32.mxu0 0.0
  %v417 = vand.u32 %v55, 4294901760
  %v418 = vsub.f32 %v55, %v417
  %419 = vmatmul.mubr.f32.gmra.mrb[0].mxu0 %v418
  %v420 = vpop.f32.mrb[0].mxu0
  %v421 = vadd.f32 %v303, %v420
  %v422 = vpop.f32.mrb[0].mxu0
  %423 = vmatprep.mubr.f32.mxu0 0.0
  %v424 = vand.u32 %v58, 4294901760
  %v425 = vsub.f32 %v58, %v424
  %426 = vmatmul.mubr.f32.gmra.mrb[0].mxu0 %v425
  %v427 = vpop.f32.mrb[0].mxu0
  %v428 = vadd.f32 %v309, %v427
  %v429 = vpop.f32.mrb[0].mxu0
  %430 = vmatprep.mubr.f32.mxu0 0.0
  %v431 = vand.u32 %v61, 4294901760
  %v432 = vsub.f32 %v61, %v431
  %433 = vmatmul.mubr.f32.gmra.mrb[0].mxu0 %v432
  %v434 = vpop.f32.mrb[0].mxu0
  %v435 = vadd.f32 %v315, %v434
  %v436 = vpop.f32.mrb[0].mxu0
  %437 = vmatprep.mubr.f32.mxu0 0.0
  %v438 = vand.u32 %v64, 4294901760
  %v439 = vsub.f32 %v64, %v438
  %440 = vmatmul.mubr.f32.gmra.mrb[0].mxu0 %v439
  %v441 = vpop.f32.mrb[0].mxu0
  %v442 = vadd.f32 %v321, %v441
  %v443 = vpop.f32.mrb[0].mxu0
  %444 = vmatprep.mubr.f32.mxu0 0.0
  %v445 = vand.u32 %v67, 4294901760
  %v446 = vsub.f32 %v67, %v445
  %447 = vmatmul.mubr.f32.gmra.mrb[0].mxu0 %v446
  %v448 = vpop.f32.mrb[0].mxu0
  %v449 = vadd.f32 %v327, %v448
  %v450 = vpop.f32.mrb[0].mxu0
  %451 = vmatprep.mubr.f32.mxu0 0.0
  %v452 = vand.u32 %v70, 4294901760
  %v453 = vsub.f32 %v70, %v452
  %454 = vmatmul.mubr.f32.gmra.mrb[0].mxu0 %v453
  %v455 = vpop.f32.mrb[0].mxu0
  %v456 = vadd.f32 %v333, %v455
  %v457 = vpop.f32.mrb[0].mxu0
  %458 = vmatprep.mubr.f32.mxu0 0.0
  %v459 = vand.u32 %v73, 4294901760
  %v460 = vsub.f32 %v73, %v459
  %461 = vmatmul.mubr.f32.gmra.mrb[0].mxu0 %v460
  %v462 = vpop.f32.mrb[0].mxu0
  %v463 = vadd.f32 %v339, %v462
  %v464 = vpop.f32.mrb[0].mxu0
  %465 = vmatprep.mubr.f32.mxu0 0.0
  %v466 = vand.u32 %v76, 4294901760
  %v467 = vsub.f32 %v76, %v466
  %468 = vmatmul.mubr.f32.gmra.mrb[0].mxu0 %v467
  %v469 = vpop.f32.mrb[0].mxu0
  %v470 = vadd.f32 %v345, %v469
  %v471 = vpop.f32.mrb[0].mxu0
  %472 = vdwg.mxu0
  %473 = vmatprep.subr.mxu0 0.0
  %v474 = vand.u32 %v11, 4294901760
  %475 = vmatpush1.msra.mxu0 %v474
  %476 = vmatprep.subr.mxu0 0.0
  %v477 = vand.u32 %v12, 4294901760
  %478 = vmatpush1.msra.mxu0 %v477
  %479 = vmatprep.subr.mxu0 0.0
  %480 = vmatpush1.msra.mxu0 0.0
  %481 = vmatprep.subr.mxu0 0.0
  %482 = vmatpush1.msra.mxu0 0.0
  %483 = vmatprep.subr.mxu0 0.0
  %484 = vmatpush1.msra.mxu0 0.0
  %485 = vmatprep.subr.mxu0 0.0
  %486 = vmatpush1.msra.mxu0 0.0
  %487 = vmatprep.subr.mxu0 0.0
  %488 = vmatpush1.msra.mxu0 0.0
  %489 = vmatprep.subr.mxu0 0.0
  %490 = vmatpush1.msra.mxu0 0.0
  %491 = vmatprep.subr.mxu0 0.0
  %492 = vmatpush1.msra.mxu0 0.0
  %493 = vmatprep.subr.mxu0 0.0
  %494 = vmatpush1.msra.mxu0 0.0
  %495 = vmatprep.subr.mxu0 0.0
  %496 = vmatpush1.msra.mxu0 0.0
  %497 = vmatprep.subr.mxu0 0.0
  %498 = vmatpush1.msra.mxu0 0.0
  %499 = vmatprep.subr.mxu0 0.0
  %500 = vmatpush1.msra.mxu0 0.0
  %501 = vmatprep.subr.mxu0 0.0
  %502 = vmatpush1.msra.mxu0 0.0
  %503 = vmatprep.subr.mxu0 0.0
  %504 = vmatpush1.msra.mxu0 0.0
  %505 = vmatprep.subr.mxu0 0.0
  %506 = vmatpush1.msra.mxu0 0.0
  %507 = vmatprep.subr.mxu0 0.0
  %508 = vmatpush1.msra.mxu0 0.0
  %509 = vmatprep.subr.mxu0 0.0
  %510 = vmatpush1.msra.mxu0 0.0
  %511 = vmatprep.subr.mxu0 0.0
  %512 = vmatpush1.msra.mxu0 0.0
  %513 = vmatprep.subr.mxu0 0.0
  %514 = vmatpush1.msra.mxu0 0.0
  %515 = vmatprep.subr.mxu0 0.0
  %516 = vmatpush1.msra.mxu0 0.0
  %517 = vmatprep.subr.mxu0 0.0
  %518 = vmatpush1.msra.mxu0 0.0
  %519 = vmatprep.subr.mxu0 0.0
  %520 = vmatpush1.msra.mxu0 0.0
  %521 = vmatprep.subr.mxu0 0.0
  %522 = vmatpush1.msra.mxu0 0.0
  %523 = vmatprep.subr.mxu0 0.0
  %524 = vmatpush1.msra.mxu0 0.0
  %525 = vmatprep.subr.mxu0 0.0
  %526 = vmatpush1.msra.mxu0 0.0
  %527 = vmatprep.subr.mxu0 0.0
  %528 = vmatpush1.msra.mxu0 0.0
  %529 = vmatprep.subr.mxu0 0.0
  %530 = vmatpush1.msra.mxu0 0.0
  %531 = vmatprep.subr.mxu0 0.0
  %532 = vmatpush1.msra.mxu0 0.0
  %533 = vmatprep.subr.mxu0 0.0
  %534 = vmatpush1.msra.mxu0 0.0
  %535 = vmatprep.subr.mxu0 0.0
  %536 = vmatpush1.msra.mxu0 0.0
  %537 = vmatprep.subr.mxu0 0.0
  %538 = vmatpush1.msra.mxu0 0.0
  %539 = vmatprep.mubr.f32.mxu0 0.0
  %v540 = vand.u32 %v55, 4294901760
  %v541 = vsub.f32 %v55, %v540
  %v542 = vand.u32 %v541, 4294901760
  %543 = vmatmul.mubr.f32.gmra.mrb[0].mxu0 %v542
  %v544 = vpop.f32.mrb[0].mxu0
  %v545 = vadd.f32 %v421, %v544
  %v546 = vpop.f32.mrb[0].mxu0
  %547 = vmatprep.mubr.f32.mxu0 0.0
  %v548 = vand.u32 %v58, 4294901760
  %v549 = vsub.f32 %v58, %v548
  %v550 = vand.u32 %v549, 4294901760
  %551 = vmatmul.mubr.f32.gmra.mrb[0].mxu0 %v550
  %v552 = vpop.f32.mrb[0].mxu0
  %v553 = vadd.f32 %v428, %v552
  %v554 = vpop.f32.mrb[0].mxu0
  %555 = vmatprep.mubr.f32.mxu0 0.0
  %v556 = vand.u32 %v61, 4294901760
  %v557 = vsub.f32 %v61, %v556
  %v558 = vand.u32 %v557, 4294901760
  %559 = vmatmul.mubr.f32.gmra.mrb[0].mxu0 %v558
  %v560 = vpop.f32.mrb[0].mxu0
  %v561 = vadd.f32 %v435, %v560
  %v562 = vpop.f32.mrb[0].mxu0
  %563 = vmatprep.mubr.f32.mxu0 0.0
  %v564 = vand.u32 %v64, 4294901760
  %v565 = vsub.f32 %v64, %v564
  %v566 = vand.u32 %v565, 4294901760
  %567 = vmatmul.mubr.f32.gmra.mrb[0].mxu0 %v566
  %v568 = vpop.f32.mrb[0].mxu0
  %v569 = vadd.f32 %v442, %v568
  %v570 = vpop.f32.mrb[0].mxu0
  %571 = vmatprep.mubr.f32.mxu0 0.0
  %v572 = vand.u32 %v67, 4294901760
  %v573 = vsub.f32 %v67, %v572
  %v574 = vand.u32 %v573, 4294901760
  %575 = vmatmul.mubr.f32.gmra.mrb[0].mxu0 %v574
  %v576 = vpop.f32.mrb[0].mxu0
  %v577 = vadd.f32 %v449, %v576
  %v578 = vpop.f32.mrb[0].mxu0
  %579 = vmatprep.mubr.f32.mxu0 0.0
  %v580 = vand.u32 %v70, 4294901760
  %v581 = vsub.f32 %v70, %v580
  %v582 = vand.u32 %v581, 4294901760
  %583 = vmatmul.mubr.f32.gmra.mrb[0].mxu0 %v582
  %v584 = vpop.f32.mrb[0].mxu0
  %v585 = vadd.f32 %v456, %v584
  %v586 = vpop.f32.mrb[0].mxu0
  %587 = vmatprep.mubr.f32.mxu0 0.0
  %v588 = vand.u32 %v73, 4294901760
  %v589 = vsub.f32 %v73, %v588
  %v590 = vand.u32 %v589, 4294901760
  %591 = vmatmul.mubr.f32.gmra.mrb[0].mxu0 %v590
  %v592 = vpop.f32.mrb[0].mxu0
  %v593 = vadd.f32 %v463, %v592
  %v594 = vpop.f32.mrb[0].mxu0
  %595 = vmatprep.mubr.f32.mxu0 0.0
  %v596 = vand.u32 %v76, 4294901760
  %v597 = vsub.f32 %v76, %v596
  %v598 = vand.u32 %v597, 4294901760
  %599 = vmatmul.mubr.f32.gmra.mrb[0].mxu0 %v598
  %v600 = vpop.f32.mrb[0].mxu0
  %v601 = vadd.f32 %v470, %v600
  %v602 = vpop.f32.mrb[0].mxu0
  %603 = vdwg.mxu0
  %604 = vmatprep.subr.mxu0 0.0
  %v605 = vand.u32 %v11, 4294901760
  %v606 = vsub.f32 %v11, %v605
  %v607 = vand.u32 %v606, 4294901760
  %608 = vmatpush1.msra.mxu0 %v607
  %609 = vmatprep.subr.mxu0 0.0
  %v610 = vand.u32 %v12, 4294901760
  %v611 = vsub.f32 %v12, %v610
  %v612 = vand.u32 %v611, 4294901760
  %613 = vmatpush1.msra.mxu0 %v612
  %614 = vmatprep.subr.mxu0 0.0
  %615 = vmatpush1.msra.mxu0 0.0
  %616 = vmatprep.subr.mxu0 0.0
  %617 = vmatpush1.msra.mxu0 0.0
  %618 = vmatprep.subr.mxu0 0.0
  %619 = vmatpush1.msra.mxu0 0.0
  %620 = vmatprep.subr.mxu0 0.0
  %621 = vmatpush1.msra.mxu0 0.0
  %622 = vmatprep.subr.mxu0 0.0
  %623 = vmatpush1.msra.mxu0 0.0
  %624 = vmatprep.subr.mxu0 0.0
  %625 = vmatpush1.msra.mxu0 0.0
  %626 = vmatprep.subr.mxu0 0.0
  %627 = vmatpush1.msra.mxu0 0.0
  %628 = vmatprep.subr.mxu0 0.0
  %629 = vmatpush1.msra.mxu0 0.0
  %630 = vmatprep.subr.mxu0 0.0
  %631 = vmatpush1.msra.mxu0 0.0
  %632 = vmatprep.subr.mxu0 0.0
  %633 = vmatpush1.msra.mxu0 0.0
  %634 = vmatprep.subr.mxu0 0.0
  %635 = vmatpush1.msra.mxu0 0.0
  %636 = vmatprep.subr.mxu0 0.0
  %637 = vmatpush1.msra.mxu0 0.0
  %638 = vmatprep.subr.mxu0 0.0
  %639 = vmatpush1.msra.mxu0 0.0
  %640 = vmatprep.subr.mxu0 0.0
  %641 = vmatpush1.msra.mxu0 0.0
  %642 = vmatprep.subr.mxu0 0.0
  %643 = vmatpush1.msra.mxu0 0.0
  %644 = vmatprep.subr.mxu0 0.0
  %645 = vmatpush1.msra.mxu0 0.0
  %646 = vmatprep.subr.mxu0 0.0
  %647 = vmatpush1.msra.mxu0 0.0
  %648 = vmatprep.subr.mxu0 0.0
  %649 = vmatpush1.msra.mxu0 0.0
  %650 = vmatprep.subr.mxu0 0.0
  %651 = vmatpush1.msra.mxu0 0.0
  %652 = vmatprep.subr.mxu0 0.0
  %653 = vmatpush1.msra.mxu0 0.0
  %654 = vmatprep.subr.mxu0 0.0
  %655 = vmatpush1.msra.mxu0 0.0
  %656 = vmatprep.subr.mxu0 0.0
  %657 = vmatpush1.msra.mxu0 0.0
  %658 = vmatprep.subr.mxu0 0.0
  %659 = vmatpush1.msra.mxu0 0.0
  %660 = vmatprep.subr.mxu0 0.0
  %661 = vmatpush1.msra.mxu0 0.0
  %662 = vmatprep.subr.mxu0 0.0
  %663 = vmatpush1.msra.mxu0 0.0
  %664 = vmatprep.subr.mxu0 0.0
  %665 = vmatpush1.msra.mxu0 0.0
  %666 = vmatprep.subr.mxu0 0.0
  %667 = vmatpush1.msra.mxu0 0.0
  %668 = vmatprep.subr.mxu0 0.0
  %669 = vmatpush1.msra.mxu0 0.0
  %670 = vmatprep.subr.mxu0 0.0
  %671 = vmatpush1.msra.mxu0 0.0
  %672 = vmatprep.subr.mxu0 0.0
  %673 = vmatpush1.msra.mxu0 0.0
  %674 = vmatprep.mubr.f32.mxu0 0.0
  %v675 = vand.u32 %v55, 4294901760
  %676 = vmatmul.mubr.f32.gmra.mrb[0].mxu0 %v675
  %v677 = vpop.f32.mrb[0].mxu0
  %v678 = vadd.f32 %v545, %v677
  %v679 = vpop.f32.mrb[0].mxu0
  %680 = vmatprep.mubr.f32.mxu0 0.0
  %v681 = vand.u32 %v58, 4294901760
  %682 = vmatmul.mubr.f32.gmra.mrb[0].mxu0 %v681
  %v683 = vpop.f32.mrb[0].mxu0
  %v684 = vadd.f32 %v553, %v683
  %v685 = vpop.f32.mrb[0].mxu0
  %686 = vmatprep.mubr.f32.mxu0 0.0
  %v687 = vand.u32 %v61, 4294901760
  %688 = vmatmul.mubr.f32.gmra.mrb[0].mxu0 %v687
  %v689 = vpop.f32.mrb[0].mxu0
  %v690 = vadd.f32 %v561, %v689
  %v691 = vpop.f32.mrb[0].mxu0
  %692 = vmatprep.mubr.f32.mxu0 0.0
  %v693 = vand.u32 %v64, 4294901760
  %694 = vmatmul.mubr.f32.gmra.mrb[0].mxu0 %v693
  %v695 = vpop.f32.mrb[0].mxu0
  %v696 = vadd.f32 %v569, %v695
  %v697 = vpop.f32.mrb[0].mxu0
  %698 = vmatprep.mubr.f32.mxu0 0.0
  %v699 = vand.u32 %v67, 4294901760
  %700 = vmatmul.mubr.f32.gmra.mrb[0].mxu0 %v699
  %v701 = vpop.f32.mrb[0].mxu0
  %v702 = vadd.f32 %v577, %v701
  %v703 = vpop.f32.mrb[0].mxu0
  %704 = vmatprep.mubr.f32.mxu0 0.0
  %v705 = vand.u32 %v70, 4294901760
  %706 = vmatmul.mubr.f32.gmra.mrb[0].mxu0 %v705
  %v707 = vpop.f32.mrb[0].mxu0
  %v708 = vadd.f32 %v585, %v707
  %v709 = vpop.f32.mrb[0].mxu0
  %710 = vmatprep.mubr.f32.mxu0 0.0
  %v711 = vand.u32 %v73, 4294901760
  %712 = vmatmul.mubr.f32.gmra.mrb[0].mxu0 %v711
  %v713 = vpop.f32.mrb[0].mxu0
  %v714 = vadd.f32 %v593, %v713
  %v715 = vpop.f32.mrb[0].mxu0
  %716 = vmatprep.mubr.f32.mxu0 0.0
  %v717 = vand.u32 %v76, 4294901760
  %718 = vmatmul.mubr.f32.gmra.mrb[0].mxu0 %v717
  %v719 = vpop.f32.mrb[0].mxu0
  %v720 = vadd.f32 %v601, %v719
  %v721 = vpop.f32.mrb[0].mxu0
  %722 = vdwg.mxu0
  %723 = vmatprep.subr.mxu0 0.0
  %v724 = vand.u32 %v11, 4294901760
  %725 = vmatpush1.msra.mxu0 %v724
  %726 = vmatprep.subr.mxu0 0.0
  %v727 = vand.u32 %v12, 4294901760
  %728 = vmatpush1.msra.mxu0 %v727
  %729 = vmatprep.subr.mxu0 0.0
  %730 = vmatpush1.msra.mxu0 0.0
  %731 = vmatprep.subr.mxu0 0.0
  %732 = vmatpush1.msra.mxu0 0.0
  %733 = vmatprep.subr.mxu0 0.0
  %734 = vmatpush1.msra.mxu0 0.0
  %735 = vmatprep.subr.mxu0 0.0
  %736 = vmatpush1.msra.mxu0 0.0
  %737 = vmatprep.subr.mxu0 0.0
  %738 = vmatpush1.msra.mxu0 0.0
  %739 = vmatprep.subr.mxu0 0.0
  %740 = vmatpush1.msra.mxu0 0.0
  %741 = vmatprep.subr.mxu0 0.0
  %742 = vmatpush1.msra.mxu0 0.0
  %743 = vmatprep.subr.mxu0 0.0
  %744 = vmatpush1.msra.mxu0 0.0
  %745 = vmatprep.subr.mxu0 0.0
  %746 = vmatpush1.msra.mxu0 0.0
  %747 = vmatprep.subr.mxu0 0.0
  %748 = vmatpush1.msra.mxu0 0.0
  %749 = vmatprep.subr.mxu0 0.0
  %750 = vmatpush1.msra.mxu0 0.0
  %751 = vmatprep.subr.mxu0 0.0
  %752 = vmatpush1.msra.mxu0 0.0
  %753 = vmatprep.subr.mxu0 0.0
  %754 = vmatpush1.msra.mxu0 0.0
  %755 = vmatprep.subr.mxu0 0.0
  %756 = vmatpush1.msra.mxu0 0.0
  %757 = vmatprep.subr.mxu0 0.0
  %758 = vmatpush1.msra.mxu0 0.0
  %759 = vmatprep.subr.mxu0 0.0
  %760 = vmatpush1.msra.mxu0 0.0
  %761 = vmatprep.subr.mxu0 0.0
  %762 = vmatpush1.msra.mxu0 0.0
  %763 = vmatprep.subr.mxu0 0.0
  %764 = vmatpush1.msra.mxu0 0.0
  %765 = vmatprep.subr.mxu0 0.0
  %766 = vmatpush1.msra.mxu0 0.0
  %767 = vmatprep.subr.mxu0 0.0
  %768 = vmatpush1.msra.mxu0 0.0
  %769 = vmatprep.subr.mxu0 0.0
  %770 = vmatpush1.msra.mxu0 0.0
  %771 = vmatprep.subr.mxu0 0.0
  %772 = vmatpush1.msra.mxu0 0.0
  %773 = vmatprep.subr.mxu0 0.0
  %774 = vmatpush1.msra.mxu0 0.0
  %775 = vmatprep.subr.mxu0 0.0
  %776 = vmatpush1.msra.mxu0 0.0
  %777 = vmatprep.subr.mxu0 0.0
  %778 = vmatpush1.msra.mxu0 0.0
  %779 = vmatprep.subr.mxu0 0.0
  %780 = vmatpush1.msra.mxu0 0.0
  %781 = vmatprep.subr.mxu0 0.0
  %782 = vmatpush1.msra.mxu0 0.0
  %783 = vmatprep.subr.mxu0 0.0
  %784 = vmatpush1.msra.mxu0 0.0
  %785 = vmatprep.subr.mxu0 0.0
  %786 = vmatpush1.msra.mxu0 0.0
  %787 = vmatprep.subr.mxu0 0.0
  %788 = vmatpush1.msra.mxu0 0.0
  %789 = vmatprep.mubr.f32.mxu0 0.0
  %v790 = vand.u32 %v55, 4294901760
  %791 = vmatmul.mubr.f32.gmra.mrb[0].mxu0 %v790
  %v792 = vpop.f32.mrb[0].mxu0
  %v793 = vadd.f32 %v678, %v792
  %v794 = vpop.f32.mrb[0].mxu0
  %795 = vmatprep.mubr.f32.mxu0 0.0
  %v796 = vand.u32 %v58, 4294901760
  %797 = vmatmul.mubr.f32.gmra.mrb[0].mxu0 %v796
  %v798 = vpop.f32.mrb[0].mxu0
  %v799 = vadd.f32 %v684, %v798
  %v800 = vpop.f32.mrb[0].mxu0
  %801 = vmatprep.mubr.f32.mxu0 0.0
  %v802 = vand.u32 %v61, 4294901760
  %803 = vmatmul.mubr.f32.gmra.mrb[0].mxu0 %v802
  %v804 = vpop.f32.mrb[0].mxu0
  %v805 = vadd.f32 %v690, %v804
  %v806 = vpop.f32.mrb[0].mxu0
  %807 = vmatprep.mubr.f32.mxu0 0.0
  %v808 = vand.u32 %v64, 4294901760
  %809 = vmatmul.mubr.f32.gmra.mrb[0].mxu0 %v808
  %v810 = vpop.f32.mrb[0].mxu0
  %v811 = vadd.f32 %v696, %v810
  %v812 = vpop.f32.mrb[0].mxu0
  %813 = vmatprep.mubr.f32.mxu0 0.0
  %v814 = vand.u32 %v67, 4294901760
  %815 = vmatmul.mubr.f32.gmra.mrb[0].mxu0 %v814
  %v816 = vpop.f32.mrb[0].mxu0
  %v817 = vadd.f32 %v702, %v816
  %v818 = vpop.f32.mrb[0].mxu0
  %819 = vmatprep.mubr.f32.mxu0 0.0
  %v820 = vand.u32 %v70, 4294901760
  %821 = vmatmul.mubr.f32.gmra.mrb[0].mxu0 %v820
  %v822 = vpop.f32.mrb[0].mxu0
  %v823 = vadd.f32 %v708, %v822
  %v824 = vpop.f32.mrb[0].mxu0
  %825 = vmatprep.mubr.f32.mxu0 0.0
  %v826 = vand.u32 %v73, 4294901760
  %827 = vmatmul.mubr.f32.gmra.mrb[0].mxu0 %v826
  %v828 = vpop.f32.mrb[0].mxu0
  %v829 = vadd.f32 %v714, %v828
  %v830 = vpop.f32.mrb[0].mxu0
  %831 = vmatprep.mubr.f32.mxu0 0.0
  %v832 = vand.u32 %v76, 4294901760
  %833 = vmatmul.mubr.f32.gmra.mrb[0].mxu0 %v832
  %v834 = vpop.f32.mrb[0].mxu0
  %v835 = vadd.f32 %v720, %v834
  %v836 = vpop.f32.mrb[0].mxu0
  %837 = vdwg.mxu0
  %838 = vmatprep.subr.mxu0 0.0
  %v839 = vand.u32 %v13, 4294901760
  %840 = vmatpush1.msra.mxu0 %v839
  %841 = vmatprep.subr.mxu0 0.0
  %v842 = vand.u32 %v14, 4294901760
  %843 = vmatpush1.msra.mxu0 %v842
  %844 = vmatprep.subr.mxu0 0.0
  %v845 = vand.u32 %v15, 4294901760
  %846 = vmatpush1.msra.mxu0 %v845
  %847 = vmatprep.subr.mxu0 0.0
  %v848 = vand.u32 %v16, 4294901760
  %849 = vmatpush1.msra.mxu0 %v848
  %850 = vmatprep.subr.mxu0 0.0
  %v851 = vand.u32 %v17, 4294901760
  %852 = vmatpush1.msra.mxu0 %v851
  %853 = vmatprep.subr.mxu0 0.0
  %v854 = vand.u32 %v18, 4294901760
  %855 = vmatpush1.msra.mxu0 %v854
  %856 = vmatprep.subr.mxu0 0.0
  %v857 = vand.u32 %v19, 4294901760
  %858 = vmatpush1.msra.mxu0 %v857
  %859 = vmatprep.subr.mxu0 0.0
  %v860 = vand.u32 %v20, 4294901760
  %861 = vmatpush1.msra.mxu0 %v860
  %862 = vmatprep.subr.mxu0 0.0
  %v863 = vand.u32 %v21, 4294901760
  %864 = vmatpush1.msra.mxu0 %v863
  %865 = vmatprep.subr.mxu0 0.0
  %v866 = vand.u32 %v22, 4294901760
  %867 = vmatpush1.msra.mxu0 %v866
  %868 = vmatprep.subr.mxu0 0.0
  %v869 = vand.u32 %v23, 4294901760
  %870 = vmatpush1.msra.mxu0 %v869
  %871 = vmatprep.subr.mxu0 0.0
  %v872 = vand.u32 %v24, 4294901760
  %873 = vmatpush1.msra.mxu0 %v872
  %874 = vmatprep.subr.mxu0 0.0
  %v875 = vand.u32 %v25, 4294901760
  %876 = vmatpush1.msra.mxu0 %v875
  %877 = vmatprep.subr.mxu0 0.0
  %v878 = vand.u32 %v26, 4294901760
  %879 = vmatpush1.msra.mxu0 %v878
  %880 = vmatprep.subr.mxu0 0.0
  %v881 = vand.u32 %v27, 4294901760
  %882 = vmatpush1.msra.mxu0 %v881
  %883 = vmatprep.subr.mxu0 0.0
  %v884 = vand.u32 %v28, 4294901760
  %885 = vmatpush1.msra.mxu0 %v884
  %886 = vmatprep.subr.mxu0 0.0
  %887 = vmatpush1.msra.mxu0 0.0
  %888 = vmatprep.subr.mxu0 0.0
  %889 = vmatpush1.msra.mxu0 0.0
  %890 = vmatprep.subr.mxu0 0.0
  %891 = vmatpush1.msra.mxu0 0.0
  %892 = vmatprep.subr.mxu0 0.0
  %893 = vmatpush1.msra.mxu0 0.0
  %894 = vmatprep.subr.mxu0 0.0
  %895 = vmatpush1.msra.mxu0 0.0
  %896 = vmatprep.subr.mxu0 0.0
  %897 = vmatpush1.msra.mxu0 0.0
  %898 = vmatprep.subr.mxu0 0.0
  %899 = vmatpush1.msra.mxu0 0.0
  %900 = vmatprep.subr.mxu0 0.0
  %901 = vmatpush1.msra.mxu0 0.0
  %902 = vmatprep.subr.mxu0 0.0
  %903 = vmatpush1.msra.mxu0 0.0
  %904 = vmatprep.subr.mxu0 0.0
  %905 = vmatpush1.msra.mxu0 0.0
  %906 = vmatprep.subr.mxu0 0.0
  %907 = vmatpush1.msra.mxu0 0.0
  %908 = vmatprep.subr.mxu0 0.0
  %909 = vmatpush1.msra.mxu0 0.0
  %910 = vmatprep.subr.mxu0 0.0
  %911 = vmatpush1.msra.mxu0 0.0
  %912 = vmatprep.subr.mxu0 0.0
  %913 = vmatpush1.msra.mxu0 0.0
  %914 = vmatprep.subr.mxu0 0.0
  %915 = vmatpush1.msra.mxu0 0.0
  %916 = vmatprep.subr.mxu0 0.0
  %917 = vmatpush1.msra.mxu0 0.0
  %918 = vmatprep.mubr.f32.mxu0 0.0
  %919 = vmatmul.mubr.f32.gmra.mrb[0].mxu0 0.0
  %v920 = vpop.f32.mrb[0].mxu0
  %v921 = vadd.f32 0.0, %v920
  %v922 = vpop.f32.mrb[0].mxu0
  %923 = vdwg.mxu0
  %924 = vmatprep.subr.mxu0 0.0
  %v925 = vand.u32 %v13, 4294901760
  %v926 = vsub.f32 %v13, %v925
  %v927 = vand.u32 %v926, 4294901760
  %v928 = vsub.f32 %v926, %v927
  %v929 = vand.u32 %v928, 4294901760
  %930 = vmatpush1.msra.mxu0 %v929
  %931 = vmatprep.subr.mxu0 0.0
  %v932 = vand.u32 %v14, 4294901760
  %v933 = vsub.f32 %v14, %v932
  %v934 = vand.u32 %v933, 4294901760
  %v935 = vsub.f32 %v933, %v934
  %v936 = vand.u32 %v935, 4294901760
  %937 = vmatpush1.msra.mxu0 %v936
  %938 = vmatprep.subr.mxu0 0.0
  %v939 = vand.u32 %v15, 4294901760
  %v940 = vsub.f32 %v15, %v939
  %v941 = vand.u32 %v940, 4294901760
  %v942 = vsub.f32 %v940, %v941
  %v943 = vand.u32 %v942, 4294901760
  %944 = vmatpush1.msra.mxu0 %v943
  %945 = vmatprep.subr.mxu0 0.0
  %v946 = vand.u32 %v16, 4294901760
  %v947 = vsub.f32 %v16, %v946
  %v948 = vand.u32 %v947, 4294901760
  %v949 = vsub.f32 %v947, %v948
  %v950 = vand.u32 %v949, 4294901760
  %951 = vmatpush1.msra.mxu0 %v950
  %952 = vmatprep.subr.mxu0 0.0
  %v953 = vand.u32 %v17, 4294901760
  %v954 = vsub.f32 %v17, %v953
  %v955 = vand.u32 %v954, 4294901760
  %v956 = vsub.f32 %v954, %v955
  %v957 = vand.u32 %v956, 4294901760
  %958 = vmatpush1.msra.mxu0 %v957
  %959 = vmatprep.subr.mxu0 0.0
  %v960 = vand.u32 %v18, 4294901760
  %v961 = vsub.f32 %v18, %v960
  %v962 = vand.u32 %v961, 4294901760
  %v963 = vsub.f32 %v961, %v962
  %v964 = vand.u32 %v963, 4294901760
  %965 = vmatpush1.msra.mxu0 %v964
  %966 = vmatprep.subr.mxu0 0.0
  %v967 = vand.u32 %v19, 4294901760
  %v968 = vsub.f32 %v19, %v967
  %v969 = vand.u32 %v968, 4294901760
  %v970 = vsub.f32 %v968, %v969
  %v971 = vand.u32 %v970, 4294901760
  %972 = vmatpush1.msra.mxu0 %v971
  %973 = vmatprep.subr.mxu0 0.0
  %v974 = vand.u32 %v20, 4294901760
  %v975 = vsub.f32 %v20, %v974
  %v976 = vand.u32 %v975, 4294901760
  %v977 = vsub.f32 %v975, %v976
  %v978 = vand.u32 %v977, 4294901760
  %979 = vmatpush1.msra.mxu0 %v978
  %980 = vmatprep.subr.mxu0 0.0
  %v981 = vand.u32 %v21, 4294901760
  %v982 = vsub.f32 %v21, %v981
  %v983 = vand.u32 %v982, 4294901760
  %v984 = vsub.f32 %v982, %v983
  %v985 = vand.u32 %v984, 4294901760
  %986 = vmatpush1.msra.mxu0 %v985
  %987 = vmatprep.subr.mxu0 0.0
  %v988 = vand.u32 %v22, 4294901760
  %v989 = vsub.f32 %v22, %v988
  %v990 = vand.u32 %v989, 4294901760
  %v991 = vsub.f32 %v989, %v990
  %v992 = vand.u32 %v991, 4294901760
  %993 = vmatpush1.msra.mxu0 %v992
  %994 = vmatprep.subr.mxu0 0.0
  %v995 = vand.u32 %v23, 4294901760
  %v996 = vsub.f32 %v23, %v995
  %v997 = vand.u32 %v996, 4294901760
  %v998 = vsub.f32 %v996, %v997
  %v999 = vand.u32 %v998, 4294901760
  %1000 = vmatpush1.msra.mxu0 %v999
  %1001 = vmatprep.subr.mxu0 0.0
  %v1002 = vand.u32 %v24, 4294901760
  %v1003 = vsub.f32 %v24, %v1002
  %v1004 = vand.u32 %v1003, 4294901760
  %v1005 = vsub.f32 %v1003, %v1004
  %v1006 = vand.u32 %v1005, 4294901760
  %1007 = vmatpush1.msra.mxu0 %v1006
  %1008 = vmatprep.subr.mxu0 0.0
  %v1009 = vand.u32 %v25, 4294901760
  %v1010 = vsub.f32 %v25, %v1009
  %v1011 = vand.u32 %v1010, 4294901760
  %v1012 = vsub.f32 %v1010, %v1011
  %v1013 = vand.u32 %v1012, 4294901760
  %1014 = vmatpush1.msra.mxu0 %v1013
  %1015 = vmatprep.subr.mxu0 0.0
  %v1016 = vand.u32 %v26, 4294901760
  %v1017 = vsub.f32 %v26, %v1016
  %v1018 = vand.u32 %v1017, 4294901760
  %v1019 = vsub.f32 %v1017, %v1018
  %v1020 = vand.u32 %v1019, 4294901760
  %1021 = vmatpush1.msra.mxu0 %v1020
  %1022 = vmatprep.subr.mxu0 0.0
  %v1023 = vand.u32 %v27, 4294901760
  %v1024 = vsub.f32 %v27, %v1023
  %v1025 = vand.u32 %v1024, 4294901760
  %v1026 = vsub.f32 %v1024, %v1025
  %v1027 = vand.u32 %v1026, 4294901760
  %1028 = vmatpush1.msra.mxu0 %v1027
  %1029 = vmatprep.subr.mxu0 0.0
  %v1030 = vand.u32 %v28, 4294901760
  %v1031 = vsub.f32 %v28, %v1030
  %v1032 = vand.u32 %v1031, 4294901760
  %v1033 = vsub.f32 %v1031, %v1032
  %v1034 = vand.u32 %v1033, 4294901760
  %1035 = vmatpush1.msra.mxu0 %v1034
  %1036 = vmatprep.subr.mxu0 0.0
  %1037 = vmatpush1.msra.mxu0 0.0
  %1038 = vmatprep.subr.mxu0 0.0
  %1039 = vmatpush1.msra.mxu0 0.0
  %1040 = vmatprep.subr.mxu0 0.0
  %1041 = vmatpush1.msra.mxu0 0.0
  %1042 = vmatprep.subr.mxu0 0.0
  %1043 = vmatpush1.msra.mxu0 0.0
  %1044 = vmatprep.subr.mxu0 0.0
  %1045 = vmatpush1.msra.mxu0 0.0
  %1046 = vmatprep.subr.mxu0 0.0
  %1047 = vmatpush1.msra.mxu0 0.0
  %1048 = vmatprep.subr.mxu0 0.0
  %1049 = vmatpush1.msra.mxu0 0.0
  %1050 = vmatprep.subr.mxu0 0.0
  %1051 = vmatpush1.msra.mxu0 0.0
  %1052 = vmatprep.subr.mxu0 0.0
  %1053 = vmatpush1.msra.mxu0 0.0
  %1054 = vmatprep.subr.mxu0 0.0
  %1055 = vmatpush1.msra.mxu0 0.0
  %1056 = vmatprep.subr.mxu0 0.0
  %1057 = vmatpush1.msra.mxu0 0.0
  %1058 = vmatprep.subr.mxu0 0.0
  %1059 = vmatpush1.msra.mxu0 0.0
  %1060 = vmatprep.subr.mxu0 0.0
  %1061 = vmatpush1.msra.mxu0 0.0
  %1062 = vmatprep.subr.mxu0 0.0
  %1063 = vmatpush1.msra.mxu0 0.0
  %1064 = vmatprep.subr.mxu0 0.0
  %1065 = vmatpush1.msra.mxu0 0.0
  %1066 = vmatprep.subr.mxu0 0.0
  %1067 = vmatpush1.msra.mxu0 0.0
  %1068 = vmatprep.mubr.f32.mxu0 0.0
  %1069 = vmatmul.mubr.f32.gmra.mrb[0].mxu0 0.0
  %v1070 = vpop.f32.mrb[0].mxu0
  %v1071 = vadd.f32 %v921, %v1070
  %v1072 = vpop.f32.mrb[0].mxu0
  %1073 = vdwg.mxu0
  %1074 = vmatprep.subr.mxu0 0.0
  %v1075 = vand.u32 %v13, 4294901760
  %v1076 = vsub.f32 %v13, %v1075
  %1077 = vmatpush1.msra.mxu0 %v1076
  %1078 = vmatprep.subr.mxu0 0.0
  %v1079 = vand.u32 %v14, 4294901760
  %v1080 = vsub.f32 %v14, %v1079
  %1081 = vmatpush1.msra.mxu0 %v1080
  %1082 = vmatprep.subr.mxu0 0.0
  %v1083 = vand.u32 %v15, 4294901760
  %v1084 = vsub.f32 %v15, %v1083
  %1085 = vmatpush1.msra.mxu0 %v1084
  %1086 = vmatprep.subr.mxu0 0.0
  %v1087 = vand.u32 %v16, 4294901760
  %v1088 = vsub.f32 %v16, %v1087
  %1089 = vmatpush1.msra.mxu0 %v1088
  %1090 = vmatprep.subr.mxu0 0.0
  %v1091 = vand.u32 %v17, 4294901760
  %v1092 = vsub.f32 %v17, %v1091
  %1093 = vmatpush1.msra.mxu0 %v1092
  %1094 = vmatprep.subr.mxu0 0.0
  %v1095 = vand.u32 %v18, 4294901760
  %v1096 = vsub.f32 %v18, %v1095
  %1097 = vmatpush1.msra.mxu0 %v1096
  %1098 = vmatprep.subr.mxu0 0.0
  %v1099 = vand.u32 %v19, 4294901760
  %v1100 = vsub.f32 %v19, %v1099
  %1101 = vmatpush1.msra.mxu0 %v1100
  %1102 = vmatprep.subr.mxu0 0.0
  %v1103 = vand.u32 %v20, 4294901760
  %v1104 = vsub.f32 %v20, %v1103
  %1105 = vmatpush1.msra.mxu0 %v1104
  %1106 = vmatprep.subr.mxu0 0.0
  %v1107 = vand.u32 %v21, 4294901760
  %v1108 = vsub.f32 %v21, %v1107
  %1109 = vmatpush1.msra.mxu0 %v1108
  %1110 = vmatprep.subr.mxu0 0.0
  %v1111 = vand.u32 %v22, 4294901760
  %v1112 = vsub.f32 %v22, %v1111
  %1113 = vmatpush1.msra.mxu0 %v1112
  %1114 = vmatprep.subr.mxu0 0.0
  %v1115 = vand.u32 %v23, 4294901760
  %v1116 = vsub.f32 %v23, %v1115
  %1117 = vmatpush1.msra.mxu0 %v1116
  %1118 = vmatprep.subr.mxu0 0.0
  %v1119 = vand.u32 %v24, 4294901760
  %v1120 = vsub.f32 %v24, %v1119
  %1121 = vmatpush1.msra.mxu0 %v1120
  %1122 = vmatprep.subr.mxu0 0.0
  %v1123 = vand.u32 %v25, 4294901760
  %v1124 = vsub.f32 %v25, %v1123
  %1125 = vmatpush1.msra.mxu0 %v1124
  %1126 = vmatprep.subr.mxu0 0.0
  %v1127 = vand.u32 %v26, 4294901760
  %v1128 = vsub.f32 %v26, %v1127
  %1129 = vmatpush1.msra.mxu0 %v1128
  %1130 = vmatprep.subr.mxu0 0.0
  %v1131 = vand.u32 %v27, 4294901760
  %v1132 = vsub.f32 %v27, %v1131
  %1133 = vmatpush1.msra.mxu0 %v1132
  %1134 = vmatprep.subr.mxu0 0.0
  %v1135 = vand.u32 %v28, 4294901760
  %v1136 = vsub.f32 %v28, %v1135
  %1137 = vmatpush1.msra.mxu0 %v1136
  %1138 = vmatprep.subr.mxu0 0.0
  %1139 = vmatpush1.msra.mxu0 0.0
  %1140 = vmatprep.subr.mxu0 0.0
  %1141 = vmatpush1.msra.mxu0 0.0
  %1142 = vmatprep.subr.mxu0 0.0
  %1143 = vmatpush1.msra.mxu0 0.0
  %1144 = vmatprep.subr.mxu0 0.0
  %1145 = vmatpush1.msra.mxu0 0.0
  %1146 = vmatprep.subr.mxu0 0.0
  %1147 = vmatpush1.msra.mxu0 0.0
  %1148 = vmatprep.subr.mxu0 0.0
  %1149 = vmatpush1.msra.mxu0 0.0
  %1150 = vmatprep.subr.mxu0 0.0
  %1151 = vmatpush1.msra.mxu0 0.0
  %1152 = vmatprep.subr.mxu0 0.0
  %1153 = vmatpush1.msra.mxu0 0.0
  %1154 = vmatprep.subr.mxu0 0.0
  %1155 = vmatpush1.msra.mxu0 0.0
  %1156 = vmatprep.subr.mxu0 0.0
  %1157 = vmatpush1.msra.mxu0 0.0
  %1158 = vmatprep.subr.mxu0 0.0
  %1159 = vmatpush1.msra.mxu0 0.0
  %1160 = vmatprep.subr.mxu0 0.0
  %1161 = vmatpush1.msra.mxu0 0.0
  %1162 = vmatprep.subr.mxu0 0.0
  %1163 = vmatpush1.msra.mxu0 0.0
  %1164 = vmatprep.subr.mxu0 0.0
  %1165 = vmatpush1.msra.mxu0 0.0
  %1166 = vmatprep.subr.mxu0 0.0
  %1167 = vmatpush1.msra.mxu0 0.0
  %1168 = vmatprep.subr.mxu0 0.0
  %1169 = vmatpush1.msra.mxu0 0.0
  %1170 = vmatprep.mubr.f32.mxu0 0.0
  %1171 = vmatmul.mubr.f32.gmra.mrb[0].mxu0 0.0
  %v1172 = vpop.f32.mrb[0].mxu0
  %v1173 = vadd.f32 %v1071, %v1172
  %v1174 = vpop.f32.mrb[0].mxu0
  %1175 = vdwg.mxu0
  %1176 = vmatprep.subr.mxu0 0.0
  %v1177 = vand.u32 %v13, 4294901760
  %1178 = vmatpush1.msra.mxu0 %v1177
  %1179 = vmatprep.subr.mxu0 0.0
  %v1180 = vand.u32 %v14, 4294901760
  %1181 = vmatpush1.msra.mxu0 %v1180
  %1182 = vmatprep.subr.mxu0 0.0
  %v1183 = vand.u32 %v15, 4294901760
  %1184 = vmatpush1.msra.mxu0 %v1183
  %1185 = vmatprep.subr.mxu0 0.0
  %v1186 = vand.u32 %v16, 4294901760
  %1187 = vmatpush1.msra.mxu0 %v1186
  %1188 = vmatprep.subr.mxu0 0.0
  %v1189 = vand.u32 %v17, 4294901760
  %1190 = vmatpush1.msra.mxu0 %v1189
  %1191 = vmatprep.subr.mxu0 0.0
  %v1192 = vand.u32 %v18, 4294901760
  %1193 = vmatpush1.msra.mxu0 %v1192
  %1194 = vmatprep.subr.mxu0 0.0
  %v1195 = vand.u32 %v19, 4294901760
  %1196 = vmatpush1.msra.mxu0 %v1195
  %1197 = vmatprep.subr.mxu0 0.0
  %v1198 = vand.u32 %v20, 4294901760
  %1199 = vmatpush1.msra.mxu0 %v1198
  %1200 = vmatprep.subr.mxu0 0.0
  %v1201 = vand.u32 %v21, 4294901760
  %1202 = vmatpush1.msra.mxu0 %v1201
  %1203 = vmatprep.subr.mxu0 0.0
  %v1204 = vand.u32 %v22, 4294901760
  %1205 = vmatpush1.msra.mxu0 %v1204
  %1206 = vmatprep.subr.mxu0 0.0
  %v1207 = vand.u32 %v23, 4294901760
  %1208 = vmatpush1.msra.mxu0 %v1207
  %1209 = vmatprep.subr.mxu0 0.0
  %v1210 = vand.u32 %v24, 4294901760
  %1211 = vmatpush1.msra.mxu0 %v1210
  %1212 = vmatprep.subr.mxu0 0.0
  %v1213 = vand.u32 %v25, 4294901760
  %1214 = vmatpush1.msra.mxu0 %v1213
  %1215 = vmatprep.subr.mxu0 0.0
  %v1216 = vand.u32 %v26, 4294901760
  %1217 = vmatpush1.msra.mxu0 %v1216
  %1218 = vmatprep.subr.mxu0 0.0
  %v1219 = vand.u32 %v27, 4294901760
  %1220 = vmatpush1.msra.mxu0 %v1219
  %1221 = vmatprep.subr.mxu0 0.0
  %v1222 = vand.u32 %v28, 4294901760
  %1223 = vmatpush1.msra.mxu0 %v1222
  %1224 = vmatprep.subr.mxu0 0.0
  %1225 = vmatpush1.msra.mxu0 0.0
  %1226 = vmatprep.subr.mxu0 0.0
  %1227 = vmatpush1.msra.mxu0 0.0
  %1228 = vmatprep.subr.mxu0 0.0
  %1229 = vmatpush1.msra.mxu0 0.0
  %1230 = vmatprep.subr.mxu0 0.0
  %1231 = vmatpush1.msra.mxu0 0.0
  %1232 = vmatprep.subr.mxu0 0.0
  %1233 = vmatpush1.msra.mxu0 0.0
  %1234 = vmatprep.subr.mxu0 0.0
  %1235 = vmatpush1.msra.mxu0 0.0
  %1236 = vmatprep.subr.mxu0 0.0
  %1237 = vmatpush1.msra.mxu0 0.0
  %1238 = vmatprep.subr.mxu0 0.0
  %1239 = vmatpush1.msra.mxu0 0.0
  %1240 = vmatprep.subr.mxu0 0.0
  %1241 = vmatpush1.msra.mxu0 0.0
  %1242 = vmatprep.subr.mxu0 0.0
  %1243 = vmatpush1.msra.mxu0 0.0
  %1244 = vmatprep.subr.mxu0 0.0
  %1245 = vmatpush1.msra.mxu0 0.0
  %1246 = vmatprep.subr.mxu0 0.0
  %1247 = vmatpush1.msra.mxu0 0.0
  %1248 = vmatprep.subr.mxu0 0.0
  %1249 = vmatpush1.msra.mxu0 0.0
  %1250 = vmatprep.subr.mxu0 0.0
  %1251 = vmatpush1.msra.mxu0 0.0
  %1252 = vmatprep.subr.mxu0 0.0
  %1253 = vmatpush1.msra.mxu0 0.0
  %1254 = vmatprep.subr.mxu0 0.0
  %1255 = vmatpush1.msra.mxu0 0.0
  %1256 = vmatprep.mubr.f32.mxu0 0.0
  %1257 = vmatmul.mubr.f32.gmra.mrb[0].mxu0 0.0
  %v1258 = vpop.f32.mrb[0].mxu0
  %v1259 = vadd.f32 %v1173, %v1258
  %v1260 = vpop.f32.mrb[0].mxu0
  %1261 = vdwg.mxu0
  %1262 = vmatprep.subr.mxu0 0.0
  %v1263 = vand.u32 %v13, 4294901760
  %v1264 = vsub.f32 %v13, %v1263
  %v1265 = vand.u32 %v1264, 4294901760
  %1266 = vmatpush1.msra.mxu0 %v1265
  %1267 = vmatprep.subr.mxu0 0.0
  %v1268 = vand.u32 %v14, 4294901760
  %v1269 = vsub.f32 %v14, %v1268
  %v1270 = vand.u32 %v1269, 4294901760
  %1271 = vmatpush1.msra.mxu0 %v1270
  %1272 = vmatprep.subr.mxu0 0.0
  %v1273 = vand.u32 %v15, 4294901760
  %v1274 = vsub.f32 %v15, %v1273
  %v1275 = vand.u32 %v1274, 4294901760
  %1276 = vmatpush1.msra.mxu0 %v1275
  %1277 = vmatprep.subr.mxu0 0.0
  %v1278 = vand.u32 %v16, 4294901760
  %v1279 = vsub.f32 %v16, %v1278
  %v1280 = vand.u32 %v1279, 4294901760
  %1281 = vmatpush1.msra.mxu0 %v1280
  %1282 = vmatprep.subr.mxu0 0.0
  %v1283 = vand.u32 %v17, 4294901760
  %v1284 = vsub.f32 %v17, %v1283
  %v1285 = vand.u32 %v1284, 4294901760
  %1286 = vmatpush1.msra.mxu0 %v1285
  %1287 = vmatprep.subr.mxu0 0.0
  %v1288 = vand.u32 %v18, 4294901760
  %v1289 = vsub.f32 %v18, %v1288
  %v1290 = vand.u32 %v1289, 4294901760
  %1291 = vmatpush1.msra.mxu0 %v1290
  %1292 = vmatprep.subr.mxu0 0.0
  %v1293 = vand.u32 %v19, 4294901760
  %v1294 = vsub.f32 %v19, %v1293
  %v1295 = vand.u32 %v1294, 4294901760
  %1296 = vmatpush1.msra.mxu0 %v1295
  %1297 = vmatprep.subr.mxu0 0.0
  %v1298 = vand.u32 %v20, 4294901760
  %v1299 = vsub.f32 %v20, %v1298
  %v1300 = vand.u32 %v1299, 4294901760
  %1301 = vmatpush1.msra.mxu0 %v1300
  %1302 = vmatprep.subr.mxu0 0.0
  %v1303 = vand.u32 %v21, 4294901760
  %v1304 = vsub.f32 %v21, %v1303
  %v1305 = vand.u32 %v1304, 4294901760
  %1306 = vmatpush1.msra.mxu0 %v1305
  %1307 = vmatprep.subr.mxu0 0.0
  %v1308 = vand.u32 %v22, 4294901760
  %v1309 = vsub.f32 %v22, %v1308
  %v1310 = vand.u32 %v1309, 4294901760
  %1311 = vmatpush1.msra.mxu0 %v1310
  %1312 = vmatprep.subr.mxu0 0.0
  %v1313 = vand.u32 %v23, 4294901760
  %v1314 = vsub.f32 %v23, %v1313
  %v1315 = vand.u32 %v1314, 4294901760
  %1316 = vmatpush1.msra.mxu0 %v1315
  %1317 = vmatprep.subr.mxu0 0.0
  %v1318 = vand.u32 %v24, 4294901760
  %v1319 = vsub.f32 %v24, %v1318
  %v1320 = vand.u32 %v1319, 4294901760
  %1321 = vmatpush1.msra.mxu0 %v1320
  %1322 = vmatprep.subr.mxu0 0.0
  %v1323 = vand.u32 %v25, 4294901760
  %v1324 = vsub.f32 %v25, %v1323
  %v1325 = vand.u32 %v1324, 4294901760
  %1326 = vmatpush1.msra.mxu0 %v1325
  %1327 = vmatprep.subr.mxu0 0.0
  %v1328 = vand.u32 %v26, 4294901760
  %v1329 = vsub.f32 %v26, %v1328
  %v1330 = vand.u32 %v1329, 4294901760
  %1331 = vmatpush1.msra.mxu0 %v1330
  %1332 = vmatprep.subr.mxu0 0.0
  %v1333 = vand.u32 %v27, 4294901760
  %v1334 = vsub.f32 %v27, %v1333
  %v1335 = vand.u32 %v1334, 4294901760
  %1336 = vmatpush1.msra.mxu0 %v1335
  %1337 = vmatprep.subr.mxu0 0.0
  %v1338 = vand.u32 %v28, 4294901760
  %v1339 = vsub.f32 %v28, %v1338
  %v1340 = vand.u32 %v1339, 4294901760
  %1341 = vmatpush1.msra.mxu0 %v1340
  %1342 = vmatprep.subr.mxu0 0.0
  %1343 = vmatpush1.msra.mxu0 0.0
  %1344 = vmatprep.subr.mxu0 0.0
  %1345 = vmatpush1.msra.mxu0 0.0
  %1346 = vmatprep.subr.mxu0 0.0
  %1347 = vmatpush1.msra.mxu0 0.0
  %1348 = vmatprep.subr.mxu0 0.0
  %1349 = vmatpush1.msra.mxu0 0.0
  %1350 = vmatprep.subr.mxu0 0.0
  %1351 = vmatpush1.msra.mxu0 0.0
  %1352 = vmatprep.subr.mxu0 0.0
  %1353 = vmatpush1.msra.mxu0 0.0
  %1354 = vmatprep.subr.mxu0 0.0
  %1355 = vmatpush1.msra.mxu0 0.0
  %1356 = vmatprep.subr.mxu0 0.0
  %1357 = vmatpush1.msra.mxu0 0.0
  %1358 = vmatprep.subr.mxu0 0.0
  %1359 = vmatpush1.msra.mxu0 0.0
  %1360 = vmatprep.subr.mxu0 0.0
  %1361 = vmatpush1.msra.mxu0 0.0
  %1362 = vmatprep.subr.mxu0 0.0
  %1363 = vmatpush1.msra.mxu0 0.0
  %1364 = vmatprep.subr.mxu0 0.0
  %1365 = vmatpush1.msra.mxu0 0.0
  %1366 = vmatprep.subr.mxu0 0.0
  %1367 = vmatpush1.msra.mxu0 0.0
  %1368 = vmatprep.subr.mxu0 0.0
  %1369 = vmatpush1.msra.mxu0 0.0
  %1370 = vmatprep.subr.mxu0 0.0
  %1371 = vmatpush1.msra.mxu0 0.0
  %1372 = vmatprep.subr.mxu0 0.0
  %1373 = vmatpush1.msra.mxu0 0.0
  %1374 = vmatprep.mubr.f32.mxu0 0.0
  %1375 = vmatmul.mubr.f32.gmra.mrb[0].mxu0 0.0
  %v1376 = vpop.f32.mrb[0].mxu0
  %v1377 = vadd.f32 %v1259, %v1376
  %v1378 = vpop.f32.mrb[0].mxu0
  %1379 = vdwg.mxu0
  %1380 = vmatprep.subr.mxu0 0.0
  %v1381 = vand.u32 %v13, 4294901760
  %1382 = vmatpush1.msra.mxu0 %v1381
  %1383 = vmatprep.subr.mxu0 0.0
  %v1384 = vand.u32 %v14, 4294901760
  %1385 = vmatpush1.msra.mxu0 %v1384
  %1386 = vmatprep.subr.mxu0 0.0
  %v1387 = vand.u32 %v15, 4294901760
  %1388 = vmatpush1.msra.mxu0 %v1387
  %1389 = vmatprep.subr.mxu0 0.0
  %v1390 = vand.u32 %v16, 4294901760
  %1391 = vmatpush1.msra.mxu0 %v1390
  %1392 = vmatprep.subr.mxu0 0.0
  %v1393 = vand.u32 %v17, 4294901760
  %1394 = vmatpush1.msra.mxu0 %v1393
  %1395 = vmatprep.subr.mxu0 0.0
  %v1396 = vand.u32 %v18, 4294901760
  %1397 = vmatpush1.msra.mxu0 %v1396
  %1398 = vmatprep.subr.mxu0 0.0
  %v1399 = vand.u32 %v19, 4294901760
  %1400 = vmatpush1.msra.mxu0 %v1399
  %1401 = vmatprep.subr.mxu0 0.0
  %v1402 = vand.u32 %v20, 4294901760
  %1403 = vmatpush1.msra.mxu0 %v1402
  %1404 = vmatprep.subr.mxu0 0.0
  %v1405 = vand.u32 %v21, 4294901760
  %1406 = vmatpush1.msra.mxu0 %v1405
  %1407 = vmatprep.subr.mxu0 0.0
  %v1408 = vand.u32 %v22, 4294901760
  %1409 = vmatpush1.msra.mxu0 %v1408
  %1410 = vmatprep.subr.mxu0 0.0
  %v1411 = vand.u32 %v23, 4294901760
  %1412 = vmatpush1.msra.mxu0 %v1411
  %1413 = vmatprep.subr.mxu0 0.0
  %v1414 = vand.u32 %v24, 4294901760
  %1415 = vmatpush1.msra.mxu0 %v1414
  %1416 = vmatprep.subr.mxu0 0.0
  %v1417 = vand.u32 %v25, 4294901760
  %1418 = vmatpush1.msra.mxu0 %v1417
  %1419 = vmatprep.subr.mxu0 0.0
  %v1420 = vand.u32 %v26, 4294901760
  %1421 = vmatpush1.msra.mxu0 %v1420
  %1422 = vmatprep.subr.mxu0 0.0
  %v1423 = vand.u32 %v27, 4294901760
  %1424 = vmatpush1.msra.mxu0 %v1423
  %1425 = vmatprep.subr.mxu0 0.0
  %v1426 = vand.u32 %v28, 4294901760
  %1427 = vmatpush1.msra.mxu0 %v1426
  %1428 = vmatprep.subr.mxu0 0.0
  %1429 = vmatpush1.msra.mxu0 0.0
  %1430 = vmatprep.subr.mxu0 0.0
  %1431 = vmatpush1.msra.mxu0 0.0
  %1432 = vmatprep.subr.mxu0 0.0
  %1433 = vmatpush1.msra.mxu0 0.0
  %1434 = vmatprep.subr.mxu0 0.0
  %1435 = vmatpush1.msra.mxu0 0.0
  %1436 = vmatprep.subr.mxu0 0.0
  %1437 = vmatpush1.msra.mxu0 0.0
  %1438 = vmatprep.subr.mxu0 0.0
  %1439 = vmatpush1.msra.mxu0 0.0
  %1440 = vmatprep.subr.mxu0 0.0
  %1441 = vmatpush1.msra.mxu0 0.0
  %1442 = vmatprep.subr.mxu0 0.0
  %1443 = vmatpush1.msra.mxu0 0.0
  %1444 = vmatprep.subr.mxu0 0.0
  %1445 = vmatpush1.msra.mxu0 0.0
  %1446 = vmatprep.subr.mxu0 0.0
  %1447 = vmatpush1.msra.mxu0 0.0
  %1448 = vmatprep.subr.mxu0 0.0
  %1449 = vmatpush1.msra.mxu0 0.0
  %1450 = vmatprep.subr.mxu0 0.0
  %1451 = vmatpush1.msra.mxu0 0.0
  %1452 = vmatprep.subr.mxu0 0.0
  %1453 = vmatpush1.msra.mxu0 0.0
  %1454 = vmatprep.subr.mxu0 0.0
  %1455 = vmatpush1.msra.mxu0 0.0
  %1456 = vmatprep.subr.mxu0 0.0
  %1457 = vmatpush1.msra.mxu0 0.0
  %1458 = vmatprep.subr.mxu0 0.0
  %1459 = vmatpush1.msra.mxu0 0.0
  %1460 = vmatprep.mubr.f32.mxu0 0.0
  %1461 = vmatmul.mubr.f32.gmra.mrb[0].mxu0 0.0
  %v1462 = vpop.f32.mrb[0].mxu0
  %v1463 = vadd.f32 %v1377, %v1462
  %v1464 = vpop.f32.mrb[0].mxu0
  %1465 = vdwg.mxu0
  %vm1466 = vcmp.gt.f32.partialorder 0.0, 1.0
  %v1467 = vsel %vm1466, 1.0, 0.0
  %v1468 = vadd.f32 %v793, 0.0
  %v1469 = vadd.f32 %v1468, %v1463
  %v1470 = vadd.f32 %v1469, 0.0
  %v1471 = vsub.f32 %v1470, %v1467
  %vm1472 = vcmp.gt.f32.partialorder %v1471, 1.0
  %v1473 = vsel %vm1472, 1, 0
  %v1474 = vcvt.s32.f32 %v1473
  %v1475 = vsub.f32 %v1470, %v1474
  %1476 = vmatprep.subr.mxu0 0.0
  %v1477 = vand.u32 %v13, 4294901760
  %1478 = vmatpush1.msra.mxu0 %v1477
  %1479 = vmatprep.subr.mxu0 0.0
  %v1480 = vand.u32 %v14, 4294901760
  %1481 = vmatpush1.msra.mxu0 %v1480
  %1482 = vmatprep.subr.mxu0 0.0
  %v1483 = vand.u32 %v15, 4294901760
  %1484 = vmatpush1.msra.mxu0 %v1483
  %1485 = vmatprep.subr.mxu0 0.0
  %v1486 = vand.u32 %v16, 4294901760
  %1487 = vmatpush1.msra.mxu0 %v1486
  %1488 = vmatprep.subr.mxu0 0.0
  %v1489 = vand.u32 %v17, 4294901760
  %1490 = vmatpush1.msra.mxu0 %v1489
  %1491 = vmatprep.subr.mxu0 0.0
  %v1492 = vand.u32 %v18, 4294901760
  %1493 = vmatpush1.msra.mxu0 %v1492
  %1494 = vmatprep.subr.mxu0 0.0
  %v1495 = vand.u32 %v19, 4294901760
  %1496 = vmatpush1.msra.mxu0 %v1495
  %1497 = vmatprep.subr.mxu0 0.0
  %v1498 = vand.u32 %v20, 4294901760
  %1499 = vmatpush1.msra.mxu0 %v1498
  %1500 = vmatprep.subr.mxu0 0.0
  %v1501 = vand.u32 %v21, 4294901760
  %1502 = vmatpush1.msra.mxu0 %v1501
  %1503 = vmatprep.subr.mxu0 0.0
  %v1504 = vand.u32 %v22, 4294901760
  %1505 = vmatpush1.msra.mxu0 %v1504
  %1506 = vmatprep.subr.mxu0 0.0
  %v1507 = vand.u32 %v23, 4294901760
  %1508 = vmatpush1.msra.mxu0 %v1507
  %1509 = vmatprep.subr.mxu0 0.0
  %v1510 = vand.u32 %v24, 4294901760
  %1511 = vmatpush1.msra.mxu0 %v1510
  %1512 = vmatprep.subr.mxu0 0.0
  %v1513 = vand.u32 %v25, 4294901760
  %1514 = vmatpush1.msra.mxu0 %v1513
  %1515 = vmatprep.subr.mxu0 0.0
  %v1516 = vand.u32 %v26, 4294901760
  %1517 = vmatpush1.msra.mxu0 %v1516
  %1518 = vmatprep.subr.mxu0 0.0
  %v1519 = vand.u32 %v27, 4294901760
  %1520 = vmatpush1.msra.mxu0 %v1519
  %1521 = vmatprep.subr.mxu0 0.0
  %v1522 = vand.u32 %v28, 4294901760
  %1523 = vmatpush1.msra.mxu0 %v1522
  %1524 = vmatprep.subr.mxu0 0.0
  %1525 = vmatpush1.msra.mxu0 0.0
  %1526 = vmatprep.subr.mxu0 0.0
  %1527 = vmatpush1.msra.mxu0 0.0
  %1528 = vmatprep.subr.mxu0 0.0
  %1529 = vmatpush1.msra.mxu0 0.0
  %1530 = vmatprep.subr.mxu0 0.0
  %1531 = vmatpush1.msra.mxu0 0.0
  %1532 = vmatprep.subr.mxu0 0.0
  %1533 = vmatpush1.msra.mxu0 0.0
  %1534 = vmatprep.subr.mxu0 0.0
  %1535 = vmatpush1.msra.mxu0 0.0
  %1536 = vmatprep.subr.mxu0 0.0
  %1537 = vmatpush1.msra.mxu0 0.0
  %1538 = vmatprep.subr.mxu0 0.0
  %1539 = vmatpush1.msra.mxu0 0.0
  %1540 = vmatprep.subr.mxu0 0.0
  %1541 = vmatpush1.msra.mxu0 0.0
  %1542 = vmatprep.subr.mxu0 0.0
  %1543 = vmatpush1.msra.mxu0 0.0
  %1544 = vmatprep.subr.mxu0 0.0
  %1545 = vmatpush1.msra.mxu0 0.0
  %1546 = vmatprep.subr.mxu0 0.0
  %1547 = vmatpush1.msra.mxu0 0.0
  %1548 = vmatprep.subr.mxu0 0.0
  %1549 = vmatpush1.msra.mxu0 0.0
  %1550 = vmatprep.subr.mxu0 0.0
  %1551 = vmatpush1.msra.mxu0 0.0
  %1552 = vmatprep.subr.mxu0 0.0
  %1553 = vmatpush1.msra.mxu0 0.0
  %1554 = vmatprep.subr.mxu0 0.0
  %1555 = vmatpush1.msra.mxu0 0.0
  %1556 = vmatprep.mubr.f32.mxu0 0.0
  %v1557 = vand.u32 %v1474, 4294901760
  %v1558 = vsub.f32 %v1474, %v1557
  %v1559 = vand.u32 %v1558, 4294901760
  %v1560 = vsub.f32 %v1558, %v1559
  %v1561 = vand.u32 %v1560, 4294901760
  %1562 = vmatmul.mubr.f32.gmra.mrb[0].mxu0 %v1561
  %v1563 = vpop.f32.mrb[0].mxu0
  %v1564 = vadd.f32 0.0, %v1563
  %v1565 = vpop.f32.mrb[0].mxu0
  %1566 = vdwg.mxu0
  %1567 = vmatprep.subr.mxu0 0.0
  %v1568 = vand.u32 %v13, 4294901760
  %v1569 = vsub.f32 %v13, %v1568
  %v1570 = vand.u32 %v1569, 4294901760
  %v1571 = vsub.f32 %v1569, %v1570
  %v1572 = vand.u32 %v1571, 4294901760
  %1573 = vmatpush1.msra.mxu0 %v1572
  %1574 = vmatprep.subr.mxu0 0.0
  %v1575 = vand.u32 %v14, 4294901760
  %v1576 = vsub.f32 %v14, %v1575
  %v1577 = vand.u32 %v1576, 4294901760
  %v1578 = vsub.f32 %v1576, %v1577
  %v1579 = vand.u32 %v1578, 4294901760
  %1580 = vmatpush1.msra.mxu0 %v1579
  %1581 = vmatprep.subr.mxu0 0.0
  %v1582 = vand.u32 %v15, 4294901760
  %v1583 = vsub.f32 %v15, %v1582
  %v1584 = vand.u32 %v1583, 4294901760
  %v1585 = vsub.f32 %v1583, %v1584
  %v1586 = vand.u32 %v1585, 4294901760
  %1587 = vmatpush1.msra.mxu0 %v1586
  %1588 = vmatprep.subr.mxu0 0.0
  %v1589 = vand.u32 %v16, 4294901760
  %v1590 = vsub.f32 %v16, %v1589
  %v1591 = vand.u32 %v1590, 4294901760
  %v1592 = vsub.f32 %v1590, %v1591
  %v1593 = vand.u32 %v1592, 4294901760
  %1594 = vmatpush1.msra.mxu0 %v1593
  %1595 = vmatprep.subr.mxu0 0.0
  %v1596 = vand.u32 %v17, 4294901760
  %v1597 = vsub.f32 %v17, %v1596
  %v1598 = vand.u32 %v1597, 4294901760
  %v1599 = vsub.f32 %v1597, %v1598
  %v1600 = vand.u32 %v1599, 4294901760
  %1601 = vmatpush1.msra.mxu0 %v1600
  %1602 = vmatprep.subr.mxu0 0.0
  %v1603 = vand.u32 %v18, 4294901760
  %v1604 = vsub.f32 %v18, %v1603
  %v1605 = vand.u32 %v1604, 4294901760
  %v1606 = vsub.f32 %v1604, %v1605
  %v1607 = vand.u32 %v1606, 4294901760
  %1608 = vmatpush1.msra.mxu0 %v1607
  %1609 = vmatprep.subr.mxu0 0.0
  %v1610 = vand.u32 %v19, 4294901760
  %v1611 = vsub.f32 %v19, %v1610
  %v1612 = vand.u32 %v1611, 4294901760
  %v1613 = vsub.f32 %v1611, %v1612
  %v1614 = vand.u32 %v1613, 4294901760
  %1615 = vmatpush1.msra.mxu0 %v1614
  %1616 = vmatprep.subr.mxu0 0.0
  %v1617 = vand.u32 %v20, 4294901760
  %v1618 = vsub.f32 %v20, %v1617
  %v1619 = vand.u32 %v1618, 4294901760
  %v1620 = vsub.f32 %v1618, %v1619
  %v1621 = vand.u32 %v1620, 4294901760
  %1622 = vmatpush1.msra.mxu0 %v1621
  %1623 = vmatprep.subr.mxu0 0.0
  %v1624 = vand.u32 %v21, 4294901760
  %v1625 = vsub.f32 %v21, %v1624
  %v1626 = vand.u32 %v1625, 4294901760
  %v1627 = vsub.f32 %v1625, %v1626
  %v1628 = vand.u32 %v1627, 4294901760
  %1629 = vmatpush1.msra.mxu0 %v1628
  %1630 = vmatprep.subr.mxu0 0.0
  %v1631 = vand.u32 %v22, 4294901760
  %v1632 = vsub.f32 %v22, %v1631
  %v1633 = vand.u32 %v1632, 4294901760
  %v1634 = vsub.f32 %v1632, %v1633
  %v1635 = vand.u32 %v1634, 4294901760
  %1636 = vmatpush1.msra.mxu0 %v1635
  %1637 = vmatprep.subr.mxu0 0.0
  %v1638 = vand.u32 %v23, 4294901760
  %v1639 = vsub.f32 %v23, %v1638
  %v1640 = vand.u32 %v1639, 4294901760
  %v1641 = vsub.f32 %v1639, %v1640
  %v1642 = vand.u32 %v1641, 4294901760
  %1643 = vmatpush1.msra.mxu0 %v1642
  %1644 = vmatprep.subr.mxu0 0.0
  %v1645 = vand.u32 %v24, 4294901760
  %v1646 = vsub.f32 %v24, %v1645
  %v1647 = vand.u32 %v1646, 4294901760
  %v1648 = vsub.f32 %v1646, %v1647
  %v1649 = vand.u32 %v1648, 4294901760
  %1650 = vmatpush1.msra.mxu0 %v1649
  %1651 = vmatprep.subr.mxu0 0.0
  %v1652 = vand.u32 %v25, 4294901760
  %v1653 = vsub.f32 %v25, %v1652
  %v1654 = vand.u32 %v1653, 4294901760
  %v1655 = vsub.f32 %v1653, %v1654
  %v1656 = vand.u32 %v1655, 4294901760
  %1657 = vmatpush1.msra.mxu0 %v1656
  %1658 = vmatprep.subr.mxu0 0.0
  %v1659 = vand.u32 %v26, 4294901760
  %v1660 = vsub.f32 %v26, %v1659
  %v1661 = vand.u32 %v1660, 4294901760
  %v1662 = vsub.f32 %v1660, %v1661
  %v1663 = vand.u32 %v1662, 4294901760
  %1664 = vmatpush1.msra.mxu0 %v1663
  %1665 = vmatprep.subr.mxu0 0.0
  %v1666 = vand.u32 %v27, 4294901760
  %v1667 = vsub.f32 %v27, %v1666
  %v1668 = vand.u32 %v1667, 4294901760
  %v1669 = vsub.f32 %v1667, %v1668
  %v1670 = vand.u32 %v1669, 4294901760
  %1671 = vmatpush1.msra.mxu0 %v1670
  %1672 = vmatprep.subr.mxu0 0.0
  %v1673 = vand.u32 %v28, 4294901760
  %v1674 = vsub.f32 %v28, %v1673
  %v1675 = vand.u32 %v1674, 4294901760
  %v1676 = vsub.f32 %v1674, %v1675
  %v1677 = vand.u32 %v1676, 4294901760
  %1678 = vmatpush1.msra.mxu0 %v1677
  %1679 = vmatprep.subr.mxu0 0.0
  %1680 = vmatpush1.msra.mxu0 0.0
  %1681 = vmatprep.subr.mxu0 0.0
  %1682 = vmatpush1.msra.mxu0 0.0
  %1683 = vmatprep.subr.mxu0 0.0
  %1684 = vmatpush1.msra.mxu0 0.0
  %1685 = vmatprep.subr.mxu0 0.0
  %1686 = vmatpush1.msra.mxu0 0.0
  %1687 = vmatprep.subr.mxu0 0.0
  %1688 = vmatpush1.msra.mxu0 0.0
  %1689 = vmatprep.subr.mxu0 0.0
  %1690 = vmatpush1.msra.mxu0 0.0
  %1691 = vmatprep.subr.mxu0 0.0
  %1692 = vmatpush1.msra.mxu0 0.0
  %1693 = vmatprep.subr.mxu0 0.0
  %1694 = vmatpush1.msra.mxu0 0.0
  %1695 = vmatprep.subr.mxu0 0.0
  %1696 = vmatpush1.msra.mxu0 0.0
  %1697 = vmatprep.subr.mxu0 0.0
  %1698 = vmatpush1.msra.mxu0 0.0
  %1699 = vmatprep.subr.mxu0 0.0
  %1700 = vmatpush1.msra.mxu0 0.0
  %1701 = vmatprep.subr.mxu0 0.0
  %1702 = vmatpush1.msra.mxu0 0.0
  %1703 = vmatprep.subr.mxu0 0.0
  %1704 = vmatpush1.msra.mxu0 0.0
  %1705 = vmatprep.subr.mxu0 0.0
  %1706 = vmatpush1.msra.mxu0 0.0
  %1707 = vmatprep.subr.mxu0 0.0
  %1708 = vmatpush1.msra.mxu0 0.0
  %1709 = vmatprep.subr.mxu0 0.0
  %1710 = vmatpush1.msra.mxu0 0.0
  %1711 = vmatprep.mubr.f32.mxu0 0.0
  %v1712 = vand.u32 %v1474, 4294901760
  %1713 = vmatmul.mubr.f32.gmra.mrb[0].mxu0 %v1712
  %v1714 = vpop.f32.mrb[0].mxu0
  %v1715 = vadd.f32 %v1564, %v1714
  %v1716 = vpop.f32.mrb[0].mxu0
  %1717 = vdwg.mxu0
  %1718 = vmatprep.subr.mxu0 0.0
  %v1719 = vand.u32 %v13, 4294901760
  %v1720 = vsub.f32 %v13, %v1719
  %1721 = vmatpush1.msra.mxu0 %v1720
  %1722 = vmatprep.subr.mxu0 0.0
  %v1723 = vand.u32 %v14, 4294901760
  %v1724 = vsub.f32 %v14, %v1723
  %1725 = vmatpush1.msra.mxu0 %v1724
  %1726 = vmatprep.subr.mxu0 0.0
  %v1727 = vand.u32 %v15, 4294901760
  %v1728 = vsub.f32 %v15, %v1727
  %1729 = vmatpush1.msra.mxu0 %v1728
  %1730 = vmatprep.subr.mxu0 0.0
  %v1731 = vand.u32 %v16, 4294901760
  %v1732 = vsub.f32 %v16, %v1731
  %1733 = vmatpush1.msra.mxu0 %v1732
  %1734 = vmatprep.subr.mxu0 0.0
  %v1735 = vand.u32 %v17, 4294901760
  %v1736 = vsub.f32 %v17, %v1735
  %1737 = vmatpush1.msra.mxu0 %v1736
  %1738 = vmatprep.subr.mxu0 0.0
  %v1739 = vand.u32 %v18, 4294901760
  %v1740 = vsub.f32 %v18, %v1739
  %1741 = vmatpush1.msra.mxu0 %v1740
  %1742 = vmatprep.subr.mxu0 0.0
  %v1743 = vand.u32 %v19, 4294901760
  %v1744 = vsub.f32 %v19, %v1743
  %1745 = vmatpush1.msra.mxu0 %v1744
  %1746 = vmatprep.subr.mxu0 0.0
  %v1747 = vand.u32 %v20, 4294901760
  %v1748 = vsub.f32 %v20, %v1747
  %1749 = vmatpush1.msra.mxu0 %v1748
  %1750 = vmatprep.subr.mxu0 0.0
  %v1751 = vand.u32 %v21, 4294901760
  %v1752 = vsub.f32 %v21, %v1751
  %1753 = vmatpush1.msra.mxu0 %v1752
  %1754 = vmatprep.subr.mxu0 0.0
  %v1755 = vand.u32 %v22, 4294901760
  %v1756 = vsub.f32 %v22, %v1755
  %1757 = vmatpush1.msra.mxu0 %v1756
  %1758 = vmatprep.subr.mxu0 0.0
  %v1759 = vand.u32 %v23, 4294901760
  %v1760 = vsub.f32 %v23, %v1759
  %1761 = vmatpush1.msra.mxu0 %v1760
  %1762 = vmatprep.subr.mxu0 0.0
  %v1763 = vand.u32 %v24, 4294901760
  %v1764 = vsub.f32 %v24, %v1763
  %1765 = vmatpush1.msra.mxu0 %v1764
  %1766 = vmatprep.subr.mxu0 0.0
  %v1767 = vand.u32 %v25, 4294901760
  %v1768 = vsub.f32 %v25, %v1767
  %1769 = vmatpush1.msra.mxu0 %v1768
  %1770 = vmatprep.subr.mxu0 0.0
  %v1771 = vand.u32 %v26, 4294901760
  %v1772 = vsub.f32 %v26, %v1771
  %1773 = vmatpush1.msra.mxu0 %v1772
  %1774 = vmatprep.subr.mxu0 0.0
  %v1775 = vand.u32 %v27, 4294901760
  %v1776 = vsub.f32 %v27, %v1775
  %1777 = vmatpush1.msra.mxu0 %v1776
  %1778 = vmatprep.subr.mxu0 0.0
  %v1779 = vand.u32 %v28, 4294901760
  %v1780 = vsub.f32 %v28, %v1779
  %1781 = vmatpush1.msra.mxu0 %v1780
  %1782 = vmatprep.subr.mxu0 0.0
  %1783 = vmatpush1.msra.mxu0 0.0
  %1784 = vmatprep.subr.mxu0 0.0
  %1785 = vmatpush1.msra.mxu0 0.0
  %1786 = vmatprep.subr.mxu0 0.0
  %1787 = vmatpush1.msra.mxu0 0.0
  %1788 = vmatprep.subr.mxu0 0.0
  %1789 = vmatpush1.msra.mxu0 0.0
  %1790 = vmatprep.subr.mxu0 0.0
  %1791 = vmatpush1.msra.mxu0 0.0
  %1792 = vmatprep.subr.mxu0 0.0
  %1793 = vmatpush1.msra.mxu0 0.0
  %1794 = vmatprep.subr.mxu0 0.0
  %1795 = vmatpush1.msra.mxu0 0.0
  %1796 = vmatprep.subr.mxu0 0.0
  %1797 = vmatpush1.msra.mxu0 0.0
  %1798 = vmatprep.subr.mxu0 0.0
  %1799 = vmatpush1.msra.mxu0 0.0
  %1800 = vmatprep.subr.mxu0 0.0
  %1801 = vmatpush1.msra.mxu0 0.0
  %1802 = vmatprep.subr.mxu0 0.0
  %1803 = vmatpush1.msra.mxu0 0.0
  %1804 = vmatprep.subr.mxu0 0.0
  %1805 = vmatpush1.msra.mxu0 0.0
  %1806 = vmatprep.subr.mxu0 0.0
  %1807 = vmatpush1.msra.mxu0 0.0
  %1808 = vmatprep.subr.mxu0 0.0
  %1809 = vmatpush1.msra.mxu0 0.0
  %1810 = vmatprep.subr.mxu0 0.0
  %1811 = vmatpush1.msra.mxu0 0.0
  %1812 = vmatprep.subr.mxu0 0.0
  %1813 = vmatpush1.msra.mxu0 0.0
  %1814 = vmatprep.mubr.f32.mxu0 0.0
  %v1815 = vand.u32 %v1474, 4294901760
  %v1816 = vsub.f32 %v1474, %v1815
  %1817 = vmatmul.mubr.f32.gmra.mrb[0].mxu0 %v1816
  %v1818 = vpop.f32.mrb[0].mxu0
  %v1819 = vadd.f32 %v1715, %v1818
  %v1820 = vpop.f32.mrb[0].mxu0
  %1821 = vdwg.mxu0
  %1822 = vmatprep.subr.mxu0 0.0
  %v1823 = vand.u32 %v13, 4294901760
  %1824 = vmatpush1.msra.mxu0 %v1823
  %1825 = vmatprep.subr.mxu0 0.0
  %v1826 = vand.u32 %v14, 4294901760
  %1827 = vmatpush1.msra.mxu0 %v1826
  %1828 = vmatprep.subr.mxu0 0.0
  %v1829 = vand.u32 %v15, 4294901760
  %1830 = vmatpush1.msra.mxu0 %v1829
  %1831 = vmatprep.subr.mxu0 0.0
  %v1832 = vand.u32 %v16, 4294901760
  %1833 = vmatpush1.msra.mxu0 %v1832
  %1834 = vmatprep.subr.mxu0 0.0
  %v1835 = vand.u32 %v17, 4294901760
  %1836 = vmatpush1.msra.mxu0 %v1835
  %1837 = vmatprep.subr.mxu0 0.0
  %v1838 = vand.u32 %v18, 4294901760
  %1839 = vmatpush1.msra.mxu0 %v1838
  %1840 = vmatprep.subr.mxu0 0.0
  %v1841 = vand.u32 %v19, 4294901760
  %1842 = vmatpush1.msra.mxu0 %v1841
  %1843 = vmatprep.subr.mxu0 0.0
  %v1844 = vand.u32 %v20, 4294901760
  %1845 = vmatpush1.msra.mxu0 %v1844
  %1846 = vmatprep.subr.mxu0 0.0
  %v1847 = vand.u32 %v21, 4294901760
  %1848 = vmatpush1.msra.mxu0 %v1847
  %1849 = vmatprep.subr.mxu0 0.0
  %v1850 = vand.u32 %v22, 4294901760
  %1851 = vmatpush1.msra.mxu0 %v1850
  %1852 = vmatprep.subr.mxu0 0.0
  %v1853 = vand.u32 %v23, 4294901760
  %1854 = vmatpush1.msra.mxu0 %v1853
  %1855 = vmatprep.subr.mxu0 0.0
  %v1856 = vand.u32 %v24, 4294901760
  %1857 = vmatpush1.msra.mxu0 %v1856
  %1858 = vmatprep.subr.mxu0 0.0
  %v1859 = vand.u32 %v25, 4294901760
  %1860 = vmatpush1.msra.mxu0 %v1859
  %1861 = vmatprep.subr.mxu0 0.0
  %v1862 = vand.u32 %v26, 4294901760
  %1863 = vmatpush1.msra.mxu0 %v1862
  %1864 = vmatprep.subr.mxu0 0.0
  %v1865 = vand.u32 %v27, 4294901760
  %1866 = vmatpush1.msra.mxu0 %v1865
  %1867 = vmatprep.subr.mxu0 0.0
  %v1868 = vand.u32 %v28, 4294901760
  %1869 = vmatpush1.msra.mxu0 %v1868
  %1870 = vmatprep.subr.mxu0 0.0
  %1871 = vmatpush1.msra.mxu0 0.0
  %1872 = vmatprep.subr.mxu0 0.0
  %1873 = vmatpush1.msra.mxu0 0.0
  %1874 = vmatprep.subr.mxu0 0.0
  %1875 = vmatpush1.msra.mxu0 0.0
  %1876 = vmatprep.subr.mxu0 0.0
  %1877 = vmatpush1.msra.mxu0 0.0
  %1878 = vmatprep.subr.mxu0 0.0
  %1879 = vmatpush1.msra.mxu0 0.0
  %1880 = vmatprep.subr.mxu0 0.0
  %1881 = vmatpush1.msra.mxu0 0.0
  %1882 = vmatprep.subr.mxu0 0.0
  %1883 = vmatpush1.msra.mxu0 0.0
  %1884 = vmatprep.subr.mxu0 0.0
  %1885 = vmatpush1.msra.mxu0 0.0
  %1886 = vmatprep.subr.mxu0 0.0
  %1887 = vmatpush1.msra.mxu0 0.0
  %1888 = vmatprep.subr.mxu0 0.0
  %1889 = vmatpush1.msra.mxu0 0.0
  %1890 = vmatprep.subr.mxu0 0.0
  %1891 = vmatpush1.msra.mxu0 0.0
  %1892 = vmatprep.subr.mxu0 0.0
  %1893 = vmatpush1.msra.mxu0 0.0
  %1894 = vmatprep.subr.mxu0 0.0
  %1895 = vmatpush1.msra.mxu0 0.0
  %1896 = vmatprep.subr.mxu0 0.0
  %1897 = vmatpush1.msra.mxu0 0.0
  %1898 = vmatprep.subr.mxu0 0.0
  %1899 = vmatpush1.msra.mxu0 0.0
  %1900 = vmatprep.subr.mxu0 0.0
  %1901 = vmatpush1.msra.mxu0 0.0
  %1902 = vmatprep.mubr.f32.mxu0 0.0
  %v1903 = vand.u32 %v1474, 4294901760
  %v1904 = vsub.f32 %v1474, %v1903
  %v1905 = vand.u32 %v1904, 4294901760
  %1906 = vmatmul.mubr.f32.gmra.mrb[0].mxu0 %v1905
  %v1907 = vpop.f32.mrb[0].mxu0
  %v1908 = vadd.f32 %v1819, %v1907
  %v1909 = vpop.f32.mrb[0].mxu0
  %1910 = vdwg.mxu0
  %1911 = vmatprep.subr.mxu0 0.0
  %v1912 = vand.u32 %v13, 4294901760
  %v1913 = vsub.f32 %v13, %v1912
  %v1914 = vand.u32 %v1913, 4294901760
  %1915 = vmatpush1.msra.mxu0 %v1914
  %1916 = vmatprep.subr.mxu0 0.0
  %v1917 = vand.u32 %v14, 4294901760
  %v1918 = vsub.f32 %v14, %v1917
  %v1919 = vand.u32 %v1918, 4294901760
  %1920 = vmatpush1.msra.mxu0 %v1919
  %1921 = vmatprep.subr.mxu0 0.0
  %v1922 = vand.u32 %v15, 4294901760
  %v1923 = vsub.f32 %v15, %v1922
  %v1924 = vand.u32 %v1923, 4294901760
  %1925 = vmatpush1.msra.mxu0 %v1924
  %1926 = vmatprep.subr.mxu0 0.0
  %v1927 = vand.u32 %v16, 4294901760
  %v1928 = vsub.f32 %v16, %v1927
  %v1929 = vand.u32 %v1928, 4294901760
  %1930 = vmatpush1.msra.mxu0 %v1929
  %1931 = vmatprep.subr.mxu0 0.0
  %v1932 = vand.u32 %v17, 4294901760
  %v1933 = vsub.f32 %v17, %v1932
  %v1934 = vand.u32 %v1933, 4294901760
  %1935 = vmatpush1.msra.mxu0 %v1934
  %1936 = vmatprep.subr.mxu0 0.0
  %v1937 = vand.u32 %v18, 4294901760
  %v1938 = vsub.f32 %v18, %v1937
  %v1939 = vand.u32 %v1938, 4294901760
  %1940 = vmatpush1.msra.mxu0 %v1939
  %1941 = vmatprep.subr.mxu0 0.0
  %v1942 = vand.u32 %v19, 4294901760
  %v1943 = vsub.f32 %v19, %v1942
  %v1944 = vand.u32 %v1943, 4294901760
  %1945 = vmatpush1.msra.mxu0 %v1944
  %1946 = vmatprep.subr.mxu0 0.0
  %v1947 = vand.u32 %v20, 4294901760
  %v1948 = vsub.f32 %v20, %v1947
  %v1949 = vand.u32 %v1948, 4294901760
  %1950 = vmatpush1.msra.mxu0 %v1949
  %1951 = vmatprep.subr.mxu0 0.0
  %v1952 = vand.u32 %v21, 4294901760
  %v1953 = vsub.f32 %v21, %v1952
  %v1954 = vand.u32 %v1953, 4294901760
  %1955 = vmatpush1.msra.mxu0 %v1954
  %1956 = vmatprep.subr.mxu0 0.0
  %v1957 = vand.u32 %v22, 4294901760
  %v1958 = vsub.f32 %v22, %v1957
  %v1959 = vand.u32 %v1958, 4294901760
  %1960 = vmatpush1.msra.mxu0 %v1959
  %1961 = vmatprep.subr.mxu0 0.0
  %v1962 = vand.u32 %v23, 4294901760
  %v1963 = vsub.f32 %v23, %v1962
  %v1964 = vand.u32 %v1963, 4294901760
  %1965 = vmatpush1.msra.mxu0 %v1964
  %1966 = vmatprep.subr.mxu0 0.0
  %v1967 = vand.u32 %v24, 4294901760
  %v1968 = vsub.f32 %v24, %v1967
  %v1969 = vand.u32 %v1968, 4294901760
  %1970 = vmatpush1.msra.mxu0 %v1969
  %1971 = vmatprep.subr.mxu0 0.0
  %v1972 = vand.u32 %v25, 4294901760
  %v1973 = vsub.f32 %v25, %v1972
  %v1974 = vand.u32 %v1973, 4294901760
  %1975 = vmatpush1.msra.mxu0 %v1974
  %1976 = vmatprep.subr.mxu0 0.0
  %v1977 = vand.u32 %v26, 4294901760
  %v1978 = vsub.f32 %v26, %v1977
  %v1979 = vand.u32 %v1978, 4294901760
  %1980 = vmatpush1.msra.mxu0 %v1979
  %1981 = vmatprep.subr.mxu0 0.0
  %v1982 = vand.u32 %v27, 4294901760
  %v1983 = vsub.f32 %v27, %v1982
  %v1984 = vand.u32 %v1983, 4294901760
  %1985 = vmatpush1.msra.mxu0 %v1984
  %1986 = vmatprep.subr.mxu0 0.0
  %v1987 = vand.u32 %v28, 4294901760
  %v1988 = vsub.f32 %v28, %v1987
  %v1989 = vand.u32 %v1988, 4294901760
  %1990 = vmatpush1.msra.mxu0 %v1989
  %1991 = vmatprep.subr.mxu0 0.0
  %1992 = vmatpush1.msra.mxu0 0.0
  %1993 = vmatprep.subr.mxu0 0.0
  %1994 = vmatpush1.msra.mxu0 0.0
  %1995 = vmatprep.subr.mxu0 0.0
  %1996 = vmatpush1.msra.mxu0 0.0
  %1997 = vmatprep.subr.mxu0 0.0
  %1998 = vmatpush1.msra.mxu0 0.0
  %1999 = vmatprep.subr.mxu0 0.0
  %2000 = vmatpush1.msra.mxu0 0.0
  %2001 = vmatprep.subr.mxu0 0.0
  %2002 = vmatpush1.msra.mxu0 0.0
  %2003 = vmatprep.subr.mxu0 0.0
  %2004 = vmatpush1.msra.mxu0 0.0
  %2005 = vmatprep.subr.mxu0 0.0
  %2006 = vmatpush1.msra.mxu0 0.0
  %2007 = vmatprep.subr.mxu0 0.0
  %2008 = vmatpush1.msra.mxu0 0.0
  %2009 = vmatprep.subr.mxu0 0.0
  %2010 = vmatpush1.msra.mxu0 0.0
  %2011 = vmatprep.subr.mxu0 0.0
  %2012 = vmatpush1.msra.mxu0 0.0
  %2013 = vmatprep.subr.mxu0 0.0
  %2014 = vmatpush1.msra.mxu0 0.0
  %2015 = vmatprep.subr.mxu0 0.0
  %2016 = vmatpush1.msra.mxu0 0.0
  %2017 = vmatprep.subr.mxu0 0.0
  %2018 = vmatpush1.msra.mxu0 0.0
  %2019 = vmatprep.subr.mxu0 0.0
  %2020 = vmatpush1.msra.mxu0 0.0
  %2021 = vmatprep.subr.mxu0 0.0
  %2022 = vmatpush1.msra.mxu0 0.0
  %2023 = vmatprep.mubr.f32.mxu0 0.0
  %v2024 = vand.u32 %v1474, 4294901760
  %2025 = vmatmul.mubr.f32.gmra.mrb[0].mxu0 %v2024
  %v2026 = vpop.f32.mrb[0].mxu0
  %v2027 = vadd.f32 %v1908, %v2026
  %v2028 = vpop.f32.mrb[0].mxu0
  %2029 = vdwg.mxu0
  %2030 = vmatprep.subr.mxu0 0.0
  %v2031 = vand.u32 %v13, 4294901760
  %2032 = vmatpush1.msra.mxu0 %v2031
  %2033 = vmatprep.subr.mxu0 0.0
  %v2034 = vand.u32 %v14, 4294901760
  %2035 = vmatpush1.msra.mxu0 %v2034
  %2036 = vmatprep.subr.mxu0 0.0
  %v2037 = vand.u32 %v15, 4294901760
  %2038 = vmatpush1.msra.mxu0 %v2037
  %2039 = vmatprep.subr.mxu0 0.0
  %v2040 = vand.u32 %v16, 4294901760
  %2041 = vmatpush1.msra.mxu0 %v2040
  %2042 = vmatprep.subr.mxu0 0.0
  %v2043 = vand.u32 %v17, 4294901760
  %2044 = vmatpush1.msra.mxu0 %v2043
  %2045 = vmatprep.subr.mxu0 0.0
  %v2046 = vand.u32 %v18, 4294901760
  %2047 = vmatpush1.msra.mxu0 %v2046
  %2048 = vmatprep.subr.mxu0 0.0
  %v2049 = vand.u32 %v19, 4294901760
  %2050 = vmatpush1.msra.mxu0 %v2049
  %2051 = vmatprep.subr.mxu0 0.0
  %v2052 = vand.u32 %v20, 4294901760
  %2053 = vmatpush1.msra.mxu0 %v2052
  %2054 = vmatprep.subr.mxu0 0.0
  %v2055 = vand.u32 %v21, 4294901760
  %2056 = vmatpush1.msra.mxu0 %v2055
  %2057 = vmatprep.subr.mxu0 0.0
  %v2058 = vand.u32 %v22, 4294901760
  %2059 = vmatpush1.msra.mxu0 %v2058
  %2060 = vmatprep.subr.mxu0 0.0
  %v2061 = vand.u32 %v23, 4294901760
  %2062 = vmatpush1.msra.mxu0 %v2061
  %2063 = vmatprep.subr.mxu0 0.0
  %v2064 = vand.u32 %v24, 4294901760
  %2065 = vmatpush1.msra.mxu0 %v2064
  %2066 = vmatprep.subr.mxu0 0.0
  %v2067 = vand.u32 %v25, 4294901760
  %2068 = vmatpush1.msra.mxu0 %v2067
  %2069 = vmatprep.subr.mxu0 0.0
  %v2070 = vand.u32 %v26, 4294901760
  %2071 = vmatpush1.msra.mxu0 %v2070
  %2072 = vmatprep.subr.mxu0 0.0
  %v2073 = vand.u32 %v27, 4294901760
  %2074 = vmatpush1.msra.mxu0 %v2073
  %2075 = vmatprep.subr.mxu0 0.0
  %v2076 = vand.u32 %v28, 4294901760
  %2077 = vmatpush1.msra.mxu0 %v2076
  %2078 = vmatprep.subr.mxu0 0.0
  %2079 = vmatpush1.msra.mxu0 0.0
  %2080 = vmatprep.subr.mxu0 0.0
  %2081 = vmatpush1.msra.mxu0 0.0
  %2082 = vmatprep.subr.mxu0 0.0
  %2083 = vmatpush1.msra.mxu0 0.0
  %2084 = vmatprep.subr.mxu0 0.0
  %2085 = vmatpush1.msra.mxu0 0.0
  %2086 = vmatprep.subr.mxu0 0.0
  %2087 = vmatpush1.msra.mxu0 0.0
  %2088 = vmatprep.subr.mxu0 0.0
  %2089 = vmatpush1.msra.mxu0 0.0
  %2090 = vmatprep.subr.mxu0 0.0
  %2091 = vmatpush1.msra.mxu0 0.0
  %2092 = vmatprep.subr.mxu0 0.0
  %2093 = vmatpush1.msra.mxu0 0.0
  %2094 = vmatprep.subr.mxu0 0.0
  %2095 = vmatpush1.msra.mxu0 0.0
  %2096 = vmatprep.subr.mxu0 0.0
  %2097 = vmatpush1.msra.mxu0 0.0
  %2098 = vmatprep.subr.mxu0 0.0
  %2099 = vmatpush1.msra.mxu0 0.0
  %2100 = vmatprep.subr.mxu0 0.0
  %2101 = vmatpush1.msra.mxu0 0.0
  %2102 = vmatprep.subr.mxu0 0.0
  %2103 = vmatpush1.msra.mxu0 0.0
  %2104 = vmatprep.subr.mxu0 0.0
  %2105 = vmatpush1.msra.mxu0 0.0
  %2106 = vmatprep.subr.mxu0 0.0
  %2107 = vmatpush1.msra.mxu0 0.0
  %2108 = vmatprep.subr.mxu0 0.0
  %2109 = vmatpush1.msra.mxu0 0.0
  %2110 = vmatprep.mubr.f32.mxu0 0.0
  %v2111 = vand.u32 %v1474, 4294901760
  %2112 = vmatmul.mubr.f32.gmra.mrb[0].mxu0 %v2111
  %v2113 = vpop.f32.mrb[0].mxu0
  %v2114 = vadd.f32 %v2027, %v2113
  %v2115 = vpop.f32.mrb[0].mxu0
  %2116 = vdwg.mxu0
  %vm2117 = vcmp.gt.f32.partialorder %v1475, 1.0
  %v2118 = vsel %vm2117, 1.0, 0.0
  %v2119 = vmul.f32 %v1469, 0.9
  %v2120 = vadd.f32 %v2119, %v799
  %v2121 = vadd.f32 %v2120, %v2114
  %v2122 = vmul.f32 %v1475, 0.9
  %v2123 = vadd.f32 %v2122, %v2121
  %v2124 = vsub.f32 %v2123, %v2118
  %vm2125 = vcmp.gt.f32.partialorder %v2124, 1.0
  %v2126 = vsel %vm2125, 1, 0
  %v2127 = vcvt.s32.f32 %v2126
  %v2128 = vsub.f32 %v2123, %v2127
  %2129 = vmatprep.subr.mxu0 0.0
  %v2130 = vand.u32 %v13, 4294901760
  %2131 = vmatpush1.msra.mxu0 %v2130
  %2132 = vmatprep.subr.mxu0 0.0
  %v2133 = vand.u32 %v14, 4294901760
  %2134 = vmatpush1.msra.mxu0 %v2133
  %2135 = vmatprep.subr.mxu0 0.0
  %v2136 = vand.u32 %v15, 4294901760
  %2137 = vmatpush1.msra.mxu0 %v2136
  %2138 = vmatprep.subr.mxu0 0.0
  %v2139 = vand.u32 %v16, 4294901760
  %2140 = vmatpush1.msra.mxu0 %v2139
  %2141 = vmatprep.subr.mxu0 0.0
  %v2142 = vand.u32 %v17, 4294901760
  %2143 = vmatpush1.msra.mxu0 %v2142
  %2144 = vmatprep.subr.mxu0 0.0
  %v2145 = vand.u32 %v18, 4294901760
  %2146 = vmatpush1.msra.mxu0 %v2145
  %2147 = vmatprep.subr.mxu0 0.0
  %v2148 = vand.u32 %v19, 4294901760
  %2149 = vmatpush1.msra.mxu0 %v2148
  %2150 = vmatprep.subr.mxu0 0.0
  %v2151 = vand.u32 %v20, 4294901760
  %2152 = vmatpush1.msra.mxu0 %v2151
  %2153 = vmatprep.subr.mxu0 0.0
  %v2154 = vand.u32 %v21, 4294901760
  %2155 = vmatpush1.msra.mxu0 %v2154
  %2156 = vmatprep.subr.mxu0 0.0
  %v2157 = vand.u32 %v22, 4294901760
  %2158 = vmatpush1.msra.mxu0 %v2157
  %2159 = vmatprep.subr.mxu0 0.0
  %v2160 = vand.u32 %v23, 4294901760
  %2161 = vmatpush1.msra.mxu0 %v2160
  %2162 = vmatprep.subr.mxu0 0.0
  %v2163 = vand.u32 %v24, 4294901760
  %2164 = vmatpush1.msra.mxu0 %v2163
  %2165 = vmatprep.subr.mxu0 0.0
  %v2166 = vand.u32 %v25, 4294901760
  %2167 = vmatpush1.msra.mxu0 %v2166
  %2168 = vmatprep.subr.mxu0 0.0
  %v2169 = vand.u32 %v26, 4294901760
  %2170 = vmatpush1.msra.mxu0 %v2169
  %2171 = vmatprep.subr.mxu0 0.0
  %v2172 = vand.u32 %v27, 4294901760
  %2173 = vmatpush1.msra.mxu0 %v2172
  %2174 = vmatprep.subr.mxu0 0.0
  %v2175 = vand.u32 %v28, 4294901760
  %2176 = vmatpush1.msra.mxu0 %v2175
  %2177 = vmatprep.subr.mxu0 0.0
  %2178 = vmatpush1.msra.mxu0 0.0
  %2179 = vmatprep.subr.mxu0 0.0
  %2180 = vmatpush1.msra.mxu0 0.0
  %2181 = vmatprep.subr.mxu0 0.0
  %2182 = vmatpush1.msra.mxu0 0.0
  %2183 = vmatprep.subr.mxu0 0.0
  %2184 = vmatpush1.msra.mxu0 0.0
  %2185 = vmatprep.subr.mxu0 0.0
  %2186 = vmatpush1.msra.mxu0 0.0
  %2187 = vmatprep.subr.mxu0 0.0
  %2188 = vmatpush1.msra.mxu0 0.0
  %2189 = vmatprep.subr.mxu0 0.0
  %2190 = vmatpush1.msra.mxu0 0.0
  %2191 = vmatprep.subr.mxu0 0.0
  %2192 = vmatpush1.msra.mxu0 0.0
  %2193 = vmatprep.subr.mxu0 0.0
  %2194 = vmatpush1.msra.mxu0 0.0
  %2195 = vmatprep.subr.mxu0 0.0
  %2196 = vmatpush1.msra.mxu0 0.0
  %2197 = vmatprep.subr.mxu0 0.0
  %2198 = vmatpush1.msra.mxu0 0.0
  %2199 = vmatprep.subr.mxu0 0.0
  %2200 = vmatpush1.msra.mxu0 0.0
  %2201 = vmatprep.subr.mxu0 0.0
  %2202 = vmatpush1.msra.mxu0 0.0
  %2203 = vmatprep.subr.mxu0 0.0
  %2204 = vmatpush1.msra.mxu0 0.0
  %2205 = vmatprep.subr.mxu0 0.0
  %2206 = vmatpush1.msra.mxu0 0.0
  %2207 = vmatprep.subr.mxu0 0.0
  %2208 = vmatpush1.msra.mxu0 0.0
  %2209 = vmatprep.mubr.f32.mxu0 0.0
  %v2210 = vand.u32 %v2127, 4294901760
  %v2211 = vsub.f32 %v2127, %v2210
  %v2212 = vand.u32 %v2211, 4294901760
  %v2213 = vsub.f32 %v2211, %v2212
  %v2214 = vand.u32 %v2213, 4294901760
  %2215 = vmatmul.mubr.f32.gmra.mrb[0].mxu0 %v2214
  %v2216 = vpop.f32.mrb[0].mxu0
  %v2217 = vadd.f32 0.0, %v2216
  %v2218 = vpop.f32.mrb[0].mxu0
  %2219 = vdwg.mxu0
  %2220 = vmatprep.subr.mxu0 0.0
  %v2221 = vand.u32 %v13, 4294901760
  %v2222 = vsub.f32 %v13, %v2221
  %v2223 = vand.u32 %v2222, 4294901760
  %v2224 = vsub.f32 %v2222, %v2223
  %v2225 = vand.u32 %v2224, 4294901760
  %2226 = vmatpush1.msra.mxu0 %v2225
  %2227 = vmatprep.subr.mxu0 0.0
  %v2228 = vand.u32 %v14, 4294901760
  %v2229 = vsub.f32 %v14, %v2228
  %v2230 = vand.u32 %v2229, 4294901760
  %v2231 = vsub.f32 %v2229, %v2230
  %v2232 = vand.u32 %v2231, 4294901760
  %2233 = vmatpush1.msra.mxu0 %v2232
  %2234 = vmatprep.subr.mxu0 0.0
  %v2235 = vand.u32 %v15, 4294901760
  %v2236 = vsub.f32 %v15, %v2235
  %v2237 = vand.u32 %v2236, 4294901760
  %v2238 = vsub.f32 %v2236, %v2237
  %v2239 = vand.u32 %v2238, 4294901760
  %2240 = vmatpush1.msra.mxu0 %v2239
  %2241 = vmatprep.subr.mxu0 0.0
  %v2242 = vand.u32 %v16, 4294901760
  %v2243 = vsub.f32 %v16, %v2242
  %v2244 = vand.u32 %v2243, 4294901760
  %v2245 = vsub.f32 %v2243, %v2244
  %v2246 = vand.u32 %v2245, 4294901760
  %2247 = vmatpush1.msra.mxu0 %v2246
  %2248 = vmatprep.subr.mxu0 0.0
  %v2249 = vand.u32 %v17, 4294901760
  %v2250 = vsub.f32 %v17, %v2249
  %v2251 = vand.u32 %v2250, 4294901760
  %v2252 = vsub.f32 %v2250, %v2251
  %v2253 = vand.u32 %v2252, 4294901760
  %2254 = vmatpush1.msra.mxu0 %v2253
  %2255 = vmatprep.subr.mxu0 0.0
  %v2256 = vand.u32 %v18, 4294901760
  %v2257 = vsub.f32 %v18, %v2256
  %v2258 = vand.u32 %v2257, 4294901760
  %v2259 = vsub.f32 %v2257, %v2258
  %v2260 = vand.u32 %v2259, 4294901760
  %2261 = vmatpush1.msra.mxu0 %v2260
  %2262 = vmatprep.subr.mxu0 0.0
  %v2263 = vand.u32 %v19, 4294901760
  %v2264 = vsub.f32 %v19, %v2263
  %v2265 = vand.u32 %v2264, 4294901760
  %v2266 = vsub.f32 %v2264, %v2265
  %v2267 = vand.u32 %v2266, 4294901760
  %2268 = vmatpush1.msra.mxu0 %v2267
  %2269 = vmatprep.subr.mxu0 0.0
  %v2270 = vand.u32 %v20, 4294901760
  %v2271 = vsub.f32 %v20, %v2270
  %v2272 = vand.u32 %v2271, 4294901760
  %v2273 = vsub.f32 %v2271, %v2272
  %v2274 = vand.u32 %v2273, 4294901760
  %2275 = vmatpush1.msra.mxu0 %v2274
  %2276 = vmatprep.subr.mxu0 0.0
  %v2277 = vand.u32 %v21, 4294901760
  %v2278 = vsub.f32 %v21, %v2277
  %v2279 = vand.u32 %v2278, 4294901760
  %v2280 = vsub.f32 %v2278, %v2279
  %v2281 = vand.u32 %v2280, 4294901760
  %2282 = vmatpush1.msra.mxu0 %v2281
  %2283 = vmatprep.subr.mxu0 0.0
  %v2284 = vand.u32 %v22, 4294901760
  %v2285 = vsub.f32 %v22, %v2284
  %v2286 = vand.u32 %v2285, 4294901760
  %v2287 = vsub.f32 %v2285, %v2286
  %v2288 = vand.u32 %v2287, 4294901760
  %2289 = vmatpush1.msra.mxu0 %v2288
  %2290 = vmatprep.subr.mxu0 0.0
  %v2291 = vand.u32 %v23, 4294901760
  %v2292 = vsub.f32 %v23, %v2291
  %v2293 = vand.u32 %v2292, 4294901760
  %v2294 = vsub.f32 %v2292, %v2293
  %v2295 = vand.u32 %v2294, 4294901760
  %2296 = vmatpush1.msra.mxu0 %v2295
  %2297 = vmatprep.subr.mxu0 0.0
  %v2298 = vand.u32 %v24, 4294901760
  %v2299 = vsub.f32 %v24, %v2298
  %v2300 = vand.u32 %v2299, 4294901760
  %v2301 = vsub.f32 %v2299, %v2300
  %v2302 = vand.u32 %v2301, 4294901760
  %2303 = vmatpush1.msra.mxu0 %v2302
  %2304 = vmatprep.subr.mxu0 0.0
  %v2305 = vand.u32 %v25, 4294901760
  %v2306 = vsub.f32 %v25, %v2305
  %v2307 = vand.u32 %v2306, 4294901760
  %v2308 = vsub.f32 %v2306, %v2307
  %v2309 = vand.u32 %v2308, 4294901760
  %2310 = vmatpush1.msra.mxu0 %v2309
  %2311 = vmatprep.subr.mxu0 0.0
  %v2312 = vand.u32 %v26, 4294901760
  %v2313 = vsub.f32 %v26, %v2312
  %v2314 = vand.u32 %v2313, 4294901760
  %v2315 = vsub.f32 %v2313, %v2314
  %v2316 = vand.u32 %v2315, 4294901760
  %2317 = vmatpush1.msra.mxu0 %v2316
  %2318 = vmatprep.subr.mxu0 0.0
  %v2319 = vand.u32 %v27, 4294901760
  %v2320 = vsub.f32 %v27, %v2319
  %v2321 = vand.u32 %v2320, 4294901760
  %v2322 = vsub.f32 %v2320, %v2321
  %v2323 = vand.u32 %v2322, 4294901760
  %2324 = vmatpush1.msra.mxu0 %v2323
  %2325 = vmatprep.subr.mxu0 0.0
  %v2326 = vand.u32 %v28, 4294901760
  %v2327 = vsub.f32 %v28, %v2326
  %v2328 = vand.u32 %v2327, 4294901760
  %v2329 = vsub.f32 %v2327, %v2328
  %v2330 = vand.u32 %v2329, 4294901760
  %2331 = vmatpush1.msra.mxu0 %v2330
  %2332 = vmatprep.subr.mxu0 0.0
  %2333 = vmatpush1.msra.mxu0 0.0
  %2334 = vmatprep.subr.mxu0 0.0
  %2335 = vmatpush1.msra.mxu0 0.0
  %2336 = vmatprep.subr.mxu0 0.0
  %2337 = vmatpush1.msra.mxu0 0.0
  %2338 = vmatprep.subr.mxu0 0.0
  %2339 = vmatpush1.msra.mxu0 0.0
  %2340 = vmatprep.subr.mxu0 0.0
  %2341 = vmatpush1.msra.mxu0 0.0
  %2342 = vmatprep.subr.mxu0 0.0
  %2343 = vmatpush1.msra.mxu0 0.0
  %2344 = vmatprep.subr.mxu0 0.0
  %2345 = vmatpush1.msra.mxu0 0.0
  %2346 = vmatprep.subr.mxu0 0.0
  %2347 = vmatpush1.msra.mxu0 0.0
  %2348 = vmatprep.subr.mxu0 0.0
  %2349 = vmatpush1.msra.mxu0 0.0
  %2350 = vmatprep.subr.mxu0 0.0
  %2351 = vmatpush1.msra.mxu0 0.0
  %2352 = vmatprep.subr.mxu0 0.0
  %2353 = vmatpush1.msra.mxu0 0.0
  %2354 = vmatprep.subr.mxu0 0.0
  %2355 = vmatpush1.msra.mxu0 0.0
  %2356 = vmatprep.subr.mxu0 0.0
  %2357 = vmatpush1.msra.mxu0 0.0
  %2358 = vmatprep.subr.mxu0 0.0
  %2359 = vmatpush1.msra.mxu0 0.0
  %2360 = vmatprep.subr.mxu0 0.0
  %2361 = vmatpush1.msra.mxu0 0.0
  %2362 = vmatprep.subr.mxu0 0.0
  %2363 = vmatpush1.msra.mxu0 0.0
  %2364 = vmatprep.mubr.f32.mxu0 0.0
  %v2365 = vand.u32 %v2127, 4294901760
  %2366 = vmatmul.mubr.f32.gmra.mrb[0].mxu0 %v2365
  %v2367 = vpop.f32.mrb[0].mxu0
  %v2368 = vadd.f32 %v2217, %v2367
  %v2369 = vpop.f32.mrb[0].mxu0
  %2370 = vdwg.mxu0
  %2371 = vmatprep.subr.mxu0 0.0
  %v2372 = vand.u32 %v13, 4294901760
  %v2373 = vsub.f32 %v13, %v2372
  %2374 = vmatpush1.msra.mxu0 %v2373
  %2375 = vmatprep.subr.mxu0 0.0
  %v2376 = vand.u32 %v14, 4294901760
  %v2377 = vsub.f32 %v14, %v2376
  %2378 = vmatpush1.msra.mxu0 %v2377
  %2379 = vmatprep.subr.mxu0 0.0
  %v2380 = vand.u32 %v15, 4294901760
  %v2381 = vsub.f32 %v15, %v2380
  %2382 = vmatpush1.msra.mxu0 %v2381
  %2383 = vmatprep.subr.mxu0 0.0
  %v2384 = vand.u32 %v16, 4294901760
  %v2385 = vsub.f32 %v16, %v2384
  %2386 = vmatpush1.msra.mxu0 %v2385
  %2387 = vmatprep.subr.mxu0 0.0
  %v2388 = vand.u32 %v17, 4294901760
  %v2389 = vsub.f32 %v17, %v2388
  %2390 = vmatpush1.msra.mxu0 %v2389
  %2391 = vmatprep.subr.mxu0 0.0
  %v2392 = vand.u32 %v18, 4294901760
  %v2393 = vsub.f32 %v18, %v2392
  %2394 = vmatpush1.msra.mxu0 %v2393
  %2395 = vmatprep.subr.mxu0 0.0
  %v2396 = vand.u32 %v19, 4294901760
  %v2397 = vsub.f32 %v19, %v2396
  %2398 = vmatpush1.msra.mxu0 %v2397
  %2399 = vmatprep.subr.mxu0 0.0
  %v2400 = vand.u32 %v20, 4294901760
  %v2401 = vsub.f32 %v20, %v2400
  %2402 = vmatpush1.msra.mxu0 %v2401
  %2403 = vmatprep.subr.mxu0 0.0
  %v2404 = vand.u32 %v21, 4294901760
  %v2405 = vsub.f32 %v21, %v2404
  %2406 = vmatpush1.msra.mxu0 %v2405
  %2407 = vmatprep.subr.mxu0 0.0
  %v2408 = vand.u32 %v22, 4294901760
  %v2409 = vsub.f32 %v22, %v2408
  %2410 = vmatpush1.msra.mxu0 %v2409
  %2411 = vmatprep.subr.mxu0 0.0
  %v2412 = vand.u32 %v23, 4294901760
  %v2413 = vsub.f32 %v23, %v2412
  %2414 = vmatpush1.msra.mxu0 %v2413
  %2415 = vmatprep.subr.mxu0 0.0
  %v2416 = vand.u32 %v24, 4294901760
  %v2417 = vsub.f32 %v24, %v2416
  %2418 = vmatpush1.msra.mxu0 %v2417
  %2419 = vmatprep.subr.mxu0 0.0
  %v2420 = vand.u32 %v25, 4294901760
  %v2421 = vsub.f32 %v25, %v2420
  %2422 = vmatpush1.msra.mxu0 %v2421
  %2423 = vmatprep.subr.mxu0 0.0
  %v2424 = vand.u32 %v26, 4294901760
  %v2425 = vsub.f32 %v26, %v2424
  %2426 = vmatpush1.msra.mxu0 %v2425
  %2427 = vmatprep.subr.mxu0 0.0
  %v2428 = vand.u32 %v27, 4294901760
  %v2429 = vsub.f32 %v27, %v2428
  %2430 = vmatpush1.msra.mxu0 %v2429
  %2431 = vmatprep.subr.mxu0 0.0
  %v2432 = vand.u32 %v28, 4294901760
  %v2433 = vsub.f32 %v28, %v2432
  %2434 = vmatpush1.msra.mxu0 %v2433
  %2435 = vmatprep.subr.mxu0 0.0
  %2436 = vmatpush1.msra.mxu0 0.0
  %2437 = vmatprep.subr.mxu0 0.0
  %2438 = vmatpush1.msra.mxu0 0.0
  %2439 = vmatprep.subr.mxu0 0.0
  %2440 = vmatpush1.msra.mxu0 0.0
  %2441 = vmatprep.subr.mxu0 0.0
  %2442 = vmatpush1.msra.mxu0 0.0
  %2443 = vmatprep.subr.mxu0 0.0
  %2444 = vmatpush1.msra.mxu0 0.0
  %2445 = vmatprep.subr.mxu0 0.0
  %2446 = vmatpush1.msra.mxu0 0.0
  %2447 = vmatprep.subr.mxu0 0.0
  %2448 = vmatpush1.msra.mxu0 0.0
  %2449 = vmatprep.subr.mxu0 0.0
  %2450 = vmatpush1.msra.mxu0 0.0
  %2451 = vmatprep.subr.mxu0 0.0
  %2452 = vmatpush1.msra.mxu0 0.0
  %2453 = vmatprep.subr.mxu0 0.0
  %2454 = vmatpush1.msra.mxu0 0.0
  %2455 = vmatprep.subr.mxu0 0.0
  %2456 = vmatpush1.msra.mxu0 0.0
  %2457 = vmatprep.subr.mxu0 0.0
  %2458 = vmatpush1.msra.mxu0 0.0
  %2459 = vmatprep.subr.mxu0 0.0
  %2460 = vmatpush1.msra.mxu0 0.0
  %2461 = vmatprep.subr.mxu0 0.0
  %2462 = vmatpush1.msra.mxu0 0.0
  %2463 = vmatprep.subr.mxu0 0.0
  %2464 = vmatpush1.msra.mxu0 0.0
  %2465 = vmatprep.subr.mxu0 0.0
  %2466 = vmatpush1.msra.mxu0 0.0
  %2467 = vmatprep.mubr.f32.mxu0 0.0
  %v2468 = vand.u32 %v2127, 4294901760
  %v2469 = vsub.f32 %v2127, %v2468
  %2470 = vmatmul.mubr.f32.gmra.mrb[0].mxu0 %v2469
  %v2471 = vpop.f32.mrb[0].mxu0
  %v2472 = vadd.f32 %v2368, %v2471
  %v2473 = vpop.f32.mrb[0].mxu0
  %2474 = vdwg.mxu0
  %2475 = vmatprep.subr.mxu0 0.0
  %v2476 = vand.u32 %v13, 4294901760
  %2477 = vmatpush1.msra.mxu0 %v2476
  %2478 = vmatprep.subr.mxu0 0.0
  %v2479 = vand.u32 %v14, 4294901760
  %2480 = vmatpush1.msra.mxu0 %v2479
  %2481 = vmatprep.subr.mxu0 0.0
  %v2482 = vand.u32 %v15, 4294901760
  %2483 = vmatpush1.msra.mxu0 %v2482
  %2484 = vmatprep.subr.mxu0 0.0
  %v2485 = vand.u32 %v16, 4294901760
  %2486 = vmatpush1.msra.mxu0 %v2485
  %2487 = vmatprep.subr.mxu0 0.0
  %v2488 = vand.u32 %v17, 4294901760
  %2489 = vmatpush1.msra.mxu0 %v2488
  %2490 = vmatprep.subr.mxu0 0.0
  %v2491 = vand.u32 %v18, 4294901760
  %2492 = vmatpush1.msra.mxu0 %v2491
  %2493 = vmatprep.subr.mxu0 0.0
  %v2494 = vand.u32 %v19, 4294901760
  %2495 = vmatpush1.msra.mxu0 %v2494
  %2496 = vmatprep.subr.mxu0 0.0
  %v2497 = vand.u32 %v20, 4294901760
  %2498 = vmatpush1.msra.mxu0 %v2497
  %2499 = vmatprep.subr.mxu0 0.0
  %v2500 = vand.u32 %v21, 4294901760
  %2501 = vmatpush1.msra.mxu0 %v2500
  %2502 = vmatprep.subr.mxu0 0.0
  %v2503 = vand.u32 %v22, 4294901760
  %2504 = vmatpush1.msra.mxu0 %v2503
  %2505 = vmatprep.subr.mxu0 0.0
  %v2506 = vand.u32 %v23, 4294901760
  %2507 = vmatpush1.msra.mxu0 %v2506
  %2508 = vmatprep.subr.mxu0 0.0
  %v2509 = vand.u32 %v24, 4294901760
  %2510 = vmatpush1.msra.mxu0 %v2509
  %2511 = vmatprep.subr.mxu0 0.0
  %v2512 = vand.u32 %v25, 4294901760
  %2513 = vmatpush1.msra.mxu0 %v2512
  %2514 = vmatprep.subr.mxu0 0.0
  %v2515 = vand.u32 %v26, 4294901760
  %2516 = vmatpush1.msra.mxu0 %v2515
  %2517 = vmatprep.subr.mxu0 0.0
  %v2518 = vand.u32 %v27, 4294901760
  %2519 = vmatpush1.msra.mxu0 %v2518
  %2520 = vmatprep.subr.mxu0 0.0
  %v2521 = vand.u32 %v28, 4294901760
  %2522 = vmatpush1.msra.mxu0 %v2521
  %2523 = vmatprep.subr.mxu0 0.0
  %2524 = vmatpush1.msra.mxu0 0.0
  %2525 = vmatprep.subr.mxu0 0.0
  %2526 = vmatpush1.msra.mxu0 0.0
  %2527 = vmatprep.subr.mxu0 0.0
  %2528 = vmatpush1.msra.mxu0 0.0
  %2529 = vmatprep.subr.mxu0 0.0
  %2530 = vmatpush1.msra.mxu0 0.0
  %2531 = vmatprep.subr.mxu0 0.0
  %2532 = vmatpush1.msra.mxu0 0.0
  %2533 = vmatprep.subr.mxu0 0.0
  %2534 = vmatpush1.msra.mxu0 0.0
  %2535 = vmatprep.subr.mxu0 0.0
  %2536 = vmatpush1.msra.mxu0 0.0
  %2537 = vmatprep.subr.mxu0 0.0
  %2538 = vmatpush1.msra.mxu0 0.0
  %2539 = vmatprep.subr.mxu0 0.0
  %2540 = vmatpush1.msra.mxu0 0.0
  %2541 = vmatprep.subr.mxu0 0.0
  %2542 = vmatpush1.msra.mxu0 0.0
  %2543 = vmatprep.subr.mxu0 0.0
  %2544 = vmatpush1.msra.mxu0 0.0
  %2545 = vmatprep.subr.mxu0 0.0
  %2546 = vmatpush1.msra.mxu0 0.0
  %2547 = vmatprep.subr.mxu0 0.0
  %2548 = vmatpush1.msra.mxu0 0.0
  %2549 = vmatprep.subr.mxu0 0.0
  %2550 = vmatpush1.msra.mxu0 0.0
  %2551 = vmatprep.subr.mxu0 0.0
  %2552 = vmatpush1.msra.mxu0 0.0
  %2553 = vmatprep.subr.mxu0 0.0
  %2554 = vmatpush1.msra.mxu0 0.0
  %2555 = vmatprep.mubr.f32.mxu0 0.0
  %v2556 = vand.u32 %v2127, 4294901760
  %v2557 = vsub.f32 %v2127, %v2556
  %v2558 = vand.u32 %v2557, 4294901760
  %2559 = vmatmul.mubr.f32.gmra.mrb[0].mxu0 %v2558
  %v2560 = vpop.f32.mrb[0].mxu0
  %v2561 = vadd.f32 %v2472, %v2560
  %v2562 = vpop.f32.mrb[0].mxu0
  %2563 = vdwg.mxu0
  %2564 = vmatprep.subr.mxu0 0.0
  %v2565 = vand.u32 %v13, 4294901760
  %v2566 = vsub.f32 %v13, %v2565
  %v2567 = vand.u32 %v2566, 4294901760
  %2568 = vmatpush1.msra.mxu0 %v2567
  %2569 = vmatprep.subr.mxu0 0.0
  %v2570 = vand.u32 %v14, 4294901760
  %v2571 = vsub.f32 %v14, %v2570
  %v2572 = vand.u32 %v2571, 4294901760
  %2573 = vmatpush1.msra.mxu0 %v2572
  %2574 = vmatprep.subr.mxu0 0.0
  %v2575 = vand.u32 %v15, 4294901760
  %v2576 = vsub.f32 %v15, %v2575
  %v2577 = vand.u32 %v2576, 4294901760
  %2578 = vmatpush1.msra.mxu0 %v2577
  %2579 = vmatprep.subr.mxu0 0.0
  %v2580 = vand.u32 %v16, 4294901760
  %v2581 = vsub.f32 %v16, %v2580
  %v2582 = vand.u32 %v2581, 4294901760
  %2583 = vmatpush1.msra.mxu0 %v2582
  %2584 = vmatprep.subr.mxu0 0.0
  %v2585 = vand.u32 %v17, 4294901760
  %v2586 = vsub.f32 %v17, %v2585
  %v2587 = vand.u32 %v2586, 4294901760
  %2588 = vmatpush1.msra.mxu0 %v2587
  %2589 = vmatprep.subr.mxu0 0.0
  %v2590 = vand.u32 %v18, 4294901760
  %v2591 = vsub.f32 %v18, %v2590
  %v2592 = vand.u32 %v2591, 4294901760
  %2593 = vmatpush1.msra.mxu0 %v2592
  %2594 = vmatprep.subr.mxu0 0.0
  %v2595 = vand.u32 %v19, 4294901760
  %v2596 = vsub.f32 %v19, %v2595
  %v2597 = vand.u32 %v2596, 4294901760
  %2598 = vmatpush1.msra.mxu0 %v2597
  %2599 = vmatprep.subr.mxu0 0.0
  %v2600 = vand.u32 %v20, 4294901760
  %v2601 = vsub.f32 %v20, %v2600
  %v2602 = vand.u32 %v2601, 4294901760
  %2603 = vmatpush1.msra.mxu0 %v2602
  %2604 = vmatprep.subr.mxu0 0.0
  %v2605 = vand.u32 %v21, 4294901760
  %v2606 = vsub.f32 %v21, %v2605
  %v2607 = vand.u32 %v2606, 4294901760
  %2608 = vmatpush1.msra.mxu0 %v2607
  %2609 = vmatprep.subr.mxu0 0.0
  %v2610 = vand.u32 %v22, 4294901760
  %v2611 = vsub.f32 %v22, %v2610
  %v2612 = vand.u32 %v2611, 4294901760
  %2613 = vmatpush1.msra.mxu0 %v2612
  %2614 = vmatprep.subr.mxu0 0.0
  %v2615 = vand.u32 %v23, 4294901760
  %v2616 = vsub.f32 %v23, %v2615
  %v2617 = vand.u32 %v2616, 4294901760
  %2618 = vmatpush1.msra.mxu0 %v2617
  %2619 = vmatprep.subr.mxu0 0.0
  %v2620 = vand.u32 %v24, 4294901760
  %v2621 = vsub.f32 %v24, %v2620
  %v2622 = vand.u32 %v2621, 4294901760
  %2623 = vmatpush1.msra.mxu0 %v2622
  %2624 = vmatprep.subr.mxu0 0.0
  %v2625 = vand.u32 %v25, 4294901760
  %v2626 = vsub.f32 %v25, %v2625
  %v2627 = vand.u32 %v2626, 4294901760
  %2628 = vmatpush1.msra.mxu0 %v2627
  %2629 = vmatprep.subr.mxu0 0.0
  %v2630 = vand.u32 %v26, 4294901760
  %v2631 = vsub.f32 %v26, %v2630
  %v2632 = vand.u32 %v2631, 4294901760
  %2633 = vmatpush1.msra.mxu0 %v2632
  %2634 = vmatprep.subr.mxu0 0.0
  %v2635 = vand.u32 %v27, 4294901760
  %v2636 = vsub.f32 %v27, %v2635
  %v2637 = vand.u32 %v2636, 4294901760
  %2638 = vmatpush1.msra.mxu0 %v2637
  %2639 = vmatprep.subr.mxu0 0.0
  %v2640 = vand.u32 %v28, 4294901760
  %v2641 = vsub.f32 %v28, %v2640
  %v2642 = vand.u32 %v2641, 4294901760
  %2643 = vmatpush1.msra.mxu0 %v2642
  %2644 = vmatprep.subr.mxu0 0.0
  %2645 = vmatpush1.msra.mxu0 0.0
  %2646 = vmatprep.subr.mxu0 0.0
  %2647 = vmatpush1.msra.mxu0 0.0
  %2648 = vmatprep.subr.mxu0 0.0
  %2649 = vmatpush1.msra.mxu0 0.0
  %2650 = vmatprep.subr.mxu0 0.0
  %2651 = vmatpush1.msra.mxu0 0.0
  %2652 = vmatprep.subr.mxu0 0.0
  %2653 = vmatpush1.msra.mxu0 0.0
  %2654 = vmatprep.subr.mxu0 0.0
  %2655 = vmatpush1.msra.mxu0 0.0
  %2656 = vmatprep.subr.mxu0 0.0
  %2657 = vmatpush1.msra.mxu0 0.0
  %2658 = vmatprep.subr.mxu0 0.0
  %2659 = vmatpush1.msra.mxu0 0.0
  %2660 = vmatprep.subr.mxu0 0.0
  %2661 = vmatpush1.msra.mxu0 0.0
  %2662 = vmatprep.subr.mxu0 0.0
  %2663 = vmatpush1.msra.mxu0 0.0
  %2664 = vmatprep.subr.mxu0 0.0
  %2665 = vmatpush1.msra.mxu0 0.0
  %2666 = vmatprep.subr.mxu0 0.0
  %2667 = vmatpush1.msra.mxu0 0.0
  %2668 = vmatprep.subr.mxu0 0.0
  %2669 = vmatpush1.msra.mxu0 0.0
  %2670 = vmatprep.subr.mxu0 0.0
  %2671 = vmatpush1.msra.mxu0 0.0
  %2672 = vmatprep.subr.mxu0 0.0
  %2673 = vmatpush1.msra.mxu0 0.0
  %2674 = vmatprep.subr.mxu0 0.0
  %2675 = vmatpush1.msra.mxu0 0.0
  %2676 = vmatprep.mubr.f32.mxu0 0.0
  %v2677 = vand.u32 %v2127, 4294901760
  %2678 = vmatmul.mubr.f32.gmra.mrb[0].mxu0 %v2677
  %v2679 = vpop.f32.mrb[0].mxu0
  %v2680 = vadd.f32 %v2561, %v2679
  %v2681 = vpop.f32.mrb[0].mxu0
  %2682 = vdwg.mxu0
  %2683 = vmatprep.subr.mxu0 0.0
  %v2684 = vand.u32 %v13, 4294901760
  %2685 = vmatpush1.msra.mxu0 %v2684
  %2686 = vmatprep.subr.mxu0 0.0
  %v2687 = vand.u32 %v14, 4294901760
  %2688 = vmatpush1.msra.mxu0 %v2687
  %2689 = vmatprep.subr.mxu0 0.0
  %v2690 = vand.u32 %v15, 4294901760
  %2691 = vmatpush1.msra.mxu0 %v2690
  %2692 = vmatprep.subr.mxu0 0.0
  %v2693 = vand.u32 %v16, 4294901760
  %2694 = vmatpush1.msra.mxu0 %v2693
  %2695 = vmatprep.subr.mxu0 0.0
  %v2696 = vand.u32 %v17, 4294901760
  %2697 = vmatpush1.msra.mxu0 %v2696
  %2698 = vmatprep.subr.mxu0 0.0
  %v2699 = vand.u32 %v18, 4294901760
  %2700 = vmatpush1.msra.mxu0 %v2699
  %2701 = vmatprep.subr.mxu0 0.0
  %v2702 = vand.u32 %v19, 4294901760
  %2703 = vmatpush1.msra.mxu0 %v2702
  %2704 = vmatprep.subr.mxu0 0.0
  %v2705 = vand.u32 %v20, 4294901760
  %2706 = vmatpush1.msra.mxu0 %v2705
  %2707 = vmatprep.subr.mxu0 0.0
  %v2708 = vand.u32 %v21, 4294901760
  %2709 = vmatpush1.msra.mxu0 %v2708
  %2710 = vmatprep.subr.mxu0 0.0
  %v2711 = vand.u32 %v22, 4294901760
  %2712 = vmatpush1.msra.mxu0 %v2711
  %2713 = vmatprep.subr.mxu0 0.0
  %v2714 = vand.u32 %v23, 4294901760
  %2715 = vmatpush1.msra.mxu0 %v2714
  %2716 = vmatprep.subr.mxu0 0.0
  %v2717 = vand.u32 %v24, 4294901760
  %2718 = vmatpush1.msra.mxu0 %v2717
  %2719 = vmatprep.subr.mxu0 0.0
  %v2720 = vand.u32 %v25, 4294901760
  %2721 = vmatpush1.msra.mxu0 %v2720
  %2722 = vmatprep.subr.mxu0 0.0
  %v2723 = vand.u32 %v26, 4294901760
  %2724 = vmatpush1.msra.mxu0 %v2723
  %2725 = vmatprep.subr.mxu0 0.0
  %v2726 = vand.u32 %v27, 4294901760
  %2727 = vmatpush1.msra.mxu0 %v2726
  %2728 = vmatprep.subr.mxu0 0.0
  %v2729 = vand.u32 %v28, 4294901760
  %2730 = vmatpush1.msra.mxu0 %v2729
  %2731 = vmatprep.subr.mxu0 0.0
  %2732 = vmatpush1.msra.mxu0 0.0
  %2733 = vmatprep.subr.mxu0 0.0
  %2734 = vmatpush1.msra.mxu0 0.0
  %2735 = vmatprep.subr.mxu0 0.0
  %2736 = vmatpush1.msra.mxu0 0.0
  %2737 = vmatprep.subr.mxu0 0.0
  %2738 = vmatpush1.msra.mxu0 0.0
  %2739 = vmatprep.subr.mxu0 0.0
  %2740 = vmatpush1.msra.mxu0 0.0
  %2741 = vmatprep.subr.mxu0 0.0
  %2742 = vmatpush1.msra.mxu0 0.0
  %2743 = vmatprep.subr.mxu0 0.0
  %2744 = vmatpush1.msra.mxu0 0.0
  %2745 = vmatprep.subr.mxu0 0.0
  %2746 = vmatpush1.msra.mxu0 0.0
  %2747 = vmatprep.subr.mxu0 0.0
  %2748 = vmatpush1.msra.mxu0 0.0
  %2749 = vmatprep.subr.mxu0 0.0
  %2750 = vmatpush1.msra.mxu0 0.0
  %2751 = vmatprep.subr.mxu0 0.0
  %2752 = vmatpush1.msra.mxu0 0.0
  %2753 = vmatprep.subr.mxu0 0.0
  %2754 = vmatpush1.msra.mxu0 0.0
  %2755 = vmatprep.subr.mxu0 0.0
  %2756 = vmatpush1.msra.mxu0 0.0
  %2757 = vmatprep.subr.mxu0 0.0
  %2758 = vmatpush1.msra.mxu0 0.0
  %2759 = vmatprep.subr.mxu0 0.0
  %2760 = vmatpush1.msra.mxu0 0.0
  %2761 = vmatprep.subr.mxu0 0.0
  %2762 = vmatpush1.msra.mxu0 0.0
  %2763 = vmatprep.mubr.f32.mxu0 0.0
  %v2764 = vand.u32 %v2127, 4294901760
  %2765 = vmatmul.mubr.f32.gmra.mrb[0].mxu0 %v2764
  %v2766 = vpop.f32.mrb[0].mxu0
  %v2767 = vadd.f32 %v2680, %v2766
  %v2768 = vpop.f32.mrb[0].mxu0
  %2769 = vdwg.mxu0
  %vm2770 = vcmp.gt.f32.partialorder %v2128, 1.0
  %v2771 = vsel %vm2770, 1.0, 0.0
  %v2772 = vmul.f32 %v2121, 0.9
  %v2773 = vadd.f32 %v2772, %v805
  %v2774 = vadd.f32 %v2773, %v2767
  %v2775 = vmul.f32 %v2128, 0.9
  %v2776 = vadd.f32 %v2775, %v2774
  %v2777 = vsub.f32 %v2776, %v2771
  %vm2778 = vcmp.gt.f32.partialorder %v2777, 1.0
  %v2779 = vsel %vm2778, 1, 0
  %v2780 = vcvt.s32.f32 %v2779
  %v2781 = vsub.f32 %v2776, %v2780
  %2782 = vmatprep.subr.mxu0 0.0
  %v2783 = vand.u32 %v13, 4294901760
  %2784 = vmatpush1.msra.mxu0 %v2783
  %2785 = vmatprep.subr.mxu0 0.0
  %v2786 = vand.u32 %v14, 4294901760
  %2787 = vmatpush1.msra.mxu0 %v2786
  %2788 = vmatprep.subr.mxu0 0.0
  %v2789 = vand.u32 %v15, 4294901760
  %2790 = vmatpush1.msra.mxu0 %v2789
  %2791 = vmatprep.subr.mxu0 0.0
  %v2792 = vand.u32 %v16, 4294901760
  %2793 = vmatpush1.msra.mxu0 %v2792
  %2794 = vmatprep.subr.mxu0 0.0
  %v2795 = vand.u32 %v17, 4294901760
  %2796 = vmatpush1.msra.mxu0 %v2795
  %2797 = vmatprep.subr.mxu0 0.0
  %v2798 = vand.u32 %v18, 4294901760
  %2799 = vmatpush1.msra.mxu0 %v2798
  %2800 = vmatprep.subr.mxu0 0.0
  %v2801 = vand.u32 %v19, 4294901760
  %2802 = vmatpush1.msra.mxu0 %v2801
  %2803 = vmatprep.subr.mxu0 0.0
  %v2804 = vand.u32 %v20, 4294901760
  %2805 = vmatpush1.msra.mxu0 %v2804
  %2806 = vmatprep.subr.mxu0 0.0
  %v2807 = vand.u32 %v21, 4294901760
  %2808 = vmatpush1.msra.mxu0 %v2807
  %2809 = vmatprep.subr.mxu0 0.0
  %v2810 = vand.u32 %v22, 4294901760
  %2811 = vmatpush1.msra.mxu0 %v2810
  %2812 = vmatprep.subr.mxu0 0.0
  %v2813 = vand.u32 %v23, 4294901760
  %2814 = vmatpush1.msra.mxu0 %v2813
  %2815 = vmatprep.subr.mxu0 0.0
  %v2816 = vand.u32 %v24, 4294901760
  %2817 = vmatpush1.msra.mxu0 %v2816
  %2818 = vmatprep.subr.mxu0 0.0
  %v2819 = vand.u32 %v25, 4294901760
  %2820 = vmatpush1.msra.mxu0 %v2819
  %2821 = vmatprep.subr.mxu0 0.0
  %v2822 = vand.u32 %v26, 4294901760
  %2823 = vmatpush1.msra.mxu0 %v2822
  %2824 = vmatprep.subr.mxu0 0.0
  %v2825 = vand.u32 %v27, 4294901760
  %2826 = vmatpush1.msra.mxu0 %v2825
  %2827 = vmatprep.subr.mxu0 0.0
  %v2828 = vand.u32 %v28, 4294901760
  %2829 = vmatpush1.msra.mxu0 %v2828
  %2830 = vmatprep.subr.mxu0 0.0
  %2831 = vmatpush1.msra.mxu0 0.0
  %2832 = vmatprep.subr.mxu0 0.0
  %2833 = vmatpush1.msra.mxu0 0.0
  %2834 = vmatprep.subr.mxu0 0.0
  %2835 = vmatpush1.msra.mxu0 0.0
  %2836 = vmatprep.subr.mxu0 0.0
  %2837 = vmatpush1.msra.mxu0 0.0
  %2838 = vmatprep.subr.mxu0 0.0
  %2839 = vmatpush1.msra.mxu0 0.0
  %2840 = vmatprep.subr.mxu0 0.0
  %2841 = vmatpush1.msra.mxu0 0.0
  %2842 = vmatprep.subr.mxu0 0.0
  %2843 = vmatpush1.msra.mxu0 0.0
  %2844 = vmatprep.subr.mxu0 0.0
  %2845 = vmatpush1.msra.mxu0 0.0
  %2846 = vmatprep.subr.mxu0 0.0
  %2847 = vmatpush1.msra.mxu0 0.0
  %2848 = vmatprep.subr.mxu0 0.0
  %2849 = vmatpush1.msra.mxu0 0.0
  %2850 = vmatprep.subr.mxu0 0.0
  %2851 = vmatpush1.msra.mxu0 0.0
  %2852 = vmatprep.subr.mxu0 0.0
  %2853 = vmatpush1.msra.mxu0 0.0
  %2854 = vmatprep.subr.mxu0 0.0
  %2855 = vmatpush1.msra.mxu0 0.0
  %2856 = vmatprep.subr.mxu0 0.0
  %2857 = vmatpush1.msra.mxu0 0.0
  %2858 = vmatprep.subr.mxu0 0.0
  %2859 = vmatpush1.msra.mxu0 0.0
  %2860 = vmatprep.subr.mxu0 0.0
  %2861 = vmatpush1.msra.mxu0 0.0
  %2862 = vmatprep.mubr.f32.mxu0 0.0
  %v2863 = vand.u32 %v2780, 4294901760
  %v2864 = vsub.f32 %v2780, %v2863
  %v2865 = vand.u32 %v2864, 4294901760
  %v2866 = vsub.f32 %v2864, %v2865
  %v2867 = vand.u32 %v2866, 4294901760
  %2868 = vmatmul.mubr.f32.gmra.mrb[0].mxu0 %v2867
  %v2869 = vpop.f32.mrb[0].mxu0
  %v2870 = vadd.f32 0.0, %v2869
  %v2871 = vpop.f32.mrb[0].mxu0
  %2872 = vdwg.mxu0
  %2873 = vmatprep.subr.mxu0 0.0
  %v2874 = vand.u32 %v13, 4294901760
  %v2875 = vsub.f32 %v13, %v2874
  %v2876 = vand.u32 %v2875, 4294901760
  %v2877 = vsub.f32 %v2875, %v2876
  %v2878 = vand.u32 %v2877, 4294901760
  %2879 = vmatpush1.msra.mxu0 %v2878
  %2880 = vmatprep.subr.mxu0 0.0
  %v2881 = vand.u32 %v14, 4294901760
  %v2882 = vsub.f32 %v14, %v2881
  %v2883 = vand.u32 %v2882, 4294901760
  %v2884 = vsub.f32 %v2882, %v2883
  %v2885 = vand.u32 %v2884, 4294901760
  %2886 = vmatpush1.msra.mxu0 %v2885
  %2887 = vmatprep.subr.mxu0 0.0
  %v2888 = vand.u32 %v15, 4294901760
  %v2889 = vsub.f32 %v15, %v2888
  %v2890 = vand.u32 %v2889, 4294901760
  %v2891 = vsub.f32 %v2889, %v2890
  %v2892 = vand.u32 %v2891, 4294901760
  %2893 = vmatpush1.msra.mxu0 %v2892
  %2894 = vmatprep.subr.mxu0 0.0
  %v2895 = vand.u32 %v16, 4294901760
  %v2896 = vsub.f32 %v16, %v2895
  %v2897 = vand.u32 %v2896, 4294901760
  %v2898 = vsub.f32 %v2896, %v2897
  %v2899 = vand.u32 %v2898, 4294901760
  %2900 = vmatpush1.msra.mxu0 %v2899
  %2901 = vmatprep.subr.mxu0 0.0
  %v2902 = vand.u32 %v17, 4294901760
  %v2903 = vsub.f32 %v17, %v2902
  %v2904 = vand.u32 %v2903, 4294901760
  %v2905 = vsub.f32 %v2903, %v2904
  %v2906 = vand.u32 %v2905, 4294901760
  %2907 = vmatpush1.msra.mxu0 %v2906
  %2908 = vmatprep.subr.mxu0 0.0
  %v2909 = vand.u32 %v18, 4294901760
  %v2910 = vsub.f32 %v18, %v2909
  %v2911 = vand.u32 %v2910, 4294901760
  %v2912 = vsub.f32 %v2910, %v2911
  %v2913 = vand.u32 %v2912, 4294901760
  %2914 = vmatpush1.msra.mxu0 %v2913
  %2915 = vmatprep.subr.mxu0 0.0
  %v2916 = vand.u32 %v19, 4294901760
  %v2917 = vsub.f32 %v19, %v2916
  %v2918 = vand.u32 %v2917, 4294901760
  %v2919 = vsub.f32 %v2917, %v2918
  %v2920 = vand.u32 %v2919, 4294901760
  %2921 = vmatpush1.msra.mxu0 %v2920
  %2922 = vmatprep.subr.mxu0 0.0
  %v2923 = vand.u32 %v20, 4294901760
  %v2924 = vsub.f32 %v20, %v2923
  %v2925 = vand.u32 %v2924, 4294901760
  %v2926 = vsub.f32 %v2924, %v2925
  %v2927 = vand.u32 %v2926, 4294901760
  %2928 = vmatpush1.msra.mxu0 %v2927
  %2929 = vmatprep.subr.mxu0 0.0
  %v2930 = vand.u32 %v21, 4294901760
  %v2931 = vsub.f32 %v21, %v2930
  %v2932 = vand.u32 %v2931, 4294901760
  %v2933 = vsub.f32 %v2931, %v2932
  %v2934 = vand.u32 %v2933, 4294901760
  %2935 = vmatpush1.msra.mxu0 %v2934
  %2936 = vmatprep.subr.mxu0 0.0
  %v2937 = vand.u32 %v22, 4294901760
  %v2938 = vsub.f32 %v22, %v2937
  %v2939 = vand.u32 %v2938, 4294901760
  %v2940 = vsub.f32 %v2938, %v2939
  %v2941 = vand.u32 %v2940, 4294901760
  %2942 = vmatpush1.msra.mxu0 %v2941
  %2943 = vmatprep.subr.mxu0 0.0
  %v2944 = vand.u32 %v23, 4294901760
  %v2945 = vsub.f32 %v23, %v2944
  %v2946 = vand.u32 %v2945, 4294901760
  %v2947 = vsub.f32 %v2945, %v2946
  %v2948 = vand.u32 %v2947, 4294901760
  %2949 = vmatpush1.msra.mxu0 %v2948
  %2950 = vmatprep.subr.mxu0 0.0
  %v2951 = vand.u32 %v24, 4294901760
  %v2952 = vsub.f32 %v24, %v2951
  %v2953 = vand.u32 %v2952, 4294901760
  %v2954 = vsub.f32 %v2952, %v2953
  %v2955 = vand.u32 %v2954, 4294901760
  %2956 = vmatpush1.msra.mxu0 %v2955
  %2957 = vmatprep.subr.mxu0 0.0
  %v2958 = vand.u32 %v25, 4294901760
  %v2959 = vsub.f32 %v25, %v2958
  %v2960 = vand.u32 %v2959, 4294901760
  %v2961 = vsub.f32 %v2959, %v2960
  %v2962 = vand.u32 %v2961, 4294901760
  %2963 = vmatpush1.msra.mxu0 %v2962
  %2964 = vmatprep.subr.mxu0 0.0
  %v2965 = vand.u32 %v26, 4294901760
  %v2966 = vsub.f32 %v26, %v2965
  %v2967 = vand.u32 %v2966, 4294901760
  %v2968 = vsub.f32 %v2966, %v2967
  %v2969 = vand.u32 %v2968, 4294901760
  %2970 = vmatpush1.msra.mxu0 %v2969
  %2971 = vmatprep.subr.mxu0 0.0
  %v2972 = vand.u32 %v27, 4294901760
  %v2973 = vsub.f32 %v27, %v2972
  %v2974 = vand.u32 %v2973, 4294901760
  %v2975 = vsub.f32 %v2973, %v2974
  %v2976 = vand.u32 %v2975, 4294901760
  %2977 = vmatpush1.msra.mxu0 %v2976
  %2978 = vmatprep.subr.mxu0 0.0
  %v2979 = vand.u32 %v28, 4294901760
  %v2980 = vsub.f32 %v28, %v2979
  %v2981 = vand.u32 %v2980, 4294901760
  %v2982 = vsub.f32 %v2980, %v2981
  %v2983 = vand.u32 %v2982, 4294901760
  %2984 = vmatpush1.msra.mxu0 %v2983
  %2985 = vmatprep.subr.mxu0 0.0
  %2986 = vmatpush1.msra.mxu0 0.0
  %2987 = vmatprep.subr.mxu0 0.0
  %2988 = vmatpush1.msra.mxu0 0.0
  %2989 = vmatprep.subr.mxu0 0.0
  %2990 = vmatpush1.msra.mxu0 0.0
  %2991 = vmatprep.subr.mxu0 0.0
  %2992 = vmatpush1.msra.mxu0 0.0
  %2993 = vmatprep.subr.mxu0 0.0
  %2994 = vmatpush1.msra.mxu0 0.0
  %2995 = vmatprep.subr.mxu0 0.0
  %2996 = vmatpush1.msra.mxu0 0.0
  %2997 = vmatprep.subr.mxu0 0.0
  %2998 = vmatpush1.msra.mxu0 0.0
  %2999 = vmatprep.subr.mxu0 0.0
  %3000 = vmatpush1.msra.mxu0 0.0
  %3001 = vmatprep.subr.mxu0 0.0
  %3002 = vmatpush1.msra.mxu0 0.0
  %3003 = vmatprep.subr.mxu0 0.0
  %3004 = vmatpush1.msra.mxu0 0.0
  %3005 = vmatprep.subr.mxu0 0.0
  %3006 = vmatpush1.msra.mxu0 0.0
  %3007 = vmatprep.subr.mxu0 0.0
  %3008 = vmatpush1.msra.mxu0 0.0
  %3009 = vmatprep.subr.mxu0 0.0
  %3010 = vmatpush1.msra.mxu0 0.0
  %3011 = vmatprep.subr.mxu0 0.0
  %3012 = vmatpush1.msra.mxu0 0.0
  %3013 = vmatprep.subr.mxu0 0.0
  %3014 = vmatpush1.msra.mxu0 0.0
  %3015 = vmatprep.subr.mxu0 0.0
  %3016 = vmatpush1.msra.mxu0 0.0
  %3017 = vmatprep.mubr.f32.mxu0 0.0
  %v3018 = vand.u32 %v2780, 4294901760
  %3019 = vmatmul.mubr.f32.gmra.mrb[0].mxu0 %v3018
  %v3020 = vpop.f32.mrb[0].mxu0
  %v3021 = vadd.f32 %v2870, %v3020
  %v3022 = vpop.f32.mrb[0].mxu0
  %3023 = vdwg.mxu0
  %3024 = vmatprep.subr.mxu0 0.0
  %v3025 = vand.u32 %v13, 4294901760
  %v3026 = vsub.f32 %v13, %v3025
  %3027 = vmatpush1.msra.mxu0 %v3026
  %3028 = vmatprep.subr.mxu0 0.0
  %v3029 = vand.u32 %v14, 4294901760
  %v3030 = vsub.f32 %v14, %v3029
  %3031 = vmatpush1.msra.mxu0 %v3030
  %3032 = vmatprep.subr.mxu0 0.0
  %v3033 = vand.u32 %v15, 4294901760
  %v3034 = vsub.f32 %v15, %v3033
  %3035 = vmatpush1.msra.mxu0 %v3034
  %3036 = vmatprep.subr.mxu0 0.0
  %v3037 = vand.u32 %v16, 4294901760
  %v3038 = vsub.f32 %v16, %v3037
  %3039 = vmatpush1.msra.mxu0 %v3038
  %3040 = vmatprep.subr.mxu0 0.0
  %v3041 = vand.u32 %v17, 4294901760
  %v3042 = vsub.f32 %v17, %v3041
  %3043 = vmatpush1.msra.mxu0 %v3042
  %3044 = vmatprep.subr.mxu0 0.0
  %v3045 = vand.u32 %v18, 4294901760
  %v3046 = vsub.f32 %v18, %v3045
  %3047 = vmatpush1.msra.mxu0 %v3046
  %3048 = vmatprep.subr.mxu0 0.0
  %v3049 = vand.u32 %v19, 4294901760
  %v3050 = vsub.f32 %v19, %v3049
  %3051 = vmatpush1.msra.mxu0 %v3050
  %3052 = vmatprep.subr.mxu0 0.0
  %v3053 = vand.u32 %v20, 4294901760
  %v3054 = vsub.f32 %v20, %v3053
  %3055 = vmatpush1.msra.mxu0 %v3054
  %3056 = vmatprep.subr.mxu0 0.0
  %v3057 = vand.u32 %v21, 4294901760
  %v3058 = vsub.f32 %v21, %v3057
  %3059 = vmatpush1.msra.mxu0 %v3058
  %3060 = vmatprep.subr.mxu0 0.0
  %v3061 = vand.u32 %v22, 4294901760
  %v3062 = vsub.f32 %v22, %v3061
  %3063 = vmatpush1.msra.mxu0 %v3062
  %3064 = vmatprep.subr.mxu0 0.0
  %v3065 = vand.u32 %v23, 4294901760
  %v3066 = vsub.f32 %v23, %v3065
  %3067 = vmatpush1.msra.mxu0 %v3066
  %3068 = vmatprep.subr.mxu0 0.0
  %v3069 = vand.u32 %v24, 4294901760
  %v3070 = vsub.f32 %v24, %v3069
  %3071 = vmatpush1.msra.mxu0 %v3070
  %3072 = vmatprep.subr.mxu0 0.0
  %v3073 = vand.u32 %v25, 4294901760
  %v3074 = vsub.f32 %v25, %v3073
  %3075 = vmatpush1.msra.mxu0 %v3074
  %3076 = vmatprep.subr.mxu0 0.0
  %v3077 = vand.u32 %v26, 4294901760
  %v3078 = vsub.f32 %v26, %v3077
  %3079 = vmatpush1.msra.mxu0 %v3078
  %3080 = vmatprep.subr.mxu0 0.0
  %v3081 = vand.u32 %v27, 4294901760
  %v3082 = vsub.f32 %v27, %v3081
  %3083 = vmatpush1.msra.mxu0 %v3082
  %3084 = vmatprep.subr.mxu0 0.0
  %v3085 = vand.u32 %v28, 4294901760
  %v3086 = vsub.f32 %v28, %v3085
  %3087 = vmatpush1.msra.mxu0 %v3086
  %3088 = vmatprep.subr.mxu0 0.0
  %3089 = vmatpush1.msra.mxu0 0.0
  %3090 = vmatprep.subr.mxu0 0.0
  %3091 = vmatpush1.msra.mxu0 0.0
  %3092 = vmatprep.subr.mxu0 0.0
  %3093 = vmatpush1.msra.mxu0 0.0
  %3094 = vmatprep.subr.mxu0 0.0
  %3095 = vmatpush1.msra.mxu0 0.0
  %3096 = vmatprep.subr.mxu0 0.0
  %3097 = vmatpush1.msra.mxu0 0.0
  %3098 = vmatprep.subr.mxu0 0.0
  %3099 = vmatpush1.msra.mxu0 0.0
  %3100 = vmatprep.subr.mxu0 0.0
  %3101 = vmatpush1.msra.mxu0 0.0
  %3102 = vmatprep.subr.mxu0 0.0
  %3103 = vmatpush1.msra.mxu0 0.0
  %3104 = vmatprep.subr.mxu0 0.0
  %3105 = vmatpush1.msra.mxu0 0.0
  %3106 = vmatprep.subr.mxu0 0.0
  %3107 = vmatpush1.msra.mxu0 0.0
  %3108 = vmatprep.subr.mxu0 0.0
  %3109 = vmatpush1.msra.mxu0 0.0
  %3110 = vmatprep.subr.mxu0 0.0
  %3111 = vmatpush1.msra.mxu0 0.0
  %3112 = vmatprep.subr.mxu0 0.0
  %3113 = vmatpush1.msra.mxu0 0.0
  %3114 = vmatprep.subr.mxu0 0.0
  %3115 = vmatpush1.msra.mxu0 0.0
  %3116 = vmatprep.subr.mxu0 0.0
  %3117 = vmatpush1.msra.mxu0 0.0
  %3118 = vmatprep.subr.mxu0 0.0
  %3119 = vmatpush1.msra.mxu0 0.0
  %3120 = vmatprep.mubr.f32.mxu0 0.0
  %v3121 = vand.u32 %v2780, 4294901760
  %v3122 = vsub.f32 %v2780, %v3121
  %3123 = vmatmul.mubr.f32.gmra.mrb[0].mxu0 %v3122
  %v3124 = vpop.f32.mrb[0].mxu0
  %v3125 = vadd.f32 %v3021, %v3124
  %v3126 = vpop.f32.mrb[0].mxu0
  %3127 = vdwg.mxu0
  %3128 = vmatprep.subr.mxu0 0.0
  %v3129 = vand.u32 %v13, 4294901760
  %3130 = vmatpush1.msra.mxu0 %v3129
  %3131 = vmatprep.subr.mxu0 0.0
  %v3132 = vand.u32 %v14, 4294901760
  %3133 = vmatpush1.msra.mxu0 %v3132
  %3134 = vmatprep.subr.mxu0 0.0
  %v3135 = vand.u32 %v15, 4294901760
  %3136 = vmatpush1.msra.mxu0 %v3135
  %3137 = vmatprep.subr.mxu0 0.0
  %v3138 = vand.u32 %v16, 4294901760
  %3139 = vmatpush1.msra.mxu0 %v3138
  %3140 = vmatprep.subr.mxu0 0.0
  %v3141 = vand.u32 %v17, 4294901760
  %3142 = vmatpush1.msra.mxu0 %v3141
  %3143 = vmatprep.subr.mxu0 0.0
  %v3144 = vand.u32 %v18, 4294901760
  %3145 = vmatpush1.msra.mxu0 %v3144
  %3146 = vmatprep.subr.mxu0 0.0
  %v3147 = vand.u32 %v19, 4294901760
  %3148 = vmatpush1.msra.mxu0 %v3147
  %3149 = vmatprep.subr.mxu0 0.0
  %v3150 = vand.u32 %v20, 4294901760
  %3151 = vmatpush1.msra.mxu0 %v3150
  %3152 = vmatprep.subr.mxu0 0.0
  %v3153 = vand.u32 %v21, 4294901760
  %3154 = vmatpush1.msra.mxu0 %v3153
  %3155 = vmatprep.subr.mxu0 0.0
  %v3156 = vand.u32 %v22, 4294901760
  %3157 = vmatpush1.msra.mxu0 %v3156
  %3158 = vmatprep.subr.mxu0 0.0
  %v3159 = vand.u32 %v23, 4294901760
  %3160 = vmatpush1.msra.mxu0 %v3159
  %3161 = vmatprep.subr.mxu0 0.0
  %v3162 = vand.u32 %v24, 4294901760
  %3163 = vmatpush1.msra.mxu0 %v3162
  %3164 = vmatprep.subr.mxu0 0.0
  %v3165 = vand.u32 %v25, 4294901760
  %3166 = vmatpush1.msra.mxu0 %v3165
  %3167 = vmatprep.subr.mxu0 0.0
  %v3168 = vand.u32 %v26, 4294901760
  %3169 = vmatpush1.msra.mxu0 %v3168
  %3170 = vmatprep.subr.mxu0 0.0
  %v3171 = vand.u32 %v27, 4294901760
  %3172 = vmatpush1.msra.mxu0 %v3171
  %3173 = vmatprep.subr.mxu0 0.0
  %v3174 = vand.u32 %v28, 4294901760
  %3175 = vmatpush1.msra.mxu0 %v3174
  %3176 = vmatprep.subr.mxu0 0.0
  %3177 = vmatpush1.msra.mxu0 0.0
  %3178 = vmatprep.subr.mxu0 0.0
  %3179 = vmatpush1.msra.mxu0 0.0
  %3180 = vmatprep.subr.mxu0 0.0
  %3181 = vmatpush1.msra.mxu0 0.0
  %3182 = vmatprep.subr.mxu0 0.0
  %3183 = vmatpush1.msra.mxu0 0.0
  %3184 = vmatprep.subr.mxu0 0.0
  %3185 = vmatpush1.msra.mxu0 0.0
  %3186 = vmatprep.subr.mxu0 0.0
  %3187 = vmatpush1.msra.mxu0 0.0
  %3188 = vmatprep.subr.mxu0 0.0
  %3189 = vmatpush1.msra.mxu0 0.0
  %3190 = vmatprep.subr.mxu0 0.0
  %3191 = vmatpush1.msra.mxu0 0.0
  %3192 = vmatprep.subr.mxu0 0.0
  %3193 = vmatpush1.msra.mxu0 0.0
  %3194 = vmatprep.subr.mxu0 0.0
  %3195 = vmatpush1.msra.mxu0 0.0
  %3196 = vmatprep.subr.mxu0 0.0
  %3197 = vmatpush1.msra.mxu0 0.0
  %3198 = vmatprep.subr.mxu0 0.0
  %3199 = vmatpush1.msra.mxu0 0.0
  %3200 = vmatprep.subr.mxu0 0.0
  %3201 = vmatpush1.msra.mxu0 0.0
  %3202 = vmatprep.subr.mxu0 0.0
  %3203 = vmatpush1.msra.mxu0 0.0
  %3204 = vmatprep.subr.mxu0 0.0
  %3205 = vmatpush1.msra.mxu0 0.0
  %3206 = vmatprep.subr.mxu0 0.0
  %3207 = vmatpush1.msra.mxu0 0.0
  %3208 = vmatprep.mubr.f32.mxu0 0.0
  %v3209 = vand.u32 %v2780, 4294901760
  %v3210 = vsub.f32 %v2780, %v3209
  %v3211 = vand.u32 %v3210, 4294901760
  %3212 = vmatmul.mubr.f32.gmra.mrb[0].mxu0 %v3211
  %v3213 = vpop.f32.mrb[0].mxu0
  %v3214 = vadd.f32 %v3125, %v3213
  %v3215 = vpop.f32.mrb[0].mxu0
  %3216 = vdwg.mxu0
  %3217 = vmatprep.subr.mxu0 0.0
  %v3218 = vand.u32 %v13, 4294901760
  %v3219 = vsub.f32 %v13, %v3218
  %v3220 = vand.u32 %v3219, 4294901760
  %3221 = vmatpush1.msra.mxu0 %v3220
  %3222 = vmatprep.subr.mxu0 0.0
  %v3223 = vand.u32 %v14, 4294901760
  %v3224 = vsub.f32 %v14, %v3223
  %v3225 = vand.u32 %v3224, 4294901760
  %3226 = vmatpush1.msra.mxu0 %v3225
  %3227 = vmatprep.subr.mxu0 0.0
  %v3228 = vand.u32 %v15, 4294901760
  %v3229 = vsub.f32 %v15, %v3228
  %v3230 = vand.u32 %v3229, 4294901760
  %3231 = vmatpush1.msra.mxu0 %v3230
  %3232 = vmatprep.subr.mxu0 0.0
  %v3233 = vand.u32 %v16, 4294901760
  %v3234 = vsub.f32 %v16, %v3233
  %v3235 = vand.u32 %v3234, 4294901760
  %3236 = vmatpush1.msra.mxu0 %v3235
  %3237 = vmatprep.subr.mxu0 0.0
  %v3238 = vand.u32 %v17, 4294901760
  %v3239 = vsub.f32 %v17, %v3238
  %v3240 = vand.u32 %v3239, 4294901760
  %3241 = vmatpush1.msra.mxu0 %v3240
  %3242 = vmatprep.subr.mxu0 0.0
  %v3243 = vand.u32 %v18, 4294901760
  %v3244 = vsub.f32 %v18, %v3243
  %v3245 = vand.u32 %v3244, 4294901760
  %3246 = vmatpush1.msra.mxu0 %v3245
  %3247 = vmatprep.subr.mxu0 0.0
  %v3248 = vand.u32 %v19, 4294901760
  %v3249 = vsub.f32 %v19, %v3248
  %v3250 = vand.u32 %v3249, 4294901760
  %3251 = vmatpush1.msra.mxu0 %v3250
  %3252 = vmatprep.subr.mxu0 0.0
  %v3253 = vand.u32 %v20, 4294901760
  %v3254 = vsub.f32 %v20, %v3253
  %v3255 = vand.u32 %v3254, 4294901760
  %3256 = vmatpush1.msra.mxu0 %v3255
  %3257 = vmatprep.subr.mxu0 0.0
  %v3258 = vand.u32 %v21, 4294901760
  %v3259 = vsub.f32 %v21, %v3258
  %v3260 = vand.u32 %v3259, 4294901760
  %3261 = vmatpush1.msra.mxu0 %v3260
  %3262 = vmatprep.subr.mxu0 0.0
  %v3263 = vand.u32 %v22, 4294901760
  %v3264 = vsub.f32 %v22, %v3263
  %v3265 = vand.u32 %v3264, 4294901760
  %3266 = vmatpush1.msra.mxu0 %v3265
  %3267 = vmatprep.subr.mxu0 0.0
  %v3268 = vand.u32 %v23, 4294901760
  %v3269 = vsub.f32 %v23, %v3268
  %v3270 = vand.u32 %v3269, 4294901760
  %3271 = vmatpush1.msra.mxu0 %v3270
  %3272 = vmatprep.subr.mxu0 0.0
  %v3273 = vand.u32 %v24, 4294901760
  %v3274 = vsub.f32 %v24, %v3273
  %v3275 = vand.u32 %v3274, 4294901760
  %3276 = vmatpush1.msra.mxu0 %v3275
  %3277 = vmatprep.subr.mxu0 0.0
  %v3278 = vand.u32 %v25, 4294901760
  %v3279 = vsub.f32 %v25, %v3278
  %v3280 = vand.u32 %v3279, 4294901760
  %3281 = vmatpush1.msra.mxu0 %v3280
  %3282 = vmatprep.subr.mxu0 0.0
  %v3283 = vand.u32 %v26, 4294901760
  %v3284 = vsub.f32 %v26, %v3283
  %v3285 = vand.u32 %v3284, 4294901760
  %3286 = vmatpush1.msra.mxu0 %v3285
  %3287 = vmatprep.subr.mxu0 0.0
  %v3288 = vand.u32 %v27, 4294901760
  %v3289 = vsub.f32 %v27, %v3288
  %v3290 = vand.u32 %v3289, 4294901760
  %3291 = vmatpush1.msra.mxu0 %v3290
  %3292 = vmatprep.subr.mxu0 0.0
  %v3293 = vand.u32 %v28, 4294901760
  %v3294 = vsub.f32 %v28, %v3293
  %v3295 = vand.u32 %v3294, 4294901760
  %3296 = vmatpush1.msra.mxu0 %v3295
  %3297 = vmatprep.subr.mxu0 0.0
  %3298 = vmatpush1.msra.mxu0 0.0
  %3299 = vmatprep.subr.mxu0 0.0
  %3300 = vmatpush1.msra.mxu0 0.0
  %3301 = vmatprep.subr.mxu0 0.0
  %3302 = vmatpush1.msra.mxu0 0.0
  %3303 = vmatprep.subr.mxu0 0.0
  %3304 = vmatpush1.msra.mxu0 0.0
  %3305 = vmatprep.subr.mxu0 0.0
  %3306 = vmatpush1.msra.mxu0 0.0
  %3307 = vmatprep.subr.mxu0 0.0
  %3308 = vmatpush1.msra.mxu0 0.0
  %3309 = vmatprep.subr.mxu0 0.0
  %3310 = vmatpush1.msra.mxu0 0.0
  %3311 = vmatprep.subr.mxu0 0.0
  %3312 = vmatpush1.msra.mxu0 0.0
  %3313 = vmatprep.subr.mxu0 0.0
  %3314 = vmatpush1.msra.mxu0 0.0
  %3315 = vmatprep.subr.mxu0 0.0
  %3316 = vmatpush1.msra.mxu0 0.0
  %3317 = vmatprep.subr.mxu0 0.0
  %3318 = vmatpush1.msra.mxu0 0.0
  %3319 = vmatprep.subr.mxu0 0.0
  %3320 = vmatpush1.msra.mxu0 0.0
  %3321 = vmatprep.subr.mxu0 0.0
  %3322 = vmatpush1.msra.mxu0 0.0
  %3323 = vmatprep.subr.mxu0 0.0
  %3324 = vmatpush1.msra.mxu0 0.0
  %3325 = vmatprep.subr.mxu0 0.0
  %3326 = vmatpush1.msra.mxu0 0.0
  %3327 = vmatprep.subr.mxu0 0.0
  %3328 = vmatpush1.msra.mxu0 0.0
  %3329 = vmatprep.mubr.f32.mxu0 0.0
  %v3330 = vand.u32 %v2780, 4294901760
  %3331 = vmatmul.mubr.f32.gmra.mrb[0].mxu0 %v3330
  %v3332 = vpop.f32.mrb[0].mxu0
  %v3333 = vadd.f32 %v3214, %v3332
  %v3334 = vpop.f32.mrb[0].mxu0
  %3335 = vdwg.mxu0
  %3336 = vmatprep.subr.mxu0 0.0
  %v3337 = vand.u32 %v13, 4294901760
  %3338 = vmatpush1.msra.mxu0 %v3337
  %3339 = vmatprep.subr.mxu0 0.0
  %v3340 = vand.u32 %v14, 4294901760
  %3341 = vmatpush1.msra.mxu0 %v3340
  %3342 = vmatprep.subr.mxu0 0.0
  %v3343 = vand.u32 %v15, 4294901760
  %3344 = vmatpush1.msra.mxu0 %v3343
  %3345 = vmatprep.subr.mxu0 0.0
  %v3346 = vand.u32 %v16, 4294901760
  %3347 = vmatpush1.msra.mxu0 %v3346
  %3348 = vmatprep.subr.mxu0 0.0
  %v3349 = vand.u32 %v17, 4294901760
  %3350 = vmatpush1.msra.mxu0 %v3349
  %3351 = vmatprep.subr.mxu0 0.0
  %v3352 = vand.u32 %v18, 4294901760
  %3353 = vmatpush1.msra.mxu0 %v3352
  %3354 = vmatprep.subr.mxu0 0.0
  %v3355 = vand.u32 %v19, 4294901760
  %3356 = vmatpush1.msra.mxu0 %v3355
  %3357 = vmatprep.subr.mxu0 0.0
  %v3358 = vand.u32 %v20, 4294901760
  %3359 = vmatpush1.msra.mxu0 %v3358
  %3360 = vmatprep.subr.mxu0 0.0
  %v3361 = vand.u32 %v21, 4294901760
  %3362 = vmatpush1.msra.mxu0 %v3361
  %3363 = vmatprep.subr.mxu0 0.0
  %v3364 = vand.u32 %v22, 4294901760
  %3365 = vmatpush1.msra.mxu0 %v3364
  %3366 = vmatprep.subr.mxu0 0.0
  %v3367 = vand.u32 %v23, 4294901760
  %3368 = vmatpush1.msra.mxu0 %v3367
  %3369 = vmatprep.subr.mxu0 0.0
  %v3370 = vand.u32 %v24, 4294901760
  %3371 = vmatpush1.msra.mxu0 %v3370
  %3372 = vmatprep.subr.mxu0 0.0
  %v3373 = vand.u32 %v25, 4294901760
  %3374 = vmatpush1.msra.mxu0 %v3373
  %3375 = vmatprep.subr.mxu0 0.0
  %v3376 = vand.u32 %v26, 4294901760
  %3377 = vmatpush1.msra.mxu0 %v3376
  %3378 = vmatprep.subr.mxu0 0.0
  %v3379 = vand.u32 %v27, 4294901760
  %3380 = vmatpush1.msra.mxu0 %v3379
  %3381 = vmatprep.subr.mxu0 0.0
  %v3382 = vand.u32 %v28, 4294901760
  %3383 = vmatpush1.msra.mxu0 %v3382
  %3384 = vmatprep.subr.mxu0 0.0
  %3385 = vmatpush1.msra.mxu0 0.0
  %3386 = vmatprep.subr.mxu0 0.0
  %3387 = vmatpush1.msra.mxu0 0.0
  %3388 = vmatprep.subr.mxu0 0.0
  %3389 = vmatpush1.msra.mxu0 0.0
  %3390 = vmatprep.subr.mxu0 0.0
  %3391 = vmatpush1.msra.mxu0 0.0
  %3392 = vmatprep.subr.mxu0 0.0
  %3393 = vmatpush1.msra.mxu0 0.0
  %3394 = vmatprep.subr.mxu0 0.0
  %3395 = vmatpush1.msra.mxu0 0.0
  %3396 = vmatprep.subr.mxu0 0.0
  %3397 = vmatpush1.msra.mxu0 0.0
  %3398 = vmatprep.subr.mxu0 0.0
  %3399 = vmatpush1.msra.mxu0 0.0
  %3400 = vmatprep.subr.mxu0 0.0
  %3401 = vmatpush1.msra.mxu0 0.0
  %3402 = vmatprep.subr.mxu0 0.0
  %3403 = vmatpush1.msra.mxu0 0.0
  %3404 = vmatprep.subr.mxu0 0.0
  %3405 = vmatpush1.msra.mxu0 0.0
  %3406 = vmatprep.subr.mxu0 0.0
  %3407 = vmatpush1.msra.mxu0 0.0
  %3408 = vmatprep.subr.mxu0 0.0
  %3409 = vmatpush1.msra.mxu0 0.0
  %3410 = vmatprep.subr.mxu0 0.0
  %3411 = vmatpush1.msra.mxu0 0.0
  %3412 = vmatprep.subr.mxu0 0.0
  %3413 = vmatpush1.msra.mxu0 0.0
  %3414 = vmatprep.subr.mxu0 0.0
  %3415 = vmatpush1.msra.mxu0 0.0
  %3416 = vmatprep.mubr.f32.mxu0 0.0
  %v3417 = vand.u32 %v2780, 4294901760
  %3418 = vmatmul.mubr.f32.gmra.mrb[0].mxu0 %v3417
  %v3419 = vpop.f32.mrb[0].mxu0
  %v3420 = vadd.f32 %v3333, %v3419
  %v3421 = vpop.f32.mrb[0].mxu0
  %3422 = vdwg.mxu0
  %vm3423 = vcmp.gt.f32.partialorder %v2781, 1.0
  %v3424 = vsel %vm3423, 1.0, 0.0
  %v3425 = vmul.f32 %v2774, 0.9
  %v3426 = vadd.f32 %v3425, %v811
  %v3427 = vadd.f32 %v3426, %v3420
  %v3428 = vmul.f32 %v2781, 0.9
  %v3429 = vadd.f32 %v3428, %v3427
  %v3430 = vsub.f32 %v3429, %v3424
  %vm3431 = vcmp.gt.f32.partialorder %v3430, 1.0
  %v3432 = vsel %vm3431, 1, 0
  %v3433 = vcvt.s32.f32 %v3432
  %v3434 = vsub.f32 %v3429, %v3433
  %3435 = vmatprep.subr.mxu0 0.0
  %v3436 = vand.u32 %v13, 4294901760
  %3437 = vmatpush1.msra.mxu0 %v3436
  %3438 = vmatprep.subr.mxu0 0.0
  %v3439 = vand.u32 %v14, 4294901760
  %3440 = vmatpush1.msra.mxu0 %v3439
  %3441 = vmatprep.subr.mxu0 0.0
  %v3442 = vand.u32 %v15, 4294901760
  %3443 = vmatpush1.msra.mxu0 %v3442
  %3444 = vmatprep.subr.mxu0 0.0
  %v3445 = vand.u32 %v16, 4294901760
  %3446 = vmatpush1.msra.mxu0 %v3445
  %3447 = vmatprep.subr.mxu0 0.0
  %v3448 = vand.u32 %v17, 4294901760
  %3449 = vmatpush1.msra.mxu0 %v3448
  %3450 = vmatprep.subr.mxu0 0.0
  %v3451 = vand.u32 %v18, 4294901760
  %3452 = vmatpush1.msra.mxu0 %v3451
  %3453 = vmatprep.subr.mxu0 0.0
  %v3454 = vand.u32 %v19, 4294901760
  %3455 = vmatpush1.msra.mxu0 %v3454
  %3456 = vmatprep.subr.mxu0 0.0
  %v3457 = vand.u32 %v20, 4294901760
  %3458 = vmatpush1.msra.mxu0 %v3457
  %3459 = vmatprep.subr.mxu0 0.0
  %v3460 = vand.u32 %v21, 4294901760
  %3461 = vmatpush1.msra.mxu0 %v3460
  %3462 = vmatprep.subr.mxu0 0.0
  %v3463 = vand.u32 %v22, 4294901760
  %3464 = vmatpush1.msra.mxu0 %v3463
  %3465 = vmatprep.subr.mxu0 0.0
  %v3466 = vand.u32 %v23, 4294901760
  %3467 = vmatpush1.msra.mxu0 %v3466
  %3468 = vmatprep.subr.mxu0 0.0
  %v3469 = vand.u32 %v24, 4294901760
  %3470 = vmatpush1.msra.mxu0 %v3469
  %3471 = vmatprep.subr.mxu0 0.0
  %v3472 = vand.u32 %v25, 4294901760
  %3473 = vmatpush1.msra.mxu0 %v3472
  %3474 = vmatprep.subr.mxu0 0.0
  %v3475 = vand.u32 %v26, 4294901760
  %3476 = vmatpush1.msra.mxu0 %v3475
  %3477 = vmatprep.subr.mxu0 0.0
  %v3478 = vand.u32 %v27, 4294901760
  %3479 = vmatpush1.msra.mxu0 %v3478
  %3480 = vmatprep.subr.mxu0 0.0
  %v3481 = vand.u32 %v28, 4294901760
  %3482 = vmatpush1.msra.mxu0 %v3481
  %3483 = vmatprep.subr.mxu0 0.0
  %3484 = vmatpush1.msra.mxu0 0.0
  %3485 = vmatprep.subr.mxu0 0.0
  %3486 = vmatpush1.msra.mxu0 0.0
  %3487 = vmatprep.subr.mxu0 0.0
  %3488 = vmatpush1.msra.mxu0 0.0
  %3489 = vmatprep.subr.mxu0 0.0
  %3490 = vmatpush1.msra.mxu0 0.0
  %3491 = vmatprep.subr.mxu0 0.0
  %3492 = vmatpush1.msra.mxu0 0.0
  %3493 = vmatprep.subr.mxu0 0.0
  %3494 = vmatpush1.msra.mxu0 0.0
  %3495 = vmatprep.subr.mxu0 0.0
  %3496 = vmatpush1.msra.mxu0 0.0
  %3497 = vmatprep.subr.mxu0 0.0
  %3498 = vmatpush1.msra.mxu0 0.0
  %3499 = vmatprep.subr.mxu0 0.0
  %3500 = vmatpush1.msra.mxu0 0.0
  %3501 = vmatprep.subr.mxu0 0.0
  %3502 = vmatpush1.msra.mxu0 0.0
  %3503 = vmatprep.subr.mxu0 0.0
  %3504 = vmatpush1.msra.mxu0 0.0
  %3505 = vmatprep.subr.mxu0 0.0
  %3506 = vmatpush1.msra.mxu0 0.0
  %3507 = vmatprep.subr.mxu0 0.0
  %3508 = vmatpush1.msra.mxu0 0.0
  %3509 = vmatprep.subr.mxu0 0.0
  %3510 = vmatpush1.msra.mxu0 0.0
  %3511 = vmatprep.subr.mxu0 0.0
  %3512 = vmatpush1.msra.mxu0 0.0
  %3513 = vmatprep.subr.mxu0 0.0
  %3514 = vmatpush1.msra.mxu0 0.0
  %3515 = vmatprep.mubr.f32.mxu0 0.0
  %v3516 = vand.u32 %v3433, 4294901760
  %v3517 = vsub.f32 %v3433, %v3516
  %v3518 = vand.u32 %v3517, 4294901760
  %v3519 = vsub.f32 %v3517, %v3518
  %v3520 = vand.u32 %v3519, 4294901760
  %3521 = vmatmul.mubr.f32.gmra.mrb[0].mxu0 %v3520
  %v3522 = vpop.f32.mrb[0].mxu0
  %v3523 = vadd.f32 0.0, %v3522
  %v3524 = vpop.f32.mrb[0].mxu0
  %3525 = vdwg.mxu0
  %3526 = vmatprep.subr.mxu0 0.0
  %v3527 = vand.u32 %v13, 4294901760
  %v3528 = vsub.f32 %v13, %v3527
  %v3529 = vand.u32 %v3528, 4294901760
  %v3530 = vsub.f32 %v3528, %v3529
  %v3531 = vand.u32 %v3530, 4294901760
  %3532 = vmatpush1.msra.mxu0 %v3531
  %3533 = vmatprep.subr.mxu0 0.0
  %v3534 = vand.u32 %v14, 4294901760
  %v3535 = vsub.f32 %v14, %v3534
  %v3536 = vand.u32 %v3535, 4294901760
  %v3537 = vsub.f32 %v3535, %v3536
  %v3538 = vand.u32 %v3537, 4294901760
  %3539 = vmatpush1.msra.mxu0 %v3538
  %3540 = vmatprep.subr.mxu0 0.0
  %v3541 = vand.u32 %v15, 4294901760
  %v3542 = vsub.f32 %v15, %v3541
  %v3543 = vand.u32 %v3542, 4294901760
  %v3544 = vsub.f32 %v3542, %v3543
  %v3545 = vand.u32 %v3544, 4294901760
  %3546 = vmatpush1.msra.mxu0 %v3545
  %3547 = vmatprep.subr.mxu0 0.0
  %v3548 = vand.u32 %v16, 4294901760
  %v3549 = vsub.f32 %v16, %v3548
  %v3550 = vand.u32 %v3549, 4294901760
  %v3551 = vsub.f32 %v3549, %v3550
  %v3552 = vand.u32 %v3551, 4294901760
  %3553 = vmatpush1.msra.mxu0 %v3552
  %3554 = vmatprep.subr.mxu0 0.0
  %v3555 = vand.u32 %v17, 4294901760
  %v3556 = vsub.f32 %v17, %v3555
  %v3557 = vand.u32 %v3556, 4294901760
  %v3558 = vsub.f32 %v3556, %v3557
  %v3559 = vand.u32 %v3558, 4294901760
  %3560 = vmatpush1.msra.mxu0 %v3559
  %3561 = vmatprep.subr.mxu0 0.0
  %v3562 = vand.u32 %v18, 4294901760
  %v3563 = vsub.f32 %v18, %v3562
  %v3564 = vand.u32 %v3563, 4294901760
  %v3565 = vsub.f32 %v3563, %v3564
  %v3566 = vand.u32 %v3565, 4294901760
  %3567 = vmatpush1.msra.mxu0 %v3566
  %3568 = vmatprep.subr.mxu0 0.0
  %v3569 = vand.u32 %v19, 4294901760
  %v3570 = vsub.f32 %v19, %v3569
  %v3571 = vand.u32 %v3570, 4294901760
  %v3572 = vsub.f32 %v3570, %v3571
  %v3573 = vand.u32 %v3572, 4294901760
  %3574 = vmatpush1.msra.mxu0 %v3573
  %3575 = vmatprep.subr.mxu0 0.0
  %v3576 = vand.u32 %v20, 4294901760
  %v3577 = vsub.f32 %v20, %v3576
  %v3578 = vand.u32 %v3577, 4294901760
  %v3579 = vsub.f32 %v3577, %v3578
  %v3580 = vand.u32 %v3579, 4294901760
  %3581 = vmatpush1.msra.mxu0 %v3580
  %3582 = vmatprep.subr.mxu0 0.0
  %v3583 = vand.u32 %v21, 4294901760
  %v3584 = vsub.f32 %v21, %v3583
  %v3585 = vand.u32 %v3584, 4294901760
  %v3586 = vsub.f32 %v3584, %v3585
  %v3587 = vand.u32 %v3586, 4294901760
  %3588 = vmatpush1.msra.mxu0 %v3587
  %3589 = vmatprep.subr.mxu0 0.0
  %v3590 = vand.u32 %v22, 4294901760
  %v3591 = vsub.f32 %v22, %v3590
  %v3592 = vand.u32 %v3591, 4294901760
  %v3593 = vsub.f32 %v3591, %v3592
  %v3594 = vand.u32 %v3593, 4294901760
  %3595 = vmatpush1.msra.mxu0 %v3594
  %3596 = vmatprep.subr.mxu0 0.0
  %v3597 = vand.u32 %v23, 4294901760
  %v3598 = vsub.f32 %v23, %v3597
  %v3599 = vand.u32 %v3598, 4294901760
  %v3600 = vsub.f32 %v3598, %v3599
  %v3601 = vand.u32 %v3600, 4294901760
  %3602 = vmatpush1.msra.mxu0 %v3601
  %3603 = vmatprep.subr.mxu0 0.0
  %v3604 = vand.u32 %v24, 4294901760
  %v3605 = vsub.f32 %v24, %v3604
  %v3606 = vand.u32 %v3605, 4294901760
  %v3607 = vsub.f32 %v3605, %v3606
  %v3608 = vand.u32 %v3607, 4294901760
  %3609 = vmatpush1.msra.mxu0 %v3608
  %3610 = vmatprep.subr.mxu0 0.0
  %v3611 = vand.u32 %v25, 4294901760
  %v3612 = vsub.f32 %v25, %v3611
  %v3613 = vand.u32 %v3612, 4294901760
  %v3614 = vsub.f32 %v3612, %v3613
  %v3615 = vand.u32 %v3614, 4294901760
  %3616 = vmatpush1.msra.mxu0 %v3615
  %3617 = vmatprep.subr.mxu0 0.0
  %v3618 = vand.u32 %v26, 4294901760
  %v3619 = vsub.f32 %v26, %v3618
  %v3620 = vand.u32 %v3619, 4294901760
  %v3621 = vsub.f32 %v3619, %v3620
  %v3622 = vand.u32 %v3621, 4294901760
  %3623 = vmatpush1.msra.mxu0 %v3622
  %3624 = vmatprep.subr.mxu0 0.0
  %v3625 = vand.u32 %v27, 4294901760
  %v3626 = vsub.f32 %v27, %v3625
  %v3627 = vand.u32 %v3626, 4294901760
  %v3628 = vsub.f32 %v3626, %v3627
  %v3629 = vand.u32 %v3628, 4294901760
  %3630 = vmatpush1.msra.mxu0 %v3629
  %3631 = vmatprep.subr.mxu0 0.0
  %v3632 = vand.u32 %v28, 4294901760
  %v3633 = vsub.f32 %v28, %v3632
  %v3634 = vand.u32 %v3633, 4294901760
  %v3635 = vsub.f32 %v3633, %v3634
  %v3636 = vand.u32 %v3635, 4294901760
  %3637 = vmatpush1.msra.mxu0 %v3636
  %3638 = vmatprep.subr.mxu0 0.0
  %3639 = vmatpush1.msra.mxu0 0.0
  %3640 = vmatprep.subr.mxu0 0.0
  %3641 = vmatpush1.msra.mxu0 0.0
  %3642 = vmatprep.subr.mxu0 0.0
  %3643 = vmatpush1.msra.mxu0 0.0
  %3644 = vmatprep.subr.mxu0 0.0
  %3645 = vmatpush1.msra.mxu0 0.0
  %3646 = vmatprep.subr.mxu0 0.0
  %3647 = vmatpush1.msra.mxu0 0.0
  %3648 = vmatprep.subr.mxu0 0.0
  %3649 = vmatpush1.msra.mxu0 0.0
  %3650 = vmatprep.subr.mxu0 0.0
  %3651 = vmatpush1.msra.mxu0 0.0
  %3652 = vmatprep.subr.mxu0 0.0
  %3653 = vmatpush1.msra.mxu0 0.0
  %3654 = vmatprep.subr.mxu0 0.0
  %3655 = vmatpush1.msra.mxu0 0.0
  %3656 = vmatprep.subr.mxu0 0.0
  %3657 = vmatpush1.msra.mxu0 0.0
  %3658 = vmatprep.subr.mxu0 0.0
  %3659 = vmatpush1.msra.mxu0 0.0
  %3660 = vmatprep.subr.mxu0 0.0
  %3661 = vmatpush1.msra.mxu0 0.0
  %3662 = vmatprep.subr.mxu0 0.0
  %3663 = vmatpush1.msra.mxu0 0.0
  %3664 = vmatprep.subr.mxu0 0.0
  %3665 = vmatpush1.msra.mxu0 0.0
  %3666 = vmatprep.subr.mxu0 0.0
  %3667 = vmatpush1.msra.mxu0 0.0
  %3668 = vmatprep.subr.mxu0 0.0
  %3669 = vmatpush1.msra.mxu0 0.0
  %3670 = vmatprep.mubr.f32.mxu0 0.0
  %v3671 = vand.u32 %v3433, 4294901760
  %3672 = vmatmul.mubr.f32.gmra.mrb[0].mxu0 %v3671
  %v3673 = vpop.f32.mrb[0].mxu0
  %v3674 = vadd.f32 %v3523, %v3673
  %v3675 = vpop.f32.mrb[0].mxu0
  %3676 = vdwg.mxu0
  %3677 = vmatprep.subr.mxu0 0.0
  %v3678 = vand.u32 %v13, 4294901760
  %v3679 = vsub.f32 %v13, %v3678
  %3680 = vmatpush1.msra.mxu0 %v3679
  %3681 = vmatprep.subr.mxu0 0.0
  %v3682 = vand.u32 %v14, 4294901760
  %v3683 = vsub.f32 %v14, %v3682
  %3684 = vmatpush1.msra.mxu0 %v3683
  %3685 = vmatprep.subr.mxu0 0.0
  %v3686 = vand.u32 %v15, 4294901760
  %v3687 = vsub.f32 %v15, %v3686
  %3688 = vmatpush1.msra.mxu0 %v3687
  %3689 = vmatprep.subr.mxu0 0.0
  %v3690 = vand.u32 %v16, 4294901760
  %v3691 = vsub.f32 %v16, %v3690
  %3692 = vmatpush1.msra.mxu0 %v3691
  %3693 = vmatprep.subr.mxu0 0.0
  %v3694 = vand.u32 %v17, 4294901760
  %v3695 = vsub.f32 %v17, %v3694
  %3696 = vmatpush1.msra.mxu0 %v3695
  %3697 = vmatprep.subr.mxu0 0.0
  %v3698 = vand.u32 %v18, 4294901760
  %v3699 = vsub.f32 %v18, %v3698
  %3700 = vmatpush1.msra.mxu0 %v3699
  %3701 = vmatprep.subr.mxu0 0.0
  %v3702 = vand.u32 %v19, 4294901760
  %v3703 = vsub.f32 %v19, %v3702
  %3704 = vmatpush1.msra.mxu0 %v3703
  %3705 = vmatprep.subr.mxu0 0.0
  %v3706 = vand.u32 %v20, 4294901760
  %v3707 = vsub.f32 %v20, %v3706
  %3708 = vmatpush1.msra.mxu0 %v3707
  %3709 = vmatprep.subr.mxu0 0.0
  %v3710 = vand.u32 %v21, 4294901760
  %v3711 = vsub.f32 %v21, %v3710
  %3712 = vmatpush1.msra.mxu0 %v3711
  %3713 = vmatprep.subr.mxu0 0.0
  %v3714 = vand.u32 %v22, 4294901760
  %v3715 = vsub.f32 %v22, %v3714
  %3716 = vmatpush1.msra.mxu0 %v3715
  %3717 = vmatprep.subr.mxu0 0.0
  %v3718 = vand.u32 %v23, 4294901760
  %v3719 = vsub.f32 %v23, %v3718
  %3720 = vmatpush1.msra.mxu0 %v3719
  %3721 = vmatprep.subr.mxu0 0.0
  %v3722 = vand.u32 %v24, 4294901760
  %v3723 = vsub.f32 %v24, %v3722
  %3724 = vmatpush1.msra.mxu0 %v3723
  %3725 = vmatprep.subr.mxu0 0.0
  %v3726 = vand.u32 %v25, 4294901760
  %v3727 = vsub.f32 %v25, %v3726
  %3728 = vmatpush1.msra.mxu0 %v3727
  %3729 = vmatprep.subr.mxu0 0.0
  %v3730 = vand.u32 %v26, 4294901760
  %v3731 = vsub.f32 %v26, %v3730
  %3732 = vmatpush1.msra.mxu0 %v3731
  %3733 = vmatprep.subr.mxu0 0.0
  %v3734 = vand.u32 %v27, 4294901760
  %v3735 = vsub.f32 %v27, %v3734
  %3736 = vmatpush1.msra.mxu0 %v3735
  %3737 = vmatprep.subr.mxu0 0.0
  %v3738 = vand.u32 %v28, 4294901760
  %v3739 = vsub.f32 %v28, %v3738
  %3740 = vmatpush1.msra.mxu0 %v3739
  %3741 = vmatprep.subr.mxu0 0.0
  %3742 = vmatpush1.msra.mxu0 0.0
  %3743 = vmatprep.subr.mxu0 0.0
  %3744 = vmatpush1.msra.mxu0 0.0
  %3745 = vmatprep.subr.mxu0 0.0
  %3746 = vmatpush1.msra.mxu0 0.0
  %3747 = vmatprep.subr.mxu0 0.0
  %3748 = vmatpush1.msra.mxu0 0.0
  %3749 = vmatprep.subr.mxu0 0.0
  %3750 = vmatpush1.msra.mxu0 0.0
  %3751 = vmatprep.subr.mxu0 0.0
  %3752 = vmatpush1.msra.mxu0 0.0
  %3753 = vmatprep.subr.mxu0 0.0
  %3754 = vmatpush1.msra.mxu0 0.0
  %3755 = vmatprep.subr.mxu0 0.0
  %3756 = vmatpush1.msra.mxu0 0.0
  %3757 = vmatprep.subr.mxu0 0.0
  %3758 = vmatpush1.msra.mxu0 0.0
  %3759 = vmatprep.subr.mxu0 0.0
  %3760 = vmatpush1.msra.mxu0 0.0
  %3761 = vmatprep.subr.mxu0 0.0
  %3762 = vmatpush1.msra.mxu0 0.0
  %3763 = vmatprep.subr.mxu0 0.0
  %3764 = vmatpush1.msra.mxu0 0.0
  %3765 = vmatprep.subr.mxu0 0.0
  %3766 = vmatpush1.msra.mxu0 0.0
  %3767 = vmatprep.subr.mxu0 0.0
  %3768 = vmatpush1.msra.mxu0 0.0
  %3769 = vmatprep.subr.mxu0 0.0
  %3770 = vmatpush1.msra.mxu0 0.0
  %3771 = vmatprep.subr.mxu0 0.0
  %3772 = vmatpush1.msra.mxu0 0.0
  %3773 = vmatprep.mubr.f32.mxu0 0.0
  %v3774 = vand.u32 %v3433, 4294901760
  %v3775 = vsub.f32 %v3433, %v3774
  %3776 = vmatmul.mubr.f32.gmra.mrb[0].mxu0 %v3775
  %v3777 = vpop.f32.mrb[0].mxu0
  %v3778 = vadd.f32 %v3674, %v3777
  %v3779 = vpop.f32.mrb[0].mxu0
  %3780 = vdwg.mxu0
  %3781 = vmatprep.subr.mxu0 0.0
  %v3782 = vand.u32 %v13, 4294901760
  %3783 = vmatpush1.msra.mxu0 %v3782
  %3784 = vmatprep.subr.mxu0 0.0
  %v3785 = vand.u32 %v14, 4294901760
  %3786 = vmatpush1.msra.mxu0 %v3785
  %3787 = vmatprep.subr.mxu0 0.0
  %v3788 = vand.u32 %v15, 4294901760
  %3789 = vmatpush1.msra.mxu0 %v3788
  %3790 = vmatprep.subr.mxu0 0.0
  %v3791 = vand.u32 %v16, 4294901760
  %3792 = vmatpush1.msra.mxu0 %v3791
  %3793 = vmatprep.subr.mxu0 0.0
  %v3794 = vand.u32 %v17, 4294901760
  %3795 = vmatpush1.msra.mxu0 %v3794
  %3796 = vmatprep.subr.mxu0 0.0
  %v3797 = vand.u32 %v18, 4294901760
  %3798 = vmatpush1.msra.mxu0 %v3797
  %3799 = vmatprep.subr.mxu0 0.0
  %v3800 = vand.u32 %v19, 4294901760
  %3801 = vmatpush1.msra.mxu0 %v3800
  %3802 = vmatprep.subr.mxu0 0.0
  %v3803 = vand.u32 %v20, 4294901760
  %3804 = vmatpush1.msra.mxu0 %v3803
  %3805 = vmatprep.subr.mxu0 0.0
  %v3806 = vand.u32 %v21, 4294901760
  %3807 = vmatpush1.msra.mxu0 %v3806
  %3808 = vmatprep.subr.mxu0 0.0
  %v3809 = vand.u32 %v22, 4294901760
  %3810 = vmatpush1.msra.mxu0 %v3809
  %3811 = vmatprep.subr.mxu0 0.0
  %v3812 = vand.u32 %v23, 4294901760
  %3813 = vmatpush1.msra.mxu0 %v3812
  %3814 = vmatprep.subr.mxu0 0.0
  %v3815 = vand.u32 %v24, 4294901760
  %3816 = vmatpush1.msra.mxu0 %v3815
  %3817 = vmatprep.subr.mxu0 0.0
  %v3818 = vand.u32 %v25, 4294901760
  %3819 = vmatpush1.msra.mxu0 %v3818
  %3820 = vmatprep.subr.mxu0 0.0
  %v3821 = vand.u32 %v26, 4294901760
  %3822 = vmatpush1.msra.mxu0 %v3821
  %3823 = vmatprep.subr.mxu0 0.0
  %v3824 = vand.u32 %v27, 4294901760
  %3825 = vmatpush1.msra.mxu0 %v3824
  %3826 = vmatprep.subr.mxu0 0.0
  %v3827 = vand.u32 %v28, 4294901760
  %3828 = vmatpush1.msra.mxu0 %v3827
  %3829 = vmatprep.subr.mxu0 0.0
  %3830 = vmatpush1.msra.mxu0 0.0
  %3831 = vmatprep.subr.mxu0 0.0
  %3832 = vmatpush1.msra.mxu0 0.0
  %3833 = vmatprep.subr.mxu0 0.0
  %3834 = vmatpush1.msra.mxu0 0.0
  %3835 = vmatprep.subr.mxu0 0.0
  %3836 = vmatpush1.msra.mxu0 0.0
  %3837 = vmatprep.subr.mxu0 0.0
  %3838 = vmatpush1.msra.mxu0 0.0
  %3839 = vmatprep.subr.mxu0 0.0
  %3840 = vmatpush1.msra.mxu0 0.0
  %3841 = vmatprep.subr.mxu0 0.0
  %3842 = vmatpush1.msra.mxu0 0.0
  %3843 = vmatprep.subr.mxu0 0.0
  %3844 = vmatpush1.msra.mxu0 0.0
  %3845 = vmatprep.subr.mxu0 0.0
  %3846 = vmatpush1.msra.mxu0 0.0
  %3847 = vmatprep.subr.mxu0 0.0
  %3848 = vmatpush1.msra.mxu0 0.0
  %3849 = vmatprep.subr.mxu0 0.0
  %3850 = vmatpush1.msra.mxu0 0.0
  %3851 = vmatprep.subr.mxu0 0.0
  %3852 = vmatpush1.msra.mxu0 0.0
  %3853 = vmatprep.subr.mxu0 0.0
  %3854 = vmatpush1.msra.mxu0 0.0
  %3855 = vmatprep.subr.mxu0 0.0
  %3856 = vmatpush1.msra.mxu0 0.0
  %3857 = vmatprep.subr.mxu0 0.0
  %3858 = vmatpush1.msra.mxu0 0.0
  %3859 = vmatprep.subr.mxu0 0.0
  %3860 = vmatpush1.msra.mxu0 0.0
  %3861 = vmatprep.mubr.f32.mxu0 0.0
  %v3862 = vand.u32 %v3433, 4294901760
  %v3863 = vsub.f32 %v3433, %v3862
  %v3864 = vand.u32 %v3863, 4294901760
  %3865 = vmatmul.mubr.f32.gmra.mrb[0].mxu0 %v3864
  %v3866 = vpop.f32.mrb[0].mxu0
  %v3867 = vadd.f32 %v3778, %v3866
  %v3868 = vpop.f32.mrb[0].mxu0
  %3869 = vdwg.mxu0
  %3870 = vmatprep.subr.mxu0 0.0
  %v3871 = vand.u32 %v13, 4294901760
  %v3872 = vsub.f32 %v13, %v3871
  %v3873 = vand.u32 %v3872, 4294901760
  %3874 = vmatpush1.msra.mxu0 %v3873
  %3875 = vmatprep.subr.mxu0 0.0
  %v3876 = vand.u32 %v14, 4294901760
  %v3877 = vsub.f32 %v14, %v3876
  %v3878 = vand.u32 %v3877, 4294901760
  %3879 = vmatpush1.msra.mxu0 %v3878
  %3880 = vmatprep.subr.mxu0 0.0
  %v3881 = vand.u32 %v15, 4294901760
  %v3882 = vsub.f32 %v15, %v3881
  %v3883 = vand.u32 %v3882, 4294901760
  %3884 = vmatpush1.msra.mxu0 %v3883
  %3885 = vmatprep.subr.mxu0 0.0
  %v3886 = vand.u32 %v16, 4294901760
  %v3887 = vsub.f32 %v16, %v3886
  %v3888 = vand.u32 %v3887, 4294901760
  %3889 = vmatpush1.msra.mxu0 %v3888
  %3890 = vmatprep.subr.mxu0 0.0
  %v3891 = vand.u32 %v17, 4294901760
  %v3892 = vsub.f32 %v17, %v3891
  %v3893 = vand.u32 %v3892, 4294901760
  %3894 = vmatpush1.msra.mxu0 %v3893
  %3895 = vmatprep.subr.mxu0 0.0
  %v3896 = vand.u32 %v18, 4294901760
  %v3897 = vsub.f32 %v18, %v3896
  %v3898 = vand.u32 %v3897, 4294901760
  %3899 = vmatpush1.msra.mxu0 %v3898
  %3900 = vmatprep.subr.mxu0 0.0
  %v3901 = vand.u32 %v19, 4294901760
  %v3902 = vsub.f32 %v19, %v3901
  %v3903 = vand.u32 %v3902, 4294901760
  %3904 = vmatpush1.msra.mxu0 %v3903
  %3905 = vmatprep.subr.mxu0 0.0
  %v3906 = vand.u32 %v20, 4294901760
  %v3907 = vsub.f32 %v20, %v3906
  %v3908 = vand.u32 %v3907, 4294901760
  %3909 = vmatpush1.msra.mxu0 %v3908
  %3910 = vmatprep.subr.mxu0 0.0
  %v3911 = vand.u32 %v21, 4294901760
  %v3912 = vsub.f32 %v21, %v3911
  %v3913 = vand.u32 %v3912, 4294901760
  %3914 = vmatpush1.msra.mxu0 %v3913
  %3915 = vmatprep.subr.mxu0 0.0
  %v3916 = vand.u32 %v22, 4294901760
  %v3917 = vsub.f32 %v22, %v3916
  %v3918 = vand.u32 %v3917, 4294901760
  %3919 = vmatpush1.msra.mxu0 %v3918
  %3920 = vmatprep.subr.mxu0 0.0
  %v3921 = vand.u32 %v23, 4294901760
  %v3922 = vsub.f32 %v23, %v3921
  %v3923 = vand.u32 %v3922, 4294901760
  %3924 = vmatpush1.msra.mxu0 %v3923
  %3925 = vmatprep.subr.mxu0 0.0
  %v3926 = vand.u32 %v24, 4294901760
  %v3927 = vsub.f32 %v24, %v3926
  %v3928 = vand.u32 %v3927, 4294901760
  %3929 = vmatpush1.msra.mxu0 %v3928
  %3930 = vmatprep.subr.mxu0 0.0
  %v3931 = vand.u32 %v25, 4294901760
  %v3932 = vsub.f32 %v25, %v3931
  %v3933 = vand.u32 %v3932, 4294901760
  %3934 = vmatpush1.msra.mxu0 %v3933
  %3935 = vmatprep.subr.mxu0 0.0
  %v3936 = vand.u32 %v26, 4294901760
  %v3937 = vsub.f32 %v26, %v3936
  %v3938 = vand.u32 %v3937, 4294901760
  %3939 = vmatpush1.msra.mxu0 %v3938
  %3940 = vmatprep.subr.mxu0 0.0
  %v3941 = vand.u32 %v27, 4294901760
  %v3942 = vsub.f32 %v27, %v3941
  %v3943 = vand.u32 %v3942, 4294901760
  %3944 = vmatpush1.msra.mxu0 %v3943
  %3945 = vmatprep.subr.mxu0 0.0
  %v3946 = vand.u32 %v28, 4294901760
  %v3947 = vsub.f32 %v28, %v3946
  %v3948 = vand.u32 %v3947, 4294901760
  %3949 = vmatpush1.msra.mxu0 %v3948
  %3950 = vmatprep.subr.mxu0 0.0
  %3951 = vmatpush1.msra.mxu0 0.0
  %3952 = vmatprep.subr.mxu0 0.0
  %3953 = vmatpush1.msra.mxu0 0.0
  %3954 = vmatprep.subr.mxu0 0.0
  %3955 = vmatpush1.msra.mxu0 0.0
  %3956 = vmatprep.subr.mxu0 0.0
  %3957 = vmatpush1.msra.mxu0 0.0
  %3958 = vmatprep.subr.mxu0 0.0
  %3959 = vmatpush1.msra.mxu0 0.0
  %3960 = vmatprep.subr.mxu0 0.0
  %3961 = vmatpush1.msra.mxu0 0.0
  %3962 = vmatprep.subr.mxu0 0.0
  %3963 = vmatpush1.msra.mxu0 0.0
  %3964 = vmatprep.subr.mxu0 0.0
  %3965 = vmatpush1.msra.mxu0 0.0
  %3966 = vmatprep.subr.mxu0 0.0
  %3967 = vmatpush1.msra.mxu0 0.0
  %3968 = vmatprep.subr.mxu0 0.0
  %3969 = vmatpush1.msra.mxu0 0.0
  %3970 = vmatprep.subr.mxu0 0.0
  %3971 = vmatpush1.msra.mxu0 0.0
  %3972 = vmatprep.subr.mxu0 0.0
  %3973 = vmatpush1.msra.mxu0 0.0
  %3974 = vmatprep.subr.mxu0 0.0
  %3975 = vmatpush1.msra.mxu0 0.0
  %3976 = vmatprep.subr.mxu0 0.0
  %3977 = vmatpush1.msra.mxu0 0.0
  %3978 = vmatprep.subr.mxu0 0.0
  %3979 = vmatpush1.msra.mxu0 0.0
  %3980 = vmatprep.subr.mxu0 0.0
  %3981 = vmatpush1.msra.mxu0 0.0
  %3982 = vmatprep.mubr.f32.mxu0 0.0
  %v3983 = vand.u32 %v3433, 4294901760
  %3984 = vmatmul.mubr.f32.gmra.mrb[0].mxu0 %v3983
  %v3985 = vpop.f32.mrb[0].mxu0
  %v3986 = vadd.f32 %v3867, %v3985
  %v3987 = vpop.f32.mrb[0].mxu0
  %3988 = vdwg.mxu0
  %3989 = vmatprep.subr.mxu0 0.0
  %v3990 = vand.u32 %v13, 4294901760
  %3991 = vmatpush1.msra.mxu0 %v3990
  %3992 = vmatprep.subr.mxu0 0.0
  %v3993 = vand.u32 %v14, 4294901760
  %3994 = vmatpush1.msra.mxu0 %v3993
  %3995 = vmatprep.subr.mxu0 0.0
  %v3996 = vand.u32 %v15, 4294901760
  %3997 = vmatpush1.msra.mxu0 %v3996
  %3998 = vmatprep.subr.mxu0 0.0
  %v3999 = vand.u32 %v16, 4294901760
  %4000 = vmatpush1.msra.mxu0 %v3999
  %4001 = vmatprep.subr.mxu0 0.0
  %v4002 = vand.u32 %v17, 4294901760
  %4003 = vmatpush1.msra.mxu0 %v4002
  %4004 = vmatprep.subr.mxu0 0.0
  %v4005 = vand.u32 %v18, 4294901760
  %4006 = vmatpush1.msra.mxu0 %v4005
  %4007 = vmatprep.subr.mxu0 0.0
  %v4008 = vand.u32 %v19, 4294901760
  %4009 = vmatpush1.msra.mxu0 %v4008
  %4010 = vmatprep.subr.mxu0 0.0
  %v4011 = vand.u32 %v20, 4294901760
  %4012 = vmatpush1.msra.mxu0 %v4011
  %4013 = vmatprep.subr.mxu0 0.0
  %v4014 = vand.u32 %v21, 4294901760
  %4015 = vmatpush1.msra.mxu0 %v4014
  %4016 = vmatprep.subr.mxu0 0.0
  %v4017 = vand.u32 %v22, 4294901760
  %4018 = vmatpush1.msra.mxu0 %v4017
  %4019 = vmatprep.subr.mxu0 0.0
  %v4020 = vand.u32 %v23, 4294901760
  %4021 = vmatpush1.msra.mxu0 %v4020
  %4022 = vmatprep.subr.mxu0 0.0
  %v4023 = vand.u32 %v24, 4294901760
  %4024 = vmatpush1.msra.mxu0 %v4023
  %4025 = vmatprep.subr.mxu0 0.0
  %v4026 = vand.u32 %v25, 4294901760
  %4027 = vmatpush1.msra.mxu0 %v4026
  %4028 = vmatprep.subr.mxu0 0.0
  %v4029 = vand.u32 %v26, 4294901760
  %4030 = vmatpush1.msra.mxu0 %v4029
  %4031 = vmatprep.subr.mxu0 0.0
  %v4032 = vand.u32 %v27, 4294901760
  %4033 = vmatpush1.msra.mxu0 %v4032
  %4034 = vmatprep.subr.mxu0 0.0
  %v4035 = vand.u32 %v28, 4294901760
  %4036 = vmatpush1.msra.mxu0 %v4035
  %4037 = vmatprep.subr.mxu0 0.0
  %4038 = vmatpush1.msra.mxu0 0.0
  %4039 = vmatprep.subr.mxu0 0.0
  %4040 = vmatpush1.msra.mxu0 0.0
  %4041 = vmatprep.subr.mxu0 0.0
  %4042 = vmatpush1.msra.mxu0 0.0
  %4043 = vmatprep.subr.mxu0 0.0
  %4044 = vmatpush1.msra.mxu0 0.0
  %4045 = vmatprep.subr.mxu0 0.0
  %4046 = vmatpush1.msra.mxu0 0.0
  %4047 = vmatprep.subr.mxu0 0.0
  %4048 = vmatpush1.msra.mxu0 0.0
  %4049 = vmatprep.subr.mxu0 0.0
  %4050 = vmatpush1.msra.mxu0 0.0
  %4051 = vmatprep.subr.mxu0 0.0
  %4052 = vmatpush1.msra.mxu0 0.0
  %4053 = vmatprep.subr.mxu0 0.0
  %4054 = vmatpush1.msra.mxu0 0.0
  %4055 = vmatprep.subr.mxu0 0.0
  %4056 = vmatpush1.msra.mxu0 0.0
  %4057 = vmatprep.subr.mxu0 0.0
  %4058 = vmatpush1.msra.mxu0 0.0
  %4059 = vmatprep.subr.mxu0 0.0
  %4060 = vmatpush1.msra.mxu0 0.0
  %4061 = vmatprep.subr.mxu0 0.0
  %4062 = vmatpush1.msra.mxu0 0.0
  %4063 = vmatprep.subr.mxu0 0.0
  %4064 = vmatpush1.msra.mxu0 0.0
  %4065 = vmatprep.subr.mxu0 0.0
  %4066 = vmatpush1.msra.mxu0 0.0
  %4067 = vmatprep.subr.mxu0 0.0
  %4068 = vmatpush1.msra.mxu0 0.0
  %4069 = vmatprep.mubr.f32.mxu0 0.0
  %v4070 = vand.u32 %v3433, 4294901760
  %4071 = vmatmul.mubr.f32.gmra.mrb[0].mxu0 %v4070
  %v4072 = vpop.f32.mrb[0].mxu0
  %v4073 = vadd.f32 %v3986, %v4072
  %v4074 = vpop.f32.mrb[0].mxu0
  %4075 = vdwg.mxu0
  %vm4076 = vcmp.gt.f32.partialorder %v3434, 1.0
  %v4077 = vsel %vm4076, 1.0, 0.0
  %v4078 = vmul.f32 %v3427, 0.9
  %v4079 = vadd.f32 %v4078, %v817
  %v4080 = vadd.f32 %v4079, %v4073
  %v4081 = vmul.f32 %v3434, 0.9
  %v4082 = vadd.f32 %v4081, %v4080
  %v4083 = vsub.f32 %v4082, %v4077
  %vm4084 = vcmp.gt.f32.partialorder %v4083, 1.0
  %v4085 = vsel %vm4084, 1, 0
  %v4086 = vcvt.s32.f32 %v4085
  %v4087 = vsub.f32 %v4082, %v4086
  %4088 = vmatprep.subr.mxu0 0.0
  %v4089 = vand.u32 %v13, 4294901760
  %4090 = vmatpush1.msra.mxu0 %v4089
  %4091 = vmatprep.subr.mxu0 0.0
  %v4092 = vand.u32 %v14, 4294901760
  %4093 = vmatpush1.msra.mxu0 %v4092
  %4094 = vmatprep.subr.mxu0 0.0
  %v4095 = vand.u32 %v15, 4294901760
  %4096 = vmatpush1.msra.mxu0 %v4095
  %4097 = vmatprep.subr.mxu0 0.0
  %v4098 = vand.u32 %v16, 4294901760
  %4099 = vmatpush1.msra.mxu0 %v4098
  %4100 = vmatprep.subr.mxu0 0.0
  %v4101 = vand.u32 %v17, 4294901760
  %4102 = vmatpush1.msra.mxu0 %v4101
  %4103 = vmatprep.subr.mxu0 0.0
  %v4104 = vand.u32 %v18, 4294901760
  %4105 = vmatpush1.msra.mxu0 %v4104
  %4106 = vmatprep.subr.mxu0 0.0
  %v4107 = vand.u32 %v19, 4294901760
  %4108 = vmatpush1.msra.mxu0 %v4107
  %4109 = vmatprep.subr.mxu0 0.0
  %v4110 = vand.u32 %v20, 4294901760
  %4111 = vmatpush1.msra.mxu0 %v4110
  %4112 = vmatprep.subr.mxu0 0.0
  %v4113 = vand.u32 %v21, 4294901760
  %4114 = vmatpush1.msra.mxu0 %v4113
  %4115 = vmatprep.subr.mxu0 0.0
  %v4116 = vand.u32 %v22, 4294901760
  %4117 = vmatpush1.msra.mxu0 %v4116
  %4118 = vmatprep.subr.mxu0 0.0
  %v4119 = vand.u32 %v23, 4294901760
  %4120 = vmatpush1.msra.mxu0 %v4119
  %4121 = vmatprep.subr.mxu0 0.0
  %v4122 = vand.u32 %v24, 4294901760
  %4123 = vmatpush1.msra.mxu0 %v4122
  %4124 = vmatprep.subr.mxu0 0.0
  %v4125 = vand.u32 %v25, 4294901760
  %4126 = vmatpush1.msra.mxu0 %v4125
  %4127 = vmatprep.subr.mxu0 0.0
  %v4128 = vand.u32 %v26, 4294901760
  %4129 = vmatpush1.msra.mxu0 %v4128
  %4130 = vmatprep.subr.mxu0 0.0
  %v4131 = vand.u32 %v27, 4294901760
  %4132 = vmatpush1.msra.mxu0 %v4131
  %4133 = vmatprep.subr.mxu0 0.0
  %v4134 = vand.u32 %v28, 4294901760
  %4135 = vmatpush1.msra.mxu0 %v4134
  %4136 = vmatprep.subr.mxu0 0.0
  %4137 = vmatpush1.msra.mxu0 0.0
  %4138 = vmatprep.subr.mxu0 0.0
  %4139 = vmatpush1.msra.mxu0 0.0
  %4140 = vmatprep.subr.mxu0 0.0
  %4141 = vmatpush1.msra.mxu0 0.0
  %4142 = vmatprep.subr.mxu0 0.0
  %4143 = vmatpush1.msra.mxu0 0.0
  %4144 = vmatprep.subr.mxu0 0.0
  %4145 = vmatpush1.msra.mxu0 0.0
  %4146 = vmatprep.subr.mxu0 0.0
  %4147 = vmatpush1.msra.mxu0 0.0
  %4148 = vmatprep.subr.mxu0 0.0
  %4149 = vmatpush1.msra.mxu0 0.0
  %4150 = vmatprep.subr.mxu0 0.0
  %4151 = vmatpush1.msra.mxu0 0.0
  %4152 = vmatprep.subr.mxu0 0.0
  %4153 = vmatpush1.msra.mxu0 0.0
  %4154 = vmatprep.subr.mxu0 0.0
  %4155 = vmatpush1.msra.mxu0 0.0
  %4156 = vmatprep.subr.mxu0 0.0
  %4157 = vmatpush1.msra.mxu0 0.0
  %4158 = vmatprep.subr.mxu0 0.0
  %4159 = vmatpush1.msra.mxu0 0.0
  %4160 = vmatprep.subr.mxu0 0.0
  %4161 = vmatpush1.msra.mxu0 0.0
  %4162 = vmatprep.subr.mxu0 0.0
  %4163 = vmatpush1.msra.mxu0 0.0
  %4164 = vmatprep.subr.mxu0 0.0
  %4165 = vmatpush1.msra.mxu0 0.0
  %4166 = vmatprep.subr.mxu0 0.0
  %4167 = vmatpush1.msra.mxu0 0.0
  %4168 = vmatprep.mubr.f32.mxu0 0.0
  %v4169 = vand.u32 %v4086, 4294901760
  %v4170 = vsub.f32 %v4086, %v4169
  %v4171 = vand.u32 %v4170, 4294901760
  %v4172 = vsub.f32 %v4170, %v4171
  %v4173 = vand.u32 %v4172, 4294901760
  %4174 = vmatmul.mubr.f32.gmra.mrb[0].mxu0 %v4173
  %v4175 = vpop.f32.mrb[0].mxu0
  %v4176 = vadd.f32 0.0, %v4175
  %v4177 = vpop.f32.mrb[0].mxu0
  %4178 = vdwg.mxu0
  %4179 = vmatprep.subr.mxu0 0.0
  %v4180 = vand.u32 %v13, 4294901760
  %v4181 = vsub.f32 %v13, %v4180
  %v4182 = vand.u32 %v4181, 4294901760
  %v4183 = vsub.f32 %v4181, %v4182
  %v4184 = vand.u32 %v4183, 4294901760
  %4185 = vmatpush1.msra.mxu0 %v4184
  %4186 = vmatprep.subr.mxu0 0.0
  %v4187 = vand.u32 %v14, 4294901760
  %v4188 = vsub.f32 %v14, %v4187
  %v4189 = vand.u32 %v4188, 4294901760
  %v4190 = vsub.f32 %v4188, %v4189
  %v4191 = vand.u32 %v4190, 4294901760
  %4192 = vmatpush1.msra.mxu0 %v4191
  %4193 = vmatprep.subr.mxu0 0.0
  %v4194 = vand.u32 %v15, 4294901760
  %v4195 = vsub.f32 %v15, %v4194
  %v4196 = vand.u32 %v4195, 4294901760
  %v4197 = vsub.f32 %v4195, %v4196
  %v4198 = vand.u32 %v4197, 4294901760
  %4199 = vmatpush1.msra.mxu0 %v4198
  %4200 = vmatprep.subr.mxu0 0.0
  %v4201 = vand.u32 %v16, 4294901760
  %v4202 = vsub.f32 %v16, %v4201
  %v4203 = vand.u32 %v4202, 4294901760
  %v4204 = vsub.f32 %v4202, %v4203
  %v4205 = vand.u32 %v4204, 4294901760
  %4206 = vmatpush1.msra.mxu0 %v4205
  %4207 = vmatprep.subr.mxu0 0.0
  %v4208 = vand.u32 %v17, 4294901760
  %v4209 = vsub.f32 %v17, %v4208
  %v4210 = vand.u32 %v4209, 4294901760
  %v4211 = vsub.f32 %v4209, %v4210
  %v4212 = vand.u32 %v4211, 4294901760
  %4213 = vmatpush1.msra.mxu0 %v4212
  %4214 = vmatprep.subr.mxu0 0.0
  %v4215 = vand.u32 %v18, 4294901760
  %v4216 = vsub.f32 %v18, %v4215
  %v4217 = vand.u32 %v4216, 4294901760
  %v4218 = vsub.f32 %v4216, %v4217
  %v4219 = vand.u32 %v4218, 4294901760
  %4220 = vmatpush1.msra.mxu0 %v4219
  %4221 = vmatprep.subr.mxu0 0.0
  %v4222 = vand.u32 %v19, 4294901760
  %v4223 = vsub.f32 %v19, %v4222
  %v4224 = vand.u32 %v4223, 4294901760
  %v4225 = vsub.f32 %v4223, %v4224
  %v4226 = vand.u32 %v4225, 4294901760
  %4227 = vmatpush1.msra.mxu0 %v4226
  %4228 = vmatprep.subr.mxu0 0.0
  %v4229 = vand.u32 %v20, 4294901760
  %v4230 = vsub.f32 %v20, %v4229
  %v4231 = vand.u32 %v4230, 4294901760
  %v4232 = vsub.f32 %v4230, %v4231
  %v4233 = vand.u32 %v4232, 4294901760
  %4234 = vmatpush1.msra.mxu0 %v4233
  %4235 = vmatprep.subr.mxu0 0.0
  %v4236 = vand.u32 %v21, 4294901760
  %v4237 = vsub.f32 %v21, %v4236
  %v4238 = vand.u32 %v4237, 4294901760
  %v4239 = vsub.f32 %v4237, %v4238
  %v4240 = vand.u32 %v4239, 4294901760
  %4241 = vmatpush1.msra.mxu0 %v4240
  %4242 = vmatprep.subr.mxu0 0.0
  %v4243 = vand.u32 %v22, 4294901760
  %v4244 = vsub.f32 %v22, %v4243
  %v4245 = vand.u32 %v4244, 4294901760
  %v4246 = vsub.f32 %v4244, %v4245
  %v4247 = vand.u32 %v4246, 4294901760
  %4248 = vmatpush1.msra.mxu0 %v4247
  %4249 = vmatprep.subr.mxu0 0.0
  %v4250 = vand.u32 %v23, 4294901760
  %v4251 = vsub.f32 %v23, %v4250
  %v4252 = vand.u32 %v4251, 4294901760
  %v4253 = vsub.f32 %v4251, %v4252
  %v4254 = vand.u32 %v4253, 4294901760
  %4255 = vmatpush1.msra.mxu0 %v4254
  %4256 = vmatprep.subr.mxu0 0.0
  %v4257 = vand.u32 %v24, 4294901760
  %v4258 = vsub.f32 %v24, %v4257
  %v4259 = vand.u32 %v4258, 4294901760
  %v4260 = vsub.f32 %v4258, %v4259
  %v4261 = vand.u32 %v4260, 4294901760
  %4262 = vmatpush1.msra.mxu0 %v4261
  %4263 = vmatprep.subr.mxu0 0.0
  %v4264 = vand.u32 %v25, 4294901760
  %v4265 = vsub.f32 %v25, %v4264
  %v4266 = vand.u32 %v4265, 4294901760
  %v4267 = vsub.f32 %v4265, %v4266
  %v4268 = vand.u32 %v4267, 4294901760
  %4269 = vmatpush1.msra.mxu0 %v4268
  %4270 = vmatprep.subr.mxu0 0.0
  %v4271 = vand.u32 %v26, 4294901760
  %v4272 = vsub.f32 %v26, %v4271
  %v4273 = vand.u32 %v4272, 4294901760
  %v4274 = vsub.f32 %v4272, %v4273
  %v4275 = vand.u32 %v4274, 4294901760
  %4276 = vmatpush1.msra.mxu0 %v4275
  %4277 = vmatprep.subr.mxu0 0.0
  %v4278 = vand.u32 %v27, 4294901760
  %v4279 = vsub.f32 %v27, %v4278
  %v4280 = vand.u32 %v4279, 4294901760
  %v4281 = vsub.f32 %v4279, %v4280
  %v4282 = vand.u32 %v4281, 4294901760
  %4283 = vmatpush1.msra.mxu0 %v4282
  %4284 = vmatprep.subr.mxu0 0.0
  %v4285 = vand.u32 %v28, 4294901760
  %v4286 = vsub.f32 %v28, %v4285
  %v4287 = vand.u32 %v4286, 4294901760
  %v4288 = vsub.f32 %v4286, %v4287
  %v4289 = vand.u32 %v4288, 4294901760
  %4290 = vmatpush1.msra.mxu0 %v4289
  %4291 = vmatprep.subr.mxu0 0.0
  %4292 = vmatpush1.msra.mxu0 0.0
  %4293 = vmatprep.subr.mxu0 0.0
  %4294 = vmatpush1.msra.mxu0 0.0
  %4295 = vmatprep.subr.mxu0 0.0
  %4296 = vmatpush1.msra.mxu0 0.0
  %4297 = vmatprep.subr.mxu0 0.0
  %4298 = vmatpush1.msra.mxu0 0.0
  %4299 = vmatprep.subr.mxu0 0.0
  %4300 = vmatpush1.msra.mxu0 0.0
  %4301 = vmatprep.subr.mxu0 0.0
  %4302 = vmatpush1.msra.mxu0 0.0
  %4303 = vmatprep.subr.mxu0 0.0
  %4304 = vmatpush1.msra.mxu0 0.0
  %4305 = vmatprep.subr.mxu0 0.0
  %4306 = vmatpush1.msra.mxu0 0.0
  %4307 = vmatprep.subr.mxu0 0.0
  %4308 = vmatpush1.msra.mxu0 0.0
  %4309 = vmatprep.subr.mxu0 0.0
  %4310 = vmatpush1.msra.mxu0 0.0
  %4311 = vmatprep.subr.mxu0 0.0
  %4312 = vmatpush1.msra.mxu0 0.0
  %4313 = vmatprep.subr.mxu0 0.0
  %4314 = vmatpush1.msra.mxu0 0.0
  %4315 = vmatprep.subr.mxu0 0.0
  %4316 = vmatpush1.msra.mxu0 0.0
  %4317 = vmatprep.subr.mxu0 0.0
  %4318 = vmatpush1.msra.mxu0 0.0
  %4319 = vmatprep.subr.mxu0 0.0
  %4320 = vmatpush1.msra.mxu0 0.0
  %4321 = vmatprep.subr.mxu0 0.0
  %4322 = vmatpush1.msra.mxu0 0.0
  %4323 = vmatprep.mubr.f32.mxu0 0.0
  %v4324 = vand.u32 %v4086, 4294901760
  %4325 = vmatmul.mubr.f32.gmra.mrb[0].mxu0 %v4324
  %v4326 = vpop.f32.mrb[0].mxu0
  %v4327 = vadd.f32 %v4176, %v4326
  %v4328 = vpop.f32.mrb[0].mxu0
  %4329 = vdwg.mxu0
  %4330 = vmatprep.subr.mxu0 0.0
  %v4331 = vand.u32 %v13, 4294901760
  %v4332 = vsub.f32 %v13, %v4331
  %4333 = vmatpush1.msra.mxu0 %v4332
  %4334 = vmatprep.subr.mxu0 0.0
  %v4335 = vand.u32 %v14, 4294901760
  %v4336 = vsub.f32 %v14, %v4335
  %4337 = vmatpush1.msra.mxu0 %v4336
  %4338 = vmatprep.subr.mxu0 0.0
  %v4339 = vand.u32 %v15, 4294901760
  %v4340 = vsub.f32 %v15, %v4339
  %4341 = vmatpush1.msra.mxu0 %v4340
  %4342 = vmatprep.subr.mxu0 0.0
  %v4343 = vand.u32 %v16, 4294901760
  %v4344 = vsub.f32 %v16, %v4343
  %4345 = vmatpush1.msra.mxu0 %v4344
  %4346 = vmatprep.subr.mxu0 0.0
  %v4347 = vand.u32 %v17, 4294901760
  %v4348 = vsub.f32 %v17, %v4347
  %4349 = vmatpush1.msra.mxu0 %v4348
  %4350 = vmatprep.subr.mxu0 0.0
  %v4351 = vand.u32 %v18, 4294901760
  %v4352 = vsub.f32 %v18, %v4351
  %4353 = vmatpush1.msra.mxu0 %v4352
  %4354 = vmatprep.subr.mxu0 0.0
  %v4355 = vand.u32 %v19, 4294901760
  %v4356 = vsub.f32 %v19, %v4355
  %4357 = vmatpush1.msra.mxu0 %v4356
  %4358 = vmatprep.subr.mxu0 0.0
  %v4359 = vand.u32 %v20, 4294901760
  %v4360 = vsub.f32 %v20, %v4359
  %4361 = vmatpush1.msra.mxu0 %v4360
  %4362 = vmatprep.subr.mxu0 0.0
  %v4363 = vand.u32 %v21, 4294901760
  %v4364 = vsub.f32 %v21, %v4363
  %4365 = vmatpush1.msra.mxu0 %v4364
  %4366 = vmatprep.subr.mxu0 0.0
  %v4367 = vand.u32 %v22, 4294901760
  %v4368 = vsub.f32 %v22, %v4367
  %4369 = vmatpush1.msra.mxu0 %v4368
  %4370 = vmatprep.subr.mxu0 0.0
  %v4371 = vand.u32 %v23, 4294901760
  %v4372 = vsub.f32 %v23, %v4371
  %4373 = vmatpush1.msra.mxu0 %v4372
  %4374 = vmatprep.subr.mxu0 0.0
  %v4375 = vand.u32 %v24, 4294901760
  %v4376 = vsub.f32 %v24, %v4375
  %4377 = vmatpush1.msra.mxu0 %v4376
  %4378 = vmatprep.subr.mxu0 0.0
  %v4379 = vand.u32 %v25, 4294901760
  %v4380 = vsub.f32 %v25, %v4379
  %4381 = vmatpush1.msra.mxu0 %v4380
  %4382 = vmatprep.subr.mxu0 0.0
  %v4383 = vand.u32 %v26, 4294901760
  %v4384 = vsub.f32 %v26, %v4383
  %4385 = vmatpush1.msra.mxu0 %v4384
  %4386 = vmatprep.subr.mxu0 0.0
  %v4387 = vand.u32 %v27, 4294901760
  %v4388 = vsub.f32 %v27, %v4387
  %4389 = vmatpush1.msra.mxu0 %v4388
  %4390 = vmatprep.subr.mxu0 0.0
  %v4391 = vand.u32 %v28, 4294901760
  %v4392 = vsub.f32 %v28, %v4391
  %4393 = vmatpush1.msra.mxu0 %v4392
  %4394 = vmatprep.subr.mxu0 0.0
  %4395 = vmatpush1.msra.mxu0 0.0
  %4396 = vmatprep.subr.mxu0 0.0
  %4397 = vmatpush1.msra.mxu0 0.0
  %4398 = vmatprep.subr.mxu0 0.0
  %4399 = vmatpush1.msra.mxu0 0.0
  %4400 = vmatprep.subr.mxu0 0.0
  %4401 = vmatpush1.msra.mxu0 0.0
  %4402 = vmatprep.subr.mxu0 0.0
  %4403 = vmatpush1.msra.mxu0 0.0
  %4404 = vmatprep.subr.mxu0 0.0
  %4405 = vmatpush1.msra.mxu0 0.0
  %4406 = vmatprep.subr.mxu0 0.0
  %4407 = vmatpush1.msra.mxu0 0.0
  %4408 = vmatprep.subr.mxu0 0.0
  %4409 = vmatpush1.msra.mxu0 0.0
  %4410 = vmatprep.subr.mxu0 0.0
  %4411 = vmatpush1.msra.mxu0 0.0
  %4412 = vmatprep.subr.mxu0 0.0
  %4413 = vmatpush1.msra.mxu0 0.0
  %4414 = vmatprep.subr.mxu0 0.0
  %4415 = vmatpush1.msra.mxu0 0.0
  %4416 = vmatprep.subr.mxu0 0.0
  %4417 = vmatpush1.msra.mxu0 0.0
  %4418 = vmatprep.subr.mxu0 0.0
  %4419 = vmatpush1.msra.mxu0 0.0
  %4420 = vmatprep.subr.mxu0 0.0
  %4421 = vmatpush1.msra.mxu0 0.0
  %4422 = vmatprep.subr.mxu0 0.0
  %4423 = vmatpush1.msra.mxu0 0.0
  %4424 = vmatprep.subr.mxu0 0.0
  %4425 = vmatpush1.msra.mxu0 0.0
  %4426 = vmatprep.mubr.f32.mxu0 0.0
  %v4427 = vand.u32 %v4086, 4294901760
  %v4428 = vsub.f32 %v4086, %v4427
  %4429 = vmatmul.mubr.f32.gmra.mrb[0].mxu0 %v4428
  %v4430 = vpop.f32.mrb[0].mxu0
  %v4431 = vadd.f32 %v4327, %v4430
  %v4432 = vpop.f32.mrb[0].mxu0
  %4433 = vdwg.mxu0
  %4434 = vmatprep.subr.mxu0 0.0
  %v4435 = vand.u32 %v13, 4294901760
  %4436 = vmatpush1.msra.mxu0 %v4435
  %4437 = vmatprep.subr.mxu0 0.0
  %v4438 = vand.u32 %v14, 4294901760
  %4439 = vmatpush1.msra.mxu0 %v4438
  %4440 = vmatprep.subr.mxu0 0.0
  %v4441 = vand.u32 %v15, 4294901760
  %4442 = vmatpush1.msra.mxu0 %v4441
  %4443 = vmatprep.subr.mxu0 0.0
  %v4444 = vand.u32 %v16, 4294901760
  %4445 = vmatpush1.msra.mxu0 %v4444
  %4446 = vmatprep.subr.mxu0 0.0
  %v4447 = vand.u32 %v17, 4294901760
  %4448 = vmatpush1.msra.mxu0 %v4447
  %4449 = vmatprep.subr.mxu0 0.0
  %v4450 = vand.u32 %v18, 4294901760
  %4451 = vmatpush1.msra.mxu0 %v4450
  %4452 = vmatprep.subr.mxu0 0.0
  %v4453 = vand.u32 %v19, 4294901760
  %4454 = vmatpush1.msra.mxu0 %v4453
  %4455 = vmatprep.subr.mxu0 0.0
  %v4456 = vand.u32 %v20, 4294901760
  %4457 = vmatpush1.msra.mxu0 %v4456
  %4458 = vmatprep.subr.mxu0 0.0
  %v4459 = vand.u32 %v21, 4294901760
  %4460 = vmatpush1.msra.mxu0 %v4459
  %4461 = vmatprep.subr.mxu0 0.0
  %v4462 = vand.u32 %v22, 4294901760
  %4463 = vmatpush1.msra.mxu0 %v4462
  %4464 = vmatprep.subr.mxu0 0.0
  %v4465 = vand.u32 %v23, 4294901760
  %4466 = vmatpush1.msra.mxu0 %v4465
  %4467 = vmatprep.subr.mxu0 0.0
  %v4468 = vand.u32 %v24, 4294901760
  %4469 = vmatpush1.msra.mxu0 %v4468
  %4470 = vmatprep.subr.mxu0 0.0
  %v4471 = vand.u32 %v25, 4294901760
  %4472 = vmatpush1.msra.mxu0 %v4471
  %4473 = vmatprep.subr.mxu0 0.0
  %v4474 = vand.u32 %v26, 4294901760
  %4475 = vmatpush1.msra.mxu0 %v4474
  %4476 = vmatprep.subr.mxu0 0.0
  %v4477 = vand.u32 %v27, 4294901760
  %4478 = vmatpush1.msra.mxu0 %v4477
  %4479 = vmatprep.subr.mxu0 0.0
  %v4480 = vand.u32 %v28, 4294901760
  %4481 = vmatpush1.msra.mxu0 %v4480
  %4482 = vmatprep.subr.mxu0 0.0
  %4483 = vmatpush1.msra.mxu0 0.0
  %4484 = vmatprep.subr.mxu0 0.0
  %4485 = vmatpush1.msra.mxu0 0.0
  %4486 = vmatprep.subr.mxu0 0.0
  %4487 = vmatpush1.msra.mxu0 0.0
  %4488 = vmatprep.subr.mxu0 0.0
  %4489 = vmatpush1.msra.mxu0 0.0
  %4490 = vmatprep.subr.mxu0 0.0
  %4491 = vmatpush1.msra.mxu0 0.0
  %4492 = vmatprep.subr.mxu0 0.0
  %4493 = vmatpush1.msra.mxu0 0.0
  %4494 = vmatprep.subr.mxu0 0.0
  %4495 = vmatpush1.msra.mxu0 0.0
  %4496 = vmatprep.subr.mxu0 0.0
  %4497 = vmatpush1.msra.mxu0 0.0
  %4498 = vmatprep.subr.mxu0 0.0
  %4499 = vmatpush1.msra.mxu0 0.0
  %4500 = vmatprep.subr.mxu0 0.0
  %4501 = vmatpush1.msra.mxu0 0.0
  %4502 = vmatprep.subr.mxu0 0.0
  %4503 = vmatpush1.msra.mxu0 0.0
  %4504 = vmatprep.subr.mxu0 0.0
  %4505 = vmatpush1.msra.mxu0 0.0
  %4506 = vmatprep.subr.mxu0 0.0
  %4507 = vmatpush1.msra.mxu0 0.0
  %4508 = vmatprep.subr.mxu0 0.0
  %4509 = vmatpush1.msra.mxu0 0.0
  %4510 = vmatprep.subr.mxu0 0.0
  %4511 = vmatpush1.msra.mxu0 0.0
  %4512 = vmatprep.subr.mxu0 0.0
  %4513 = vmatpush1.msra.mxu0 0.0
  %4514 = vmatprep.mubr.f32.mxu0 0.0
  %v4515 = vand.u32 %v4086, 4294901760
  %v4516 = vsub.f32 %v4086, %v4515
  %v4517 = vand.u32 %v4516, 4294901760
  %4518 = vmatmul.mubr.f32.gmra.mrb[0].mxu0 %v4517
  %v4519 = vpop.f32.mrb[0].mxu0
  %v4520 = vadd.f32 %v4431, %v4519
  %v4521 = vpop.f32.mrb[0].mxu0
  %4522 = vdwg.mxu0
  %4523 = vmatprep.subr.mxu0 0.0
  %v4524 = vand.u32 %v13, 4294901760
  %v4525 = vsub.f32 %v13, %v4524
  %v4526 = vand.u32 %v4525, 4294901760
  %4527 = vmatpush1.msra.mxu0 %v4526
  %4528 = vmatprep.subr.mxu0 0.0
  %v4529 = vand.u32 %v14, 4294901760
  %v4530 = vsub.f32 %v14, %v4529
  %v4531 = vand.u32 %v4530, 4294901760
  %4532 = vmatpush1.msra.mxu0 %v4531
  %4533 = vmatprep.subr.mxu0 0.0
  %v4534 = vand.u32 %v15, 4294901760
  %v4535 = vsub.f32 %v15, %v4534
  %v4536 = vand.u32 %v4535, 4294901760
  %4537 = vmatpush1.msra.mxu0 %v4536
  %4538 = vmatprep.subr.mxu0 0.0
  %v4539 = vand.u32 %v16, 4294901760
  %v4540 = vsub.f32 %v16, %v4539
  %v4541 = vand.u32 %v4540, 4294901760
  %4542 = vmatpush1.msra.mxu0 %v4541
  %4543 = vmatprep.subr.mxu0 0.0
  %v4544 = vand.u32 %v17, 4294901760
  %v4545 = vsub.f32 %v17, %v4544
  %v4546 = vand.u32 %v4545, 4294901760
  %4547 = vmatpush1.msra.mxu0 %v4546
  %4548 = vmatprep.subr.mxu0 0.0
  %v4549 = vand.u32 %v18, 4294901760
  %v4550 = vsub.f32 %v18, %v4549
  %v4551 = vand.u32 %v4550, 4294901760
  %4552 = vmatpush1.msra.mxu0 %v4551
  %4553 = vmatprep.subr.mxu0 0.0
  %v4554 = vand.u32 %v19, 4294901760
  %v4555 = vsub.f32 %v19, %v4554
  %v4556 = vand.u32 %v4555, 4294901760
  %4557 = vmatpush1.msra.mxu0 %v4556
  %4558 = vmatprep.subr.mxu0 0.0
  %v4559 = vand.u32 %v20, 4294901760
  %v4560 = vsub.f32 %v20, %v4559
  %v4561 = vand.u32 %v4560, 4294901760
  %4562 = vmatpush1.msra.mxu0 %v4561
  %4563 = vmatprep.subr.mxu0 0.0
  %v4564 = vand.u32 %v21, 4294901760
  %v4565 = vsub.f32 %v21, %v4564
  %v4566 = vand.u32 %v4565, 4294901760
  %4567 = vmatpush1.msra.mxu0 %v4566
  %4568 = vmatprep.subr.mxu0 0.0
  %v4569 = vand.u32 %v22, 4294901760
  %v4570 = vsub.f32 %v22, %v4569
  %v4571 = vand.u32 %v4570, 4294901760
  %4572 = vmatpush1.msra.mxu0 %v4571
  %4573 = vmatprep.subr.mxu0 0.0
  %v4574 = vand.u32 %v23, 4294901760
  %v4575 = vsub.f32 %v23, %v4574
  %v4576 = vand.u32 %v4575, 4294901760
  %4577 = vmatpush1.msra.mxu0 %v4576
  %4578 = vmatprep.subr.mxu0 0.0
  %v4579 = vand.u32 %v24, 4294901760
  %v4580 = vsub.f32 %v24, %v4579
  %v4581 = vand.u32 %v4580, 4294901760
  %4582 = vmatpush1.msra.mxu0 %v4581
  %4583 = vmatprep.subr.mxu0 0.0
  %v4584 = vand.u32 %v25, 4294901760
  %v4585 = vsub.f32 %v25, %v4584
  %v4586 = vand.u32 %v4585, 4294901760
  %4587 = vmatpush1.msra.mxu0 %v4586
  %4588 = vmatprep.subr.mxu0 0.0
  %v4589 = vand.u32 %v26, 4294901760
  %v4590 = vsub.f32 %v26, %v4589
  %v4591 = vand.u32 %v4590, 4294901760
  %4592 = vmatpush1.msra.mxu0 %v4591
  %4593 = vmatprep.subr.mxu0 0.0
  %v4594 = vand.u32 %v27, 4294901760
  %v4595 = vsub.f32 %v27, %v4594
  %v4596 = vand.u32 %v4595, 4294901760
  %4597 = vmatpush1.msra.mxu0 %v4596
  %4598 = vmatprep.subr.mxu0 0.0
  %v4599 = vand.u32 %v28, 4294901760
  %v4600 = vsub.f32 %v28, %v4599
  %v4601 = vand.u32 %v4600, 4294901760
  %4602 = vmatpush1.msra.mxu0 %v4601
  %4603 = vmatprep.subr.mxu0 0.0
  %4604 = vmatpush1.msra.mxu0 0.0
  %4605 = vmatprep.subr.mxu0 0.0
  %4606 = vmatpush1.msra.mxu0 0.0
  %4607 = vmatprep.subr.mxu0 0.0
  %4608 = vmatpush1.msra.mxu0 0.0
  %4609 = vmatprep.subr.mxu0 0.0
  %4610 = vmatpush1.msra.mxu0 0.0
  %4611 = vmatprep.subr.mxu0 0.0
  %4612 = vmatpush1.msra.mxu0 0.0
  %4613 = vmatprep.subr.mxu0 0.0
  %4614 = vmatpush1.msra.mxu0 0.0
  %4615 = vmatprep.subr.mxu0 0.0
  %4616 = vmatpush1.msra.mxu0 0.0
  %4617 = vmatprep.subr.mxu0 0.0
  %4618 = vmatpush1.msra.mxu0 0.0
  %4619 = vmatprep.subr.mxu0 0.0
  %4620 = vmatpush1.msra.mxu0 0.0
  %4621 = vmatprep.subr.mxu0 0.0
  %4622 = vmatpush1.msra.mxu0 0.0
  %4623 = vmatprep.subr.mxu0 0.0
  %4624 = vmatpush1.msra.mxu0 0.0
  %4625 = vmatprep.subr.mxu0 0.0
  %4626 = vmatpush1.msra.mxu0 0.0
  %4627 = vmatprep.subr.mxu0 0.0
  %4628 = vmatpush1.msra.mxu0 0.0
  %4629 = vmatprep.subr.mxu0 0.0
  %4630 = vmatpush1.msra.mxu0 0.0
  %4631 = vmatprep.subr.mxu0 0.0
  %4632 = vmatpush1.msra.mxu0 0.0
  %4633 = vmatprep.subr.mxu0 0.0
  %4634 = vmatpush1.msra.mxu0 0.0
  %4635 = vmatprep.mubr.f32.mxu0 0.0
  %v4636 = vand.u32 %v4086, 4294901760
  %4637 = vmatmul.mubr.f32.gmra.mrb[0].mxu0 %v4636
  %v4638 = vpop.f32.mrb[0].mxu0
  %v4639 = vadd.f32 %v4520, %v4638
  %v4640 = vpop.f32.mrb[0].mxu0
  %4641 = vdwg.mxu0
  %4642 = vmatprep.subr.mxu0 0.0
  %v4643 = vand.u32 %v13, 4294901760
  %4644 = vmatpush1.msra.mxu0 %v4643
  %4645 = vmatprep.subr.mxu0 0.0
  %v4646 = vand.u32 %v14, 4294901760
  %4647 = vmatpush1.msra.mxu0 %v4646
  %4648 = vmatprep.subr.mxu0 0.0
  %v4649 = vand.u32 %v15, 4294901760
  %4650 = vmatpush1.msra.mxu0 %v4649
  %4651 = vmatprep.subr.mxu0 0.0
  %v4652 = vand.u32 %v16, 4294901760
  %4653 = vmatpush1.msra.mxu0 %v4652
  %4654 = vmatprep.subr.mxu0 0.0
  %v4655 = vand.u32 %v17, 4294901760
  %4656 = vmatpush1.msra.mxu0 %v4655
  %4657 = vmatprep.subr.mxu0 0.0
  %v4658 = vand.u32 %v18, 4294901760
  %4659 = vmatpush1.msra.mxu0 %v4658
  %4660 = vmatprep.subr.mxu0 0.0
  %v4661 = vand.u32 %v19, 4294901760
  %4662 = vmatpush1.msra.mxu0 %v4661
  %4663 = vmatprep.subr.mxu0 0.0
  %v4664 = vand.u32 %v20, 4294901760
  %4665 = vmatpush1.msra.mxu0 %v4664
  %4666 = vmatprep.subr.mxu0 0.0
  %v4667 = vand.u32 %v21, 4294901760
  %4668 = vmatpush1.msra.mxu0 %v4667
  %4669 = vmatprep.subr.mxu0 0.0
  %v4670 = vand.u32 %v22, 4294901760
  %4671 = vmatpush1.msra.mxu0 %v4670
  %4672 = vmatprep.subr.mxu0 0.0
  %v4673 = vand.u32 %v23, 4294901760
  %4674 = vmatpush1.msra.mxu0 %v4673
  %4675 = vmatprep.subr.mxu0 0.0
  %v4676 = vand.u32 %v24, 4294901760
  %4677 = vmatpush1.msra.mxu0 %v4676
  %4678 = vmatprep.subr.mxu0 0.0
  %v4679 = vand.u32 %v25, 4294901760
  %4680 = vmatpush1.msra.mxu0 %v4679
  %4681 = vmatprep.subr.mxu0 0.0
  %v4682 = vand.u32 %v26, 4294901760
  %4683 = vmatpush1.msra.mxu0 %v4682
  %4684 = vmatprep.subr.mxu0 0.0
  %v4685 = vand.u32 %v27, 4294901760
  %4686 = vmatpush1.msra.mxu0 %v4685
  %4687 = vmatprep.subr.mxu0 0.0
  %v4688 = vand.u32 %v28, 4294901760
  %4689 = vmatpush1.msra.mxu0 %v4688
  %4690 = vmatprep.subr.mxu0 0.0
  %4691 = vmatpush1.msra.mxu0 0.0
  %4692 = vmatprep.subr.mxu0 0.0
  %4693 = vmatpush1.msra.mxu0 0.0
  %4694 = vmatprep.subr.mxu0 0.0
  %4695 = vmatpush1.msra.mxu0 0.0
  %4696 = vmatprep.subr.mxu0 0.0
  %4697 = vmatpush1.msra.mxu0 0.0
  %4698 = vmatprep.subr.mxu0 0.0
  %4699 = vmatpush1.msra.mxu0 0.0
  %4700 = vmatprep.subr.mxu0 0.0
  %4701 = vmatpush1.msra.mxu0 0.0
  %4702 = vmatprep.subr.mxu0 0.0
  %4703 = vmatpush1.msra.mxu0 0.0
  %4704 = vmatprep.subr.mxu0 0.0
  %4705 = vmatpush1.msra.mxu0 0.0
  %4706 = vmatprep.subr.mxu0 0.0
  %4707 = vmatpush1.msra.mxu0 0.0
  %4708 = vmatprep.subr.mxu0 0.0
  %4709 = vmatpush1.msra.mxu0 0.0
  %4710 = vmatprep.subr.mxu0 0.0
  %4711 = vmatpush1.msra.mxu0 0.0
  %4712 = vmatprep.subr.mxu0 0.0
  %4713 = vmatpush1.msra.mxu0 0.0
  %4714 = vmatprep.subr.mxu0 0.0
  %4715 = vmatpush1.msra.mxu0 0.0
  %4716 = vmatprep.subr.mxu0 0.0
  %4717 = vmatpush1.msra.mxu0 0.0
  %4718 = vmatprep.subr.mxu0 0.0
  %4719 = vmatpush1.msra.mxu0 0.0
  %4720 = vmatprep.subr.mxu0 0.0
  %4721 = vmatpush1.msra.mxu0 0.0
  %4722 = vmatprep.mubr.f32.mxu0 0.0
  %v4723 = vand.u32 %v4086, 4294901760
  %4724 = vmatmul.mubr.f32.gmra.mrb[0].mxu0 %v4723
  %v4725 = vpop.f32.mrb[0].mxu0
  %v4726 = vadd.f32 %v4639, %v4725
  %v4727 = vpop.f32.mrb[0].mxu0
  %4728 = vdwg.mxu0
  %vm4729 = vcmp.gt.f32.partialorder %v4087, 1.0
  %v4730 = vsel %vm4729, 1.0, 0.0
  %v4731 = vmul.f32 %v4080, 0.9
  %v4732 = vadd.f32 %v4731, %v823
  %v4733 = vadd.f32 %v4732, %v4726
  %v4734 = vmul.f32 %v4087, 0.9
  %v4735 = vadd.f32 %v4734, %v4733
  %v4736 = vsub.f32 %v4735, %v4730
  %vm4737 = vcmp.gt.f32.partialorder %v4736, 1.0
  %v4738 = vsel %vm4737, 1, 0
  %v4739 = vcvt.s32.f32 %v4738
  %v4740 = vsub.f32 %v4735, %v4739
  %4741 = vmatprep.subr.mxu0 0.0
  %v4742 = vand.u32 %v13, 4294901760
  %4743 = vmatpush1.msra.mxu0 %v4742
  %4744 = vmatprep.subr.mxu0 0.0
  %v4745 = vand.u32 %v14, 4294901760
  %4746 = vmatpush1.msra.mxu0 %v4745
  %4747 = vmatprep.subr.mxu0 0.0
  %v4748 = vand.u32 %v15, 4294901760
  %4749 = vmatpush1.msra.mxu0 %v4748
  %4750 = vmatprep.subr.mxu0 0.0
  %v4751 = vand.u32 %v16, 4294901760
  %4752 = vmatpush1.msra.mxu0 %v4751
  %4753 = vmatprep.subr.mxu0 0.0
  %v4754 = vand.u32 %v17, 4294901760
  %4755 = vmatpush1.msra.mxu0 %v4754
  %4756 = vmatprep.subr.mxu0 0.0
  %v4757 = vand.u32 %v18, 4294901760
  %4758 = vmatpush1.msra.mxu0 %v4757
  %4759 = vmatprep.subr.mxu0 0.0
  %v4760 = vand.u32 %v19, 4294901760
  %4761 = vmatpush1.msra.mxu0 %v4760
  %4762 = vmatprep.subr.mxu0 0.0
  %v4763 = vand.u32 %v20, 4294901760
  %4764 = vmatpush1.msra.mxu0 %v4763
  %4765 = vmatprep.subr.mxu0 0.0
  %v4766 = vand.u32 %v21, 4294901760
  %4767 = vmatpush1.msra.mxu0 %v4766
  %4768 = vmatprep.subr.mxu0 0.0
  %v4769 = vand.u32 %v22, 4294901760
  %4770 = vmatpush1.msra.mxu0 %v4769
  %4771 = vmatprep.subr.mxu0 0.0
  %v4772 = vand.u32 %v23, 4294901760
  %4773 = vmatpush1.msra.mxu0 %v4772
  %4774 = vmatprep.subr.mxu0 0.0
  %v4775 = vand.u32 %v24, 4294901760
  %4776 = vmatpush1.msra.mxu0 %v4775
  %4777 = vmatprep.subr.mxu0 0.0
  %v4778 = vand.u32 %v25, 4294901760
  %4779 = vmatpush1.msra.mxu0 %v4778
  %4780 = vmatprep.subr.mxu0 0.0
  %v4781 = vand.u32 %v26, 4294901760
  %4782 = vmatpush1.msra.mxu0 %v4781
  %4783 = vmatprep.subr.mxu0 0.0
  %v4784 = vand.u32 %v27, 4294901760
  %4785 = vmatpush1.msra.mxu0 %v4784
  %4786 = vmatprep.subr.mxu0 0.0
  %v4787 = vand.u32 %v28, 4294901760
  %4788 = vmatpush1.msra.mxu0 %v4787
  %4789 = vmatprep.subr.mxu0 0.0
  %4790 = vmatpush1.msra.mxu0 0.0
  %4791 = vmatprep.subr.mxu0 0.0
  %4792 = vmatpush1.msra.mxu0 0.0
  %4793 = vmatprep.subr.mxu0 0.0
  %4794 = vmatpush1.msra.mxu0 0.0
  %4795 = vmatprep.subr.mxu0 0.0
  %4796 = vmatpush1.msra.mxu0 0.0
  %4797 = vmatprep.subr.mxu0 0.0
  %4798 = vmatpush1.msra.mxu0 0.0
  %4799 = vmatprep.subr.mxu0 0.0
  %4800 = vmatpush1.msra.mxu0 0.0
  %4801 = vmatprep.subr.mxu0 0.0
  %4802 = vmatpush1.msra.mxu0 0.0
  %4803 = vmatprep.subr.mxu0 0.0
  %4804 = vmatpush1.msra.mxu0 0.0
  %4805 = vmatprep.subr.mxu0 0.0
  %4806 = vmatpush1.msra.mxu0 0.0
  %4807 = vmatprep.subr.mxu0 0.0
  %4808 = vmatpush1.msra.mxu0 0.0
  %4809 = vmatprep.subr.mxu0 0.0
  %4810 = vmatpush1.msra.mxu0 0.0
  %4811 = vmatprep.subr.mxu0 0.0
  %4812 = vmatpush1.msra.mxu0 0.0
  %4813 = vmatprep.subr.mxu0 0.0
  %4814 = vmatpush1.msra.mxu0 0.0
  %4815 = vmatprep.subr.mxu0 0.0
  %4816 = vmatpush1.msra.mxu0 0.0
  %4817 = vmatprep.subr.mxu0 0.0
  %4818 = vmatpush1.msra.mxu0 0.0
  %4819 = vmatprep.subr.mxu0 0.0
  %4820 = vmatpush1.msra.mxu0 0.0
  %4821 = vmatprep.mubr.f32.mxu0 0.0
  %v4822 = vand.u32 %v4739, 4294901760
  %v4823 = vsub.f32 %v4739, %v4822
  %v4824 = vand.u32 %v4823, 4294901760
  %v4825 = vsub.f32 %v4823, %v4824
  %v4826 = vand.u32 %v4825, 4294901760
  %4827 = vmatmul.mubr.f32.gmra.mrb[0].mxu0 %v4826
  %v4828 = vpop.f32.mrb[0].mxu0
  %v4829 = vadd.f32 0.0, %v4828
  %v4830 = vpop.f32.mrb[0].mxu0
  %4831 = vdwg.mxu0
  %4832 = vmatprep.subr.mxu0 0.0
  %v4833 = vand.u32 %v13, 4294901760
  %v4834 = vsub.f32 %v13, %v4833
  %v4835 = vand.u32 %v4834, 4294901760
  %v4836 = vsub.f32 %v4834, %v4835
  %v4837 = vand.u32 %v4836, 4294901760
  %4838 = vmatpush1.msra.mxu0 %v4837
  %4839 = vmatprep.subr.mxu0 0.0
  %v4840 = vand.u32 %v14, 4294901760
  %v4841 = vsub.f32 %v14, %v4840
  %v4842 = vand.u32 %v4841, 4294901760
  %v4843 = vsub.f32 %v4841, %v4842
  %v4844 = vand.u32 %v4843, 4294901760
  %4845 = vmatpush1.msra.mxu0 %v4844
  %4846 = vmatprep.subr.mxu0 0.0
  %v4847 = vand.u32 %v15, 4294901760
  %v4848 = vsub.f32 %v15, %v4847
  %v4849 = vand.u32 %v4848, 4294901760
  %v4850 = vsub.f32 %v4848, %v4849
  %v4851 = vand.u32 %v4850, 4294901760
  %4852 = vmatpush1.msra.mxu0 %v4851
  %4853 = vmatprep.subr.mxu0 0.0
  %v4854 = vand.u32 %v16, 4294901760
  %v4855 = vsub.f32 %v16, %v4854
  %v4856 = vand.u32 %v4855, 4294901760
  %v4857 = vsub.f32 %v4855, %v4856
  %v4858 = vand.u32 %v4857, 4294901760
  %4859 = vmatpush1.msra.mxu0 %v4858
  %4860 = vmatprep.subr.mxu0 0.0
  %v4861 = vand.u32 %v17, 4294901760
  %v4862 = vsub.f32 %v17, %v4861
  %v4863 = vand.u32 %v4862, 4294901760
  %v4864 = vsub.f32 %v4862, %v4863
  %v4865 = vand.u32 %v4864, 4294901760
  %4866 = vmatpush1.msra.mxu0 %v4865
  %4867 = vmatprep.subr.mxu0 0.0
  %v4868 = vand.u32 %v18, 4294901760
  %v4869 = vsub.f32 %v18, %v4868
  %v4870 = vand.u32 %v4869, 4294901760
  %v4871 = vsub.f32 %v4869, %v4870
  %v4872 = vand.u32 %v4871, 4294901760
  %4873 = vmatpush1.msra.mxu0 %v4872
  %4874 = vmatprep.subr.mxu0 0.0
  %v4875 = vand.u32 %v19, 4294901760
  %v4876 = vsub.f32 %v19, %v4875
  %v4877 = vand.u32 %v4876, 4294901760
  %v4878 = vsub.f32 %v4876, %v4877
  %v4879 = vand.u32 %v4878, 4294901760
  %4880 = vmatpush1.msra.mxu0 %v4879
  %4881 = vmatprep.subr.mxu0 0.0
  %v4882 = vand.u32 %v20, 4294901760
  %v4883 = vsub.f32 %v20, %v4882
  %v4884 = vand.u32 %v4883, 4294901760
  %v4885 = vsub.f32 %v4883, %v4884
  %v4886 = vand.u32 %v4885, 4294901760
  %4887 = vmatpush1.msra.mxu0 %v4886
  %4888 = vmatprep.subr.mxu0 0.0
  %v4889 = vand.u32 %v21, 4294901760
  %v4890 = vsub.f32 %v21, %v4889
  %v4891 = vand.u32 %v4890, 4294901760
  %v4892 = vsub.f32 %v4890, %v4891
  %v4893 = vand.u32 %v4892, 4294901760
  %4894 = vmatpush1.msra.mxu0 %v4893
  %4895 = vmatprep.subr.mxu0 0.0
  %v4896 = vand.u32 %v22, 4294901760
  %v4897 = vsub.f32 %v22, %v4896
  %v4898 = vand.u32 %v4897, 4294901760
  %v4899 = vsub.f32 %v4897, %v4898
  %v4900 = vand.u32 %v4899, 4294901760
  %4901 = vmatpush1.msra.mxu0 %v4900
  %4902 = vmatprep.subr.mxu0 0.0
  %v4903 = vand.u32 %v23, 4294901760
  %v4904 = vsub.f32 %v23, %v4903
  %v4905 = vand.u32 %v4904, 4294901760
  %v4906 = vsub.f32 %v4904, %v4905
  %v4907 = vand.u32 %v4906, 4294901760
  %4908 = vmatpush1.msra.mxu0 %v4907
  %4909 = vmatprep.subr.mxu0 0.0
  %v4910 = vand.u32 %v24, 4294901760
  %v4911 = vsub.f32 %v24, %v4910
  %v4912 = vand.u32 %v4911, 4294901760
  %v4913 = vsub.f32 %v4911, %v4912
  %v4914 = vand.u32 %v4913, 4294901760
  %4915 = vmatpush1.msra.mxu0 %v4914
  %4916 = vmatprep.subr.mxu0 0.0
  %v4917 = vand.u32 %v25, 4294901760
  %v4918 = vsub.f32 %v25, %v4917
  %v4919 = vand.u32 %v4918, 4294901760
  %v4920 = vsub.f32 %v4918, %v4919
  %v4921 = vand.u32 %v4920, 4294901760
  %4922 = vmatpush1.msra.mxu0 %v4921
  %4923 = vmatprep.subr.mxu0 0.0
  %v4924 = vand.u32 %v26, 4294901760
  %v4925 = vsub.f32 %v26, %v4924
  %v4926 = vand.u32 %v4925, 4294901760
  %v4927 = vsub.f32 %v4925, %v4926
  %v4928 = vand.u32 %v4927, 4294901760
  %4929 = vmatpush1.msra.mxu0 %v4928
  %4930 = vmatprep.subr.mxu0 0.0
  %v4931 = vand.u32 %v27, 4294901760
  %v4932 = vsub.f32 %v27, %v4931
  %v4933 = vand.u32 %v4932, 4294901760
  %v4934 = vsub.f32 %v4932, %v4933
  %v4935 = vand.u32 %v4934, 4294901760
  %4936 = vmatpush1.msra.mxu0 %v4935
  %4937 = vmatprep.subr.mxu0 0.0
  %v4938 = vand.u32 %v28, 4294901760
  %v4939 = vsub.f32 %v28, %v4938
  %v4940 = vand.u32 %v4939, 4294901760
  %v4941 = vsub.f32 %v4939, %v4940
  %v4942 = vand.u32 %v4941, 4294901760
  %4943 = vmatpush1.msra.mxu0 %v4942
  %4944 = vmatprep.subr.mxu0 0.0
  %4945 = vmatpush1.msra.mxu0 0.0
  %4946 = vmatprep.subr.mxu0 0.0
  %4947 = vmatpush1.msra.mxu0 0.0
  %4948 = vmatprep.subr.mxu0 0.0
  %4949 = vmatpush1.msra.mxu0 0.0
  %4950 = vmatprep.subr.mxu0 0.0
  %4951 = vmatpush1.msra.mxu0 0.0
  %4952 = vmatprep.subr.mxu0 0.0
  %4953 = vmatpush1.msra.mxu0 0.0
  %4954 = vmatprep.subr.mxu0 0.0
  %4955 = vmatpush1.msra.mxu0 0.0
  %4956 = vmatprep.subr.mxu0 0.0
  %4957 = vmatpush1.msra.mxu0 0.0
  %4958 = vmatprep.subr.mxu0 0.0
  %4959 = vmatpush1.msra.mxu0 0.0
  %4960 = vmatprep.subr.mxu0 0.0
  %4961 = vmatpush1.msra.mxu0 0.0
  %4962 = vmatprep.subr.mxu0 0.0
  %4963 = vmatpush1.msra.mxu0 0.0
  %4964 = vmatprep.subr.mxu0 0.0
  %4965 = vmatpush1.msra.mxu0 0.0
  %4966 = vmatprep.subr.mxu0 0.0
  %4967 = vmatpush1.msra.mxu0 0.0
  %4968 = vmatprep.subr.mxu0 0.0
  %4969 = vmatpush1.msra.mxu0 0.0
  %4970 = vmatprep.subr.mxu0 0.0
  %4971 = vmatpush1.msra.mxu0 0.0
  %4972 = vmatprep.subr.mxu0 0.0
  %4973 = vmatpush1.msra.mxu0 0.0
  %4974 = vmatprep.subr.mxu0 0.0
  %4975 = vmatpush1.msra.mxu0 0.0
  %4976 = vmatprep.mubr.f32.mxu0 0.0
  %v4977 = vand.u32 %v4739, 4294901760
  %4978 = vmatmul.mubr.f32.gmra.mrb[0].mxu0 %v4977
  %v4979 = vpop.f32.mrb[0].mxu0
  %v4980 = vadd.f32 %v4829, %v4979
  %v4981 = vpop.f32.mrb[0].mxu0
  %4982 = vdwg.mxu0
  %4983 = vmatprep.subr.mxu0 0.0
  %v4984 = vand.u32 %v13, 4294901760
  %v4985 = vsub.f32 %v13, %v4984
  %4986 = vmatpush1.msra.mxu0 %v4985
  %4987 = vmatprep.subr.mxu0 0.0
  %v4988 = vand.u32 %v14, 4294901760
  %v4989 = vsub.f32 %v14, %v4988
  %4990 = vmatpush1.msra.mxu0 %v4989
  %4991 = vmatprep.subr.mxu0 0.0
  %v4992 = vand.u32 %v15, 4294901760
  %v4993 = vsub.f32 %v15, %v4992
  %4994 = vmatpush1.msra.mxu0 %v4993
  %4995 = vmatprep.subr.mxu0 0.0
  %v4996 = vand.u32 %v16, 4294901760
  %v4997 = vsub.f32 %v16, %v4996
  %4998 = vmatpush1.msra.mxu0 %v4997
  %4999 = vmatprep.subr.mxu0 0.0
  %v5000 = vand.u32 %v17, 4294901760
  %v5001 = vsub.f32 %v17, %v5000
  %5002 = vmatpush1.msra.mxu0 %v5001
  %5003 = vmatprep.subr.mxu0 0.0
  %v5004 = vand.u32 %v18, 4294901760
  %v5005 = vsub.f32 %v18, %v5004
  %5006 = vmatpush1.msra.mxu0 %v5005
  %5007 = vmatprep.subr.mxu0 0.0
  %v5008 = vand.u32 %v19, 4294901760
  %v5009 = vsub.f32 %v19, %v5008
  %5010 = vmatpush1.msra.mxu0 %v5009
  %5011 = vmatprep.subr.mxu0 0.0
  %v5012 = vand.u32 %v20, 4294901760
  %v5013 = vsub.f32 %v20, %v5012
  %5014 = vmatpush1.msra.mxu0 %v5013
  %5015 = vmatprep.subr.mxu0 0.0
  %v5016 = vand.u32 %v21, 4294901760
  %v5017 = vsub.f32 %v21, %v5016
  %5018 = vmatpush1.msra.mxu0 %v5017
  %5019 = vmatprep.subr.mxu0 0.0
  %v5020 = vand.u32 %v22, 4294901760
  %v5021 = vsub.f32 %v22, %v5020
  %5022 = vmatpush1.msra.mxu0 %v5021
  %5023 = vmatprep.subr.mxu0 0.0
  %v5024 = vand.u32 %v23, 4294901760
  %v5025 = vsub.f32 %v23, %v5024
  %5026 = vmatpush1.msra.mxu0 %v5025
  %5027 = vmatprep.subr.mxu0 0.0
  %v5028 = vand.u32 %v24, 4294901760
  %v5029 = vsub.f32 %v24, %v5028
  %5030 = vmatpush1.msra.mxu0 %v5029
  %5031 = vmatprep.subr.mxu0 0.0
  %v5032 = vand.u32 %v25, 4294901760
  %v5033 = vsub.f32 %v25, %v5032
  %5034 = vmatpush1.msra.mxu0 %v5033
  %5035 = vmatprep.subr.mxu0 0.0
  %v5036 = vand.u32 %v26, 4294901760
  %v5037 = vsub.f32 %v26, %v5036
  %5038 = vmatpush1.msra.mxu0 %v5037
  %5039 = vmatprep.subr.mxu0 0.0
  %v5040 = vand.u32 %v27, 4294901760
  %v5041 = vsub.f32 %v27, %v5040
  %5042 = vmatpush1.msra.mxu0 %v5041
  %5043 = vmatprep.subr.mxu0 0.0
  %v5044 = vand.u32 %v28, 4294901760
  %v5045 = vsub.f32 %v28, %v5044
  %5046 = vmatpush1.msra.mxu0 %v5045
  %5047 = vmatprep.subr.mxu0 0.0
  %5048 = vmatpush1.msra.mxu0 0.0
  %5049 = vmatprep.subr.mxu0 0.0
  %5050 = vmatpush1.msra.mxu0 0.0
  %5051 = vmatprep.subr.mxu0 0.0
  %5052 = vmatpush1.msra.mxu0 0.0
  %5053 = vmatprep.subr.mxu0 0.0
  %5054 = vmatpush1.msra.mxu0 0.0
  %5055 = vmatprep.subr.mxu0 0.0
  %5056 = vmatpush1.msra.mxu0 0.0
  %5057 = vmatprep.subr.mxu0 0.0
  %5058 = vmatpush1.msra.mxu0 0.0
  %5059 = vmatprep.subr.mxu0 0.0
  %5060 = vmatpush1.msra.mxu0 0.0
  %5061 = vmatprep.subr.mxu0 0.0
  %5062 = vmatpush1.msra.mxu0 0.0
  %5063 = vmatprep.subr.mxu0 0.0
  %5064 = vmatpush1.msra.mxu0 0.0
  %5065 = vmatprep.subr.mxu0 0.0
  %5066 = vmatpush1.msra.mxu0 0.0
  %5067 = vmatprep.subr.mxu0 0.0
  %5068 = vmatpush1.msra.mxu0 0.0
  %5069 = vmatprep.subr.mxu0 0.0
  %5070 = vmatpush1.msra.mxu0 0.0
  %5071 = vmatprep.subr.mxu0 0.0
  %5072 = vmatpush1.msra.mxu0 0.0
  %5073 = vmatprep.subr.mxu0 0.0
  %5074 = vmatpush1.msra.mxu0 0.0
  %5075 = vmatprep.subr.mxu0 0.0
  %5076 = vmatpush1.msra.mxu0 0.0
  %5077 = vmatprep.subr.mxu0 0.0
  %5078 = vmatpush1.msra.mxu0 0.0
  %5079 = vmatprep.mubr.f32.mxu0 0.0
  %v5080 = vand.u32 %v4739, 4294901760
  %v5081 = vsub.f32 %v4739, %v5080
  %5082 = vmatmul.mubr.f32.gmra.mrb[0].mxu0 %v5081
  %v5083 = vpop.f32.mrb[0].mxu0
  %v5084 = vadd.f32 %v4980, %v5083
  %v5085 = vpop.f32.mrb[0].mxu0
  %5086 = vdwg.mxu0
  %5087 = vmatprep.subr.mxu0 0.0
  %v5088 = vand.u32 %v13, 4294901760
  %5089 = vmatpush1.msra.mxu0 %v5088
  %5090 = vmatprep.subr.mxu0 0.0
  %v5091 = vand.u32 %v14, 4294901760
  %5092 = vmatpush1.msra.mxu0 %v5091
  %5093 = vmatprep.subr.mxu0 0.0
  %v5094 = vand.u32 %v15, 4294901760
  %5095 = vmatpush1.msra.mxu0 %v5094
  %5096 = vmatprep.subr.mxu0 0.0
  %v5097 = vand.u32 %v16, 4294901760
  %5098 = vmatpush1.msra.mxu0 %v5097
  %5099 = vmatprep.subr.mxu0 0.0
  %v5100 = vand.u32 %v17, 4294901760
  %5101 = vmatpush1.msra.mxu0 %v5100
  %5102 = vmatprep.subr.mxu0 0.0
  %v5103 = vand.u32 %v18, 4294901760
  %5104 = vmatpush1.msra.mxu0 %v5103
  %5105 = vmatprep.subr.mxu0 0.0
  %v5106 = vand.u32 %v19, 4294901760
  %5107 = vmatpush1.msra.mxu0 %v5106
  %5108 = vmatprep.subr.mxu0 0.0
  %v5109 = vand.u32 %v20, 4294901760
  %5110 = vmatpush1.msra.mxu0 %v5109
  %5111 = vmatprep.subr.mxu0 0.0
  %v5112 = vand.u32 %v21, 4294901760
  %5113 = vmatpush1.msra.mxu0 %v5112
  %5114 = vmatprep.subr.mxu0 0.0
  %v5115 = vand.u32 %v22, 4294901760
  %5116 = vmatpush1.msra.mxu0 %v5115
  %5117 = vmatprep.subr.mxu0 0.0
  %v5118 = vand.u32 %v23, 4294901760
  %5119 = vmatpush1.msra.mxu0 %v5118
  %5120 = vmatprep.subr.mxu0 0.0
  %v5121 = vand.u32 %v24, 4294901760
  %5122 = vmatpush1.msra.mxu0 %v5121
  %5123 = vmatprep.subr.mxu0 0.0
  %v5124 = vand.u32 %v25, 4294901760
  %5125 = vmatpush1.msra.mxu0 %v5124
  %5126 = vmatprep.subr.mxu0 0.0
  %v5127 = vand.u32 %v26, 4294901760
  %5128 = vmatpush1.msra.mxu0 %v5127
  %5129 = vmatprep.subr.mxu0 0.0
  %v5130 = vand.u32 %v27, 4294901760
  %5131 = vmatpush1.msra.mxu0 %v5130
  %5132 = vmatprep.subr.mxu0 0.0
  %v5133 = vand.u32 %v28, 4294901760
  %5134 = vmatpush1.msra.mxu0 %v5133
  %5135 = vmatprep.subr.mxu0 0.0
  %5136 = vmatpush1.msra.mxu0 0.0
  %5137 = vmatprep.subr.mxu0 0.0
  %5138 = vmatpush1.msra.mxu0 0.0
  %5139 = vmatprep.subr.mxu0 0.0
  %5140 = vmatpush1.msra.mxu0 0.0
  %5141 = vmatprep.subr.mxu0 0.0
  %5142 = vmatpush1.msra.mxu0 0.0
  %5143 = vmatprep.subr.mxu0 0.0
  %5144 = vmatpush1.msra.mxu0 0.0
  %5145 = vmatprep.subr.mxu0 0.0
  %5146 = vmatpush1.msra.mxu0 0.0
  %5147 = vmatprep.subr.mxu0 0.0
  %5148 = vmatpush1.msra.mxu0 0.0
  %5149 = vmatprep.subr.mxu0 0.0
  %5150 = vmatpush1.msra.mxu0 0.0
  %5151 = vmatprep.subr.mxu0 0.0
  %5152 = vmatpush1.msra.mxu0 0.0
  %5153 = vmatprep.subr.mxu0 0.0
  %5154 = vmatpush1.msra.mxu0 0.0
  %5155 = vmatprep.subr.mxu0 0.0
  %5156 = vmatpush1.msra.mxu0 0.0
  %5157 = vmatprep.subr.mxu0 0.0
  %5158 = vmatpush1.msra.mxu0 0.0
  %5159 = vmatprep.subr.mxu0 0.0
  %5160 = vmatpush1.msra.mxu0 0.0
  %5161 = vmatprep.subr.mxu0 0.0
  %5162 = vmatpush1.msra.mxu0 0.0
  %5163 = vmatprep.subr.mxu0 0.0
  %5164 = vmatpush1.msra.mxu0 0.0
  %5165 = vmatprep.subr.mxu0 0.0
  %5166 = vmatpush1.msra.mxu0 0.0
  %5167 = vmatprep.mubr.f32.mxu0 0.0
  %v5168 = vand.u32 %v4739, 4294901760
  %v5169 = vsub.f32 %v4739, %v5168
  %v5170 = vand.u32 %v5169, 4294901760
  %5171 = vmatmul.mubr.f32.gmra.mrb[0].mxu0 %v5170
  %v5172 = vpop.f32.mrb[0].mxu0
  %v5173 = vadd.f32 %v5084, %v5172
  %v5174 = vpop.f32.mrb[0].mxu0
  %5175 = vdwg.mxu0
  %5176 = vmatprep.subr.mxu0 0.0
  %v5177 = vand.u32 %v13, 4294901760
  %v5178 = vsub.f32 %v13, %v5177
  %v5179 = vand.u32 %v5178, 4294901760
  %5180 = vmatpush1.msra.mxu0 %v5179
  %5181 = vmatprep.subr.mxu0 0.0
  %v5182 = vand.u32 %v14, 4294901760
  %v5183 = vsub.f32 %v14, %v5182
  %v5184 = vand.u32 %v5183, 4294901760
  %5185 = vmatpush1.msra.mxu0 %v5184
  %5186 = vmatprep.subr.mxu0 0.0
  %v5187 = vand.u32 %v15, 4294901760
  %v5188 = vsub.f32 %v15, %v5187
  %v5189 = vand.u32 %v5188, 4294901760
  %5190 = vmatpush1.msra.mxu0 %v5189
  %5191 = vmatprep.subr.mxu0 0.0
  %v5192 = vand.u32 %v16, 4294901760
  %v5193 = vsub.f32 %v16, %v5192
  %v5194 = vand.u32 %v5193, 4294901760
  %5195 = vmatpush1.msra.mxu0 %v5194
  %5196 = vmatprep.subr.mxu0 0.0
  %v5197 = vand.u32 %v17, 4294901760
  %v5198 = vsub.f32 %v17, %v5197
  %v5199 = vand.u32 %v5198, 4294901760
  %5200 = vmatpush1.msra.mxu0 %v5199
  %5201 = vmatprep.subr.mxu0 0.0
  %v5202 = vand.u32 %v18, 4294901760
  %v5203 = vsub.f32 %v18, %v5202
  %v5204 = vand.u32 %v5203, 4294901760
  %5205 = vmatpush1.msra.mxu0 %v5204
  %5206 = vmatprep.subr.mxu0 0.0
  %v5207 = vand.u32 %v19, 4294901760
  %v5208 = vsub.f32 %v19, %v5207
  %v5209 = vand.u32 %v5208, 4294901760
  %5210 = vmatpush1.msra.mxu0 %v5209
  %5211 = vmatprep.subr.mxu0 0.0
  %v5212 = vand.u32 %v20, 4294901760
  %v5213 = vsub.f32 %v20, %v5212
  %v5214 = vand.u32 %v5213, 4294901760
  %5215 = vmatpush1.msra.mxu0 %v5214
  %5216 = vmatprep.subr.mxu0 0.0
  %v5217 = vand.u32 %v21, 4294901760
  %v5218 = vsub.f32 %v21, %v5217
  %v5219 = vand.u32 %v5218, 4294901760
  %5220 = vmatpush1.msra.mxu0 %v5219
  %5221 = vmatprep.subr.mxu0 0.0
  %v5222 = vand.u32 %v22, 4294901760
  %v5223 = vsub.f32 %v22, %v5222
  %v5224 = vand.u32 %v5223, 4294901760
  %5225 = vmatpush1.msra.mxu0 %v5224
  %5226 = vmatprep.subr.mxu0 0.0
  %v5227 = vand.u32 %v23, 4294901760
  %v5228 = vsub.f32 %v23, %v5227
  %v5229 = vand.u32 %v5228, 4294901760
  %5230 = vmatpush1.msra.mxu0 %v5229
  %5231 = vmatprep.subr.mxu0 0.0
  %v5232 = vand.u32 %v24, 4294901760
  %v5233 = vsub.f32 %v24, %v5232
  %v5234 = vand.u32 %v5233, 4294901760
  %5235 = vmatpush1.msra.mxu0 %v5234
  %5236 = vmatprep.subr.mxu0 0.0
  %v5237 = vand.u32 %v25, 4294901760
  %v5238 = vsub.f32 %v25, %v5237
  %v5239 = vand.u32 %v5238, 4294901760
  %5240 = vmatpush1.msra.mxu0 %v5239
  %5241 = vmatprep.subr.mxu0 0.0
  %v5242 = vand.u32 %v26, 4294901760
  %v5243 = vsub.f32 %v26, %v5242
  %v5244 = vand.u32 %v5243, 4294901760
  %5245 = vmatpush1.msra.mxu0 %v5244
  %5246 = vmatprep.subr.mxu0 0.0
  %v5247 = vand.u32 %v27, 4294901760
  %v5248 = vsub.f32 %v27, %v5247
  %v5249 = vand.u32 %v5248, 4294901760
  %5250 = vmatpush1.msra.mxu0 %v5249
  %5251 = vmatprep.subr.mxu0 0.0
  %v5252 = vand.u32 %v28, 4294901760
  %v5253 = vsub.f32 %v28, %v5252
  %v5254 = vand.u32 %v5253, 4294901760
  %5255 = vmatpush1.msra.mxu0 %v5254
  %5256 = vmatprep.subr.mxu0 0.0
  %5257 = vmatpush1.msra.mxu0 0.0
  %5258 = vmatprep.subr.mxu0 0.0
  %5259 = vmatpush1.msra.mxu0 0.0
  %5260 = vmatprep.subr.mxu0 0.0
  %5261 = vmatpush1.msra.mxu0 0.0
  %5262 = vmatprep.subr.mxu0 0.0
  %5263 = vmatpush1.msra.mxu0 0.0
  %5264 = vmatprep.subr.mxu0 0.0
  %5265 = vmatpush1.msra.mxu0 0.0
  %5266 = vmatprep.subr.mxu0 0.0
  %5267 = vmatpush1.msra.mxu0 0.0
  %5268 = vmatprep.subr.mxu0 0.0
  %5269 = vmatpush1.msra.mxu0 0.0
  %5270 = vmatprep.subr.mxu0 0.0
  %5271 = vmatpush1.msra.mxu0 0.0
  %5272 = vmatprep.subr.mxu0 0.0
  %5273 = vmatpush1.msra.mxu0 0.0
  %5274 = vmatprep.subr.mxu0 0.0
  %5275 = vmatpush1.msra.mxu0 0.0
  %5276 = vmatprep.subr.mxu0 0.0
  %5277 = vmatpush1.msra.mxu0 0.0
  %5278 = vmatprep.subr.mxu0 0.0
  %5279 = vmatpush1.msra.mxu0 0.0
  %5280 = vmatprep.subr.mxu0 0.0
  %5281 = vmatpush1.msra.mxu0 0.0
  %5282 = vmatprep.subr.mxu0 0.0
  %5283 = vmatpush1.msra.mxu0 0.0
  %5284 = vmatprep.subr.mxu0 0.0
  %5285 = vmatpush1.msra.mxu0 0.0
  %5286 = vmatprep.subr.mxu0 0.0
  %5287 = vmatpush1.msra.mxu0 0.0
  %5288 = vmatprep.mubr.f32.mxu0 0.0
  %v5289 = vand.u32 %v4739, 4294901760
  %5290 = vmatmul.mubr.f32.gmra.mrb[0].mxu0 %v5289
  %v5291 = vpop.f32.mrb[0].mxu0
  %v5292 = vadd.f32 %v5173, %v5291
  %v5293 = vpop.f32.mrb[0].mxu0
  %5294 = vdwg.mxu0
  %5295 = vmatprep.subr.mxu0 0.0
  %v5296 = vand.u32 %v13, 4294901760
  %5297 = vmatpush1.msra.mxu0 %v5296
  %5298 = vmatprep.subr.mxu0 0.0
  %v5299 = vand.u32 %v14, 4294901760
  %5300 = vmatpush1.msra.mxu0 %v5299
  %5301 = vmatprep.subr.mxu0 0.0
  %v5302 = vand.u32 %v15, 4294901760
  %5303 = vmatpush1.msra.mxu0 %v5302
  %5304 = vmatprep.subr.mxu0 0.0
  %v5305 = vand.u32 %v16, 4294901760
  %5306 = vmatpush1.msra.mxu0 %v5305
  %5307 = vmatprep.subr.mxu0 0.0
  %v5308 = vand.u32 %v17, 4294901760
  %5309 = vmatpush1.msra.mxu0 %v5308
  %5310 = vmatprep.subr.mxu0 0.0
  %v5311 = vand.u32 %v18, 4294901760
  %5312 = vmatpush1.msra.mxu0 %v5311
  %5313 = vmatprep.subr.mxu0 0.0
  %v5314 = vand.u32 %v19, 4294901760
  %5315 = vmatpush1.msra.mxu0 %v5314
  %5316 = vmatprep.subr.mxu0 0.0
  %v5317 = vand.u32 %v20, 4294901760
  %5318 = vmatpush1.msra.mxu0 %v5317
  %5319 = vmatprep.subr.mxu0 0.0
  %v5320 = vand.u32 %v21, 4294901760
  %5321 = vmatpush1.msra.mxu0 %v5320
  %5322 = vmatprep.subr.mxu0 0.0
  %v5323 = vand.u32 %v22, 4294901760
  %5324 = vmatpush1.msra.mxu0 %v5323
  %5325 = vmatprep.subr.mxu0 0.0
  %v5326 = vand.u32 %v23, 4294901760
  %5327 = vmatpush1.msra.mxu0 %v5326
  %5328 = vmatprep.subr.mxu0 0.0
  %v5329 = vand.u32 %v24, 4294901760
  %5330 = vmatpush1.msra.mxu0 %v5329
  %5331 = vmatprep.subr.mxu0 0.0
  %v5332 = vand.u32 %v25, 4294901760
  %5333 = vmatpush1.msra.mxu0 %v5332
  %5334 = vmatprep.subr.mxu0 0.0
  %v5335 = vand.u32 %v26, 4294901760
  %5336 = vmatpush1.msra.mxu0 %v5335
  %5337 = vmatprep.subr.mxu0 0.0
  %v5338 = vand.u32 %v27, 4294901760
  %5339 = vmatpush1.msra.mxu0 %v5338
  %5340 = vmatprep.subr.mxu0 0.0
  %v5341 = vand.u32 %v28, 4294901760
  %5342 = vmatpush1.msra.mxu0 %v5341
  %5343 = vmatprep.subr.mxu0 0.0
  %5344 = vmatpush1.msra.mxu0 0.0
  %5345 = vmatprep.subr.mxu0 0.0
  %5346 = vmatpush1.msra.mxu0 0.0
  %5347 = vmatprep.subr.mxu0 0.0
  %5348 = vmatpush1.msra.mxu0 0.0
  %5349 = vmatprep.subr.mxu0 0.0
  %5350 = vmatpush1.msra.mxu0 0.0
  %5351 = vmatprep.subr.mxu0 0.0
  %5352 = vmatpush1.msra.mxu0 0.0
  %5353 = vmatprep.subr.mxu0 0.0
  %5354 = vmatpush1.msra.mxu0 0.0
  %5355 = vmatprep.subr.mxu0 0.0
  %5356 = vmatpush1.msra.mxu0 0.0
  %5357 = vmatprep.subr.mxu0 0.0
  %5358 = vmatpush1.msra.mxu0 0.0
  %5359 = vmatprep.subr.mxu0 0.0
  %5360 = vmatpush1.msra.mxu0 0.0
  %5361 = vmatprep.subr.mxu0 0.0
  %5362 = vmatpush1.msra.mxu0 0.0
  %5363 = vmatprep.subr.mxu0 0.0
  %5364 = vmatpush1.msra.mxu0 0.0
  %5365 = vmatprep.subr.mxu0 0.0
  %5366 = vmatpush1.msra.mxu0 0.0
  %5367 = vmatprep.subr.mxu0 0.0
  %5368 = vmatpush1.msra.mxu0 0.0
  %5369 = vmatprep.subr.mxu0 0.0
  %5370 = vmatpush1.msra.mxu0 0.0
  %5371 = vmatprep.subr.mxu0 0.0
  %5372 = vmatpush1.msra.mxu0 0.0
  %5373 = vmatprep.subr.mxu0 0.0
  %5374 = vmatpush1.msra.mxu0 0.0
  %5375 = vmatprep.mubr.f32.mxu0 0.0
  %v5376 = vand.u32 %v4739, 4294901760
  %5377 = vmatmul.mubr.f32.gmra.mrb[0].mxu0 %v5376
  %v5378 = vpop.f32.mrb[0].mxu0
  %v5379 = vadd.f32 %v5292, %v5378
  %v5380 = vpop.f32.mrb[0].mxu0
  %5381 = vdwg.mxu0
  %vm5382 = vcmp.gt.f32.partialorder %v4740, 1.0
  %v5383 = vsel %vm5382, 1.0, 0.0
  %v5384 = vmul.f32 %v4733, 0.9
  %v5385 = vadd.f32 %v5384, %v829
  %v5386 = vadd.f32 %v5385, %v5379
  %v5387 = vmul.f32 %v4740, 0.9
  %v5388 = vadd.f32 %v5387, %v5386
  %v5389 = vsub.f32 %v5388, %v5383
  %vm5390 = vcmp.gt.f32.partialorder %v5389, 1.0
  %v5391 = vsel %vm5390, 1, 0
  %v5392 = vcvt.s32.f32 %v5391
  %v5393 = vsub.f32 %v5388, %v5392
  %5394 = vmatprep.subr.mxu0 0.0
  %v5395 = vand.u32 %v13, 4294901760
  %5396 = vmatpush1.msra.mxu0 %v5395
  %5397 = vmatprep.subr.mxu0 0.0
  %v5398 = vand.u32 %v14, 4294901760
  %5399 = vmatpush1.msra.mxu0 %v5398
  %5400 = vmatprep.subr.mxu0 0.0
  %v5401 = vand.u32 %v15, 4294901760
  %5402 = vmatpush1.msra.mxu0 %v5401
  %5403 = vmatprep.subr.mxu0 0.0
  %v5404 = vand.u32 %v16, 4294901760
  %5405 = vmatpush1.msra.mxu0 %v5404
  %5406 = vmatprep.subr.mxu0 0.0
  %v5407 = vand.u32 %v17, 4294901760
  %5408 = vmatpush1.msra.mxu0 %v5407
  %5409 = vmatprep.subr.mxu0 0.0
  %v5410 = vand.u32 %v18, 4294901760
  %5411 = vmatpush1.msra.mxu0 %v5410
  %5412 = vmatprep.subr.mxu0 0.0
  %v5413 = vand.u32 %v19, 4294901760
  %5414 = vmatpush1.msra.mxu0 %v5413
  %5415 = vmatprep.subr.mxu0 0.0
  %v5416 = vand.u32 %v20, 4294901760
  %5417 = vmatpush1.msra.mxu0 %v5416
  %5418 = vmatprep.subr.mxu0 0.0
  %v5419 = vand.u32 %v21, 4294901760
  %5420 = vmatpush1.msra.mxu0 %v5419
  %5421 = vmatprep.subr.mxu0 0.0
  %v5422 = vand.u32 %v22, 4294901760
  %5423 = vmatpush1.msra.mxu0 %v5422
  %5424 = vmatprep.subr.mxu0 0.0
  %v5425 = vand.u32 %v23, 4294901760
  %5426 = vmatpush1.msra.mxu0 %v5425
  %5427 = vmatprep.subr.mxu0 0.0
  %v5428 = vand.u32 %v24, 4294901760
  %5429 = vmatpush1.msra.mxu0 %v5428
  %5430 = vmatprep.subr.mxu0 0.0
  %v5431 = vand.u32 %v25, 4294901760
  %5432 = vmatpush1.msra.mxu0 %v5431
  %5433 = vmatprep.subr.mxu0 0.0
  %v5434 = vand.u32 %v26, 4294901760
  %5435 = vmatpush1.msra.mxu0 %v5434
  %5436 = vmatprep.subr.mxu0 0.0
  %v5437 = vand.u32 %v27, 4294901760
  %5438 = vmatpush1.msra.mxu0 %v5437
  %5439 = vmatprep.subr.mxu0 0.0
  %v5440 = vand.u32 %v28, 4294901760
  %5441 = vmatpush1.msra.mxu0 %v5440
  %5442 = vmatprep.subr.mxu0 0.0
  %5443 = vmatpush1.msra.mxu0 0.0
  %5444 = vmatprep.subr.mxu0 0.0
  %5445 = vmatpush1.msra.mxu0 0.0
  %5446 = vmatprep.subr.mxu0 0.0
  %5447 = vmatpush1.msra.mxu0 0.0
  %5448 = vmatprep.subr.mxu0 0.0
  %5449 = vmatpush1.msra.mxu0 0.0
  %5450 = vmatprep.subr.mxu0 0.0
  %5451 = vmatpush1.msra.mxu0 0.0
  %5452 = vmatprep.subr.mxu0 0.0
  %5453 = vmatpush1.msra.mxu0 0.0
  %5454 = vmatprep.subr.mxu0 0.0
  %5455 = vmatpush1.msra.mxu0 0.0
  %5456 = vmatprep.subr.mxu0 0.0
  %5457 = vmatpush1.msra.mxu0 0.0
  %5458 = vmatprep.subr.mxu0 0.0
  %5459 = vmatpush1.msra.mxu0 0.0
  %5460 = vmatprep.subr.mxu0 0.0
  %5461 = vmatpush1.msra.mxu0 0.0
  %5462 = vmatprep.subr.mxu0 0.0
  %5463 = vmatpush1.msra.mxu0 0.0
  %5464 = vmatprep.subr.mxu0 0.0
  %5465 = vmatpush1.msra.mxu0 0.0
  %5466 = vmatprep.subr.mxu0 0.0
  %5467 = vmatpush1.msra.mxu0 0.0
  %5468 = vmatprep.subr.mxu0 0.0
  %5469 = vmatpush1.msra.mxu0 0.0
  %5470 = vmatprep.subr.mxu0 0.0
  %5471 = vmatpush1.msra.mxu0 0.0
  %5472 = vmatprep.subr.mxu0 0.0
  %5473 = vmatpush1.msra.mxu0 0.0
  %5474 = vmatprep.mubr.f32.mxu0 0.0
  %v5475 = vand.u32 %v5392, 4294901760
  %v5476 = vsub.f32 %v5392, %v5475
  %v5477 = vand.u32 %v5476, 4294901760
  %v5478 = vsub.f32 %v5476, %v5477
  %v5479 = vand.u32 %v5478, 4294901760
  %5480 = vmatmul.mubr.f32.gmra.mrb[0].mxu0 %v5479
  %v5481 = vpop.f32.mrb[0].mxu0
  %v5482 = vadd.f32 0.0, %v5481
  %v5483 = vpop.f32.mrb[0].mxu0
  %5484 = vdwg.mxu0
  %5485 = vmatprep.subr.mxu0 0.0
  %v5486 = vand.u32 %v13, 4294901760
  %v5487 = vsub.f32 %v13, %v5486
  %v5488 = vand.u32 %v5487, 4294901760
  %v5489 = vsub.f32 %v5487, %v5488
  %v5490 = vand.u32 %v5489, 4294901760
  %5491 = vmatpush1.msra.mxu0 %v5490
  %5492 = vmatprep.subr.mxu0 0.0
  %v5493 = vand.u32 %v14, 4294901760
  %v5494 = vsub.f32 %v14, %v5493
  %v5495 = vand.u32 %v5494, 4294901760
  %v5496 = vsub.f32 %v5494, %v5495
  %v5497 = vand.u32 %v5496, 4294901760
  %5498 = vmatpush1.msra.mxu0 %v5497
  %5499 = vmatprep.subr.mxu0 0.0
  %v5500 = vand.u32 %v15, 4294901760
  %v5501 = vsub.f32 %v15, %v5500
  %v5502 = vand.u32 %v5501, 4294901760
  %v5503 = vsub.f32 %v5501, %v5502
  %v5504 = vand.u32 %v5503, 4294901760
  %5505 = vmatpush1.msra.mxu0 %v5504
  %5506 = vmatprep.subr.mxu0 0.0
  %v5507 = vand.u32 %v16, 4294901760
  %v5508 = vsub.f32 %v16, %v5507
  %v5509 = vand.u32 %v5508, 4294901760
  %v5510 = vsub.f32 %v5508, %v5509
  %v5511 = vand.u32 %v5510, 4294901760
  %5512 = vmatpush1.msra.mxu0 %v5511
  %5513 = vmatprep.subr.mxu0 0.0
  %v5514 = vand.u32 %v17, 4294901760
  %v5515 = vsub.f32 %v17, %v5514
  %v5516 = vand.u32 %v5515, 4294901760
  %v5517 = vsub.f32 %v5515, %v5516
  %v5518 = vand.u32 %v5517, 4294901760
  %5519 = vmatpush1.msra.mxu0 %v5518
  %5520 = vmatprep.subr.mxu0 0.0
  %v5521 = vand.u32 %v18, 4294901760
  %v5522 = vsub.f32 %v18, %v5521
  %v5523 = vand.u32 %v5522, 4294901760
  %v5524 = vsub.f32 %v5522, %v5523
  %v5525 = vand.u32 %v5524, 4294901760
  %5526 = vmatpush1.msra.mxu0 %v5525
  %5527 = vmatprep.subr.mxu0 0.0
  %v5528 = vand.u32 %v19, 4294901760
  %v5529 = vsub.f32 %v19, %v5528
  %v5530 = vand.u32 %v5529, 4294901760
  %v5531 = vsub.f32 %v5529, %v5530
  %v5532 = vand.u32 %v5531, 4294901760
  %5533 = vmatpush1.msra.mxu0 %v5532
  %5534 = vmatprep.subr.mxu0 0.0
  %v5535 = vand.u32 %v20, 4294901760
  %v5536 = vsub.f32 %v20, %v5535
  %v5537 = vand.u32 %v5536, 4294901760
  %v5538 = vsub.f32 %v5536, %v5537
  %v5539 = vand.u32 %v5538, 4294901760
  %5540 = vmatpush1.msra.mxu0 %v5539
  %5541 = vmatprep.subr.mxu0 0.0
  %v5542 = vand.u32 %v21, 4294901760
  %v5543 = vsub.f32 %v21, %v5542
  %v5544 = vand.u32 %v5543, 4294901760
  %v5545 = vsub.f32 %v5543, %v5544
  %v5546 = vand.u32 %v5545, 4294901760
  %5547 = vmatpush1.msra.mxu0 %v5546
  %5548 = vmatprep.subr.mxu0 0.0
  %v5549 = vand.u32 %v22, 4294901760
  %v5550 = vsub.f32 %v22, %v5549
  %v5551 = vand.u32 %v5550, 4294901760
  %v5552 = vsub.f32 %v5550, %v5551
  %v5553 = vand.u32 %v5552, 4294901760
  %5554 = vmatpush1.msra.mxu0 %v5553
  %5555 = vmatprep.subr.mxu0 0.0
  %v5556 = vand.u32 %v23, 4294901760
  %v5557 = vsub.f32 %v23, %v5556
  %v5558 = vand.u32 %v5557, 4294901760
  %v5559 = vsub.f32 %v5557, %v5558
  %v5560 = vand.u32 %v5559, 4294901760
  %5561 = vmatpush1.msra.mxu0 %v5560
  %5562 = vmatprep.subr.mxu0 0.0
  %v5563 = vand.u32 %v24, 4294901760
  %v5564 = vsub.f32 %v24, %v5563
  %v5565 = vand.u32 %v5564, 4294901760
  %v5566 = vsub.f32 %v5564, %v5565
  %v5567 = vand.u32 %v5566, 4294901760
  %5568 = vmatpush1.msra.mxu0 %v5567
  %5569 = vmatprep.subr.mxu0 0.0
  %v5570 = vand.u32 %v25, 4294901760
  %v5571 = vsub.f32 %v25, %v5570
  %v5572 = vand.u32 %v5571, 4294901760
  %v5573 = vsub.f32 %v5571, %v5572
  %v5574 = vand.u32 %v5573, 4294901760
  %5575 = vmatpush1.msra.mxu0 %v5574
  %5576 = vmatprep.subr.mxu0 0.0
  %v5577 = vand.u32 %v26, 4294901760
  %v5578 = vsub.f32 %v26, %v5577
  %v5579 = vand.u32 %v5578, 4294901760
  %v5580 = vsub.f32 %v5578, %v5579
  %v5581 = vand.u32 %v5580, 4294901760
  %5582 = vmatpush1.msra.mxu0 %v5581
  %5583 = vmatprep.subr.mxu0 0.0
  %v5584 = vand.u32 %v27, 4294901760
  %v5585 = vsub.f32 %v27, %v5584
  %v5586 = vand.u32 %v5585, 4294901760
  %v5587 = vsub.f32 %v5585, %v5586
  %v5588 = vand.u32 %v5587, 4294901760
  %5589 = vmatpush1.msra.mxu0 %v5588
  %5590 = vmatprep.subr.mxu0 0.0
  %v5591 = vand.u32 %v28, 4294901760
  %v5592 = vsub.f32 %v28, %v5591
  %v5593 = vand.u32 %v5592, 4294901760
  %v5594 = vsub.f32 %v5592, %v5593
  %v5595 = vand.u32 %v5594, 4294901760
  %5596 = vmatpush1.msra.mxu0 %v5595
  %5597 = vmatprep.subr.mxu0 0.0
  %5598 = vmatpush1.msra.mxu0 0.0
  %5599 = vmatprep.subr.mxu0 0.0
  %5600 = vmatpush1.msra.mxu0 0.0
  %5601 = vmatprep.subr.mxu0 0.0
  %5602 = vmatpush1.msra.mxu0 0.0
  %5603 = vmatprep.subr.mxu0 0.0
  %5604 = vmatpush1.msra.mxu0 0.0
  %5605 = vmatprep.subr.mxu0 0.0
  %5606 = vmatpush1.msra.mxu0 0.0
  %5607 = vmatprep.subr.mxu0 0.0
  %5608 = vmatpush1.msra.mxu0 0.0
  %5609 = vmatprep.subr.mxu0 0.0
  %5610 = vmatpush1.msra.mxu0 0.0
  %5611 = vmatprep.subr.mxu0 0.0
  %5612 = vmatpush1.msra.mxu0 0.0
  %5613 = vmatprep.subr.mxu0 0.0
  %5614 = vmatpush1.msra.mxu0 0.0
  %5615 = vmatprep.subr.mxu0 0.0
  %5616 = vmatpush1.msra.mxu0 0.0
  %5617 = vmatprep.subr.mxu0 0.0
  %5618 = vmatpush1.msra.mxu0 0.0
  %5619 = vmatprep.subr.mxu0 0.0
  %5620 = vmatpush1.msra.mxu0 0.0
  %5621 = vmatprep.subr.mxu0 0.0
  %5622 = vmatpush1.msra.mxu0 0.0
  %5623 = vmatprep.subr.mxu0 0.0
  %5624 = vmatpush1.msra.mxu0 0.0
  %5625 = vmatprep.subr.mxu0 0.0
  %5626 = vmatpush1.msra.mxu0 0.0
  %5627 = vmatprep.subr.mxu0 0.0
  %5628 = vmatpush1.msra.mxu0 0.0
  %5629 = vmatprep.mubr.f32.mxu0 0.0
  %v5630 = vand.u32 %v5392, 4294901760
  %5631 = vmatmul.mubr.f32.gmra.mrb[0].mxu0 %v5630
  %v5632 = vpop.f32.mrb[0].mxu0
  %v5633 = vadd.f32 %v5482, %v5632
  %v5634 = vpop.f32.mrb[0].mxu0
  %5635 = vdwg.mxu0
  %5636 = vmatprep.subr.mxu0 0.0
  %v5637 = vand.u32 %v13, 4294901760
  %v5638 = vsub.f32 %v13, %v5637
  %5639 = vmatpush1.msra.mxu0 %v5638
  %5640 = vmatprep.subr.mxu0 0.0
  %v5641 = vand.u32 %v14, 4294901760
  %v5642 = vsub.f32 %v14, %v5641
  %5643 = vmatpush1.msra.mxu0 %v5642
  %5644 = vmatprep.subr.mxu0 0.0
  %v5645 = vand.u32 %v15, 4294901760
  %v5646 = vsub.f32 %v15, %v5645
  %5647 = vmatpush1.msra.mxu0 %v5646
  %5648 = vmatprep.subr.mxu0 0.0
  %v5649 = vand.u32 %v16, 4294901760
  %v5650 = vsub.f32 %v16, %v5649
  %5651 = vmatpush1.msra.mxu0 %v5650
  %5652 = vmatprep.subr.mxu0 0.0
  %v5653 = vand.u32 %v17, 4294901760
  %v5654 = vsub.f32 %v17, %v5653
  %5655 = vmatpush1.msra.mxu0 %v5654
  %5656 = vmatprep.subr.mxu0 0.0
  %v5657 = vand.u32 %v18, 4294901760
  %v5658 = vsub.f32 %v18, %v5657
  %5659 = vmatpush1.msra.mxu0 %v5658
  %5660 = vmatprep.subr.mxu0 0.0
  %v5661 = vand.u32 %v19, 4294901760
  %v5662 = vsub.f32 %v19, %v5661
  %5663 = vmatpush1.msra.mxu0 %v5662
  %5664 = vmatprep.subr.mxu0 0.0
  %v5665 = vand.u32 %v20, 4294901760
  %v5666 = vsub.f32 %v20, %v5665
  %5667 = vmatpush1.msra.mxu0 %v5666
  %5668 = vmatprep.subr.mxu0 0.0
  %v5669 = vand.u32 %v21, 4294901760
  %v5670 = vsub.f32 %v21, %v5669
  %5671 = vmatpush1.msra.mxu0 %v5670
  %5672 = vmatprep.subr.mxu0 0.0
  %v5673 = vand.u32 %v22, 4294901760
  %v5674 = vsub.f32 %v22, %v5673
  %5675 = vmatpush1.msra.mxu0 %v5674
  %5676 = vmatprep.subr.mxu0 0.0
  %v5677 = vand.u32 %v23, 4294901760
  %v5678 = vsub.f32 %v23, %v5677
  %5679 = vmatpush1.msra.mxu0 %v5678
  %5680 = vmatprep.subr.mxu0 0.0
  %v5681 = vand.u32 %v24, 4294901760
  %v5682 = vsub.f32 %v24, %v5681
  %5683 = vmatpush1.msra.mxu0 %v5682
  %5684 = vmatprep.subr.mxu0 0.0
  %v5685 = vand.u32 %v25, 4294901760
  %v5686 = vsub.f32 %v25, %v5685
  %5687 = vmatpush1.msra.mxu0 %v5686
  %5688 = vmatprep.subr.mxu0 0.0
  %v5689 = vand.u32 %v26, 4294901760
  %v5690 = vsub.f32 %v26, %v5689
  %5691 = vmatpush1.msra.mxu0 %v5690
  %5692 = vmatprep.subr.mxu0 0.0
  %v5693 = vand.u32 %v27, 4294901760
  %v5694 = vsub.f32 %v27, %v5693
  %5695 = vmatpush1.msra.mxu0 %v5694
  %5696 = vmatprep.subr.mxu0 0.0
  %v5697 = vand.u32 %v28, 4294901760
  %v5698 = vsub.f32 %v28, %v5697
  %5699 = vmatpush1.msra.mxu0 %v5698
  %5700 = vmatprep.subr.mxu0 0.0
  %5701 = vmatpush1.msra.mxu0 0.0
  %5702 = vmatprep.subr.mxu0 0.0
  %5703 = vmatpush1.msra.mxu0 0.0
  %5704 = vmatprep.subr.mxu0 0.0
  %5705 = vmatpush1.msra.mxu0 0.0
  %5706 = vmatprep.subr.mxu0 0.0
  %5707 = vmatpush1.msra.mxu0 0.0
  %5708 = vmatprep.subr.mxu0 0.0
  %5709 = vmatpush1.msra.mxu0 0.0
  %5710 = vmatprep.subr.mxu0 0.0
  %5711 = vmatpush1.msra.mxu0 0.0
  %5712 = vmatprep.subr.mxu0 0.0
  %5713 = vmatpush1.msra.mxu0 0.0
  %5714 = vmatprep.subr.mxu0 0.0
  %5715 = vmatpush1.msra.mxu0 0.0
  %5716 = vmatprep.subr.mxu0 0.0
  %5717 = vmatpush1.msra.mxu0 0.0
  %5718 = vmatprep.subr.mxu0 0.0
  %5719 = vmatpush1.msra.mxu0 0.0
  %5720 = vmatprep.subr.mxu0 0.0
  %5721 = vmatpush1.msra.mxu0 0.0
  %5722 = vmatprep.subr.mxu0 0.0
  %5723 = vmatpush1.msra.mxu0 0.0
  %5724 = vmatprep.subr.mxu0 0.0
  %5725 = vmatpush1.msra.mxu0 0.0
  %5726 = vmatprep.subr.mxu0 0.0
  %5727 = vmatpush1.msra.mxu0 0.0
  %5728 = vmatprep.subr.mxu0 0.0
  %5729 = vmatpush1.msra.mxu0 0.0
  %5730 = vmatprep.subr.mxu0 0.0
  %5731 = vmatpush1.msra.mxu0 0.0
  %5732 = vmatprep.mubr.f32.mxu0 0.0
  %v5733 = vand.u32 %v5392, 4294901760
  %v5734 = vsub.f32 %v5392, %v5733
  %5735 = vmatmul.mubr.f32.gmra.mrb[0].mxu0 %v5734
  %v5736 = vpop.f32.mrb[0].mxu0
  %v5737 = vadd.f32 %v5633, %v5736
  %v5738 = vpop.f32.mrb[0].mxu0
  %5739 = vdwg.mxu0
  %5740 = vmatprep.subr.mxu0 0.0
  %v5741 = vand.u32 %v13, 4294901760
  %5742 = vmatpush1.msra.mxu0 %v5741
  %5743 = vmatprep.subr.mxu0 0.0
  %v5744 = vand.u32 %v14, 4294901760
  %5745 = vmatpush1.msra.mxu0 %v5744
  %5746 = vmatprep.subr.mxu0 0.0
  %v5747 = vand.u32 %v15, 4294901760
  %5748 = vmatpush1.msra.mxu0 %v5747
  %5749 = vmatprep.subr.mxu0 0.0
  %v5750 = vand.u32 %v16, 4294901760
  %5751 = vmatpush1.msra.mxu0 %v5750
  %5752 = vmatprep.subr.mxu0 0.0
  %v5753 = vand.u32 %v17, 4294901760
  %5754 = vmatpush1.msra.mxu0 %v5753
  %5755 = vmatprep.subr.mxu0 0.0
  %v5756 = vand.u32 %v18, 4294901760
  %5757 = vmatpush1.msra.mxu0 %v5756
  %5758 = vmatprep.subr.mxu0 0.0
  %v5759 = vand.u32 %v19, 4294901760
  %5760 = vmatpush1.msra.mxu0 %v5759
  %5761 = vmatprep.subr.mxu0 0.0
  %v5762 = vand.u32 %v20, 4294901760
  %5763 = vmatpush1.msra.mxu0 %v5762
  %5764 = vmatprep.subr.mxu0 0.0
  %v5765 = vand.u32 %v21, 4294901760
  %5766 = vmatpush1.msra.mxu0 %v5765
  %5767 = vmatprep.subr.mxu0 0.0
  %v5768 = vand.u32 %v22, 4294901760
  %5769 = vmatpush1.msra.mxu0 %v5768
  %5770 = vmatprep.subr.mxu0 0.0
  %v5771 = vand.u32 %v23, 4294901760
  %5772 = vmatpush1.msra.mxu0 %v5771
  %5773 = vmatprep.subr.mxu0 0.0
  %v5774 = vand.u32 %v24, 4294901760
  %5775 = vmatpush1.msra.mxu0 %v5774
  %5776 = vmatprep.subr.mxu0 0.0
  %v5777 = vand.u32 %v25, 4294901760
  %5778 = vmatpush1.msra.mxu0 %v5777
  %5779 = vmatprep.subr.mxu0 0.0
  %v5780 = vand.u32 %v26, 4294901760
  %5781 = vmatpush1.msra.mxu0 %v5780
  %5782 = vmatprep.subr.mxu0 0.0
  %v5783 = vand.u32 %v27, 4294901760
  %5784 = vmatpush1.msra.mxu0 %v5783
  %5785 = vmatprep.subr.mxu0 0.0
  %v5786 = vand.u32 %v28, 4294901760
  %5787 = vmatpush1.msra.mxu0 %v5786
  %5788 = vmatprep.subr.mxu0 0.0
  %5789 = vmatpush1.msra.mxu0 0.0
  %5790 = vmatprep.subr.mxu0 0.0
  %5791 = vmatpush1.msra.mxu0 0.0
  %5792 = vmatprep.subr.mxu0 0.0
  %5793 = vmatpush1.msra.mxu0 0.0
  %5794 = vmatprep.subr.mxu0 0.0
  %5795 = vmatpush1.msra.mxu0 0.0
  %5796 = vmatprep.subr.mxu0 0.0
  %5797 = vmatpush1.msra.mxu0 0.0
  %5798 = vmatprep.subr.mxu0 0.0
  %5799 = vmatpush1.msra.mxu0 0.0
  %5800 = vmatprep.subr.mxu0 0.0
  %5801 = vmatpush1.msra.mxu0 0.0
  %5802 = vmatprep.subr.mxu0 0.0
  %5803 = vmatpush1.msra.mxu0 0.0
  %5804 = vmatprep.subr.mxu0 0.0
  %5805 = vmatpush1.msra.mxu0 0.0
  %5806 = vmatprep.subr.mxu0 0.0
  %5807 = vmatpush1.msra.mxu0 0.0
  %5808 = vmatprep.subr.mxu0 0.0
  %5809 = vmatpush1.msra.mxu0 0.0
  %5810 = vmatprep.subr.mxu0 0.0
  %5811 = vmatpush1.msra.mxu0 0.0
  %5812 = vmatprep.subr.mxu0 0.0
  %5813 = vmatpush1.msra.mxu0 0.0
  %5814 = vmatprep.subr.mxu0 0.0
  %5815 = vmatpush1.msra.mxu0 0.0
  %5816 = vmatprep.subr.mxu0 0.0
  %5817 = vmatpush1.msra.mxu0 0.0
  %5818 = vmatprep.subr.mxu0 0.0
  %5819 = vmatpush1.msra.mxu0 0.0
  %5820 = vmatprep.mubr.f32.mxu0 0.0
  %v5821 = vand.u32 %v5392, 4294901760
  %v5822 = vsub.f32 %v5392, %v5821
  %v5823 = vand.u32 %v5822, 4294901760
  %5824 = vmatmul.mubr.f32.gmra.mrb[0].mxu0 %v5823
  %v5825 = vpop.f32.mrb[0].mxu0
  %v5826 = vadd.f32 %v5737, %v5825
  %v5827 = vpop.f32.mrb[0].mxu0
  %5828 = vdwg.mxu0
  %5829 = vmatprep.subr.mxu0 0.0
  %v5830 = vand.u32 %v13, 4294901760
  %v5831 = vsub.f32 %v13, %v5830
  %v5832 = vand.u32 %v5831, 4294901760
  %5833 = vmatpush1.msra.mxu0 %v5832
  %5834 = vmatprep.subr.mxu0 0.0
  %v5835 = vand.u32 %v14, 4294901760
  %v5836 = vsub.f32 %v14, %v5835
  %v5837 = vand.u32 %v5836, 4294901760
  %5838 = vmatpush1.msra.mxu0 %v5837
  %5839 = vmatprep.subr.mxu0 0.0
  %v5840 = vand.u32 %v15, 4294901760
  %v5841 = vsub.f32 %v15, %v5840
  %v5842 = vand.u32 %v5841, 4294901760
  %5843 = vmatpush1.msra.mxu0 %v5842
  %5844 = vmatprep.subr.mxu0 0.0
  %v5845 = vand.u32 %v16, 4294901760
  %v5846 = vsub.f32 %v16, %v5845
  %v5847 = vand.u32 %v5846, 4294901760
  %5848 = vmatpush1.msra.mxu0 %v5847
  %5849 = vmatprep.subr.mxu0 0.0
  %v5850 = vand.u32 %v17, 4294901760
  %v5851 = vsub.f32 %v17, %v5850
  %v5852 = vand.u32 %v5851, 4294901760
  %5853 = vmatpush1.msra.mxu0 %v5852
  %5854 = vmatprep.subr.mxu0 0.0
  %v5855 = vand.u32 %v18, 4294901760
  %v5856 = vsub.f32 %v18, %v5855
  %v5857 = vand.u32 %v5856, 4294901760
  %5858 = vmatpush1.msra.mxu0 %v5857
  %5859 = vmatprep.subr.mxu0 0.0
  %v5860 = vand.u32 %v19, 4294901760
  %v5861 = vsub.f32 %v19, %v5860
  %v5862 = vand.u32 %v5861, 4294901760
  %5863 = vmatpush1.msra.mxu0 %v5862
  %5864 = vmatprep.subr.mxu0 0.0
  %v5865 = vand.u32 %v20, 4294901760
  %v5866 = vsub.f32 %v20, %v5865
  %v5867 = vand.u32 %v5866, 4294901760
  %5868 = vmatpush1.msra.mxu0 %v5867
  %5869 = vmatprep.subr.mxu0 0.0
  %v5870 = vand.u32 %v21, 4294901760
  %v5871 = vsub.f32 %v21, %v5870
  %v5872 = vand.u32 %v5871, 4294901760
  %5873 = vmatpush1.msra.mxu0 %v5872
  %5874 = vmatprep.subr.mxu0 0.0
  %v5875 = vand.u32 %v22, 4294901760
  %v5876 = vsub.f32 %v22, %v5875
  %v5877 = vand.u32 %v5876, 4294901760
  %5878 = vmatpush1.msra.mxu0 %v5877
  %5879 = vmatprep.subr.mxu0 0.0
  %v5880 = vand.u32 %v23, 4294901760
  %v5881 = vsub.f32 %v23, %v5880
  %v5882 = vand.u32 %v5881, 4294901760
  %5883 = vmatpush1.msra.mxu0 %v5882
  %5884 = vmatprep.subr.mxu0 0.0
  %v5885 = vand.u32 %v24, 4294901760
  %v5886 = vsub.f32 %v24, %v5885
  %v5887 = vand.u32 %v5886, 4294901760
  %5888 = vmatpush1.msra.mxu0 %v5887
  %5889 = vmatprep.subr.mxu0 0.0
  %v5890 = vand.u32 %v25, 4294901760
  %v5891 = vsub.f32 %v25, %v5890
  %v5892 = vand.u32 %v5891, 4294901760
  %5893 = vmatpush1.msra.mxu0 %v5892
  %5894 = vmatprep.subr.mxu0 0.0
  %v5895 = vand.u32 %v26, 4294901760
  %v5896 = vsub.f32 %v26, %v5895
  %v5897 = vand.u32 %v5896, 4294901760
  %5898 = vmatpush1.msra.mxu0 %v5897
  %5899 = vmatprep.subr.mxu0 0.0
  %v5900 = vand.u32 %v27, 4294901760
  %v5901 = vsub.f32 %v27, %v5900
  %v5902 = vand.u32 %v5901, 4294901760
  %5903 = vmatpush1.msra.mxu0 %v5902
  %5904 = vmatprep.subr.mxu0 0.0
  %v5905 = vand.u32 %v28, 4294901760
  %v5906 = vsub.f32 %v28, %v5905
  %v5907 = vand.u32 %v5906, 4294901760
  %5908 = vmatpush1.msra.mxu0 %v5907
  %5909 = vmatprep.subr.mxu0 0.0
  %5910 = vmatpush1.msra.mxu0 0.0
  %5911 = vmatprep.subr.mxu0 0.0
  %5912 = vmatpush1.msra.mxu0 0.0
  %5913 = vmatprep.subr.mxu0 0.0
  %5914 = vmatpush1.msra.mxu0 0.0
  %5915 = vmatprep.subr.mxu0 0.0
  %5916 = vmatpush1.msra.mxu0 0.0
  %5917 = vmatprep.subr.mxu0 0.0
  %5918 = vmatpush1.msra.mxu0 0.0
  %5919 = vmatprep.subr.mxu0 0.0
  %5920 = vmatpush1.msra.mxu0 0.0
  %5921 = vmatprep.subr.mxu0 0.0
  %5922 = vmatpush1.msra.mxu0 0.0
  %5923 = vmatprep.subr.mxu0 0.0
  %5924 = vmatpush1.msra.mxu0 0.0
  %5925 = vmatprep.subr.mxu0 0.0
  %5926 = vmatpush1.msra.mxu0 0.0
  %5927 = vmatprep.subr.mxu0 0.0
  %5928 = vmatpush1.msra.mxu0 0.0
  %5929 = vmatprep.subr.mxu0 0.0
  %5930 = vmatpush1.msra.mxu0 0.0
  %5931 = vmatprep.subr.mxu0 0.0
  %5932 = vmatpush1.msra.mxu0 0.0
  %5933 = vmatprep.subr.mxu0 0.0
  %5934 = vmatpush1.msra.mxu0 0.0
  %5935 = vmatprep.subr.mxu0 0.0
  %5936 = vmatpush1.msra.mxu0 0.0
  %5937 = vmatprep.subr.mxu0 0.0
  %5938 = vmatpush1.msra.mxu0 0.0
  %5939 = vmatprep.subr.mxu0 0.0
  %5940 = vmatpush1.msra.mxu0 0.0
  %5941 = vmatprep.mubr.f32.mxu0 0.0
  %v5942 = vand.u32 %v5392, 4294901760
  %5943 = vmatmul.mubr.f32.gmra.mrb[0].mxu0 %v5942
  %v5944 = vpop.f32.mrb[0].mxu0
  %v5945 = vadd.f32 %v5826, %v5944
  %v5946 = vpop.f32.mrb[0].mxu0
  %5947 = vdwg.mxu0
  %5948 = vmatprep.subr.mxu0 0.0
  %v5949 = vand.u32 %v13, 4294901760
  %5950 = vmatpush1.msra.mxu0 %v5949
  %5951 = vmatprep.subr.mxu0 0.0
  %v5952 = vand.u32 %v14, 4294901760
  %5953 = vmatpush1.msra.mxu0 %v5952
  %5954 = vmatprep.subr.mxu0 0.0
  %v5955 = vand.u32 %v15, 4294901760
  %5956 = vmatpush1.msra.mxu0 %v5955
  %5957 = vmatprep.subr.mxu0 0.0
  %v5958 = vand.u32 %v16, 4294901760
  %5959 = vmatpush1.msra.mxu0 %v5958
  %5960 = vmatprep.subr.mxu0 0.0
  %v5961 = vand.u32 %v17, 4294901760
  %5962 = vmatpush1.msra.mxu0 %v5961
  %5963 = vmatprep.subr.mxu0 0.0
  %v5964 = vand.u32 %v18, 4294901760
  %5965 = vmatpush1.msra.mxu0 %v5964
  %5966 = vmatprep.subr.mxu0 0.0
  %v5967 = vand.u32 %v19, 4294901760
  %5968 = vmatpush1.msra.mxu0 %v5967
  %5969 = vmatprep.subr.mxu0 0.0
  %v5970 = vand.u32 %v20, 4294901760
  %5971 = vmatpush1.msra.mxu0 %v5970
  %5972 = vmatprep.subr.mxu0 0.0
  %v5973 = vand.u32 %v21, 4294901760
  %5974 = vmatpush1.msra.mxu0 %v5973
  %5975 = vmatprep.subr.mxu0 0.0
  %v5976 = vand.u32 %v22, 4294901760
  %5977 = vmatpush1.msra.mxu0 %v5976
  %5978 = vmatprep.subr.mxu0 0.0
  %v5979 = vand.u32 %v23, 4294901760
  %5980 = vmatpush1.msra.mxu0 %v5979
  %5981 = vmatprep.subr.mxu0 0.0
  %v5982 = vand.u32 %v24, 4294901760
  %5983 = vmatpush1.msra.mxu0 %v5982
  %5984 = vmatprep.subr.mxu0 0.0
  %v5985 = vand.u32 %v25, 4294901760
  %5986 = vmatpush1.msra.mxu0 %v5985
  %5987 = vmatprep.subr.mxu0 0.0
  %v5988 = vand.u32 %v26, 4294901760
  %5989 = vmatpush1.msra.mxu0 %v5988
  %5990 = vmatprep.subr.mxu0 0.0
  %v5991 = vand.u32 %v27, 4294901760
  %5992 = vmatpush1.msra.mxu0 %v5991
  %5993 = vmatprep.subr.mxu0 0.0
  %v5994 = vand.u32 %v28, 4294901760
  %5995 = vmatpush1.msra.mxu0 %v5994
  %5996 = vmatprep.subr.mxu0 0.0
  %5997 = vmatpush1.msra.mxu0 0.0
  %5998 = vmatprep.subr.mxu0 0.0
  %5999 = vmatpush1.msra.mxu0 0.0
  %6000 = vmatprep.subr.mxu0 0.0
  %6001 = vmatpush1.msra.mxu0 0.0
  %6002 = vmatprep.subr.mxu0 0.0
  %6003 = vmatpush1.msra.mxu0 0.0
  %6004 = vmatprep.subr.mxu0 0.0
  %6005 = vmatpush1.msra.mxu0 0.0
  %6006 = vmatprep.subr.mxu0 0.0
  %6007 = vmatpush1.msra.mxu0 0.0
  %6008 = vmatprep.subr.mxu0 0.0
  %6009 = vmatpush1.msra.mxu0 0.0
  %6010 = vmatprep.subr.mxu0 0.0
  %6011 = vmatpush1.msra.mxu0 0.0
  %6012 = vmatprep.subr.mxu0 0.0
  %6013 = vmatpush1.msra.mxu0 0.0
  %6014 = vmatprep.subr.mxu0 0.0
  %6015 = vmatpush1.msra.mxu0 0.0
  %6016 = vmatprep.subr.mxu0 0.0
  %6017 = vmatpush1.msra.mxu0 0.0
  %6018 = vmatprep.subr.mxu0 0.0
  %6019 = vmatpush1.msra.mxu0 0.0
  %6020 = vmatprep.subr.mxu0 0.0
  %6021 = vmatpush1.msra.mxu0 0.0
  %6022 = vmatprep.subr.mxu0 0.0
  %6023 = vmatpush1.msra.mxu0 0.0
  %6024 = vmatprep.subr.mxu0 0.0
  %6025 = vmatpush1.msra.mxu0 0.0
  %6026 = vmatprep.subr.mxu0 0.0
  %6027 = vmatpush1.msra.mxu0 0.0
  %6028 = vmatprep.mubr.f32.mxu0 0.0
  %v6029 = vand.u32 %v5392, 4294901760
  %6030 = vmatmul.mubr.f32.gmra.mrb[0].mxu0 %v6029
  %v6031 = vpop.f32.mrb[0].mxu0
  %v6032 = vadd.f32 %v5945, %v6031
  %v6033 = vpop.f32.mrb[0].mxu0
  %6034 = vdwg.mxu0
  %vm6035 = vcmp.gt.f32.partialorder %v5393, 1.0
  %v6036 = vsel %vm6035, 1.0, 0.0
  %v6037 = vmul.f32 %v5386, 0.9
  %v6038 = vadd.f32 %v6037, %v835
  %v6039 = vadd.f32 %v6038, %v6032
  %v6040 = vmul.f32 %v5393, 0.9
  %v6041 = vadd.f32 %v6040, %v6039
  %v6042 = vsub.f32 %v6041, %v6036
  %vm6043 = vcmp.gt.f32.partialorder %v6042, 1.0
  %v6044 = vsel %vm6043, 1, 0
  %v6045 = vcvt.s32.f32 %v6044
  %6046 = vmatprep.subr.mxu0 0.0
  %v6047 = vand.u32 %v29, 4294901760
  %6048 = vmatpush1.msra.mxu0 %v6047
  %6049 = vmatprep.subr.mxu0 0.0
  %v6050 = vand.u32 %v30, 4294901760
  %6051 = vmatpush1.msra.mxu0 %v6050
  %6052 = vmatprep.subr.mxu0 0.0
  %v6053 = vand.u32 %v31, 4294901760
  %6054 = vmatpush1.msra.mxu0 %v6053
  %6055 = vmatprep.subr.mxu0 0.0
  %v6056 = vand.u32 %v32, 4294901760
  %6057 = vmatpush1.msra.mxu0 %v6056
  %6058 = vmatprep.subr.mxu0 0.0
  %v6059 = vand.u32 %v33, 4294901760
  %6060 = vmatpush1.msra.mxu0 %v6059
  %6061 = vmatprep.subr.mxu0 0.0
  %v6062 = vand.u32 %v34, 4294901760
  %6063 = vmatpush1.msra.mxu0 %v6062
  %6064 = vmatprep.subr.mxu0 0.0
  %v6065 = vand.u32 %v35, 4294901760
  %6066 = vmatpush1.msra.mxu0 %v6065
  %6067 = vmatprep.subr.mxu0 0.0
  %v6068 = vand.u32 %v36, 4294901760
  %6069 = vmatpush1.msra.mxu0 %v6068
  %6070 = vmatprep.subr.mxu0 0.0
  %v6071 = vand.u32 %v37, 4294901760
  %6072 = vmatpush1.msra.mxu0 %v6071
  %6073 = vmatprep.subr.mxu0 0.0
  %v6074 = vand.u32 %v38, 4294901760
  %6075 = vmatpush1.msra.mxu0 %v6074
  %6076 = vmatprep.subr.mxu0 0.0
  %v6077 = vand.u32 %v39, 4294901760
  %6078 = vmatpush1.msra.mxu0 %v6077
  %6079 = vmatprep.subr.mxu0 0.0
  %v6080 = vand.u32 %v40, 4294901760
  %6081 = vmatpush1.msra.mxu0 %v6080
  %6082 = vmatprep.subr.mxu0 0.0
  %v6083 = vand.u32 %v41, 4294901760
  %6084 = vmatpush1.msra.mxu0 %v6083
  %6085 = vmatprep.subr.mxu0 0.0
  %v6086 = vand.u32 %v42, 4294901760
  %6087 = vmatpush1.msra.mxu0 %v6086
  %6088 = vmatprep.subr.mxu0 0.0
  %v6089 = vand.u32 %v43, 4294901760
  %6090 = vmatpush1.msra.mxu0 %v6089
  %6091 = vmatprep.subr.mxu0 0.0
  %v6092 = vand.u32 %v44, 4294901760
  %6093 = vmatpush1.msra.mxu0 %v6092
  %6094 = vmatprep.subr.mxu0 0.0
  %6095 = vmatpush1.msra.mxu0 0.0
  %6096 = vmatprep.subr.mxu0 0.0
  %6097 = vmatpush1.msra.mxu0 0.0
  %6098 = vmatprep.subr.mxu0 0.0
  %6099 = vmatpush1.msra.mxu0 0.0
  %6100 = vmatprep.subr.mxu0 0.0
  %6101 = vmatpush1.msra.mxu0 0.0
  %6102 = vmatprep.subr.mxu0 0.0
  %6103 = vmatpush1.msra.mxu0 0.0
  %6104 = vmatprep.subr.mxu0 0.0
  %6105 = vmatpush1.msra.mxu0 0.0
  %6106 = vmatprep.subr.mxu0 0.0
  %6107 = vmatpush1.msra.mxu0 0.0
  %6108 = vmatprep.subr.mxu0 0.0
  %6109 = vmatpush1.msra.mxu0 0.0
  %6110 = vmatprep.subr.mxu0 0.0
  %6111 = vmatpush1.msra.mxu0 0.0
  %6112 = vmatprep.subr.mxu0 0.0
  %6113 = vmatpush1.msra.mxu0 0.0
  %6114 = vmatprep.subr.mxu0 0.0
  %6115 = vmatpush1.msra.mxu0 0.0
  %6116 = vmatprep.subr.mxu0 0.0
  %6117 = vmatpush1.msra.mxu0 0.0
  %6118 = vmatprep.subr.mxu0 0.0
  %6119 = vmatpush1.msra.mxu0 0.0
  %6120 = vmatprep.subr.mxu0 0.0
  %6121 = vmatpush1.msra.mxu0 0.0
  %6122 = vmatprep.subr.mxu0 0.0
  %6123 = vmatpush1.msra.mxu0 0.0
  %6124 = vmatprep.subr.mxu0 0.0
  %6125 = vmatpush1.msra.mxu0 0.0
  %6126 = vmatprep.mubr.f32.mxu0 0.0
  %v6127 = vand.u32 %v1474, 4294901760
  %v6128 = vsub.f32 %v1474, %v6127
  %v6129 = vand.u32 %v6128, 4294901760
  %v6130 = vsub.f32 %v6128, %v6129
  %v6131 = vand.u32 %v6130, 4294901760
  %6132 = vmatmul.mubr.f32.gmra.mrb[0].mxu0 %v6131
  %v6133 = vpop.f32.mrb[0].mxu0
  %v6134 = vadd.f32 0.0, %v6133
  %v6135 = vpop.f32.mrb[0].mxu0
  %6136 = vmatprep.mubr.f32.mxu0 0.0
  %v6137 = vand.u32 %v2127, 4294901760
  %v6138 = vsub.f32 %v2127, %v6137
  %v6139 = vand.u32 %v6138, 4294901760
  %v6140 = vsub.f32 %v6138, %v6139
  %v6141 = vand.u32 %v6140, 4294901760
  %6142 = vmatmul.mubr.f32.gmra.mrb[0].mxu0 %v6141
  %v6143 = vpop.f32.mrb[0].mxu0
  %v6144 = vadd.f32 0.0, %v6143
  %v6145 = vpop.f32.mrb[0].mxu0
  %6146 = vmatprep.mubr.f32.mxu0 0.0
  %v6147 = vand.u32 %v2780, 4294901760
  %v6148 = vsub.f32 %v2780, %v6147
  %v6149 = vand.u32 %v6148, 4294901760
  %v6150 = vsub.f32 %v6148, %v6149
  %v6151 = vand.u32 %v6150, 4294901760
  %6152 = vmatmul.mubr.f32.gmra.mrb[0].mxu0 %v6151
  %v6153 = vpop.f32.mrb[0].mxu0
  %v6154 = vadd.f32 0.0, %v6153
  %v6155 = vpop.f32.mrb[0].mxu0
  %6156 = vmatprep.mubr.f32.mxu0 0.0
  %v6157 = vand.u32 %v3433, 4294901760
  %v6158 = vsub.f32 %v3433, %v6157
  %v6159 = vand.u32 %v6158, 4294901760
  %v6160 = vsub.f32 %v6158, %v6159
  %v6161 = vand.u32 %v6160, 4294901760
  %6162 = vmatmul.mubr.f32.gmra.mrb[0].mxu0 %v6161
  %v6163 = vpop.f32.mrb[0].mxu0
  %v6164 = vadd.f32 0.0, %v6163
  %v6165 = vpop.f32.mrb[0].mxu0
  %6166 = vmatprep.mubr.f32.mxu0 0.0
  %v6167 = vand.u32 %v4086, 4294901760
  %v6168 = vsub.f32 %v4086, %v6167
  %v6169 = vand.u32 %v6168, 4294901760
  %v6170 = vsub.f32 %v6168, %v6169
  %v6171 = vand.u32 %v6170, 4294901760
  %6172 = vmatmul.mubr.f32.gmra.mrb[0].mxu0 %v6171
  %v6173 = vpop.f32.mrb[0].mxu0
  %v6174 = vadd.f32 0.0, %v6173
  %v6175 = vpop.f32.mrb[0].mxu0
  %6176 = vmatprep.mubr.f32.mxu0 0.0
  %v6177 = vand.u32 %v4739, 4294901760
  %v6178 = vsub.f32 %v4739, %v6177
  %v6179 = vand.u32 %v6178, 4294901760
  %v6180 = vsub.f32 %v6178, %v6179
  %v6181 = vand.u32 %v6180, 4294901760
  %6182 = vmatmul.mubr.f32.gmra.mrb[0].mxu0 %v6181
  %v6183 = vpop.f32.mrb[0].mxu0
  %v6184 = vadd.f32 0.0, %v6183
  %v6185 = vpop.f32.mrb[0].mxu0
  %6186 = vmatprep.mubr.f32.mxu0 0.0
  %v6187 = vand.u32 %v5392, 4294901760
  %v6188 = vsub.f32 %v5392, %v6187
  %v6189 = vand.u32 %v6188, 4294901760
  %v6190 = vsub.f32 %v6188, %v6189
  %v6191 = vand.u32 %v6190, 4294901760
  %6192 = vmatmul.mubr.f32.gmra.mrb[0].mxu0 %v6191
  %v6193 = vpop.f32.mrb[0].mxu0
  %v6194 = vadd.f32 0.0, %v6193
  %v6195 = vpop.f32.mrb[0].mxu0
  %6196 = vmatprep.mubr.f32.mxu0 0.0
  %v6197 = vand.u32 %v6045, 4294901760
  %v6198 = vsub.f32 %v6045, %v6197
  %v6199 = vand.u32 %v6198, 4294901760
  %v6200 = vsub.f32 %v6198, %v6199
  %v6201 = vand.u32 %v6200, 4294901760
  %6202 = vmatmul.mubr.f32.gmra.mrb[0].mxu0 %v6201
  %v6203 = vpop.f32.mrb[0].mxu0
  %v6204 = vadd.f32 0.0, %v6203
  %v6205 = vpop.f32.mrb[0].mxu0
  %6206 = vdwg.mxu0
  %6207 = vmatprep.subr.mxu0 0.0
  %v6208 = vand.u32 %v29, 4294901760
  %v6209 = vsub.f32 %v29, %v6208
  %v6210 = vand.u32 %v6209, 4294901760
  %v6211 = vsub.f32 %v6209, %v6210
  %v6212 = vand.u32 %v6211, 4294901760
  %6213 = vmatpush1.msra.mxu0 %v6212
  %6214 = vmatprep.subr.mxu0 0.0
  %v6215 = vand.u32 %v30, 4294901760
  %v6216 = vsub.f32 %v30, %v6215
  %v6217 = vand.u32 %v6216, 4294901760
  %v6218 = vsub.f32 %v6216, %v6217
  %v6219 = vand.u32 %v6218, 4294901760
  %6220 = vmatpush1.msra.mxu0 %v6219
  %6221 = vmatprep.subr.mxu0 0.0
  %v6222 = vand.u32 %v31, 4294901760
  %v6223 = vsub.f32 %v31, %v6222
  %v6224 = vand.u32 %v6223, 4294901760
  %v6225 = vsub.f32 %v6223, %v6224
  %v6226 = vand.u32 %v6225, 4294901760
  %6227 = vmatpush1.msra.mxu0 %v6226
  %6228 = vmatprep.subr.mxu0 0.0
  %v6229 = vand.u32 %v32, 4294901760
  %v6230 = vsub.f32 %v32, %v6229
  %v6231 = vand.u32 %v6230, 4294901760
  %v6232 = vsub.f32 %v6230, %v6231
  %v6233 = vand.u32 %v6232, 4294901760
  %6234 = vmatpush1.msra.mxu0 %v6233
  %6235 = vmatprep.subr.mxu0 0.0
  %v6236 = vand.u32 %v33, 4294901760
  %v6237 = vsub.f32 %v33, %v6236
  %v6238 = vand.u32 %v6237, 4294901760
  %v6239 = vsub.f32 %v6237, %v6238
  %v6240 = vand.u32 %v6239, 4294901760
  %6241 = vmatpush1.msra.mxu0 %v6240
  %6242 = vmatprep.subr.mxu0 0.0
  %v6243 = vand.u32 %v34, 4294901760
  %v6244 = vsub.f32 %v34, %v6243
  %v6245 = vand.u32 %v6244, 4294901760
  %v6246 = vsub.f32 %v6244, %v6245
  %v6247 = vand.u32 %v6246, 4294901760
  %6248 = vmatpush1.msra.mxu0 %v6247
  %6249 = vmatprep.subr.mxu0 0.0
  %v6250 = vand.u32 %v35, 4294901760
  %v6251 = vsub.f32 %v35, %v6250
  %v6252 = vand.u32 %v6251, 4294901760
  %v6253 = vsub.f32 %v6251, %v6252
  %v6254 = vand.u32 %v6253, 4294901760
  %6255 = vmatpush1.msra.mxu0 %v6254
  %6256 = vmatprep.subr.mxu0 0.0
  %v6257 = vand.u32 %v36, 4294901760
  %v6258 = vsub.f32 %v36, %v6257
  %v6259 = vand.u32 %v6258, 4294901760
  %v6260 = vsub.f32 %v6258, %v6259
  %v6261 = vand.u32 %v6260, 4294901760
  %6262 = vmatpush1.msra.mxu0 %v6261
  %6263 = vmatprep.subr.mxu0 0.0
  %v6264 = vand.u32 %v37, 4294901760
  %v6265 = vsub.f32 %v37, %v6264
  %v6266 = vand.u32 %v6265, 4294901760
  %v6267 = vsub.f32 %v6265, %v6266
  %v6268 = vand.u32 %v6267, 4294901760
  %6269 = vmatpush1.msra.mxu0 %v6268
  %6270 = vmatprep.subr.mxu0 0.0
  %v6271 = vand.u32 %v38, 4294901760
  %v6272 = vsub.f32 %v38, %v6271
  %v6273 = vand.u32 %v6272, 4294901760
  %v6274 = vsub.f32 %v6272, %v6273
  %v6275 = vand.u32 %v6274, 4294901760
  %6276 = vmatpush1.msra.mxu0 %v6275
  %6277 = vmatprep.subr.mxu0 0.0
  %v6278 = vand.u32 %v39, 4294901760
  %v6279 = vsub.f32 %v39, %v6278
  %v6280 = vand.u32 %v6279, 4294901760
  %v6281 = vsub.f32 %v6279, %v6280
  %v6282 = vand.u32 %v6281, 4294901760
  %6283 = vmatpush1.msra.mxu0 %v6282
  %6284 = vmatprep.subr.mxu0 0.0
  %v6285 = vand.u32 %v40, 4294901760
  %v6286 = vsub.f32 %v40, %v6285
  %v6287 = vand.u32 %v6286, 4294901760
  %v6288 = vsub.f32 %v6286, %v6287
  %v6289 = vand.u32 %v6288, 4294901760
  %6290 = vmatpush1.msra.mxu0 %v6289
  %6291 = vmatprep.subr.mxu0 0.0
  %v6292 = vand.u32 %v41, 4294901760
  %v6293 = vsub.f32 %v41, %v6292
  %v6294 = vand.u32 %v6293, 4294901760
  %v6295 = vsub.f32 %v6293, %v6294
  %v6296 = vand.u32 %v6295, 4294901760
  %6297 = vmatpush1.msra.mxu0 %v6296
  %6298 = vmatprep.subr.mxu0 0.0
  %v6299 = vand.u32 %v42, 4294901760
  %v6300 = vsub.f32 %v42, %v6299
  %v6301 = vand.u32 %v6300, 4294901760
  %v6302 = vsub.f32 %v6300, %v6301
  %v6303 = vand.u32 %v6302, 4294901760
  %6304 = vmatpush1.msra.mxu0 %v6303
  %6305 = vmatprep.subr.mxu0 0.0
  %v6306 = vand.u32 %v43, 4294901760
  %v6307 = vsub.f32 %v43, %v6306
  %v6308 = vand.u32 %v6307, 4294901760
  %v6309 = vsub.f32 %v6307, %v6308
  %v6310 = vand.u32 %v6309, 4294901760
  %6311 = vmatpush1.msra.mxu0 %v6310
  %6312 = vmatprep.subr.mxu0 0.0
  %v6313 = vand.u32 %v44, 4294901760
  %v6314 = vsub.f32 %v44, %v6313
  %v6315 = vand.u32 %v6314, 4294901760
  %v6316 = vsub.f32 %v6314, %v6315
  %v6317 = vand.u32 %v6316, 4294901760
  %6318 = vmatpush1.msra.mxu0 %v6317
  %6319 = vmatprep.subr.mxu0 0.0
  %6320 = vmatpush1.msra.mxu0 0.0
  %6321 = vmatprep.subr.mxu0 0.0
  %6322 = vmatpush1.msra.mxu0 0.0
  %6323 = vmatprep.subr.mxu0 0.0
  %6324 = vmatpush1.msra.mxu0 0.0
  %6325 = vmatprep.subr.mxu0 0.0
  %6326 = vmatpush1.msra.mxu0 0.0
  %6327 = vmatprep.subr.mxu0 0.0
  %6328 = vmatpush1.msra.mxu0 0.0
  %6329 = vmatprep.subr.mxu0 0.0
  %6330 = vmatpush1.msra.mxu0 0.0
  %6331 = vmatprep.subr.mxu0 0.0
  %6332 = vmatpush1.msra.mxu0 0.0
  %6333 = vmatprep.subr.mxu0 0.0
  %6334 = vmatpush1.msra.mxu0 0.0
  %6335 = vmatprep.subr.mxu0 0.0
  %6336 = vmatpush1.msra.mxu0 0.0
  %6337 = vmatprep.subr.mxu0 0.0
  %6338 = vmatpush1.msra.mxu0 0.0
  %6339 = vmatprep.subr.mxu0 0.0
  %6340 = vmatpush1.msra.mxu0 0.0
  %6341 = vmatprep.subr.mxu0 0.0
  %6342 = vmatpush1.msra.mxu0 0.0
  %6343 = vmatprep.subr.mxu0 0.0
  %6344 = vmatpush1.msra.mxu0 0.0
  %6345 = vmatprep.subr.mxu0 0.0
  %6346 = vmatpush1.msra.mxu0 0.0
  %6347 = vmatprep.subr.mxu0 0.0
  %6348 = vmatpush1.msra.mxu0 0.0
  %6349 = vmatprep.subr.mxu0 0.0
  %6350 = vmatpush1.msra.mxu0 0.0
  %6351 = vmatprep.mubr.f32.mxu0 0.0
  %v6352 = vand.u32 %v1474, 4294901760
  %6353 = vmatmul.mubr.f32.gmra.mrb[0].mxu0 %v6352
  %v6354 = vpop.f32.mrb[0].mxu0
  %v6355 = vadd.f32 %v6134, %v6354
  %v6356 = vpop.f32.mrb[0].mxu0
  %6357 = vmatprep.mubr.f32.mxu0 0.0
  %v6358 = vand.u32 %v2127, 4294901760
  %6359 = vmatmul.mubr.f32.gmra.mrb[0].mxu0 %v6358
  %v6360 = vpop.f32.mrb[0].mxu0
  %v6361 = vadd.f32 %v6144, %v6360
  %v6362 = vpop.f32.mrb[0].mxu0
  %6363 = vmatprep.mubr.f32.mxu0 0.0
  %v6364 = vand.u32 %v2780, 4294901760
  %6365 = vmatmul.mubr.f32.gmra.mrb[0].mxu0 %v6364
  %v6366 = vpop.f32.mrb[0].mxu0
  %v6367 = vadd.f32 %v6154, %v6366
  %v6368 = vpop.f32.mrb[0].mxu0
  %6369 = vmatprep.mubr.f32.mxu0 0.0
  %v6370 = vand.u32 %v3433, 4294901760
  %6371 = vmatmul.mubr.f32.gmra.mrb[0].mxu0 %v6370
  %v6372 = vpop.f32.mrb[0].mxu0
  %v6373 = vadd.f32 %v6164, %v6372
  %v6374 = vpop.f32.mrb[0].mxu0
  %6375 = vmatprep.mubr.f32.mxu0 0.0
  %v6376 = vand.u32 %v4086, 4294901760
  %6377 = vmatmul.mubr.f32.gmra.mrb[0].mxu0 %v6376
  %v6378 = vpop.f32.mrb[0].mxu0
  %v6379 = vadd.f32 %v6174, %v6378
  %v6380 = vpop.f32.mrb[0].mxu0
  %6381 = vmatprep.mubr.f32.mxu0 0.0
  %v6382 = vand.u32 %v4739, 4294901760
  %6383 = vmatmul.mubr.f32.gmra.mrb[0].mxu0 %v6382
  %v6384 = vpop.f32.mrb[0].mxu0
  %v6385 = vadd.f32 %v6184, %v6384
  %v6386 = vpop.f32.mrb[0].mxu0
  %6387 = vmatprep.mubr.f32.mxu0 0.0
  %v6388 = vand.u32 %v5392, 4294901760
  %6389 = vmatmul.mubr.f32.gmra.mrb[0].mxu0 %v6388
  %v6390 = vpop.f32.mrb[0].mxu0
  %v6391 = vadd.f32 %v6194, %v6390
  %v6392 = vpop.f32.mrb[0].mxu0
  %6393 = vmatprep.mubr.f32.mxu0 0.0
  %v6394 = vand.u32 %v6045, 4294901760
  %6395 = vmatmul.mubr.f32.gmra.mrb[0].mxu0 %v6394
  %v6396 = vpop.f32.mrb[0].mxu0
  %v6397 = vadd.f32 %v6204, %v6396
  %v6398 = vpop.f32.mrb[0].mxu0
  %6399 = vdwg.mxu0
  %6400 = vmatprep.subr.mxu0 0.0
  %v6401 = vand.u32 %v29, 4294901760
  %v6402 = vsub.f32 %v29, %v6401
  %6403 = vmatpush1.msra.mxu0 %v6402
  %6404 = vmatprep.subr.mxu0 0.0
  %v6405 = vand.u32 %v30, 4294901760
  %v6406 = vsub.f32 %v30, %v6405
  %6407 = vmatpush1.msra.mxu0 %v6406
  %6408 = vmatprep.subr.mxu0 0.0
  %v6409 = vand.u32 %v31, 4294901760
  %v6410 = vsub.f32 %v31, %v6409
  %6411 = vmatpush1.msra.mxu0 %v6410
  %6412 = vmatprep.subr.mxu0 0.0
  %v6413 = vand.u32 %v32, 4294901760
  %v6414 = vsub.f32 %v32, %v6413
  %6415 = vmatpush1.msra.mxu0 %v6414
  %6416 = vmatprep.subr.mxu0 0.0
  %v6417 = vand.u32 %v33, 4294901760
  %v6418 = vsub.f32 %v33, %v6417
  %6419 = vmatpush1.msra.mxu0 %v6418
  %6420 = vmatprep.subr.mxu0 0.0
  %v6421 = vand.u32 %v34, 4294901760
  %v6422 = vsub.f32 %v34, %v6421
  %6423 = vmatpush1.msra.mxu0 %v6422
  %6424 = vmatprep.subr.mxu0 0.0
  %v6425 = vand.u32 %v35, 4294901760
  %v6426 = vsub.f32 %v35, %v6425
  %6427 = vmatpush1.msra.mxu0 %v6426
  %6428 = vmatprep.subr.mxu0 0.0
  %v6429 = vand.u32 %v36, 4294901760
  %v6430 = vsub.f32 %v36, %v6429
  %6431 = vmatpush1.msra.mxu0 %v6430
  %6432 = vmatprep.subr.mxu0 0.0
  %v6433 = vand.u32 %v37, 4294901760
  %v6434 = vsub.f32 %v37, %v6433
  %6435 = vmatpush1.msra.mxu0 %v6434
  %6436 = vmatprep.subr.mxu0 0.0
  %v6437 = vand.u32 %v38, 4294901760
  %v6438 = vsub.f32 %v38, %v6437
  %6439 = vmatpush1.msra.mxu0 %v6438
  %6440 = vmatprep.subr.mxu0 0.0
  %v6441 = vand.u32 %v39, 4294901760
  %v6442 = vsub.f32 %v39, %v6441
  %6443 = vmatpush1.msra.mxu0 %v6442
  %6444 = vmatprep.subr.mxu0 0.0
  %v6445 = vand.u32 %v40, 4294901760
  %v6446 = vsub.f32 %v40, %v6445
  %6447 = vmatpush1.msra.mxu0 %v6446
  %6448 = vmatprep.subr.mxu0 0.0
  %v6449 = vand.u32 %v41, 4294901760
  %v6450 = vsub.f32 %v41, %v6449
  %6451 = vmatpush1.msra.mxu0 %v6450
  %6452 = vmatprep.subr.mxu0 0.0
  %v6453 = vand.u32 %v42, 4294901760
  %v6454 = vsub.f32 %v42, %v6453
  %6455 = vmatpush1.msra.mxu0 %v6454
  %6456 = vmatprep.subr.mxu0 0.0
  %v6457 = vand.u32 %v43, 4294901760
  %v6458 = vsub.f32 %v43, %v6457
  %6459 = vmatpush1.msra.mxu0 %v6458
  %6460 = vmatprep.subr.mxu0 0.0
  %v6461 = vand.u32 %v44, 4294901760
  %v6462 = vsub.f32 %v44, %v6461
  %6463 = vmatpush1.msra.mxu0 %v6462
  %6464 = vmatprep.subr.mxu0 0.0
  %6465 = vmatpush1.msra.mxu0 0.0
  %6466 = vmatprep.subr.mxu0 0.0
  %6467 = vmatpush1.msra.mxu0 0.0
  %6468 = vmatprep.subr.mxu0 0.0
  %6469 = vmatpush1.msra.mxu0 0.0
  %6470 = vmatprep.subr.mxu0 0.0
  %6471 = vmatpush1.msra.mxu0 0.0
  %6472 = vmatprep.subr.mxu0 0.0
  %6473 = vmatpush1.msra.mxu0 0.0
  %6474 = vmatprep.subr.mxu0 0.0
  %6475 = vmatpush1.msra.mxu0 0.0
  %6476 = vmatprep.subr.mxu0 0.0
  %6477 = vmatpush1.msra.mxu0 0.0
  %6478 = vmatprep.subr.mxu0 0.0
  %6479 = vmatpush1.msra.mxu0 0.0
  %6480 = vmatprep.subr.mxu0 0.0
  %6481 = vmatpush1.msra.mxu0 0.0
  %6482 = vmatprep.subr.mxu0 0.0
  %6483 = vmatpush1.msra.mxu0 0.0
  %6484 = vmatprep.subr.mxu0 0.0
  %6485 = vmatpush1.msra.mxu0 0.0
  %6486 = vmatprep.subr.mxu0 0.0
  %6487 = vmatpush1.msra.mxu0 0.0
  %6488 = vmatprep.subr.mxu0 0.0
  %6489 = vmatpush1.msra.mxu0 0.0
  %6490 = vmatprep.subr.mxu0 0.0
  %6491 = vmatpush1.msra.mxu0 0.0
  %6492 = vmatprep.subr.mxu0 0.0
  %6493 = vmatpush1.msra.mxu0 0.0
  %6494 = vmatprep.subr.mxu0 0.0
  %6495 = vmatpush1.msra.mxu0 0.0
  %6496 = vmatprep.mubr.f32.mxu0 0.0
  %v6497 = vand.u32 %v1474, 4294901760
  %v6498 = vsub.f32 %v1474, %v6497
  %6499 = vmatmul.mubr.f32.gmra.mrb[0].mxu0 %v6498
  %v6500 = vpop.f32.mrb[0].mxu0
  %v6501 = vadd.f32 %v6355, %v6500
  %v6502 = vpop.f32.mrb[0].mxu0
  %6503 = vmatprep.mubr.f32.mxu0 0.0
  %v6504 = vand.u32 %v2127, 4294901760
  %v6505 = vsub.f32 %v2127, %v6504
  %6506 = vmatmul.mubr.f32.gmra.mrb[0].mxu0 %v6505
  %v6507 = vpop.f32.mrb[0].mxu0
  %v6508 = vadd.f32 %v6361, %v6507
  %v6509 = vpop.f32.mrb[0].mxu0
  %6510 = vmatprep.mubr.f32.mxu0 0.0
  %v6511 = vand.u32 %v2780, 4294901760
  %v6512 = vsub.f32 %v2780, %v6511
  %6513 = vmatmul.mubr.f32.gmra.mrb[0].mxu0 %v6512
  %v6514 = vpop.f32.mrb[0].mxu0
  %v6515 = vadd.f32 %v6367, %v6514
  %v6516 = vpop.f32.mrb[0].mxu0
  %6517 = vmatprep.mubr.f32.mxu0 0.0
  %v6518 = vand.u32 %v3433, 4294901760
  %v6519 = vsub.f32 %v3433, %v6518
  %6520 = vmatmul.mubr.f32.gmra.mrb[0].mxu0 %v6519
  %v6521 = vpop.f32.mrb[0].mxu0
  %v6522 = vadd.f32 %v6373, %v6521
  %v6523 = vpop.f32.mrb[0].mxu0
  %6524 = vmatprep.mubr.f32.mxu0 0.0
  %v6525 = vand.u32 %v4086, 4294901760
  %v6526 = vsub.f32 %v4086, %v6525
  %6527 = vmatmul.mubr.f32.gmra.mrb[0].mxu0 %v6526
  %v6528 = vpop.f32.mrb[0].mxu0
  %v6529 = vadd.f32 %v6379, %v6528
  %v6530 = vpop.f32.mrb[0].mxu0
  %6531 = vmatprep.mubr.f32.mxu0 0.0
  %v6532 = vand.u32 %v4739, 4294901760
  %v6533 = vsub.f32 %v4739, %v6532
  %6534 = vmatmul.mubr.f32.gmra.mrb[0].mxu0 %v6533
  %v6535 = vpop.f32.mrb[0].mxu0
  %v6536 = vadd.f32 %v6385, %v6535
  %v6537 = vpop.f32.mrb[0].mxu0
  %6538 = vmatprep.mubr.f32.mxu0 0.0
  %v6539 = vand.u32 %v5392, 4294901760
  %v6540 = vsub.f32 %v5392, %v6539
  %6541 = vmatmul.mubr.f32.gmra.mrb[0].mxu0 %v6540
  %v6542 = vpop.f32.mrb[0].mxu0
  %v6543 = vadd.f32 %v6391, %v6542
  %v6544 = vpop.f32.mrb[0].mxu0
  %6545 = vmatprep.mubr.f32.mxu0 0.0
  %v6546 = vand.u32 %v6045, 4294901760
  %v6547 = vsub.f32 %v6045, %v6546
  %6548 = vmatmul.mubr.f32.gmra.mrb[0].mxu0 %v6547
  %v6549 = vpop.f32.mrb[0].mxu0
  %v6550 = vadd.f32 %v6397, %v6549
  %v6551 = vpop.f32.mrb[0].mxu0
  %6552 = vdwg.mxu0
  %6553 = vmatprep.subr.mxu0 0.0
  %v6554 = vand.u32 %v29, 4294901760
  %6555 = vmatpush1.msra.mxu0 %v6554
  %6556 = vmatprep.subr.mxu0 0.0
  %v6557 = vand.u32 %v30, 4294901760
  %6558 = vmatpush1.msra.mxu0 %v6557
  %6559 = vmatprep.subr.mxu0 0.0
  %v6560 = vand.u32 %v31, 4294901760
  %6561 = vmatpush1.msra.mxu0 %v6560
  %6562 = vmatprep.subr.mxu0 0.0
  %v6563 = vand.u32 %v32, 4294901760
  %6564 = vmatpush1.msra.mxu0 %v6563
  %6565 = vmatprep.subr.mxu0 0.0
  %v6566 = vand.u32 %v33, 4294901760
  %6567 = vmatpush1.msra.mxu0 %v6566
  %6568 = vmatprep.subr.mxu0 0.0
  %v6569 = vand.u32 %v34, 4294901760
  %6570 = vmatpush1.msra.mxu0 %v6569
  %6571 = vmatprep.subr.mxu0 0.0
  %v6572 = vand.u32 %v35, 4294901760
  %6573 = vmatpush1.msra.mxu0 %v6572
  %6574 = vmatprep.subr.mxu0 0.0
  %v6575 = vand.u32 %v36, 4294901760
  %6576 = vmatpush1.msra.mxu0 %v6575
  %6577 = vmatprep.subr.mxu0 0.0
  %v6578 = vand.u32 %v37, 4294901760
  %6579 = vmatpush1.msra.mxu0 %v6578
  %6580 = vmatprep.subr.mxu0 0.0
  %v6581 = vand.u32 %v38, 4294901760
  %6582 = vmatpush1.msra.mxu0 %v6581
  %6583 = vmatprep.subr.mxu0 0.0
  %v6584 = vand.u32 %v39, 4294901760
  %6585 = vmatpush1.msra.mxu0 %v6584
  %6586 = vmatprep.subr.mxu0 0.0
  %v6587 = vand.u32 %v40, 4294901760
  %6588 = vmatpush1.msra.mxu0 %v6587
  %6589 = vmatprep.subr.mxu0 0.0
  %v6590 = vand.u32 %v41, 4294901760
  %6591 = vmatpush1.msra.mxu0 %v6590
  %6592 = vmatprep.subr.mxu0 0.0
  %v6593 = vand.u32 %v42, 4294901760
  %6594 = vmatpush1.msra.mxu0 %v6593
  %6595 = vmatprep.subr.mxu0 0.0
  %v6596 = vand.u32 %v43, 4294901760
  %6597 = vmatpush1.msra.mxu0 %v6596
  %6598 = vmatprep.subr.mxu0 0.0
  %v6599 = vand.u32 %v44, 4294901760
  %6600 = vmatpush1.msra.mxu0 %v6599
  %6601 = vmatprep.subr.mxu0 0.0
  %6602 = vmatpush1.msra.mxu0 0.0
  %6603 = vmatprep.subr.mxu0 0.0
  %6604 = vmatpush1.msra.mxu0 0.0
  %6605 = vmatprep.subr.mxu0 0.0
  %6606 = vmatpush1.msra.mxu0 0.0
  %6607 = vmatprep.subr.mxu0 0.0
  %6608 = vmatpush1.msra.mxu0 0.0
  %6609 = vmatprep.subr.mxu0 0.0
  %6610 = vmatpush1.msra.mxu0 0.0
  %6611 = vmatprep.subr.mxu0 0.0
  %6612 = vmatpush1.msra.mxu0 0.0
  %6613 = vmatprep.subr.mxu0 0.0
  %6614 = vmatpush1.msra.mxu0 0.0
  %6615 = vmatprep.subr.mxu0 0.0
  %6616 = vmatpush1.msra.mxu0 0.0
  %6617 = vmatprep.subr.mxu0 0.0
  %6618 = vmatpush1.msra.mxu0 0.0
  %6619 = vmatprep.subr.mxu0 0.0
  %6620 = vmatpush1.msra.mxu0 0.0
  %6621 = vmatprep.subr.mxu0 0.0
  %6622 = vmatpush1.msra.mxu0 0.0
  %6623 = vmatprep.subr.mxu0 0.0
  %6624 = vmatpush1.msra.mxu0 0.0
  %6625 = vmatprep.subr.mxu0 0.0
  %6626 = vmatpush1.msra.mxu0 0.0
  %6627 = vmatprep.subr.mxu0 0.0
  %6628 = vmatpush1.msra.mxu0 0.0
  %6629 = vmatprep.subr.mxu0 0.0
  %6630 = vmatpush1.msra.mxu0 0.0
  %6631 = vmatprep.subr.mxu0 0.0
  %6632 = vmatpush1.msra.mxu0 0.0
  %6633 = vmatprep.mubr.f32.mxu0 0.0
  %v6634 = vand.u32 %v1474, 4294901760
  %v6635 = vsub.f32 %v1474, %v6634
  %v6636 = vand.u32 %v6635, 4294901760
  %6637 = vmatmul.mubr.f32.gmra.mrb[0].mxu0 %v6636
  %v6638 = vpop.f32.mrb[0].mxu0
  %v6639 = vadd.f32 %v6501, %v6638
  %v6640 = vpop.f32.mrb[0].mxu0
  %6641 = vmatprep.mubr.f32.mxu0 0.0
  %v6642 = vand.u32 %v2127, 4294901760
  %v6643 = vsub.f32 %v2127, %v6642
  %v6644 = vand.u32 %v6643, 4294901760
  %6645 = vmatmul.mubr.f32.gmra.mrb[0].mxu0 %v6644
  %v6646 = vpop.f32.mrb[0].mxu0
  %v6647 = vadd.f32 %v6508, %v6646
  %v6648 = vpop.f32.mrb[0].mxu0
  %6649 = vmatprep.mubr.f32.mxu0 0.0
  %v6650 = vand.u32 %v2780, 4294901760
  %v6651 = vsub.f32 %v2780, %v6650
  %v6652 = vand.u32 %v6651, 4294901760
  %6653 = vmatmul.mubr.f32.gmra.mrb[0].mxu0 %v6652
  %v6654 = vpop.f32.mrb[0].mxu0
  %v6655 = vadd.f32 %v6515, %v6654
  %v6656 = vpop.f32.mrb[0].mxu0
  %6657 = vmatprep.mubr.f32.mxu0 0.0
  %v6658 = vand.u32 %v3433, 4294901760
  %v6659 = vsub.f32 %v3433, %v6658
  %v6660 = vand.u32 %v6659, 4294901760
  %6661 = vmatmul.mubr.f32.gmra.mrb[0].mxu0 %v6660
  %v6662 = vpop.f32.mrb[0].mxu0
  %v6663 = vadd.f32 %v6522, %v6662
  %v6664 = vpop.f32.mrb[0].mxu0
  %6665 = vmatprep.mubr.f32.mxu0 0.0
  %v6666 = vand.u32 %v4086, 4294901760
  %v6667 = vsub.f32 %v4086, %v6666
  %v6668 = vand.u32 %v6667, 4294901760
  %6669 = vmatmul.mubr.f32.gmra.mrb[0].mxu0 %v6668
  %v6670 = vpop.f32.mrb[0].mxu0
  %v6671 = vadd.f32 %v6529, %v6670
  %v6672 = vpop.f32.mrb[0].mxu0
  %6673 = vmatprep.mubr.f32.mxu0 0.0
  %v6674 = vand.u32 %v4739, 4294901760
  %v6675 = vsub.f32 %v4739, %v6674
  %v6676 = vand.u32 %v6675, 4294901760
  %6677 = vmatmul.mubr.f32.gmra.mrb[0].mxu0 %v6676
  %v6678 = vpop.f32.mrb[0].mxu0
  %v6679 = vadd.f32 %v6536, %v6678
  %v6680 = vpop.f32.mrb[0].mxu0
  %6681 = vmatprep.mubr.f32.mxu0 0.0
  %v6682 = vand.u32 %v5392, 4294901760
  %v6683 = vsub.f32 %v5392, %v6682
  %v6684 = vand.u32 %v6683, 4294901760
  %6685 = vmatmul.mubr.f32.gmra.mrb[0].mxu0 %v6684
  %v6686 = vpop.f32.mrb[0].mxu0
  %v6687 = vadd.f32 %v6543, %v6686
  %v6688 = vpop.f32.mrb[0].mxu0
  %6689 = vmatprep.mubr.f32.mxu0 0.0
  %v6690 = vand.u32 %v6045, 4294901760
  %v6691 = vsub.f32 %v6045, %v6690
  %v6692 = vand.u32 %v6691, 4294901760
  %6693 = vmatmul.mubr.f32.gmra.mrb[0].mxu0 %v6692
  %v6694 = vpop.f32.mrb[0].mxu0
  %v6695 = vadd.f32 %v6550, %v6694
  %v6696 = vpop.f32.mrb[0].mxu0
  %6697 = vdwg.mxu0
  %6698 = vmatprep.subr.mxu0 0.0
  %v6699 = vand.u32 %v29, 4294901760
  %v6700 = vsub.f32 %v29, %v6699
  %v6701 = vand.u32 %v6700, 4294901760
  %6702 = vmatpush1.msra.mxu0 %v6701
  %6703 = vmatprep.subr.mxu0 0.0
  %v6704 = vand.u32 %v30, 4294901760
  %v6705 = vsub.f32 %v30, %v6704
  %v6706 = vand.u32 %v6705, 4294901760
  %6707 = vmatpush1.msra.mxu0 %v6706
  %6708 = vmatprep.subr.mxu0 0.0
  %v6709 = vand.u32 %v31, 4294901760
  %v6710 = vsub.f32 %v31, %v6709
  %v6711 = vand.u32 %v6710, 4294901760
  %6712 = vmatpush1.msra.mxu0 %v6711
  %6713 = vmatprep.subr.mxu0 0.0
  %v6714 = vand.u32 %v32, 4294901760
  %v6715 = vsub.f32 %v32, %v6714
  %v6716 = vand.u32 %v6715, 4294901760
  %6717 = vmatpush1.msra.mxu0 %v6716
  %6718 = vmatprep.subr.mxu0 0.0
  %v6719 = vand.u32 %v33, 4294901760
  %v6720 = vsub.f32 %v33, %v6719
  %v6721 = vand.u32 %v6720, 4294901760
  %6722 = vmatpush1.msra.mxu0 %v6721
  %6723 = vmatprep.subr.mxu0 0.0
  %v6724 = vand.u32 %v34, 4294901760
  %v6725 = vsub.f32 %v34, %v6724
  %v6726 = vand.u32 %v6725, 4294901760
  %6727 = vmatpush1.msra.mxu0 %v6726
  %6728 = vmatprep.subr.mxu0 0.0
  %v6729 = vand.u32 %v35, 4294901760
  %v6730 = vsub.f32 %v35, %v6729
  %v6731 = vand.u32 %v6730, 4294901760
  %6732 = vmatpush1.msra.mxu0 %v6731
  %6733 = vmatprep.subr.mxu0 0.0
  %v6734 = vand.u32 %v36, 4294901760
  %v6735 = vsub.f32 %v36, %v6734
  %v6736 = vand.u32 %v6735, 4294901760
  %6737 = vmatpush1.msra.mxu0 %v6736
  %6738 = vmatprep.subr.mxu0 0.0
  %v6739 = vand.u32 %v37, 4294901760
  %v6740 = vsub.f32 %v37, %v6739
  %v6741 = vand.u32 %v6740, 4294901760
  %6742 = vmatpush1.msra.mxu0 %v6741
  %6743 = vmatprep.subr.mxu0 0.0
  %v6744 = vand.u32 %v38, 4294901760
  %v6745 = vsub.f32 %v38, %v6744
  %v6746 = vand.u32 %v6745, 4294901760
  %6747 = vmatpush1.msra.mxu0 %v6746
  %6748 = vmatprep.subr.mxu0 0.0
  %v6749 = vand.u32 %v39, 4294901760
  %v6750 = vsub.f32 %v39, %v6749
  %v6751 = vand.u32 %v6750, 4294901760
  %6752 = vmatpush1.msra.mxu0 %v6751
  %6753 = vmatprep.subr.mxu0 0.0
  %v6754 = vand.u32 %v40, 4294901760
  %v6755 = vsub.f32 %v40, %v6754
  %v6756 = vand.u32 %v6755, 4294901760
  %6757 = vmatpush1.msra.mxu0 %v6756
  %6758 = vmatprep.subr.mxu0 0.0
  %v6759 = vand.u32 %v41, 4294901760
  %v6760 = vsub.f32 %v41, %v6759
  %v6761 = vand.u32 %v6760, 4294901760
  %6762 = vmatpush1.msra.mxu0 %v6761
  %6763 = vmatprep.subr.mxu0 0.0
  %v6764 = vand.u32 %v42, 4294901760
  %v6765 = vsub.f32 %v42, %v6764
  %v6766 = vand.u32 %v6765, 4294901760
  %6767 = vmatpush1.msra.mxu0 %v6766
  %6768 = vmatprep.subr.mxu0 0.0
  %v6769 = vand.u32 %v43, 4294901760
  %v6770 = vsub.f32 %v43, %v6769
  %v6771 = vand.u32 %v6770, 4294901760
  %6772 = vmatpush1.msra.mxu0 %v6771
  %6773 = vmatprep.subr.mxu0 0.0
  %v6774 = vand.u32 %v44, 4294901760
  %v6775 = vsub.f32 %v44, %v6774
  %v6776 = vand.u32 %v6775, 4294901760
  %6777 = vmatpush1.msra.mxu0 %v6776
  %6778 = vmatprep.subr.mxu0 0.0
  %6779 = vmatpush1.msra.mxu0 0.0
  %6780 = vmatprep.subr.mxu0 0.0
  %6781 = vmatpush1.msra.mxu0 0.0
  %6782 = vmatprep.subr.mxu0 0.0
  %6783 = vmatpush1.msra.mxu0 0.0
  %6784 = vmatprep.subr.mxu0 0.0
  %6785 = vmatpush1.msra.mxu0 0.0
  %6786 = vmatprep.subr.mxu0 0.0
  %6787 = vmatpush1.msra.mxu0 0.0
  %6788 = vmatprep.subr.mxu0 0.0
  %6789 = vmatpush1.msra.mxu0 0.0
  %6790 = vmatprep.subr.mxu0 0.0
  %6791 = vmatpush1.msra.mxu0 0.0
  %6792 = vmatprep.subr.mxu0 0.0
  %6793 = vmatpush1.msra.mxu0 0.0
  %6794 = vmatprep.subr.mxu0 0.0
  %6795 = vmatpush1.msra.mxu0 0.0
  %6796 = vmatprep.subr.mxu0 0.0
  %6797 = vmatpush1.msra.mxu0 0.0
  %6798 = vmatprep.subr.mxu0 0.0
  %6799 = vmatpush1.msra.mxu0 0.0
  %6800 = vmatprep.subr.mxu0 0.0
  %6801 = vmatpush1.msra.mxu0 0.0
  %6802 = vmatprep.subr.mxu0 0.0
  %6803 = vmatpush1.msra.mxu0 0.0
  %6804 = vmatprep.subr.mxu0 0.0
  %6805 = vmatpush1.msra.mxu0 0.0
  %6806 = vmatprep.subr.mxu0 0.0
  %6807 = vmatpush1.msra.mxu0 0.0
  %6808 = vmatprep.subr.mxu0 0.0
  %6809 = vmatpush1.msra.mxu0 0.0
  %6810 = vmatprep.mubr.f32.mxu0 0.0
  %v6811 = vand.u32 %v1474, 4294901760
  %6812 = vmatmul.mubr.f32.gmra.mrb[0].mxu0 %v6811
  %v6813 = vpop.f32.mrb[0].mxu0
  %v6814 = vadd.f32 %v6639, %v6813
  %v6815 = vpop.f32.mrb[0].mxu0
  %6816 = vmatprep.mubr.f32.mxu0 0.0
  %v6817 = vand.u32 %v2127, 4294901760
  %6818 = vmatmul.mubr.f32.gmra.mrb[0].mxu0 %v6817
  %v6819 = vpop.f32.mrb[0].mxu0
  %v6820 = vadd.f32 %v6647, %v6819
  %v6821 = vpop.f32.mrb[0].mxu0
  %6822 = vmatprep.mubr.f32.mxu0 0.0
  %v6823 = vand.u32 %v2780, 4294901760
  %6824 = vmatmul.mubr.f32.gmra.mrb[0].mxu0 %v6823
  %v6825 = vpop.f32.mrb[0].mxu0
  %v6826 = vadd.f32 %v6655, %v6825
  %v6827 = vpop.f32.mrb[0].mxu0
  %6828 = vmatprep.mubr.f32.mxu0 0.0
  %v6829 = vand.u32 %v3433, 4294901760
  %6830 = vmatmul.mubr.f32.gmra.mrb[0].mxu0 %v6829
  %v6831 = vpop.f32.mrb[0].mxu0
  %v6832 = vadd.f32 %v6663, %v6831
  %v6833 = vpop.f32.mrb[0].mxu0
  %6834 = vmatprep.mubr.f32.mxu0 0.0
  %v6835 = vand.u32 %v4086, 4294901760
  %6836 = vmatmul.mubr.f32.gmra.mrb[0].mxu0 %v6835
  %v6837 = vpop.f32.mrb[0].mxu0
  %v6838 = vadd.f32 %v6671, %v6837
  %v6839 = vpop.f32.mrb[0].mxu0
  %6840 = vmatprep.mubr.f32.mxu0 0.0
  %v6841 = vand.u32 %v4739, 4294901760
  %6842 = vmatmul.mubr.f32.gmra.mrb[0].mxu0 %v6841
  %v6843 = vpop.f32.mrb[0].mxu0
  %v6844 = vadd.f32 %v6679, %v6843
  %v6845 = vpop.f32.mrb[0].mxu0
  %6846 = vmatprep.mubr.f32.mxu0 0.0
  %v6847 = vand.u32 %v5392, 4294901760
  %6848 = vmatmul.mubr.f32.gmra.mrb[0].mxu0 %v6847
  %v6849 = vpop.f32.mrb[0].mxu0
  %v6850 = vadd.f32 %v6687, %v6849
  %v6851 = vpop.f32.mrb[0].mxu0
  %6852 = vmatprep.mubr.f32.mxu0 0.0
  %v6853 = vand.u32 %v6045, 4294901760
  %6854 = vmatmul.mubr.f32.gmra.mrb[0].mxu0 %v6853
  %v6855 = vpop.f32.mrb[0].mxu0
  %v6856 = vadd.f32 %v6695, %v6855
  %v6857 = vpop.f32.mrb[0].mxu0
  %6858 = vdwg.mxu0
  %6859 = vmatprep.subr.mxu0 0.0
  %v6860 = vand.u32 %v29, 4294901760
  %6861 = vmatpush1.msra.mxu0 %v6860
  %6862 = vmatprep.subr.mxu0 0.0
  %v6863 = vand.u32 %v30, 4294901760
  %6864 = vmatpush1.msra.mxu0 %v6863
  %6865 = vmatprep.subr.mxu0 0.0
  %v6866 = vand.u32 %v31, 4294901760
  %6867 = vmatpush1.msra.mxu0 %v6866
  %6868 = vmatprep.subr.mxu0 0.0
  %v6869 = vand.u32 %v32, 4294901760
  %6870 = vmatpush1.msra.mxu0 %v6869
  %6871 = vmatprep.subr.mxu0 0.0
  %v6872 = vand.u32 %v33, 4294901760
  %6873 = vmatpush1.msra.mxu0 %v6872
  %6874 = vmatprep.subr.mxu0 0.0
  %v6875 = vand.u32 %v34, 4294901760
  %6876 = vmatpush1.msra.mxu0 %v6875
  %6877 = vmatprep.subr.mxu0 0.0
  %v6878 = vand.u32 %v35, 4294901760
  %6879 = vmatpush1.msra.mxu0 %v6878
  %6880 = vmatprep.subr.mxu0 0.0
  %v6881 = vand.u32 %v36, 4294901760
  %6882 = vmatpush1.msra.mxu0 %v6881
  %6883 = vmatprep.subr.mxu0 0.0
  %v6884 = vand.u32 %v37, 4294901760
  %6885 = vmatpush1.msra.mxu0 %v6884
  %6886 = vmatprep.subr.mxu0 0.0
  %v6887 = vand.u32 %v38, 4294901760
  %6888 = vmatpush1.msra.mxu0 %v6887
  %6889 = vmatprep.subr.mxu0 0.0
  %v6890 = vand.u32 %v39, 4294901760
  %6891 = vmatpush1.msra.mxu0 %v6890
  %6892 = vmatprep.subr.mxu0 0.0
  %v6893 = vand.u32 %v40, 4294901760
  %6894 = vmatpush1.msra.mxu0 %v6893
  %6895 = vmatprep.subr.mxu0 0.0
  %v6896 = vand.u32 %v41, 4294901760
  %6897 = vmatpush1.msra.mxu0 %v6896
  %6898 = vmatprep.subr.mxu0 0.0
  %v6899 = vand.u32 %v42, 4294901760
  %6900 = vmatpush1.msra.mxu0 %v6899
  %6901 = vmatprep.subr.mxu0 0.0
  %v6902 = vand.u32 %v43, 4294901760
  %6903 = vmatpush1.msra.mxu0 %v6902
  %6904 = vmatprep.subr.mxu0 0.0
  %v6905 = vand.u32 %v44, 4294901760
  %6906 = vmatpush1.msra.mxu0 %v6905
  %6907 = vmatprep.subr.mxu0 0.0
  %6908 = vmatpush1.msra.mxu0 0.0
  %6909 = vmatprep.subr.mxu0 0.0
  %6910 = vmatpush1.msra.mxu0 0.0
  %6911 = vmatprep.subr.mxu0 0.0
  %6912 = vmatpush1.msra.mxu0 0.0
  %6913 = vmatprep.subr.mxu0 0.0
  %6914 = vmatpush1.msra.mxu0 0.0
  %6915 = vmatprep.subr.mxu0 0.0
  %6916 = vmatpush1.msra.mxu0 0.0
  %6917 = vmatprep.subr.mxu0 0.0
  %6918 = vmatpush1.msra.mxu0 0.0
  %6919 = vmatprep.subr.mxu0 0.0
  %6920 = vmatpush1.msra.mxu0 0.0
  %6921 = vmatprep.subr.mxu0 0.0
  %6922 = vmatpush1.msra.mxu0 0.0
  %6923 = vmatprep.subr.mxu0 0.0
  %6924 = vmatpush1.msra.mxu0 0.0
  %6925 = vmatprep.subr.mxu0 0.0
  %6926 = vmatpush1.msra.mxu0 0.0
  %6927 = vmatprep.subr.mxu0 0.0
  %6928 = vmatpush1.msra.mxu0 0.0
  %6929 = vmatprep.subr.mxu0 0.0
  %6930 = vmatpush1.msra.mxu0 0.0
  %6931 = vmatprep.subr.mxu0 0.0
  %6932 = vmatpush1.msra.mxu0 0.0
  %6933 = vmatprep.subr.mxu0 0.0
  %6934 = vmatpush1.msra.mxu0 0.0
  %6935 = vmatprep.subr.mxu0 0.0
  %6936 = vmatpush1.msra.mxu0 0.0
  %6937 = vmatprep.subr.mxu0 0.0
  %6938 = vmatpush1.msra.mxu0 0.0
  %6939 = vmatprep.mubr.f32.mxu0 0.0
  %v6940 = vand.u32 %v1474, 4294901760
  %6941 = vmatmul.mubr.f32.gmra.mrb[0].mxu0 %v6940
  %v6942 = vpop.f32.mrb[0].mxu0
  %v6943 = vadd.f32 %v6814, %v6942
  %v6944 = vpop.f32.mrb[0].mxu0
  %6945 = vmatprep.mubr.f32.mxu0 0.0
  %v6946 = vand.u32 %v2127, 4294901760
  %6947 = vmatmul.mubr.f32.gmra.mrb[0].mxu0 %v6946
  %v6948 = vpop.f32.mrb[0].mxu0
  %v6949 = vadd.f32 %v6820, %v6948
  %v6950 = vpop.f32.mrb[0].mxu0
  %6951 = vmatprep.mubr.f32.mxu0 0.0
  %v6952 = vand.u32 %v2780, 4294901760
  %6953 = vmatmul.mubr.f32.gmra.mrb[0].mxu0 %v6952
  %v6954 = vpop.f32.mrb[0].mxu0
  %v6955 = vadd.f32 %v6826, %v6954
  %v6956 = vpop.f32.mrb[0].mxu0
  %6957 = vmatprep.mubr.f32.mxu0 0.0
  %v6958 = vand.u32 %v3433, 4294901760
  %6959 = vmatmul.mubr.f32.gmra.mrb[0].mxu0 %v6958
  %v6960 = vpop.f32.mrb[0].mxu0
  %v6961 = vadd.f32 %v6832, %v6960
  %v6962 = vpop.f32.mrb[0].mxu0
  %6963 = vmatprep.mubr.f32.mxu0 0.0
  %v6964 = vand.u32 %v4086, 4294901760
  %6965 = vmatmul.mubr.f32.gmra.mrb[0].mxu0 %v6964
  %v6966 = vpop.f32.mrb[0].mxu0
  %v6967 = vadd.f32 %v6838, %v6966
  %v6968 = vpop.f32.mrb[0].mxu0
  %6969 = vmatprep.mubr.f32.mxu0 0.0
  %v6970 = vand.u32 %v4739, 4294901760
  %6971 = vmatmul.mubr.f32.gmra.mrb[0].mxu0 %v6970
  %v6972 = vpop.f32.mrb[0].mxu0
  %v6973 = vadd.f32 %v6844, %v6972
  %v6974 = vpop.f32.mrb[0].mxu0
  %6975 = vmatprep.mubr.f32.mxu0 0.0
  %v6976 = vand.u32 %v5392, 4294901760
  %6977 = vmatmul.mubr.f32.gmra.mrb[0].mxu0 %v6976
  %v6978 = vpop.f32.mrb[0].mxu0
  %v6979 = vadd.f32 %v6850, %v6978
  %v6980 = vpop.f32.mrb[0].mxu0
  %6981 = vmatprep.mubr.f32.mxu0 0.0
  %v6982 = vand.u32 %v6045, 4294901760
  %6983 = vmatmul.mubr.f32.gmra.mrb[0].mxu0 %v6982
  %v6984 = vpop.f32.mrb[0].mxu0
  %v6985 = vadd.f32 %v6856, %v6984
  %v6986 = vpop.f32.mrb[0].mxu0
  %6987 = vdwg.mxu0
  %v6988 = vadd.f32 %v6943, 0.0
  %v6989 = vsub.f32 %v6988, %v1467
  %vm6990 = vcmp.gt.f32.partialorder %v6989, 1.0
  %v6991 = vsel %vm6990, 1, 0
  %v6992 = vcvt.s32.f32 %v6991
  %v6993 = vsel %vm6990, 1.0, 0.0
  %v6994 = vmul.f32 %v6989, 0.9
  %v6995 = vadd.f32 %v6994, %v6949
  %v6996 = vsub.f32 %v6995, %v6993
  %vm6997 = vcmp.gt.f32.partialorder %v6996, 1.0
  %v6998 = vsel %vm6997, 1, 0
  %v6999 = vcvt.s32.f32 %v6998
  %v7000 = vsel %vm6997, 1.0, 0.0
  %v7001 = vmul.f32 %v6996, 0.9
  %v7002 = vadd.f32 %v7001, %v6955
  %v7003 = vsub.f32 %v7002, %v7000
  %vm7004 = vcmp.gt.f32.partialorder %v7003, 1.0
  %v7005 = vsel %vm7004, 1, 0
  %v7006 = vcvt.s32.f32 %v7005
  %v7007 = vsel %vm7004, 1.0, 0.0
  %v7008 = vmul.f32 %v7003, 0.9
  %v7009 = vadd.f32 %v7008, %v6961
  %v7010 = vsub.f32 %v7009, %v7007
  %vm7011 = vcmp.gt.f32.partialorder %v7010, 1.0
  %v7012 = vsel %vm7011, 1, 0
  %v7013 = vcvt.s32.f32 %v7012
  %v7014 = vsel %vm7011, 1.0, 0.0
  %v7015 = vmul.f32 %v7010, 0.9
  %v7016 = vadd.f32 %v7015, %v6967
  %v7017 = vsub.f32 %v7016, %v7014
  %vm7018 = vcmp.gt.f32.partialorder %v7017, 1.0
  %v7019 = vsel %vm7018, 1, 0
  %v7020 = vcvt.s32.f32 %v7019
  %v7021 = vsel %vm7018, 1.0, 0.0
  %v7022 = vmul.f32 %v7017, 0.9
  %v7023 = vadd.f32 %v7022, %v6973
  %v7024 = vsub.f32 %v7023, %v7021
  %vm7025 = vcmp.gt.f32.partialorder %v7024, 1.0
  %v7026 = vsel %vm7025, 1, 0
  %v7027 = vcvt.s32.f32 %v7026
  %v7028 = vsel %vm7025, 1.0, 0.0
  %v7029 = vmul.f32 %v7024, 0.9
  %v7030 = vadd.f32 %v7029, %v6979
  %v7031 = vsub.f32 %v7030, %v7028
  %vm7032 = vcmp.gt.f32.partialorder %v7031, 1.0
  %v7033 = vsel %vm7032, 1, 0
  %v7034 = vcvt.s32.f32 %v7033
  %v7035 = vsel %vm7032, 1.0, 0.0
  %v7036 = vmul.f32 %v7031, 0.9
  %v7037 = vadd.f32 %v7036, %v6985
  %v7038 = vsub.f32 %v7037, %v7035
  %vm7039 = vcmp.gt.f32.partialorder %v7038, 1.0
  %v7040 = vsel %vm7039, 1, 0
  %v7041 = vcvt.s32.f32 %v7040
  %7042 = vst [vmem:[%s2] sm:$0xff] %v6992
  %7043 = vst [vmem:[%s2 + $0x8] sm:$0xff] %v6999
  %7044 = vst [vmem:[%s2 + $0x10] sm:$0xff] %v7006
  %7045 = vst [vmem:[%s2 + $0x18] sm:$0xff] %v7013
  %7046 = vst [vmem:[%s2 + $0x20] sm:$0xff] %v7020
  %7047 = vst [vmem:[%s2 + $0x28] sm:$0xff] %v7027
  %7048 = vst [vmem:[%s2 + $0x30] sm:$0xff] %v7034
  %7049 = vst [vmem:[%s2 + $0x38] sm:$0xff] %v7041
  %s7050 = scalar_lea.vmem %s2, 64
  %7051 = vst [vmem:[%s7050] sm:$0xff] %v6989
  %7052 = vst [vmem:[%s7050 + $0x8] sm:$0xff] %v6996
  %7053 = vst [vmem:[%s7050 + $0x10] sm:$0xff] %v7003
  %7054 = vst [vmem:[%s7050 + $0x18] sm:$0xff] %v7010
  %7055 = vst [vmem:[%s7050 + $0x20] sm:$0xff] %v7017
  %7056 = vst [vmem:[%s7050 + $0x28] sm:$0xff] %v7024
  %7057 = vst [vmem:[%s7050 + $0x30] sm:$0xff] %v7031
  %7058 = vst [vmem:[%s7050 + $0x38] sm:$0xff] %v7038
  // Predicated region
  $region10: #{spiking_net_forward.1} parent=0 // pred_check
    _
  $region11: #{spiking_net_forward.1} parent=0 // pred_check_branch
    %7060 = sbr.rel (0) target = $region13
  $region12: #{spiking_net_forward.1} parent=0 // pred_region
    _
  $region13: #{spiking_net_forward.1} parent=0 // pred_fallthru
    _
  // Predicated region
  $region14: #{spiking_net_forward.1} parent=0 // pred_check
    _
  $region15: #{spiking_net_forward.1} parent=0 // pred_check_branch
    %7062 = sbr.rel (0) target = $region17
  $region16: #{spiking_net_forward.1} parent=0 // pred_region
    _
  $region17: #{spiking_net_forward.1} parent=0 // pred_fallthru
    _

</llo_original>
